<compile_context>
chip_gen: v6e
topology: v6e:2x2x1
jax: 0.10.0
libtpu: 0.0.40
codegen_flags: <defaults>
</compile_context>

<pallas_src>
import functools

import jax
import jax.numpy as jnp
from jax.experimental import pallas as pl
from jax.experimental.pallas import tpu as pltpu


def _round_up(x, m):
    return ((x + m - 1) // m) * m


def _row_tiles(m, max_bm=512):
    """Row tiling: full-array block when small, else 512-row tiles (padded)."""
    if m <= max_bm:
        return m, m, 1
    bm = max_bm
    mp = _round_up(m, bm)
    return bm, mp, mp // bm


# ---------------------------------------------------------------------------
# Fused conv matmul kernel: out = post_act(pre_act(A) @ W + bias)
# plus per-channel sum / sum^2 of (A @ W + bias) for a following BatchNorm.
# Grid: (group, row-tile, k-tile).
# ---------------------------------------------------------------------------
def _fused_conv_kernel(a_ref, w_ref, bias_ref, o_ref, stat_ref, acc_ref,
                       *, pre_act, post_act, bm, m_valid, mask_rows):
    kk = pl.program_id(2)
    nk = pl.num_programs(2)

    @pl.when(kk == 0)
    def _():
        acc_ref[...] = jnp.zeros_like(acc_ref)

    a = a_ref[0]
    if pre_act == "lrelu":
        a = jnp.where(a >= 0, a, 0.2 * a)
    elif pre_act == "relu":
        a = jnp.maximum(a, jnp.zeros_like(a))
    acc_ref[...] += jnp.dot(a, w_ref[0], preferred_element_type=jnp.float32)

    @pl.when(kk == nk - 1)
    def _():
        y = acc_ref[...] + bias_ref[...]
        n = y.shape[-1]
        if mask_rows:
            rows = (jax.lax.broadcasted_iota(jnp.int32, (bm, 1), 0)
                    + pl.program_id(1) * bm)
            ys = jnp.where(rows < m_valid, y, 0.0)
        else:
            ys = y
        s1 = jnp.sum(ys, axis=0, keepdims=True)
        s2 = jnp.sum(ys * ys, axis=0, keepdims=True)
        stat_ref[0, 0] = jnp.concatenate(
            [s1, s2, jnp.zeros((6, n), jnp.float32)], axis=0)
        if post_act == "tanh":
            y = jnp.tanh(y)
        o_ref[0] = y


def fused_conv_matmul(a, w, bias, *, pre_act=None, post_act=None):
    """a: [G, M, K], w: [G, K, N], bias: [N].

    Returns (out [G, M, N] fp32, stats [2, N] fp32) where stats holds the
    per-channel sum and sum-of-squares of (a @ w + bias) over all G*M rows.
    """
    g, m, k = a.shape
    n = w.shape[2]
    bm, mp, nm = _row_tiles(m, 512)
    if mp != m:
        a = jnp.pad(a, ((0, 0), (0, mp - m), (0, 0)))
    if k > 1024 and k % 512 == 0:
        tk, nk = 512, k // 512
    else:
        tk, nk = k, 1

    a = a.astype(jnp.bfloat16)
    w = w.astype(jnp.bfloat16)
    bias2 = bias.reshape(1, n).astype(jnp.float32)

    kern = functools.partial(
        _fused_conv_kernel, pre_act=pre_act, post_act=post_act,
        bm=bm, m_valid=m, mask_rows=(mp != m))

    out, stats = pl.pallas_call(
        kern,
        out_shape=(jax.ShapeDtypeStruct((g, mp, n), jnp.float32),
                   jax.ShapeDtypeStruct((g, nm, 8, n), jnp.float32)),
        grid=(g, nm, nk),
        in_specs=[
            pl.BlockSpec((1, bm, tk), lambda gi, i, kk: (gi, i, kk)),
            pl.BlockSpec((1, tk, n), lambda gi, i, kk: (gi, kk, 0)),
            pl.BlockSpec((1, n), lambda gi, i, kk: (0, 0)),
        ],
        out_specs=(
            pl.BlockSpec((1, bm, n), lambda gi, i, kk: (gi, i, 0)),
            pl.BlockSpec((1, 1, 8, n), lambda gi, i, kk: (gi, i, 0, 0)),
        ),
        scratch_shapes=[pltpu.VMEM((bm, n), jnp.float32)],
        compiler_params=pltpu.CompilerParams(
            dimension_semantics=("parallel", "parallel", "arbitrary")),
    )(a, w, bias2)

    if mp != m:
        out = out[:, :m, :]
    stats = jnp.sum(stats[:, :, :2, :], axis=(0, 1))    # [2, N]
    return out, stats


# ---------------------------------------------------------------------------
# Lane-dense per-channel affine kernel (BatchNorm apply).
# ---------------------------------------------------------------------------
def _affine_kernel(x_ref, s_ref, t_ref, o_ref):
    o_ref[...] = x_ref[...] * s_ref[...] + t_ref[...]


def batchnorm_apply_nhwc(y, scale, shift):
    """y*scale + shift per channel, packed lane-dense as [N*H, W*C]."""
    n_, hh, ww, c = y.shape
    rows, cols = n_ * hh, ww * c
    y2 = y.reshape(rows, cols)
    s_row = jnp.tile(scale.astype(jnp.float32), ww).reshape(1, cols)
    t_row = jnp.tile(shift.astype(jnp.float32), ww).reshape(1, cols)
    bm, mp, nm = _row_tiles(rows, 512)
    if mp != rows:
        y2 = jnp.pad(y2, ((0, mp - rows), (0, 0)))
    out = pl.pallas_call(
        _affine_kernel,
        out_shape=jax.ShapeDtypeStruct((mp, cols), jnp.float32),
        grid=(nm,),
        in_specs=[
            pl.BlockSpec((bm, cols), lambda i: (i, 0)),
            pl.BlockSpec((1, cols), lambda i: (0, 0)),
            pl.BlockSpec((1, cols), lambda i: (0, 0)),
        ],
        out_specs=pl.BlockSpec((bm, cols), lambda i: (i, 0)),
        compiler_params=pltpu.CompilerParams(
            dimension_semantics=("parallel",)),
    )(y2, s_row, t_row)
    return out[:rows].reshape(n_, hh, ww, c)


def batchnorm_params(stats, count, gamma, beta, eps=1e-5):
    """Training-mode BatchNorm2d: biased batch statistics over (N, H, W)."""
    mean = stats[0] / count
    var = jnp.maximum(stats[1] / count - mean * mean, 0.0)
    scale = gamma * jax.lax.rsqrt(var + eps)
    shift = beta - mean * scale
    return scale, shift


# ---------------------------------------------------------------------------
# Conv2d(k=4, s=2, p=1) and ConvTranspose2d(k=4, s=2, p=1) wrappers.
# ---------------------------------------------------------------------------
def _im2col_s2(x, k=4, pad=1):
    """stride-2 im2col; patch columns ordered (kh, kw, ci)."""
    n_, h, w, c = x.shape
    xp = jnp.pad(x, ((0, 0), (pad, pad), (pad, pad), (0, 0)))
    ho = (h + 2 * pad - k) // 2 + 1
    wo = (w + 2 * pad - k) // 2 + 1
    taps = []
    for kh in range(k):
        for kw in range(k):
            taps.append(xp[:, kh:kh + 2 * (ho - 1) + 1:2,
                           kw:kw + 2 * (wo - 1) + 1:2, :])
    patches = jnp.stack(taps, axis=3)          # [n, ho, wo, k*k, c]
    return patches.reshape(n_ * ho * wo, k * k * c), (n_, ho, wo)


def conv_down(x, w_oihw, *, pre_act):
    """Conv2d(4,2,1, bias=False); weight in PyTorch (Co, Ci, 4, 4) layout.
    pre_act (lrelu/relu/None) is applied to the input inside the kernel."""
    co, ci = w_oihw.shape[0], w_oihw.shape[1]
    patches, (n_, ho, wo) = _im2col_s2(x.astype(jnp.bfloat16))
    wmat = jnp.transpose(w_oihw, (2, 3, 1, 0)).reshape(16 * ci, co)
    y, stats = fused_conv_matmul(
        patches[None], wmat[None], jnp.zeros((co,), jnp.float32),
        pre_act=pre_act, post_act=None)
    return y[0].reshape(n_, ho, wo, co), stats, n_ * ho * wo


def conv_up(x, w_iohw, bias=None, *, pre_act, post_act=None):
    """ConvTranspose2d(4,2,1) via 4-phase (output-parity) decomposition.
    Weight in PyTorch (Ci, Co, 4, 4) layout."""
    n_, h, w, ci = x.shape
    co = w_iohw.shape[1]
    xp = jnp.pad(x.astype(jnp.bfloat16), ((0, 0), (1, 1), (1, 1), (0, 0)))
    pats, wms = [], []
    for ey in range(2):
        for ex in range(2):
            taps = []
            for jy in range(2):
                for jx in range(2):
                    oy, ox = ey - jy + 1, ex - jx + 1
                    taps.append(xp[:, oy:oy + h, ox:ox + w, :])
            pats.append(jnp.stack(taps, axis=3).reshape(n_ * h * w, 4 * ci))
            wsub = w_iohw[:, :, (1 - ey)::2, (1 - ex)::2]       # (ci, co, 2, 2)
            wms.append(jnp.transpose(wsub, (2, 3, 0, 1)).reshape(4 * ci, co))
    a = jnp.stack(pats, axis=0)                                 # [4, M, 4*ci]
    wm = jnp.stack(wms, axis=0)                                 # [4, 4*ci, co]
    if bias is None:
        bias = jnp.zeros((co,), jnp.float32)
    y4, stats = fused_conv_matmul(a, wm, bias,
                                  pre_act=pre_act, post_act=post_act)
    y4 = y4.reshape(2, 2, n_, h, w, co)                         # (ey, ex, n, h, w, c)
    y = jnp.transpose(y4, (2, 3, 0, 4, 1, 5)).reshape(n_, 2 * h, 2 * w, co)
    return y, stats, n_ * 2 * h * 2 * w


# ---------------------------------------------------------------------------
# U-Net structure (parameters mirror the PyTorch module).
# ---------------------------------------------------------------------------
def make_block(key, outer_nc, inner_nc, input_nc=None, submodule=None,
               outermost=False, innermost=False):
    # norm_layer = BatchNorm2d -> use_bias = False for downconv / inner upconvs
    if input_nc is None:
        input_nc = outer_nc
    k1, k2, k3 = jax.random.split(key, 3)
    p = {"outermost": outermost, "innermost": innermost, "submodule": submodule}
    p["down_w"] = 0.02 * jax.random.normal(k1, (inner_nc, input_nc, 4, 4), jnp.float32)
    if outermost:
        p["up_w"] = 0.02 * jax.random.normal(k2, (inner_nc * 2, outer_nc, 4, 4), jnp.float32)
        p["up_b"] = 0.02 * jax.random.normal(k3, (outer_nc,), jnp.float32)
    elif innermost:
        p["up_w"] = 0.02 * jax.random.normal(k2, (inner_nc, outer_nc, 4, 4), jnp.float32)
        p["up_gamma"] = jnp.ones((outer_nc,), jnp.float32)
        p["up_beta"] = jnp.zeros((outer_nc,), jnp.float32)
    else:
        p["up_w"] = 0.02 * jax.random.normal(k2, (inner_nc * 2, outer_nc, 4, 4), jnp.float32)
        p["down_gamma"] = jnp.ones((inner_nc,), jnp.float32)
        p["down_beta"] = jnp.zeros((inner_nc,), jnp.float32)
        p["up_gamma"] = jnp.ones((outer_nc,), jnp.float32)
        p["up_beta"] = jnp.zeros((outer_nc,), jnp.float32)
    return p


def build_unet_params(key, input_nc, output_nc, num_downs, ngf):
    keys = jax.random.split(key, num_downs + 1)
    blk = make_block(keys[0], ngf * 8, ngf * 8, innermost=True)
    idx = 1
    for _ in range(num_downs - 5):
        blk = make_block(keys[idx], ngf * 8, ngf * 8, submodule=blk)
        idx += 1
    blk = make_block(keys[idx], ngf * 4, ngf * 8, submodule=blk); idx += 1
    blk = make_block(keys[idx], ngf * 2, ngf * 4, submodule=blk); idx += 1
    blk = make_block(keys[idx], ngf, ngf * 2, submodule=blk); idx += 1
    blk = make_block(keys[idx], output_nc, ngf, input_nc=input_nc,
                     submodule=blk, outermost=True)
    return blk


def block_forward(p, x):
    if p["outermost"]:
        y, _, _ = conv_down(x, p["down_w"], pre_act=None)              # downconv
        z = block_forward(p["submodule"], y)                           # submodule
        out, _, _ = conv_up(z, p["up_w"], p["up_b"],
                            pre_act="relu", post_act="tanh")           # uprelu+upconv+Tanh
        return out
    if p["innermost"]:
        y, _, _ = conv_down(x, p["down_w"], pre_act="lrelu")           # downrelu+downconv
        h, ustats, ucnt = conv_up(y, p["up_w"], pre_act="relu")        # uprelu+upconv
        us, ut = batchnorm_params(ustats, ucnt, p["up_gamma"], p["up_beta"])
        h = batchnorm_apply_nhwc(h, us, ut)                            # upnorm
        return jnp.concatenate([x, h], axis=-1)                        # skip concat
    # middle block
    y, dstats, dcnt = conv_down(x, p["down_w"], pre_act="lrelu")       # downrelu+downconv
    ds, dt = batchnorm_params(dstats, dcnt, p["down_gamma"], p["down_beta"])
    y = batchnorm_apply_nhwc(y, ds, dt)                                # downnorm
    z = block_forward(p["submodule"], y)                               # submodule
    h, ustats, ucnt = conv_up(z, p["up_w"], pre_act="relu")            # uprelu+upconv
    us, ut = batchnorm_params(ustats, ucnt, p["up_gamma"], p["up_beta"])
    h = batchnorm_apply_nhwc(h, us, ut)                                # upnorm
    return jnp.concatenate([x, h], axis=-1)                            # skip concat


def unet_generator_forward(params, x_nchw):
    x = jnp.transpose(x_nchw, (0, 2, 3, 1)).astype(jnp.float32)        # NCHW -> NHWC
    y = block_forward(params, x)
    return jnp.transpose(y, (0, 3, 1, 2))                              # NHWC -> NCHW


if __name__ == "__main__":
    key = jax.random.PRNGKey(0)
    pkey, xkey = jax.random.split(key)

    input_nc, output_nc, num_downs, ngf = 3, 3, 5, 8
    batch, spatial = 2, 32  # spatial must be divisible by 2**num_downs

    params = build_unet_params(pkey, input_nc, output_nc, num_downs, ngf)
    x = jax.random.normal(xkey, (batch, input_nc, spatial, spatial), jnp.float32)

    fwd = jax.jit(lambda inp: unet_generator_forward(params, inp))
    y = jax.block_until_ready(fwd(x))

    assert y.shape == (batch, output_nc, spatial, spatial), y.shape
    assert bool(jnp.all(jnp.isfinite(y)))
    print("KERNEL_OK")
</pallas_src>

<mosaic_0001>
module attributes {stable_mosaic.version = 11 : i64} {
  func.func @_fused_conv_kernel(%arg0: i32, %arg1: i32, %arg2: i32, %arg3: memref<1x512x48xbf16, #tpu.memory_space<vmem>>, %arg4: memref<1x48x8xbf16, #tpu.memory_space<vmem>>, %arg5: memref<1x8xf32, #tpu.memory_space<vmem>>, %arg6: memref<1x512x8xf32, #tpu.memory_space<vmem>>, %arg7: memref<1x1x8x8xf32, #tpu.memory_space<vmem>>, %arg8: memref<512x8xf32, #tpu.memory_space<vmem>>) attributes {dimension_semantics = [#tpu.dimension_semantics<parallel>, #tpu.dimension_semantics<parallel>, #tpu.dimension_semantics<arbitrary>], iteration_bounds = array<i64: 1, 1, 1>, scalar_prefetch = 0 : i64, scratch_operands = 1 : i64, tpu.core_type = #tpu.core_type<tc>, window_params = [{transform_indices = @transform_0, window_bounds = array<i64: 1, 512, 48>}, {transform_indices = @transform_1, window_bounds = array<i64: 1, 48, 8>}, {pipeline_mode = #tpu.pipeline_mode<synchronous>, transform_indices = @transform_2, window_bounds = array<i64: 1, 8>}, {transform_indices = @transform_3, window_bounds = array<i64: 1, 512, 8>}, {transform_indices = @transform_4, window_bounds = array<i64: 1, 1, 8, 8>}]} {
    %c0_i32 = arith.constant 0 : i32
    %0 = arith.cmpi eq, %arg2, %c0_i32 : i32
    %1 = arith.extui %0 : i1 to i32
    %c0_i32_0 = arith.constant 0 : i32
    %2 = arith.cmpi ne, %1, %c0_i32_0 : i32
    scf.if %2 {
      %cst_12 = arith.constant 0.000000e+00 : f32
      %14 = vector.broadcast %cst_12 : f32 to vector<512x8xf32>
      %c0_13 = arith.constant 0 : index
      %c0_14 = arith.constant 0 : index
      %15 = vector.load %arg8[%c0_13, %c0_14] : memref<512x8xf32, #tpu.memory_space<vmem>>, vector<512x8xf32>
      tpu.vector_store %arg8[%c0_13, %c0_14], %14 {strides = array<i32>} : memref<512x8xf32, #tpu.memory_space<vmem>>, vector<512x8xf32>,
    } else {
    }
    %c0 = arith.constant 0 : index
    %c0_1 = arith.constant 0 : index
    %c0_2 = arith.constant 0 : index
    %3 = vector.load %arg3[%c0, %c0_1, %c0_2] : memref<1x512x48xbf16, #tpu.memory_space<vmem>>, vector<1x512x48xbf16>
    %4 = vector.shape_cast %3 : vector<1x512x48xbf16> to vector<512x48xbf16>
    %c0_3 = arith.constant 0 : index
    %c0_4 = arith.constant 0 : index
    %5 = vector.load %arg8[%c0_3, %c0_4] : memref<512x8xf32, #tpu.memory_space<vmem>>, vector<512x8xf32>
    %c0_5 = arith.constant 0 : index
    %c0_6 = arith.constant 0 : index
    %c0_7 = arith.constant 0 : index
    %6 = vector.load %arg4[%c0_5, %c0_6, %c0_7] : memref<1x48x8xbf16, #tpu.memory_space<vmem>>, vector<1x48x8xbf16>
    %7 = vector.shape_cast %6 : vector<1x48x8xbf16> to vector<48x8xbf16>
    %cst = arith.constant dense<0.000000e+00> : vector<512x8xf32>
    %8 = tpu.matmul %4, %7, %cst {dimension_numbers = #tpu.dot_dimension_numbers<[1], [0], [0], [1], [0, 0, 1, 1], [], []>} : vector<512x48xbf16>, vector<48x8xbf16>, vector<512x8xf32> -> vector<512x8xf32>
    %9 = arith.addf %5, %8 : vector<512x8xf32>
    %c0_8 = arith.constant 0 : index
    %c0_9 = arith.constant 0 : index
    %10 = vector.load %arg8[%c0_8, %c0_9] : memref<512x8xf32, #tpu.memory_space<vmem>>, vector<512x8xf32>
    tpu.vector_store %arg8[%c0_8, %c0_9], %9 {strides = array<i32>} : memref<512x8xf32, #tpu.memory_space<vmem>>, vector<512x8xf32>,
    %c0_i32_10 = arith.constant 0 : i32
    %11 = arith.cmpi eq, %arg2, %c0_i32_10 : i32
    %12 = arith.extui %11 : i1 to i32
    %c0_i32_11 = arith.constant 0 : i32
    %13 = arith.cmpi ne, %12, %c0_i32_11 : i32
    scf.if %13 {
      %c0_12 = arith.constant 0 : index
      %c0_13 = arith.constant 0 : index
      %14 = vector.load %arg8[%c0_12, %c0_13] : memref<512x8xf32, #tpu.memory_space<vmem>>, vector<512x8xf32>
      %c0_14 = arith.constant 0 : index
      %c0_15 = arith.constant 0 : index
      %15 = vector.load %arg5[%c0_14, %c0_15] : memref<1x8xf32, #tpu.memory_space<vmem>>, vector<1x8xf32>
      %16 = vector.broadcast %15 : vector<1x8xf32> to vector<512x8xf32>
      %17 = arith.addf %14, %16 : vector<512x8xf32>
      %cst_16 = arith.constant dense<0.000000e+00> : vector<8xf32>
      %18 = vector.multi_reduction <add>, %17, %cst_16 [0] : vector<512x8xf32> to vector<8xf32>
      %19 = vector.shape_cast %18 : vector<8xf32> to vector<1x8xf32>
      %20 = arith.mulf %17, %17 : vector<512x8xf32>
      %cst_17 = arith.constant dense<0.000000e+00> : vector<8xf32>
      %21 = vector.multi_reduction <add>, %20, %cst_17 [0] : vector<512x8xf32> to vector<8xf32>
      %22 = vector.shape_cast %21 : vector<8xf32> to vector<1x8xf32>
      %cst_18 = arith.constant 0.000000e+00 : f32
      %23 = vector.broadcast %cst_18 : f32 to vector<6x8xf32>
      %24 = tpu.concatenate %19, %22, %23 in 0 : vector<1x8xf32>, vector<1x8xf32>, vector<6x8xf32> -> vector<8x8xf32>
      %c0_19 = arith.constant 0 : index
      %c0_20 = arith.constant 0 : index
      %c0_21 = arith.constant 0 : index
      %c0_22 = arith.constant 0 : index
      %25 = vector.load %arg7[%c0_19, %c0_20, %c0_21, %c0_22] : memref<1x1x8x8xf32, #tpu.memory_space<vmem>>, vector<1x1x8x8xf32>
      %26 = vector.shape_cast %25 : vector<1x1x8x8xf32> to vector<8x8xf32>
      %27 = vector.shape_cast %24 : vector<8x8xf32> to vector<1x1x8x8xf32>
      tpu.vector_store %arg7[%c0_19, %c0_20, %c0_21, %c0_22], %27 {strides = array<i32>} : memref<1x1x8x8xf32, #tpu.memory_space<vmem>>, vector<1x1x8x8xf32>,
      %c0_23 = arith.constant 0 : index
      %c0_24 = arith.constant 0 : index
      %c0_25 = arith.constant 0 : index
      %28 = vector.load %arg6[%c0_23, %c0_24, %c0_25] : memref<1x512x8xf32, #tpu.memory_space<vmem>>, vector<1x512x8xf32>
      %29 = vector.shape_cast %28 : vector<1x512x8xf32> to vector<512x8xf32>
      %30 = vector.shape_cast %17 : vector<512x8xf32> to vector<1x512x8xf32>
      tpu.vector_store %arg6[%c0_23, %c0_24, %c0_25], %30 {strides = array<i32>} : memref<1x512x8xf32, #tpu.memory_space<vmem>>, vector<1x512x8xf32>,
    } else {
    }
    return
  }
  func.func @transform_0(%arg0: i32, %arg1: i32, %arg2: i32) -> (i32, i32, i32) {
    %c0_i32 = arith.constant 0 : i32
    return %arg0, %arg1, %arg2 : i32, i32, i32
  }
  func.func @transform_1(%arg0: i32, %arg1: i32, %arg2: i32) -> (i32, i32, i32) {
    %c0_i32 = arith.constant 0 : i32
    %c0_i32_0 = arith.constant 0 : i32
    return %arg0, %arg2, %c0_i32 : i32, i32, i32
  }
  func.func @transform_2(%arg0: i32, %arg1: i32, %arg2: i32) -> (i32, i32) {
    %c0_i32 = arith.constant 0 : i32
    %c0_i32_0 = arith.constant 0 : i32
    %c0_i32_1 = arith.constant 0 : i32
    return %c0_i32, %c0_i32_0 : i32, i32
  }
  func.func @transform_3(%arg0: i32, %arg1: i32, %arg2: i32) -> (i32, i32, i32) {
    %c0_i32 = arith.constant 0 : i32
    %c0_i32_0 = arith.constant 0 : i32
    return %arg0, %arg1, %c0_i32 : i32, i32, i32
  }
  func.func @transform_4(%arg0: i32, %arg1: i32, %arg2: i32) -> (i32, i32, i32, i32) {
    %c0_i32 = arith.constant 0 : i32
    %c0_i32_0 = arith.constant 0 : i32
    %c0_i32_1 = arith.constant 0 : i32
    return %arg0, %arg1, %c0_i32, %c0_i32_0 : i32, i32, i32, i32
  }
}

module attributes {stable_mosaic.version = 11 : i64} {
  func.func @_fused_conv_kernel(%arg0: i32, %arg1: i32, %arg2: i32, %arg3: memref<1x128x128xbf16, #tpu.memory_space<vmem>>, %arg4: memref<1x128x16xbf16, #tpu.memory_space<vmem>>, %arg5: memref<1x16xf32, #tpu.memory_space<vmem>>, %arg6: memref<1x128x16xf32, #tpu.memory_space<vmem>>, %arg7: memref<1x1x8x16xf32, #tpu.memory_space<vmem>>, %arg8: memref<128x16xf32, #tpu.memory_space<vmem>>) attributes {dimension_semantics = [#tpu.dimension_semantics<parallel>, #tpu.dimension_semantics<parallel>, #tpu.dimension_semantics<arbitrary>], iteration_bounds = array<i64: 1, 1, 1>, scalar_prefetch = 0 : i64, scratch_operands = 1 : i64, tpu.core_type = #tpu.core_type<tc>, window_params = [{transform_indices = @transform_0, window_bounds = array<i64: 1, 128, 128>}, {transform_indices = @transform_1, window_bounds = array<i64: 1, 128, 16>}, {pipeline_mode = #tpu.pipeline_mode<synchronous>, transform_indices = @transform_2, window_bounds = array<i64: 1, 16>}, {transform_indices = @transform_3, window_bounds = array<i64: 1, 128, 16>}, {transform_indices = @transform_4, window_bounds = array<i64: 1, 1, 8, 16>}]} {
    %c0_i32 = arith.constant 0 : i32
    %0 = arith.cmpi eq, %arg2, %c0_i32 : i32
    %1 = arith.extui %0 : i1 to i32
    %c0_i32_0 = arith.constant 0 : i32
    %2 = arith.cmpi ne, %1, %c0_i32_0 : i32
    scf.if %2 {
      %cst_14 = arith.constant 0.000000e+00 : f32
      %19 = vector.broadcast %cst_14 : f32 to vector<128x16xf32>
      %c0_15 = arith.constant 0 : index
      %c0_16 = arith.constant 0 : index
      %20 = vector.load %arg8[%c0_15, %c0_16] : memref<128x16xf32, #tpu.memory_space<vmem>>, vector<128x16xf32>
      tpu.vector_store %arg8[%c0_15, %c0_16], %19 {strides = array<i32>} : memref<128x16xf32, #tpu.memory_space<vmem>>, vector<128x16xf32>,
    } else {
    }
    %c0 = arith.constant 0 : index
    %c0_1 = arith.constant 0 : index
    %c0_2 = arith.constant 0 : index
    %3 = vector.load %arg3[%c0, %c0_1, %c0_2] : memref<1x128x128xbf16, #tpu.memory_space<vmem>>, vector<1x128x128xbf16>
    %4 = vector.shape_cast %3 : vector<1x128x128xbf16> to vector<128x128xbf16>
    %cst = arith.constant 0.000000e+00 : bf16
    %5 = vector.broadcast %cst : bf16 to vector<128x128xbf16>
    %6 = arith.cmpf oge, %4, %5 : vector<128x128xbf16>
    %cst_3 = arith.constant 2.001950e-01 : bf16
    %7 = vector.broadcast %cst_3 : bf16 to vector<128x128xbf16>
    %8 = arith.mulf %7, %4 : vector<128x128xbf16>
    %9 = arith.select %6, %4, %8 : vector<128x128xi1>, vector<128x128xbf16>
    %c0_4 = arith.constant 0 : index
    %c0_5 = arith.constant 0 : index
    %10 = vector.load %arg8[%c0_4, %c0_5] : memref<128x16xf32, #tpu.memory_space<vmem>>, vector<128x16xf32>
    %c0_6 = arith.constant 0 : index
    %c0_7 = arith.constant 0 : index
    %c0_8 = arith.constant 0 : index
    %11 = vector.load %arg4[%c0_6, %c0_7, %c0_8] : memref<1x128x16xbf16, #tpu.memory_space<vmem>>, vector<1x128x16xbf16>
    %12 = vector.shape_cast %11 : vector<1x128x16xbf16> to vector<128x16xbf16>
    %cst_9 = arith.constant dense<0.000000e+00> : vector<128x16xf32>
    %13 = tpu.matmul %9, %12, %cst_9 {dimension_numbers = #tpu.dot_dimension_numbers<[1], [0], [0], [1], [0, 0, 1, 1], [], []>} : vector<128x128xbf16>, vector<128x16xbf16>, vector<128x16xf32> -> vector<128x16xf32>
    %14 = arith.addf %10, %13 : vector<128x16xf32>
    %c0_10 = arith.constant 0 : index
    %c0_11 = arith.constant 0 : index
    %15 = vector.load %arg8[%c0_10, %c0_11] : memref<128x16xf32, #tpu.memory_space<vmem>>, vector<128x16xf32>
    tpu.vector_store %arg8[%c0_10, %c0_11], %14 {strides = array<i32>} : memref<128x16xf32, #tpu.memory_space<vmem>>, vector<128x16xf32>,
    %c0_i32_12 = arith.constant 0 : i32
    %16 = arith.cmpi eq, %arg2, %c0_i32_12 : i32
    %17 = arith.extui %16 : i1 to i32
    %c0_i32_13 = arith.constant 0 : i32
    %18 = arith.cmpi ne, %17, %c0_i32_13 : i32
    scf.if %18 {
      %c0_14 = arith.constant 0 : index
      %c0_15 = arith.constant 0 : index
      %19 = vector.load %arg8[%c0_14, %c0_15] : memref<128x16xf32, #tpu.memory_space<vmem>>, vector<128x16xf32>
      %c0_16 = arith.constant 0 : index
      %c0_17 = arith.constant 0 : index
      %20 = vector.load %arg5[%c0_16, %c0_17] : memref<1x16xf32, #tpu.memory_space<vmem>>, vector<1x16xf32>
      %21 = vector.broadcast %20 : vector<1x16xf32> to vector<128x16xf32>
      %22 = arith.addf %19, %21 : vector<128x16xf32>
      %cst_18 = arith.constant dense<0.000000e+00> : vector<16xf32>
      %23 = vector.multi_reduction <add>, %22, %cst_18 [0] : vector<128x16xf32> to vector<16xf32>
      %24 = vector.shape_cast %23 : vector<16xf32> to vector<1x16xf32>
      %25 = arith.mulf %22, %22 : vector<128x16xf32>
      %cst_19 = arith.constant dense<0.000000e+00> : vector<16xf32>
      %26 = vector.multi_reduction <add>, %25, %cst_19 [0] : vector<128x16xf32> to vector<16xf32>
      %27 = vector.shape_cast %26 : vector<16xf32> to vector<1x16xf32>
      %cst_20 = arith.constant 0.000000e+00 : f32
      %28 = vector.broadcast %cst_20 : f32 to vector<6x16xf32>
      %29 = tpu.concatenate %24, %27, %28 in 0 : vector<1x16xf32>, vector<1x16xf32>, vector<6x16xf32> -> vector<8x16xf32>
      %c0_21 = arith.constant 0 : index
      %c0_22 = arith.constant 0 : index
      %c0_23 = arith.constant 0 : index
      %c0_24 = arith.constant 0 : index
      %30 = vector.load %arg7[%c0_21, %c0_22, %c0_23, %c0_24] : memref<1x1x8x16xf32, #tpu.memory_space<vmem>>, vector<1x1x8x16xf32>
      %31 = vector.shape_cast %30 : vector<1x1x8x16xf32> to vector<8x16xf32>
      %32 = vector.shape_cast %29 : vector<8x16xf32> to vector<1x1x8x16xf32>
      tpu.vector_store %arg7[%c0_21, %c0_22, %c0_23, %c0_24], %32 {strides = array<i32>} : memref<1x1x8x16xf32, #tpu.memory_space<vmem>>, vector<1x1x8x16xf32>,
      %c0_25 = arith.constant 0 : index
      %c0_26 = arith.constant 0 : index
      %c0_27 = arith.constant 0 : index
      %33 = vector.load %arg6[%c0_25, %c0_26, %c0_27] : memref<1x128x16xf32, #tpu.memory_space<vmem>>, vector<1x128x16xf32>
      %34 = vector.shape_cast %33 : vector<1x128x16xf32> to vector<128x16xf32>
      %35 = vector.shape_cast %22 : vector<128x16xf32> to vector<1x128x16xf32>
      tpu.vector_store %arg6[%c0_25, %c0_26, %c0_27], %35 {strides = array<i32>} : memref<1x128x16xf32, #tpu.memory_space<vmem>>, vector<1x128x16xf32>,
    } else {
    }
    return
  }
  func.func @transform_0(%arg0: i32, %arg1: i32, %arg2: i32) -> (i32, i32, i32) {
    %c0_i32 = arith.constant 0 : i32
    return %arg0, %arg1, %arg2 : i32, i32, i32
  }
  func.func @transform_1(%arg0: i32, %arg1: i32, %arg2: i32) -> (i32, i32, i32) {
    %c0_i32 = arith.constant 0 : i32
    %c0_i32_0 = arith.constant 0 : i32
    return %arg0, %arg2, %c0_i32 : i32, i32, i32
  }
  func.func @transform_2(%arg0: i32, %arg1: i32, %arg2: i32) -> (i32, i32) {
    %c0_i32 = arith.constant 0 : i32
    %c0_i32_0 = arith.constant 0 : i32
    %c0_i32_1 = arith.constant 0 : i32
    return %c0_i32, %c0_i32_0 : i32, i32
  }
  func.func @transform_3(%arg0: i32, %arg1: i32, %arg2: i32) -> (i32, i32, i32) {
    %c0_i32 = arith.constant 0 : i32
    %c0_i32_0 = arith.constant 0 : i32
    return %arg0, %arg1, %c0_i32 : i32, i32, i32
  }
  func.func @transform_4(%arg0: i32, %arg1: i32, %arg2: i32) -> (i32, i32, i32, i32) {
    %c0_i32 = arith.constant 0 : i32
    %c0_i32_0 = arith.constant 0 : i32
    %c0_i32_1 = arith.constant 0 : i32
    return %arg0, %arg1, %c0_i32, %c0_i32_0 : i32, i32, i32, i32
  }
}

module attributes {stable_mosaic.version = 11 : i64} {
  func.func @_affine_kernel(%arg0: i32, %arg1: memref<16x128xf32, #tpu.memory_space<vmem>>, %arg2: memref<1x128xf32, #tpu.memory_space<vmem>>, %arg3: memref<1x128xf32, #tpu.memory_space<vmem>>, %arg4: memref<16x128xf32, #tpu.memory_space<vmem>>) attributes {dimension_semantics = [#tpu.dimension_semantics<parallel>], iteration_bounds = array<i64: 1>, scalar_prefetch = 0 : i64, scratch_operands = 0 : i64, tpu.core_type = #tpu.core_type<tc>, window_params = [{transform_indices = @transform_0, window_bounds = array<i64: 16, 128>}, {pipeline_mode = #tpu.pipeline_mode<synchronous>, transform_indices = @transform_1, window_bounds = array<i64: 1, 128>}, {pipeline_mode = #tpu.pipeline_mode<synchronous>, transform_indices = @transform_2, window_bounds = array<i64: 1, 128>}, {transform_indices = @transform_3, window_bounds = array<i64: 16, 128>}]} {
    %c0 = arith.constant 0 : index
    %c0_0 = arith.constant 0 : index
    %0 = vector.load %arg1[%c0, %c0_0] : memref<16x128xf32, #tpu.memory_space<vmem>>, vector<16x128xf32>
    %c0_1 = arith.constant 0 : index
    %c0_2 = arith.constant 0 : index
    %1 = vector.load %arg2[%c0_1, %c0_2] : memref<1x128xf32, #tpu.memory_space<vmem>>, vector<1x128xf32>
    %2 = vector.broadcast %1 : vector<1x128xf32> to vector<16x128xf32>
    %3 = arith.mulf %0, %2 : vector<16x128xf32>
    %c0_3 = arith.constant 0 : index
    %c0_4 = arith.constant 0 : index
    %4 = vector.load %arg3[%c0_3, %c0_4] : memref<1x128xf32, #tpu.memory_space<vmem>>, vector<1x128xf32>
    %5 = vector.broadcast %4 : vector<1x128xf32> to vector<16x128xf32>
    %6 = arith.addf %3, %5 : vector<16x128xf32>
    %c0_5 = arith.constant 0 : index
    %c0_6 = arith.constant 0 : index
    %7 = vector.load %arg4[%c0_5, %c0_6] : memref<16x128xf32, #tpu.memory_space<vmem>>, vector<16x128xf32>
    tpu.vector_store %arg4[%c0_5, %c0_6], %6 {strides = array<i32>} : memref<16x128xf32, #tpu.memory_space<vmem>>, vector<16x128xf32>,
    return
  }
  func.func @transform_0(%arg0: i32) -> (i32, i32) {
    %c0_i32 = arith.constant 0 : i32
    %c0_i32_0 = arith.constant 0 : i32
    return %arg0, %c0_i32 : i32, i32
  }
  func.func @transform_1(%arg0: i32) -> (i32, i32) {
    %c0_i32 = arith.constant 0 : i32
    %c0_i32_0 = arith.constant 0 : i32
    %c0_i32_1 = arith.constant 0 : i32
    return %c0_i32, %c0_i32_0 : i32, i32
  }
  func.func @transform_2(%arg0: i32) -> (i32, i32) {
    %c0_i32 = arith.constant 0 : i32
    %c0_i32_0 = arith.constant 0 : i32
    %c0_i32_1 = arith.constant 0 : i32
    return %c0_i32, %c0_i32_0 : i32, i32
  }
  func.func @transform_3(%arg0: i32) -> (i32, i32) {
    %c0_i32 = arith.constant 0 : i32
    %c0_i32_0 = arith.constant 0 : i32
    return %arg0, %c0_i32 : i32, i32
  }
}

module attributes {stable_mosaic.version = 11 : i64} {
  func.func @_fused_conv_kernel(%arg0: i32, %arg1: i32, %arg2: i32, %arg3: memref<1x32x256xbf16, #tpu.memory_space<vmem>>, %arg4: memref<1x256x32xbf16, #tpu.memory_space<vmem>>, %arg5: memref<1x32xf32, #tpu.memory_space<vmem>>, %arg6: memref<1x32x32xf32, #tpu.memory_space<vmem>>, %arg7: memref<1x1x8x32xf32, #tpu.memory_space<vmem>>, %arg8: memref<32x32xf32, #tpu.memory_space<vmem>>) attributes {dimension_semantics = [#tpu.dimension_semantics<parallel>, #tpu.dimension_semantics<parallel>, #tpu.dimension_semantics<arbitrary>], iteration_bounds = array<i64: 1, 1, 1>, scalar_prefetch = 0 : i64, scratch_operands = 1 : i64, tpu.core_type = #tpu.core_type<tc>, window_params = [{transform_indices = @transform_0, window_bounds = array<i64: 1, 32, 256>}, {transform_indices = @transform_1, window_bounds = array<i64: 1, 256, 32>}, {pipeline_mode = #tpu.pipeline_mode<synchronous>, transform_indices = @transform_2, window_bounds = array<i64: 1, 32>}, {transform_indices = @transform_3, window_bounds = array<i64: 1, 32, 32>}, {transform_indices = @transform_4, window_bounds = array<i64: 1, 1, 8, 32>}]} {
    %c0_i32 = arith.constant 0 : i32
    %0 = arith.cmpi eq, %arg2, %c0_i32 : i32
    %1 = arith.extui %0 : i1 to i32
    %c0_i32_0 = arith.constant 0 : i32
    %2 = arith.cmpi ne, %1, %c0_i32_0 : i32
    scf.if %2 {
      %cst_14 = arith.constant 0.000000e+00 : f32
      %19 = vector.broadcast %cst_14 : f32 to vector<32x32xf32>
      %c0_15 = arith.constant 0 : index
      %c0_16 = arith.constant 0 : index
      %20 = vector.load %arg8[%c0_15, %c0_16] : memref<32x32xf32, #tpu.memory_space<vmem>>, vector<32x32xf32>
      tpu.vector_store %arg8[%c0_15, %c0_16], %19 {strides = array<i32>} : memref<32x32xf32, #tpu.memory_space<vmem>>, vector<32x32xf32>,
    } else {
    }
    %c0 = arith.constant 0 : index
    %c0_1 = arith.constant 0 : index
    %c0_2 = arith.constant 0 : index
    %3 = vector.load %arg3[%c0, %c0_1, %c0_2] : memref<1x32x256xbf16, #tpu.memory_space<vmem>>, vector<1x32x256xbf16>
    %4 = vector.shape_cast %3 : vector<1x32x256xbf16> to vector<32x256xbf16>
    %cst = arith.constant 0.000000e+00 : bf16
    %5 = vector.broadcast %cst : bf16 to vector<32x256xbf16>
    %6 = arith.cmpf oge, %4, %5 : vector<32x256xbf16>
    %cst_3 = arith.constant 2.001950e-01 : bf16
    %7 = vector.broadcast %cst_3 : bf16 to vector<32x256xbf16>
    %8 = arith.mulf %7, %4 : vector<32x256xbf16>
    %9 = arith.select %6, %4, %8 : vector<32x256xi1>, vector<32x256xbf16>
    %c0_4 = arith.constant 0 : index
    %c0_5 = arith.constant 0 : index
    %10 = vector.load %arg8[%c0_4, %c0_5] : memref<32x32xf32, #tpu.memory_space<vmem>>, vector<32x32xf32>
    %c0_6 = arith.constant 0 : index
    %c0_7 = arith.constant 0 : index
    %c0_8 = arith.constant 0 : index
    %11 = vector.load %arg4[%c0_6, %c0_7, %c0_8] : memref<1x256x32xbf16, #tpu.memory_space<vmem>>, vector<1x256x32xbf16>
    %12 = vector.shape_cast %11 : vector<1x256x32xbf16> to vector<256x32xbf16>
    %cst_9 = arith.constant dense<0.000000e+00> : vector<32x32xf32>
    %13 = tpu.matmul %9, %12, %cst_9 {dimension_numbers = #tpu.dot_dimension_numbers<[1], [0], [0], [1], [0, 0, 1, 1], [], []>} : vector<32x256xbf16>, vector<256x32xbf16>, vector<32x32xf32> -> vector<32x32xf32>
    %14 = arith.addf %10, %13 : vector<32x32xf32>
    %c0_10 = arith.constant 0 : index
    %c0_11 = arith.constant 0 : index
    %15 = vector.load %arg8[%c0_10, %c0_11] : memref<32x32xf32, #tpu.memory_space<vmem>>, vector<32x32xf32>
    tpu.vector_store %arg8[%c0_10, %c0_11], %14 {strides = array<i32>} : memref<32x32xf32, #tpu.memory_space<vmem>>, vector<32x32xf32>,
    %c0_i32_12 = arith.constant 0 : i32
    %16 = arith.cmpi eq, %arg2, %c0_i32_12 : i32
    %17 = arith.extui %16 : i1 to i32
    %c0_i32_13 = arith.constant 0 : i32
    %18 = arith.cmpi ne, %17, %c0_i32_13 : i32
    scf.if %18 {
      %c0_14 = arith.constant 0 : index
      %c0_15 = arith.constant 0 : index
      %19 = vector.load %arg8[%c0_14, %c0_15] : memref<32x32xf32, #tpu.memory_space<vmem>>, vector<32x32xf32>
      %c0_16 = arith.constant 0 : index
      %c0_17 = arith.constant 0 : index
      %20 = vector.load %arg5[%c0_16, %c0_17] : memref<1x32xf32, #tpu.memory_space<vmem>>, vector<1x32xf32>
      %21 = vector.broadcast %20 : vector<1x32xf32> to vector<32x32xf32>
      %22 = arith.addf %19, %21 : vector<32x32xf32>
      %cst_18 = arith.constant dense<0.000000e+00> : vector<32xf32>
      %23 = vector.multi_reduction <add>, %22, %cst_18 [0] : vector<32x32xf32> to vector<32xf32>
      %24 = vector.shape_cast %23 : vector<32xf32> to vector<1x32xf32>
      %25 = arith.mulf %22, %22 : vector<32x32xf32>
      %cst_19 = arith.constant dense<0.000000e+00> : vector<32xf32>
      %26 = vector.multi_reduction <add>, %25, %cst_19 [0] : vector<32x32xf32> to vector<32xf32>
      %27 = vector.shape_cast %26 : vector<32xf32> to vector<1x32xf32>
      %cst_20 = arith.constant 0.000000e+00 : f32
      %28 = vector.broadcast %cst_20 : f32 to vector<6x32xf32>
      %29 = tpu.concatenate %24, %27, %28 in 0 : vector<1x32xf32>, vector<1x32xf32>, vector<6x32xf32> -> vector<8x32xf32>
      %c0_21 = arith.constant 0 : index
      %c0_22 = arith.constant 0 : index
      %c0_23 = arith.constant 0 : index
      %c0_24 = arith.constant 0 : index
      %30 = vector.load %arg7[%c0_21, %c0_22, %c0_23, %c0_24] : memref<1x1x8x32xf32, #tpu.memory_space<vmem>>, vector<1x1x8x32xf32>
      %31 = vector.shape_cast %30 : vector<1x1x8x32xf32> to vector<8x32xf32>
      %32 = vector.shape_cast %29 : vector<8x32xf32> to vector<1x1x8x32xf32>
      tpu.vector_store %arg7[%c0_21, %c0_22, %c0_23, %c0_24], %32 {strides = array<i32>} : memref<1x1x8x32xf32, #tpu.memory_space<vmem>>, vector<1x1x8x32xf32>,
      %c0_25 = arith.constant 0 : index
      %c0_26 = arith.constant 0 : index
      %c0_27 = arith.constant 0 : index
      %33 = vector.load %arg6[%c0_25, %c0_26, %c0_27] : memref<1x32x32xf32, #tpu.memory_space<vmem>>, vector<1x32x32xf32>
      %34 = vector.shape_cast %33 : vector<1x32x32xf32> to vector<32x32xf32>
      %35 = vector.shape_cast %22 : vector<32x32xf32> to vector<1x32x32xf32>
      tpu.vector_store %arg6[%c0_25, %c0_26, %c0_27], %35 {strides = array<i32>} : memref<1x32x32xf32, #tpu.memory_space<vmem>>, vector<1x32x32xf32>,
    } else {
    }
    return
  }
  func.func @transform_0(%arg0: i32, %arg1: i32, %arg2: i32) -> (i32, i32, i32) {
    %c0_i32 = arith.constant 0 : i32
    return %arg0, %arg1, %arg2 : i32, i32, i32
  }
  func.func @transform_1(%arg0: i32, %arg1: i32, %arg2: i32) -> (i32, i32, i32) {
    %c0_i32 = arith.constant 0 : i32
    %c0_i32_0 = arith.constant 0 : i32
    return %arg0, %arg2, %c0_i32 : i32, i32, i32
  }
  func.func @transform_2(%arg0: i32, %arg1: i32, %arg2: i32) -> (i32, i32) {
    %c0_i32 = arith.constant 0 : i32
    %c0_i32_0 = arith.constant 0 : i32
    %c0_i32_1 = arith.constant 0 : i32
    return %c0_i32, %c0_i32_0 : i32, i32
  }
  func.func @transform_3(%arg0: i32, %arg1: i32, %arg2: i32) -> (i32, i32, i32) {
    %c0_i32 = arith.constant 0 : i32
    %c0_i32_0 = arith.constant 0 : i32
    return %arg0, %arg1, %c0_i32 : i32, i32, i32
  }
  func.func @transform_4(%arg0: i32, %arg1: i32, %arg2: i32) -> (i32, i32, i32, i32) {
    %c0_i32 = arith.constant 0 : i32
    %c0_i32_0 = arith.constant 0 : i32
    %c0_i32_1 = arith.constant 0 : i32
    return %arg0, %arg1, %c0_i32, %c0_i32_0 : i32, i32, i32, i32
  }
}

module attributes {stable_mosaic.version = 11 : i64} {
  func.func @_affine_kernel(%arg0: i32, %arg1: memref<8x128xf32, #tpu.memory_space<vmem>>, %arg2: memref<1x128xf32, #tpu.memory_space<vmem>>, %arg3: memref<1x128xf32, #tpu.memory_space<vmem>>, %arg4: memref<8x128xf32, #tpu.memory_space<vmem>>) attributes {dimension_semantics = [#tpu.dimension_semantics<parallel>], iteration_bounds = array<i64: 1>, scalar_prefetch = 0 : i64, scratch_operands = 0 : i64, tpu.core_type = #tpu.core_type<tc>, window_params = [{transform_indices = @transform_0, window_bounds = array<i64: 8, 128>}, {pipeline_mode = #tpu.pipeline_mode<synchronous>, transform_indices = @transform_1, window_bounds = array<i64: 1, 128>}, {pipeline_mode = #tpu.pipeline_mode<synchronous>, transform_indices = @transform_2, window_bounds = array<i64: 1, 128>}, {transform_indices = @transform_3, window_bounds = array<i64: 8, 128>}]} {
    %c0 = arith.constant 0 : index
    %c0_0 = arith.constant 0 : index
    %0 = vector.load %arg1[%c0, %c0_0] : memref<8x128xf32, #tpu.memory_space<vmem>>, vector<8x128xf32>
    %c0_1 = arith.constant 0 : index
    %c0_2 = arith.constant 0 : index
    %1 = vector.load %arg2[%c0_1, %c0_2] : memref<1x128xf32, #tpu.memory_space<vmem>>, vector<1x128xf32>
    %2 = vector.broadcast %1 : vector<1x128xf32> to vector<8x128xf32>
    %3 = arith.mulf %0, %2 : vector<8x128xf32>
    %c0_3 = arith.constant 0 : index
    %c0_4 = arith.constant 0 : index
    %4 = vector.load %arg3[%c0_3, %c0_4] : memref<1x128xf32, #tpu.memory_space<vmem>>, vector<1x128xf32>
    %5 = vector.broadcast %4 : vector<1x128xf32> to vector<8x128xf32>
    %6 = arith.addf %3, %5 : vector<8x128xf32>
    %c0_5 = arith.constant 0 : index
    %c0_6 = arith.constant 0 : index
    %7 = vector.load %arg4[%c0_5, %c0_6] : memref<8x128xf32, #tpu.memory_space<vmem>>, vector<8x128xf32>
    tpu.vector_store %arg4[%c0_5, %c0_6], %6 {strides = array<i32>} : memref<8x128xf32, #tpu.memory_space<vmem>>, vector<8x128xf32>,
    return
  }
  func.func @transform_0(%arg0: i32) -> (i32, i32) {
    %c0_i32 = arith.constant 0 : i32
    %c0_i32_0 = arith.constant 0 : i32
    return %arg0, %c0_i32 : i32, i32
  }
  func.func @transform_1(%arg0: i32) -> (i32, i32) {
    %c0_i32 = arith.constant 0 : i32
    %c0_i32_0 = arith.constant 0 : i32
    %c0_i32_1 = arith.constant 0 : i32
    return %c0_i32, %c0_i32_0 : i32, i32
  }
  func.func @transform_2(%arg0: i32) -> (i32, i32) {
    %c0_i32 = arith.constant 0 : i32
    %c0_i32_0 = arith.constant 0 : i32
    %c0_i32_1 = arith.constant 0 : i32
    return %c0_i32, %c0_i32_0 : i32, i32
  }
  func.func @transform_3(%arg0: i32) -> (i32, i32) {
    %c0_i32 = arith.constant 0 : i32
    %c0_i32_0 = arith.constant 0 : i32
    return %arg0, %c0_i32 : i32, i32
  }
}

module attributes {stable_mosaic.version = 11 : i64} {
  func.func @_affine_kernel(%arg0: i32, %arg1: memref<4x128xf32, #tpu.memory_space<vmem>>, %arg2: memref<1x128xf32, #tpu.memory_space<vmem>>, %arg3: memref<1x128xf32, #tpu.memory_space<vmem>>, %arg4: memref<4x128xf32, #tpu.memory_space<vmem>>) attributes {dimension_semantics = [#tpu.dimension_semantics<parallel>], iteration_bounds = array<i64: 1>, scalar_prefetch = 0 : i64, scratch_operands = 0 : i64, tpu.core_type = #tpu.core_type<tc>, window_params = [{transform_indices = @transform_0, window_bounds = array<i64: 4, 128>}, {pipeline_mode = #tpu.pipeline_mode<synchronous>, transform_indices = @transform_1, window_bounds = array<i64: 1, 128>}, {pipeline_mode = #tpu.pipeline_mode<synchronous>, transform_indices = @transform_2, window_bounds = array<i64: 1, 128>}, {transform_indices = @transform_3, window_bounds = array<i64: 4, 128>}]} {
    %c0 = arith.constant 0 : index
    %c0_0 = arith.constant 0 : index
    %0 = vector.load %arg1[%c0, %c0_0] : memref<4x128xf32, #tpu.memory_space<vmem>>, vector<4x128xf32>
    %c0_1 = arith.constant 0 : index
    %c0_2 = arith.constant 0 : index
    %1 = vector.load %arg2[%c0_1, %c0_2] : memref<1x128xf32, #tpu.memory_space<vmem>>, vector<1x128xf32>
    %2 = vector.broadcast %1 : vector<1x128xf32> to vector<4x128xf32>
    %3 = arith.mulf %0, %2 : vector<4x128xf32>
    %c0_3 = arith.constant 0 : index
    %c0_4 = arith.constant 0 : index
    %4 = vector.load %arg3[%c0_3, %c0_4] : memref<1x128xf32, #tpu.memory_space<vmem>>, vector<1x128xf32>
    %5 = vector.broadcast %4 : vector<1x128xf32> to vector<4x128xf32>
    %6 = arith.addf %3, %5 : vector<4x128xf32>
    %c0_5 = arith.constant 0 : index
    %c0_6 = arith.constant 0 : index
    %7 = vector.load %arg4[%c0_5, %c0_6] : memref<4x128xf32, #tpu.memory_space<vmem>>, vector<4x128xf32>
    tpu.vector_store %arg4[%c0_5, %c0_6], %6 {strides = array<i32>} : memref<4x128xf32, #tpu.memory_space<vmem>>, vector<4x128xf32>,
    return
  }
  func.func @transform_0(%arg0: i32) -> (i32, i32) {
    %c0_i32 = arith.constant 0 : i32
    %c0_i32_0 = arith.constant 0 : i32
    return %arg0, %c0_i32 : i32, i32
  }
  func.func @transform_1(%arg0: i32) -> (i32, i32) {
    %c0_i32 = arith.constant 0 : i32
    %c0_i32_0 = arith.constant 0 : i32
    %c0_i32_1 = arith.constant 0 : i32
    return %c0_i32, %c0_i32_0 : i32, i32
  }
  func.func @transform_2(%arg0: i32) -> (i32, i32) {
    %c0_i32 = arith.constant 0 : i32
    %c0_i32_0 = arith.constant 0 : i32
    %c0_i32_1 = arith.constant 0 : i32
    return %c0_i32, %c0_i32_0 : i32, i32
  }
  func.func @transform_3(%arg0: i32) -> (i32, i32) {
    %c0_i32 = arith.constant 0 : i32
    %c0_i32_0 = arith.constant 0 : i32
    return %arg0, %c0_i32 : i32, i32
  }
}

module attributes {stable_mosaic.version = 11 : i64} {
  func.func @_fused_conv_kernel(%arg0: i32, %arg1: i32, %arg2: i32, %arg3: memref<1x8x512xbf16, #tpu.memory_space<vmem>>, %arg4: memref<1x512x64xbf16, #tpu.memory_space<vmem>>, %arg5: memref<1x64xf32, #tpu.memory_space<vmem>>, %arg6: memref<1x8x64xf32, #tpu.memory_space<vmem>>, %arg7: memref<1x1x8x64xf32, #tpu.memory_space<vmem>>, %arg8: memref<8x64xf32, #tpu.memory_space<vmem>>) attributes {dimension_semantics = [#tpu.dimension_semantics<parallel>, #tpu.dimension_semantics<parallel>, #tpu.dimension_semantics<arbitrary>], iteration_bounds = array<i64: 1, 1, 1>, scalar_prefetch = 0 : i64, scratch_operands = 1 : i64, tpu.core_type = #tpu.core_type<tc>, window_params = [{transform_indices = @transform_0, window_bounds = array<i64: 1, 8, 512>}, {transform_indices = @transform_1, window_bounds = array<i64: 1, 512, 64>}, {pipeline_mode = #tpu.pipeline_mode<synchronous>, transform_indices = @transform_2, window_bounds = array<i64: 1, 64>}, {transform_indices = @transform_3, window_bounds = array<i64: 1, 8, 64>}, {transform_indices = @transform_4, window_bounds = array<i64: 1, 1, 8, 64>}]} {
    %c0_i32 = arith.constant 0 : i32
    %0 = arith.cmpi eq, %arg2, %c0_i32 : i32
    %1 = arith.extui %0 : i1 to i32
    %c0_i32_0 = arith.constant 0 : i32
    %2 = arith.cmpi ne, %1, %c0_i32_0 : i32
    scf.if %2 {
      %cst_14 = arith.constant 0.000000e+00 : f32
      %19 = vector.broadcast %cst_14 : f32 to vector<8x64xf32>
      %c0_15 = arith.constant 0 : index
      %c0_16 = arith.constant 0 : index
      %20 = vector.load %arg8[%c0_15, %c0_16] : memref<8x64xf32, #tpu.memory_space<vmem>>, vector<8x64xf32>
      tpu.vector_store %arg8[%c0_15, %c0_16], %19 {strides = array<i32>} : memref<8x64xf32, #tpu.memory_space<vmem>>, vector<8x64xf32>,
    } else {
    }
    %c0 = arith.constant 0 : index
    %c0_1 = arith.constant 0 : index
    %c0_2 = arith.constant 0 : index
    %3 = vector.load %arg3[%c0, %c0_1, %c0_2] : memref<1x8x512xbf16, #tpu.memory_space<vmem>>, vector<1x8x512xbf16>
    %4 = vector.shape_cast %3 : vector<1x8x512xbf16> to vector<8x512xbf16>
    %cst = arith.constant 0.000000e+00 : bf16
    %5 = vector.broadcast %cst : bf16 to vector<8x512xbf16>
    %6 = arith.cmpf oge, %4, %5 : vector<8x512xbf16>
    %cst_3 = arith.constant 2.001950e-01 : bf16
    %7 = vector.broadcast %cst_3 : bf16 to vector<8x512xbf16>
    %8 = arith.mulf %7, %4 : vector<8x512xbf16>
    %9 = arith.select %6, %4, %8 : vector<8x512xi1>, vector<8x512xbf16>
    %c0_4 = arith.constant 0 : index
    %c0_5 = arith.constant 0 : index
    %10 = vector.load %arg8[%c0_4, %c0_5] : memref<8x64xf32, #tpu.memory_space<vmem>>, vector<8x64xf32>
    %c0_6 = arith.constant 0 : index
    %c0_7 = arith.constant 0 : index
    %c0_8 = arith.constant 0 : index
    %11 = vector.load %arg4[%c0_6, %c0_7, %c0_8] : memref<1x512x64xbf16, #tpu.memory_space<vmem>>, vector<1x512x64xbf16>
    %12 = vector.shape_cast %11 : vector<1x512x64xbf16> to vector<512x64xbf16>
    %cst_9 = arith.constant dense<0.000000e+00> : vector<8x64xf32>
    %13 = tpu.matmul %9, %12, %cst_9 {dimension_numbers = #tpu.dot_dimension_numbers<[1], [0], [0], [1], [0, 0, 1, 1], [], []>} : vector<8x512xbf16>, vector<512x64xbf16>, vector<8x64xf32> -> vector<8x64xf32>
    %14 = arith.addf %10, %13 : vector<8x64xf32>
    %c0_10 = arith.constant 0 : index
    %c0_11 = arith.constant 0 : index
    %15 = vector.load %arg8[%c0_10, %c0_11] : memref<8x64xf32, #tpu.memory_space<vmem>>, vector<8x64xf32>
    tpu.vector_store %arg8[%c0_10, %c0_11], %14 {strides = array<i32>} : memref<8x64xf32, #tpu.memory_space<vmem>>, vector<8x64xf32>,
    %c0_i32_12 = arith.constant 0 : i32
    %16 = arith.cmpi eq, %arg2, %c0_i32_12 : i32
    %17 = arith.extui %16 : i1 to i32
    %c0_i32_13 = arith.constant 0 : i32
    %18 = arith.cmpi ne, %17, %c0_i32_13 : i32
    scf.if %18 {
      %c0_14 = arith.constant 0 : index
      %c0_15 = arith.constant 0 : index
      %19 = vector.load %arg8[%c0_14, %c0_15] : memref<8x64xf32, #tpu.memory_space<vmem>>, vector<8x64xf32>
      %c0_16 = arith.constant 0 : index
      %c0_17 = arith.constant 0 : index
      %20 = vector.load %arg5[%c0_16, %c0_17] : memref<1x64xf32, #tpu.memory_space<vmem>>, vector<1x64xf32>
      %21 = vector.broadcast %20 : vector<1x64xf32> to vector<8x64xf32>
      %22 = arith.addf %19, %21 : vector<8x64xf32>
      %cst_18 = arith.constant dense<0.000000e+00> : vector<64xf32>
      %23 = vector.multi_reduction <add>, %22, %cst_18 [0] : vector<8x64xf32> to vector<64xf32>
      %24 = vector.shape_cast %23 : vector<64xf32> to vector<1x64xf32>
      %25 = arith.mulf %22, %22 : vector<8x64xf32>
      %cst_19 = arith.constant dense<0.000000e+00> : vector<64xf32>
      %26 = vector.multi_reduction <add>, %25, %cst_19 [0] : vector<8x64xf32> to vector<64xf32>
      %27 = vector.shape_cast %26 : vector<64xf32> to vector<1x64xf32>
      %cst_20 = arith.constant 0.000000e+00 : f32
      %28 = vector.broadcast %cst_20 : f32 to vector<6x64xf32>
      %29 = tpu.concatenate %24, %27, %28 in 0 : vector<1x64xf32>, vector<1x64xf32>, vector<6x64xf32> -> vector<8x64xf32>
      %c0_21 = arith.constant 0 : index
      %c0_22 = arith.constant 0 : index
      %c0_23 = arith.constant 0 : index
      %c0_24 = arith.constant 0 : index
      %30 = vector.load %arg7[%c0_21, %c0_22, %c0_23, %c0_24] : memref<1x1x8x64xf32, #tpu.memory_space<vmem>>, vector<1x1x8x64xf32>
      %31 = vector.shape_cast %30 : vector<1x1x8x64xf32> to vector<8x64xf32>
      %32 = vector.shape_cast %29 : vector<8x64xf32> to vector<1x1x8x64xf32>
      tpu.vector_store %arg7[%c0_21, %c0_22, %c0_23, %c0_24], %32 {strides = array<i32>} : memref<1x1x8x64xf32, #tpu.memory_space<vmem>>, vector<1x1x8x64xf32>,
      %c0_25 = arith.constant 0 : index
      %c0_26 = arith.constant 0 : index
      %c0_27 = arith.constant 0 : index
      %33 = vector.load %arg6[%c0_25, %c0_26, %c0_27] : memref<1x8x64xf32, #tpu.memory_space<vmem>>, vector<1x8x64xf32>
      %34 = vector.shape_cast %33 : vector<1x8x64xf32> to vector<8x64xf32>
      %35 = vector.shape_cast %22 : vector<8x64xf32> to vector<1x8x64xf32>
      tpu.vector_store %arg6[%c0_25, %c0_26, %c0_27], %35 {strides = array<i32>} : memref<1x8x64xf32, #tpu.memory_space<vmem>>, vector<1x8x64xf32>,
    } else {
    }
    return
  }
  func.func @transform_0(%arg0: i32, %arg1: i32, %arg2: i32) -> (i32, i32, i32) {
    %c0_i32 = arith.constant 0 : i32
    return %arg0, %arg1, %arg2 : i32, i32, i32
  }
  func.func @transform_1(%arg0: i32, %arg1: i32, %arg2: i32) -> (i32, i32, i32) {
    %c0_i32 = arith.constant 0 : i32
    %c0_i32_0 = arith.constant 0 : i32
    return %arg0, %arg2, %c0_i32 : i32, i32, i32
  }
  func.func @transform_2(%arg0: i32, %arg1: i32, %arg2: i32) -> (i32, i32) {
    %c0_i32 = arith.constant 0 : i32
    %c0_i32_0 = arith.constant 0 : i32
    %c0_i32_1 = arith.constant 0 : i32
    return %c0_i32, %c0_i32_0 : i32, i32
  }
  func.func @transform_3(%arg0: i32, %arg1: i32, %arg2: i32) -> (i32, i32, i32) {
    %c0_i32 = arith.constant 0 : i32
    %c0_i32_0 = arith.constant 0 : i32
    return %arg0, %arg1, %c0_i32 : i32, i32, i32
  }
  func.func @transform_4(%arg0: i32, %arg1: i32, %arg2: i32) -> (i32, i32, i32, i32) {
    %c0_i32 = arith.constant 0 : i32
    %c0_i32_0 = arith.constant 0 : i32
    %c0_i32_1 = arith.constant 0 : i32
    return %arg0, %arg1, %c0_i32, %c0_i32_0 : i32, i32, i32, i32
  }
}

module attributes {stable_mosaic.version = 11 : i64} {
  func.func @_fused_conv_kernel(%arg0: i32, %arg1: i32, %arg2: i32, %arg3: memref<1x2x1024xbf16, #tpu.memory_space<vmem>>, %arg4: memref<1x1024x64xbf16, #tpu.memory_space<vmem>>, %arg5: memref<1x64xf32, #tpu.memory_space<vmem>>, %arg6: memref<1x2x64xf32, #tpu.memory_space<vmem>>, %arg7: memref<1x1x8x64xf32, #tpu.memory_space<vmem>>, %arg8: memref<2x64xf32, #tpu.memory_space<vmem>>) attributes {dimension_semantics = [#tpu.dimension_semantics<parallel>, #tpu.dimension_semantics<parallel>, #tpu.dimension_semantics<arbitrary>], iteration_bounds = array<i64: 1, 1, 1>, scalar_prefetch = 0 : i64, scratch_operands = 1 : i64, tpu.core_type = #tpu.core_type<tc>, window_params = [{transform_indices = @transform_0, window_bounds = array<i64: 1, 2, 1024>}, {transform_indices = @transform_1, window_bounds = array<i64: 1, 1024, 64>}, {pipeline_mode = #tpu.pipeline_mode<synchronous>, transform_indices = @transform_2, window_bounds = array<i64: 1, 64>}, {transform_indices = @transform_3, window_bounds = array<i64: 1, 2, 64>}, {transform_indices = @transform_4, window_bounds = array<i64: 1, 1, 8, 64>}]} {
    %c0_i32 = arith.constant 0 : i32
    %0 = arith.cmpi eq, %arg2, %c0_i32 : i32
    %1 = arith.extui %0 : i1 to i32
    %c0_i32_0 = arith.constant 0 : i32
    %2 = arith.cmpi ne, %1, %c0_i32_0 : i32
    scf.if %2 {
      %cst_14 = arith.constant 0.000000e+00 : f32
      %19 = vector.broadcast %cst_14 : f32 to vector<2x64xf32>
      %c0_15 = arith.constant 0 : index
      %c0_16 = arith.constant 0 : index
      %20 = vector.load %arg8[%c0_15, %c0_16] : memref<2x64xf32, #tpu.memory_space<vmem>>, vector<2x64xf32>
      tpu.vector_store %arg8[%c0_15, %c0_16], %19 {strides = array<i32>} : memref<2x64xf32, #tpu.memory_space<vmem>>, vector<2x64xf32>,
    } else {
    }
    %c0 = arith.constant 0 : index
    %c0_1 = arith.constant 0 : index
    %c0_2 = arith.constant 0 : index
    %3 = vector.load %arg3[%c0, %c0_1, %c0_2] : memref<1x2x1024xbf16, #tpu.memory_space<vmem>>, vector<1x2x1024xbf16>
    %4 = vector.shape_cast %3 : vector<1x2x1024xbf16> to vector<2x1024xbf16>
    %cst = arith.constant 0.000000e+00 : bf16
    %5 = vector.broadcast %cst : bf16 to vector<2x1024xbf16>
    %6 = arith.cmpf oge, %4, %5 : vector<2x1024xbf16>
    %cst_3 = arith.constant 2.001950e-01 : bf16
    %7 = vector.broadcast %cst_3 : bf16 to vector<2x1024xbf16>
    %8 = arith.mulf %7, %4 : vector<2x1024xbf16>
    %9 = arith.select %6, %4, %8 : vector<2x1024xi1>, vector<2x1024xbf16>
    %c0_4 = arith.constant 0 : index
    %c0_5 = arith.constant 0 : index
    %10 = vector.load %arg8[%c0_4, %c0_5] : memref<2x64xf32, #tpu.memory_space<vmem>>, vector<2x64xf32>
    %c0_6 = arith.constant 0 : index
    %c0_7 = arith.constant 0 : index
    %c0_8 = arith.constant 0 : index
    %11 = vector.load %arg4[%c0_6, %c0_7, %c0_8] : memref<1x1024x64xbf16, #tpu.memory_space<vmem>>, vector<1x1024x64xbf16>
    %12 = vector.shape_cast %11 : vector<1x1024x64xbf16> to vector<1024x64xbf16>
    %cst_9 = arith.constant dense<0.000000e+00> : vector<2x64xf32>
    %13 = tpu.matmul %9, %12, %cst_9 {dimension_numbers = #tpu.dot_dimension_numbers<[1], [0], [0], [1], [0, 0, 1, 1], [], []>} : vector<2x1024xbf16>, vector<1024x64xbf16>, vector<2x64xf32> -> vector<2x64xf32>
    %14 = arith.addf %10, %13 : vector<2x64xf32>
    %c0_10 = arith.constant 0 : index
    %c0_11 = arith.constant 0 : index
    %15 = vector.load %arg8[%c0_10, %c0_11] : memref<2x64xf32, #tpu.memory_space<vmem>>, vector<2x64xf32>
    tpu.vector_store %arg8[%c0_10, %c0_11], %14 {strides = array<i32>} : memref<2x64xf32, #tpu.memory_space<vmem>>, vector<2x64xf32>,
    %c0_i32_12 = arith.constant 0 : i32
    %16 = arith.cmpi eq, %arg2, %c0_i32_12 : i32
    %17 = arith.extui %16 : i1 to i32
    %c0_i32_13 = arith.constant 0 : i32
    %18 = arith.cmpi ne, %17, %c0_i32_13 : i32
    scf.if %18 {
      %c0_14 = arith.constant 0 : index
      %c0_15 = arith.constant 0 : index
      %19 = vector.load %arg8[%c0_14, %c0_15] : memref<2x64xf32, #tpu.memory_space<vmem>>, vector<2x64xf32>
      %c0_16 = arith.constant 0 : index
      %c0_17 = arith.constant 0 : index
      %20 = vector.load %arg5[%c0_16, %c0_17] : memref<1x64xf32, #tpu.memory_space<vmem>>, vector<1x64xf32>
      %21 = vector.broadcast %20 : vector<1x64xf32> to vector<2x64xf32>
      %22 = arith.addf %19, %21 : vector<2x64xf32>
      %cst_18 = arith.constant dense<0.000000e+00> : vector<64xf32>
      %23 = vector.multi_reduction <add>, %22, %cst_18 [0] : vector<2x64xf32> to vector<64xf32>
      %24 = vector.shape_cast %23 : vector<64xf32> to vector<1x64xf32>
      %25 = arith.mulf %22, %22 : vector<2x64xf32>
      %cst_19 = arith.constant dense<0.000000e+00> : vector<64xf32>
      %26 = vector.multi_reduction <add>, %25, %cst_19 [0] : vector<2x64xf32> to vector<64xf32>
      %27 = vector.shape_cast %26 : vector<64xf32> to vector<1x64xf32>
      %cst_20 = arith.constant 0.000000e+00 : f32
      %28 = vector.broadcast %cst_20 : f32 to vector<6x64xf32>
      %29 = tpu.concatenate %24, %27, %28 in 0 : vector<1x64xf32>, vector<1x64xf32>, vector<6x64xf32> -> vector<8x64xf32>
      %c0_21 = arith.constant 0 : index
      %c0_22 = arith.constant 0 : index
      %c0_23 = arith.constant 0 : index
      %c0_24 = arith.constant 0 : index
      %30 = vector.load %arg7[%c0_21, %c0_22, %c0_23, %c0_24] : memref<1x1x8x64xf32, #tpu.memory_space<vmem>>, vector<1x1x8x64xf32>
      %31 = vector.shape_cast %30 : vector<1x1x8x64xf32> to vector<8x64xf32>
      %32 = vector.shape_cast %29 : vector<8x64xf32> to vector<1x1x8x64xf32>
      tpu.vector_store %arg7[%c0_21, %c0_22, %c0_23, %c0_24], %32 {strides = array<i32>} : memref<1x1x8x64xf32, #tpu.memory_space<vmem>>, vector<1x1x8x64xf32>,
      %c0_25 = arith.constant 0 : index
      %c0_26 = arith.constant 0 : index
      %c0_27 = arith.constant 0 : index
      %33 = vector.load %arg6[%c0_25, %c0_26, %c0_27] : memref<1x2x64xf32, #tpu.memory_space<vmem>>, vector<1x2x64xf32>
      %34 = vector.shape_cast %33 : vector<1x2x64xf32> to vector<2x64xf32>
      %35 = vector.shape_cast %22 : vector<2x64xf32> to vector<1x2x64xf32>
      tpu.vector_store %arg6[%c0_25, %c0_26, %c0_27], %35 {strides = array<i32>} : memref<1x2x64xf32, #tpu.memory_space<vmem>>, vector<1x2x64xf32>,
    } else {
    }
    return
  }
  func.func @transform_0(%arg0: i32, %arg1: i32, %arg2: i32) -> (i32, i32, i32) {
    %c0_i32 = arith.constant 0 : i32
    return %arg0, %arg1, %arg2 : i32, i32, i32
  }
  func.func @transform_1(%arg0: i32, %arg1: i32, %arg2: i32) -> (i32, i32, i32) {
    %c0_i32 = arith.constant 0 : i32
    %c0_i32_0 = arith.constant 0 : i32
    return %arg0, %arg2, %c0_i32 : i32, i32, i32
  }
  func.func @transform_2(%arg0: i32, %arg1: i32, %arg2: i32) -> (i32, i32) {
    %c0_i32 = arith.constant 0 : i32
    %c0_i32_0 = arith.constant 0 : i32
    %c0_i32_1 = arith.constant 0 : i32
    return %c0_i32, %c0_i32_0 : i32, i32
  }
  func.func @transform_3(%arg0: i32, %arg1: i32, %arg2: i32) -> (i32, i32, i32) {
    %c0_i32 = arith.constant 0 : i32
    %c0_i32_0 = arith.constant 0 : i32
    return %arg0, %arg1, %c0_i32 : i32, i32, i32
  }
  func.func @transform_4(%arg0: i32, %arg1: i32, %arg2: i32) -> (i32, i32, i32, i32) {
    %c0_i32 = arith.constant 0 : i32
    %c0_i32_0 = arith.constant 0 : i32
    %c0_i32_1 = arith.constant 0 : i32
    return %arg0, %arg1, %c0_i32, %c0_i32_0 : i32, i32, i32, i32
  }
}

module attributes {stable_mosaic.version = 11 : i64} {
  func.func @_fused_conv_kernel(%arg0: i32, %arg1: i32, %arg2: i32, %arg3: memref<1x2x256xbf16, #tpu.memory_space<vmem>>, %arg4: memref<1x256x64xbf16, #tpu.memory_space<vmem>>, %arg5: memref<1x64xf32, #tpu.memory_space<vmem>>, %arg6: memref<1x2x64xf32, #tpu.memory_space<vmem>>, %arg7: memref<1x1x8x64xf32, #tpu.memory_space<vmem>>, %arg8: memref<2x64xf32, #tpu.memory_space<vmem>>) attributes {dimension_semantics = [#tpu.dimension_semantics<parallel>, #tpu.dimension_semantics<parallel>, #tpu.dimension_semantics<arbitrary>], iteration_bounds = array<i64: 4, 1, 1>, scalar_prefetch = 0 : i64, scratch_operands = 1 : i64, tpu.core_type = #tpu.core_type<tc>, window_params = [{transform_indices = @transform_0, window_bounds = array<i64: 1, 2, 256>}, {transform_indices = @transform_1, window_bounds = array<i64: 1, 256, 64>}, {pipeline_mode = #tpu.pipeline_mode<synchronous>, transform_indices = @transform_2, window_bounds = array<i64: 1, 64>}, {transform_indices = @transform_3, window_bounds = array<i64: 1, 2, 64>}, {transform_indices = @transform_4, window_bounds = array<i64: 1, 1, 8, 64>}]} {
    %c0_i32 = arith.constant 0 : i32
    %0 = arith.cmpi eq, %arg2, %c0_i32 : i32
    %1 = arith.extui %0 : i1 to i32
    %c0_i32_0 = arith.constant 0 : i32
    %2 = arith.cmpi ne, %1, %c0_i32_0 : i32
    scf.if %2 {
      %cst_13 = arith.constant 0.000000e+00 : f32
      %16 = vector.broadcast %cst_13 : f32 to vector<2x64xf32>
      %c0_14 = arith.constant 0 : index
      %c0_15 = arith.constant 0 : index
      %17 = vector.load %arg8[%c0_14, %c0_15] : memref<2x64xf32, #tpu.memory_space<vmem>>, vector<2x64xf32>
      tpu.vector_store %arg8[%c0_14, %c0_15], %16 {strides = array<i32>} : memref<2x64xf32, #tpu.memory_space<vmem>>, vector<2x64xf32>,
    } else {
    }
    %c0 = arith.constant 0 : index
    %c0_1 = arith.constant 0 : index
    %c0_2 = arith.constant 0 : index
    %3 = vector.load %arg3[%c0, %c0_1, %c0_2] : memref<1x2x256xbf16, #tpu.memory_space<vmem>>, vector<1x2x256xbf16>
    %4 = vector.shape_cast %3 : vector<1x2x256xbf16> to vector<2x256xbf16>
    %cst = arith.constant 0.000000e+00 : bf16
    %5 = vector.broadcast %cst : bf16 to vector<2x256xbf16>
    %6 = arith.maximumf %4, %5 : vector<2x256xbf16>
    %c0_3 = arith.constant 0 : index
    %c0_4 = arith.constant 0 : index
    %7 = vector.load %arg8[%c0_3, %c0_4] : memref<2x64xf32, #tpu.memory_space<vmem>>, vector<2x64xf32>
    %c0_5 = arith.constant 0 : index
    %c0_6 = arith.constant 0 : index
    %c0_7 = arith.constant 0 : index
    %8 = vector.load %arg4[%c0_5, %c0_6, %c0_7] : memref<1x256x64xbf16, #tpu.memory_space<vmem>>, vector<1x256x64xbf16>
    %9 = vector.shape_cast %8 : vector<1x256x64xbf16> to vector<256x64xbf16>
    %cst_8 = arith.constant dense<0.000000e+00> : vector<2x64xf32>
    %10 = tpu.matmul %6, %9, %cst_8 {dimension_numbers = #tpu.dot_dimension_numbers<[1], [0], [0], [1], [0, 0, 1, 1], [], []>} : vector<2x256xbf16>, vector<256x64xbf16>, vector<2x64xf32> -> vector<2x64xf32>
    %11 = arith.addf %7, %10 : vector<2x64xf32>
    %c0_9 = arith.constant 0 : index
    %c0_10 = arith.constant 0 : index
    %12 = vector.load %arg8[%c0_9, %c0_10] : memref<2x64xf32, #tpu.memory_space<vmem>>, vector<2x64xf32>
    tpu.vector_store %arg8[%c0_9, %c0_10], %11 {strides = array<i32>} : memref<2x64xf32, #tpu.memory_space<vmem>>, vector<2x64xf32>,
    %c0_i32_11 = arith.constant 0 : i32
    %13 = arith.cmpi eq, %arg2, %c0_i32_11 : i32
    %14 = arith.extui %13 : i1 to i32
    %c0_i32_12 = arith.constant 0 : i32
    %15 = arith.cmpi ne, %14, %c0_i32_12 : i32
    scf.if %15 {
      %c0_13 = arith.constant 0 : index
      %c0_14 = arith.constant 0 : index
      %16 = vector.load %arg8[%c0_13, %c0_14] : memref<2x64xf32, #tpu.memory_space<vmem>>, vector<2x64xf32>
      %c0_15 = arith.constant 0 : index
      %c0_16 = arith.constant 0 : index
      %17 = vector.load %arg5[%c0_15, %c0_16] : memref<1x64xf32, #tpu.memory_space<vmem>>, vector<1x64xf32>
      %18 = vector.broadcast %17 : vector<1x64xf32> to vector<2x64xf32>
      %19 = arith.addf %16, %18 : vector<2x64xf32>
      %cst_17 = arith.constant dense<0.000000e+00> : vector<64xf32>
      %20 = vector.multi_reduction <add>, %19, %cst_17 [0] : vector<2x64xf32> to vector<64xf32>
      %21 = vector.shape_cast %20 : vector<64xf32> to vector<1x64xf32>
      %22 = arith.mulf %19, %19 : vector<2x64xf32>
      %cst_18 = arith.constant dense<0.000000e+00> : vector<64xf32>
      %23 = vector.multi_reduction <add>, %22, %cst_18 [0] : vector<2x64xf32> to vector<64xf32>
      %24 = vector.shape_cast %23 : vector<64xf32> to vector<1x64xf32>
      %cst_19 = arith.constant 0.000000e+00 : f32
      %25 = vector.broadcast %cst_19 : f32 to vector<6x64xf32>
      %26 = tpu.concatenate %21, %24, %25 in 0 : vector<1x64xf32>, vector<1x64xf32>, vector<6x64xf32> -> vector<8x64xf32>
      %c0_20 = arith.constant 0 : index
      %c0_21 = arith.constant 0 : index
      %c0_22 = arith.constant 0 : index
      %c0_23 = arith.constant 0 : index
      %27 = vector.load %arg7[%c0_20, %c0_21, %c0_22, %c0_23] : memref<1x1x8x64xf32, #tpu.memory_space<vmem>>, vector<1x1x8x64xf32>
      %28 = vector.shape_cast %27 : vector<1x1x8x64xf32> to vector<8x64xf32>
      %29 = vector.shape_cast %26 : vector<8x64xf32> to vector<1x1x8x64xf32>
      tpu.vector_store %arg7[%c0_20, %c0_21, %c0_22, %c0_23], %29 {strides = array<i32>} : memref<1x1x8x64xf32, #tpu.memory_space<vmem>>, vector<1x1x8x64xf32>,
      %c0_24 = arith.constant 0 : index
      %c0_25 = arith.constant 0 : index
      %c0_26 = arith.constant 0 : index
      %30 = vector.load %arg6[%c0_24, %c0_25, %c0_26] : memref<1x2x64xf32, #tpu.memory_space<vmem>>, vector<1x2x64xf32>
      %31 = vector.shape_cast %30 : vector<1x2x64xf32> to vector<2x64xf32>
      %32 = vector.shape_cast %19 : vector<2x64xf32> to vector<1x2x64xf32>
      tpu.vector_store %arg6[%c0_24, %c0_25, %c0_26], %32 {strides = array<i32>} : memref<1x2x64xf32, #tpu.memory_space<vmem>>, vector<1x2x64xf32>,
    } else {
    }
    return
  }
  func.func @transform_0(%arg0: i32, %arg1: i32, %arg2: i32) -> (i32, i32, i32) {
    %c0_i32 = arith.constant 0 : i32
    return %arg0, %arg1, %arg2 : i32, i32, i32
  }
  func.func @transform_1(%arg0: i32, %arg1: i32, %arg2: i32) -> (i32, i32, i32) {
    %c0_i32 = arith.constant 0 : i32
    %c0_i32_0 = arith.constant 0 : i32
    return %arg0, %arg2, %c0_i32 : i32, i32, i32
  }
  func.func @transform_2(%arg0: i32, %arg1: i32, %arg2: i32) -> (i32, i32) {
    %c0_i32 = arith.constant 0 : i32
    %c0_i32_0 = arith.constant 0 : i32
    %c0_i32_1 = arith.constant 0 : i32
    return %c0_i32, %c0_i32_0 : i32, i32
  }
  func.func @transform_3(%arg0: i32, %arg1: i32, %arg2: i32) -> (i32, i32, i32) {
    %c0_i32 = arith.constant 0 : i32
    %c0_i32_0 = arith.constant 0 : i32
    return %arg0, %arg1, %c0_i32 : i32, i32, i32
  }
  func.func @transform_4(%arg0: i32, %arg1: i32, %arg2: i32) -> (i32, i32, i32, i32) {
    %c0_i32 = arith.constant 0 : i32
    %c0_i32_0 = arith.constant 0 : i32
    %c0_i32_1 = arith.constant 0 : i32
    return %arg0, %arg1, %c0_i32, %c0_i32_0 : i32, i32, i32, i32
  }
}

module attributes {stable_mosaic.version = 11 : i64} {
  func.func @_fused_conv_kernel(%arg0: i32, %arg1: i32, %arg2: i32, %arg3: memref<1x8x512xbf16, #tpu.memory_space<vmem>>, %arg4: memref<1x512x32xbf16, #tpu.memory_space<vmem>>, %arg5: memref<1x32xf32, #tpu.memory_space<vmem>>, %arg6: memref<1x8x32xf32, #tpu.memory_space<vmem>>, %arg7: memref<1x1x8x32xf32, #tpu.memory_space<vmem>>, %arg8: memref<8x32xf32, #tpu.memory_space<vmem>>) attributes {dimension_semantics = [#tpu.dimension_semantics<parallel>, #tpu.dimension_semantics<parallel>, #tpu.dimension_semantics<arbitrary>], iteration_bounds = array<i64: 4, 1, 1>, scalar_prefetch = 0 : i64, scratch_operands = 1 : i64, tpu.core_type = #tpu.core_type<tc>, window_params = [{transform_indices = @transform_0, window_bounds = array<i64: 1, 8, 512>}, {transform_indices = @transform_1, window_bounds = array<i64: 1, 512, 32>}, {pipeline_mode = #tpu.pipeline_mode<synchronous>, transform_indices = @transform_2, window_bounds = array<i64: 1, 32>}, {transform_indices = @transform_3, window_bounds = array<i64: 1, 8, 32>}, {transform_indices = @transform_4, window_bounds = array<i64: 1, 1, 8, 32>}]} {
    %c0_i32 = arith.constant 0 : i32
    %0 = arith.cmpi eq, %arg2, %c0_i32 : i32
    %1 = arith.extui %0 : i1 to i32
    %c0_i32_0 = arith.constant 0 : i32
    %2 = arith.cmpi ne, %1, %c0_i32_0 : i32
    scf.if %2 {
      %cst_13 = arith.constant 0.000000e+00 : f32
      %16 = vector.broadcast %cst_13 : f32 to vector<8x32xf32>
      %c0_14 = arith.constant 0 : index
      %c0_15 = arith.constant 0 : index
      %17 = vector.load %arg8[%c0_14, %c0_15] : memref<8x32xf32, #tpu.memory_space<vmem>>, vector<8x32xf32>
      tpu.vector_store %arg8[%c0_14, %c0_15], %16 {strides = array<i32>} : memref<8x32xf32, #tpu.memory_space<vmem>>, vector<8x32xf32>,
    } else {
    }
    %c0 = arith.constant 0 : index
    %c0_1 = arith.constant 0 : index
    %c0_2 = arith.constant 0 : index
    %3 = vector.load %arg3[%c0, %c0_1, %c0_2] : memref<1x8x512xbf16, #tpu.memory_space<vmem>>, vector<1x8x512xbf16>
    %4 = vector.shape_cast %3 : vector<1x8x512xbf16> to vector<8x512xbf16>
    %cst = arith.constant 0.000000e+00 : bf16
    %5 = vector.broadcast %cst : bf16 to vector<8x512xbf16>
    %6 = arith.maximumf %4, %5 : vector<8x512xbf16>
    %c0_3 = arith.constant 0 : index
    %c0_4 = arith.constant 0 : index
    %7 = vector.load %arg8[%c0_3, %c0_4] : memref<8x32xf32, #tpu.memory_space<vmem>>, vector<8x32xf32>
    %c0_5 = arith.constant 0 : index
    %c0_6 = arith.constant 0 : index
    %c0_7 = arith.constant 0 : index
    %8 = vector.load %arg4[%c0_5, %c0_6, %c0_7] : memref<1x512x32xbf16, #tpu.memory_space<vmem>>, vector<1x512x32xbf16>
    %9 = vector.shape_cast %8 : vector<1x512x32xbf16> to vector<512x32xbf16>
    %cst_8 = arith.constant dense<0.000000e+00> : vector<8x32xf32>
    %10 = tpu.matmul %6, %9, %cst_8 {dimension_numbers = #tpu.dot_dimension_numbers<[1], [0], [0], [1], [0, 0, 1, 1], [], []>} : vector<8x512xbf16>, vector<512x32xbf16>, vector<8x32xf32> -> vector<8x32xf32>
    %11 = arith.addf %7, %10 : vector<8x32xf32>
    %c0_9 = arith.constant 0 : index
    %c0_10 = arith.constant 0 : index
    %12 = vector.load %arg8[%c0_9, %c0_10] : memref<8x32xf32, #tpu.memory_space<vmem>>, vector<8x32xf32>
    tpu.vector_store %arg8[%c0_9, %c0_10], %11 {strides = array<i32>} : memref<8x32xf32, #tpu.memory_space<vmem>>, vector<8x32xf32>,
    %c0_i32_11 = arith.constant 0 : i32
    %13 = arith.cmpi eq, %arg2, %c0_i32_11 : i32
    %14 = arith.extui %13 : i1 to i32
    %c0_i32_12 = arith.constant 0 : i32
    %15 = arith.cmpi ne, %14, %c0_i32_12 : i32
    scf.if %15 {
      %c0_13 = arith.constant 0 : index
      %c0_14 = arith.constant 0 : index
      %16 = vector.load %arg8[%c0_13, %c0_14] : memref<8x32xf32, #tpu.memory_space<vmem>>, vector<8x32xf32>
      %c0_15 = arith.constant 0 : index
      %c0_16 = arith.constant 0 : index
      %17 = vector.load %arg5[%c0_15, %c0_16] : memref<1x32xf32, #tpu.memory_space<vmem>>, vector<1x32xf32>
      %18 = vector.broadcast %17 : vector<1x32xf32> to vector<8x32xf32>
      %19 = arith.addf %16, %18 : vector<8x32xf32>
      %cst_17 = arith.constant dense<0.000000e+00> : vector<32xf32>
      %20 = vector.multi_reduction <add>, %19, %cst_17 [0] : vector<8x32xf32> to vector<32xf32>
      %21 = vector.shape_cast %20 : vector<32xf32> to vector<1x32xf32>
      %22 = arith.mulf %19, %19 : vector<8x32xf32>
      %cst_18 = arith.constant dense<0.000000e+00> : vector<32xf32>
      %23 = vector.multi_reduction <add>, %22, %cst_18 [0] : vector<8x32xf32> to vector<32xf32>
      %24 = vector.shape_cast %23 : vector<32xf32> to vector<1x32xf32>
      %cst_19 = arith.constant 0.000000e+00 : f32
      %25 = vector.broadcast %cst_19 : f32 to vector<6x32xf32>
      %26 = tpu.concatenate %21, %24, %25 in 0 : vector<1x32xf32>, vector<1x32xf32>, vector<6x32xf32> -> vector<8x32xf32>
      %c0_20 = arith.constant 0 : index
      %c0_21 = arith.constant 0 : index
      %c0_22 = arith.constant 0 : index
      %c0_23 = arith.constant 0 : index
      %27 = vector.load %arg7[%c0_20, %c0_21, %c0_22, %c0_23] : memref<1x1x8x32xf32, #tpu.memory_space<vmem>>, vector<1x1x8x32xf32>
      %28 = vector.shape_cast %27 : vector<1x1x8x32xf32> to vector<8x32xf32>
      %29 = vector.shape_cast %26 : vector<8x32xf32> to vector<1x1x8x32xf32>
      tpu.vector_store %arg7[%c0_20, %c0_21, %c0_22, %c0_23], %29 {strides = array<i32>} : memref<1x1x8x32xf32, #tpu.memory_space<vmem>>, vector<1x1x8x32xf32>,
      %c0_24 = arith.constant 0 : index
      %c0_25 = arith.constant 0 : index
      %c0_26 = arith.constant 0 : index
      %30 = vector.load %arg6[%c0_24, %c0_25, %c0_26] : memref<1x8x32xf32, #tpu.memory_space<vmem>>, vector<1x8x32xf32>
      %31 = vector.shape_cast %30 : vector<1x8x32xf32> to vector<8x32xf32>
      %32 = vector.shape_cast %19 : vector<8x32xf32> to vector<1x8x32xf32>
      tpu.vector_store %arg6[%c0_24, %c0_25, %c0_26], %32 {strides = array<i32>} : memref<1x8x32xf32, #tpu.memory_space<vmem>>, vector<1x8x32xf32>,
    } else {
    }
    return
  }
  func.func @transform_0(%arg0: i32, %arg1: i32, %arg2: i32) -> (i32, i32, i32) {
    %c0_i32 = arith.constant 0 : i32
    return %arg0, %arg1, %arg2 : i32, i32, i32
  }
  func.func @transform_1(%arg0: i32, %arg1: i32, %arg2: i32) -> (i32, i32, i32) {
    %c0_i32 = arith.constant 0 : i32
    %c0_i32_0 = arith.constant 0 : i32
    return %arg0, %arg2, %c0_i32 : i32, i32, i32
  }
  func.func @transform_2(%arg0: i32, %arg1: i32, %arg2: i32) -> (i32, i32) {
    %c0_i32 = arith.constant 0 : i32
    %c0_i32_0 = arith.constant 0 : i32
    %c0_i32_1 = arith.constant 0 : i32
    return %c0_i32, %c0_i32_0 : i32, i32
  }
  func.func @transform_3(%arg0: i32, %arg1: i32, %arg2: i32) -> (i32, i32, i32) {
    %c0_i32 = arith.constant 0 : i32
    %c0_i32_0 = arith.constant 0 : i32
    return %arg0, %arg1, %c0_i32 : i32, i32, i32
  }
  func.func @transform_4(%arg0: i32, %arg1: i32, %arg2: i32) -> (i32, i32, i32, i32) {
    %c0_i32 = arith.constant 0 : i32
    %c0_i32_0 = arith.constant 0 : i32
    %c0_i32_1 = arith.constant 0 : i32
    return %arg0, %arg1, %c0_i32, %c0_i32_0 : i32, i32, i32, i32
  }
}

module attributes {stable_mosaic.version = 11 : i64} {
  func.func @_fused_conv_kernel(%arg0: i32, %arg1: i32, %arg2: i32, %arg3: memref<1x32x256xbf16, #tpu.memory_space<vmem>>, %arg4: memref<1x256x16xbf16, #tpu.memory_space<vmem>>, %arg5: memref<1x16xf32, #tpu.memory_space<vmem>>, %arg6: memref<1x32x16xf32, #tpu.memory_space<vmem>>, %arg7: memref<1x1x8x16xf32, #tpu.memory_space<vmem>>, %arg8: memref<32x16xf32, #tpu.memory_space<vmem>>) attributes {dimension_semantics = [#tpu.dimension_semantics<parallel>, #tpu.dimension_semantics<parallel>, #tpu.dimension_semantics<arbitrary>], iteration_bounds = array<i64: 4, 1, 1>, scalar_prefetch = 0 : i64, scratch_operands = 1 : i64, tpu.core_type = #tpu.core_type<tc>, window_params = [{transform_indices = @transform_0, window_bounds = array<i64: 1, 32, 256>}, {transform_indices = @transform_1, window_bounds = array<i64: 1, 256, 16>}, {pipeline_mode = #tpu.pipeline_mode<synchronous>, transform_indices = @transform_2, window_bounds = array<i64: 1, 16>}, {transform_indices = @transform_3, window_bounds = array<i64: 1, 32, 16>}, {transform_indices = @transform_4, window_bounds = array<i64: 1, 1, 8, 16>}]} {
    %c0_i32 = arith.constant 0 : i32
    %0 = arith.cmpi eq, %arg2, %c0_i32 : i32
    %1 = arith.extui %0 : i1 to i32
    %c0_i32_0 = arith.constant 0 : i32
    %2 = arith.cmpi ne, %1, %c0_i32_0 : i32
    scf.if %2 {
      %cst_13 = arith.constant 0.000000e+00 : f32
      %16 = vector.broadcast %cst_13 : f32 to vector<32x16xf32>
      %c0_14 = arith.constant 0 : index
      %c0_15 = arith.constant 0 : index
      %17 = vector.load %arg8[%c0_14, %c0_15] : memref<32x16xf32, #tpu.memory_space<vmem>>, vector<32x16xf32>
      tpu.vector_store %arg8[%c0_14, %c0_15], %16 {strides = array<i32>} : memref<32x16xf32, #tpu.memory_space<vmem>>, vector<32x16xf32>,
    } else {
    }
    %c0 = arith.constant 0 : index
    %c0_1 = arith.constant 0 : index
    %c0_2 = arith.constant 0 : index
    %3 = vector.load %arg3[%c0, %c0_1, %c0_2] : memref<1x32x256xbf16, #tpu.memory_space<vmem>>, vector<1x32x256xbf16>
    %4 = vector.shape_cast %3 : vector<1x32x256xbf16> to vector<32x256xbf16>
    %cst = arith.constant 0.000000e+00 : bf16
    %5 = vector.broadcast %cst : bf16 to vector<32x256xbf16>
    %6 = arith.maximumf %4, %5 : vector<32x256xbf16>
    %c0_3 = arith.constant 0 : index
    %c0_4 = arith.constant 0 : index
    %7 = vector.load %arg8[%c0_3, %c0_4] : memref<32x16xf32, #tpu.memory_space<vmem>>, vector<32x16xf32>
    %c0_5 = arith.constant 0 : index
    %c0_6 = arith.constant 0 : index
    %c0_7 = arith.constant 0 : index
    %8 = vector.load %arg4[%c0_5, %c0_6, %c0_7] : memref<1x256x16xbf16, #tpu.memory_space<vmem>>, vector<1x256x16xbf16>
    %9 = vector.shape_cast %8 : vector<1x256x16xbf16> to vector<256x16xbf16>
    %cst_8 = arith.constant dense<0.000000e+00> : vector<32x16xf32>
    %10 = tpu.matmul %6, %9, %cst_8 {dimension_numbers = #tpu.dot_dimension_numbers<[1], [0], [0], [1], [0, 0, 1, 1], [], []>} : vector<32x256xbf16>, vector<256x16xbf16>, vector<32x16xf32> -> vector<32x16xf32>
    %11 = arith.addf %7, %10 : vector<32x16xf32>
    %c0_9 = arith.constant 0 : index
    %c0_10 = arith.constant 0 : index
    %12 = vector.load %arg8[%c0_9, %c0_10] : memref<32x16xf32, #tpu.memory_space<vmem>>, vector<32x16xf32>
    tpu.vector_store %arg8[%c0_9, %c0_10], %11 {strides = array<i32>} : memref<32x16xf32, #tpu.memory_space<vmem>>, vector<32x16xf32>,
    %c0_i32_11 = arith.constant 0 : i32
    %13 = arith.cmpi eq, %arg2, %c0_i32_11 : i32
    %14 = arith.extui %13 : i1 to i32
    %c0_i32_12 = arith.constant 0 : i32
    %15 = arith.cmpi ne, %14, %c0_i32_12 : i32
    scf.if %15 {
      %c0_13 = arith.constant 0 : index
      %c0_14 = arith.constant 0 : index
      %16 = vector.load %arg8[%c0_13, %c0_14] : memref<32x16xf32, #tpu.memory_space<vmem>>, vector<32x16xf32>
      %c0_15 = arith.constant 0 : index
      %c0_16 = arith.constant 0 : index
      %17 = vector.load %arg5[%c0_15, %c0_16] : memref<1x16xf32, #tpu.memory_space<vmem>>, vector<1x16xf32>
      %18 = vector.broadcast %17 : vector<1x16xf32> to vector<32x16xf32>
      %19 = arith.addf %16, %18 : vector<32x16xf32>
      %cst_17 = arith.constant dense<0.000000e+00> : vector<16xf32>
      %20 = vector.multi_reduction <add>, %19, %cst_17 [0] : vector<32x16xf32> to vector<16xf32>
      %21 = vector.shape_cast %20 : vector<16xf32> to vector<1x16xf32>
      %22 = arith.mulf %19, %19 : vector<32x16xf32>
      %cst_18 = arith.constant dense<0.000000e+00> : vector<16xf32>
      %23 = vector.multi_reduction <add>, %22, %cst_18 [0] : vector<32x16xf32> to vector<16xf32>
      %24 = vector.shape_cast %23 : vector<16xf32> to vector<1x16xf32>
      %cst_19 = arith.constant 0.000000e+00 : f32
      %25 = vector.broadcast %cst_19 : f32 to vector<6x16xf32>
      %26 = tpu.concatenate %21, %24, %25 in 0 : vector<1x16xf32>, vector<1x16xf32>, vector<6x16xf32> -> vector<8x16xf32>
      %c0_20 = arith.constant 0 : index
      %c0_21 = arith.constant 0 : index
      %c0_22 = arith.constant 0 : index
      %c0_23 = arith.constant 0 : index
      %27 = vector.load %arg7[%c0_20, %c0_21, %c0_22, %c0_23] : memref<1x1x8x16xf32, #tpu.memory_space<vmem>>, vector<1x1x8x16xf32>
      %28 = vector.shape_cast %27 : vector<1x1x8x16xf32> to vector<8x16xf32>
      %29 = vector.shape_cast %26 : vector<8x16xf32> to vector<1x1x8x16xf32>
      tpu.vector_store %arg7[%c0_20, %c0_21, %c0_22, %c0_23], %29 {strides = array<i32>} : memref<1x1x8x16xf32, #tpu.memory_space<vmem>>, vector<1x1x8x16xf32>,
      %c0_24 = arith.constant 0 : index
      %c0_25 = arith.constant 0 : index
      %c0_26 = arith.constant 0 : index
      %30 = vector.load %arg6[%c0_24, %c0_25, %c0_26] : memref<1x32x16xf32, #tpu.memory_space<vmem>>, vector<1x32x16xf32>
      %31 = vector.shape_cast %30 : vector<1x32x16xf32> to vector<32x16xf32>
      %32 = vector.shape_cast %19 : vector<32x16xf32> to vector<1x32x16xf32>
      tpu.vector_store %arg6[%c0_24, %c0_25, %c0_26], %32 {strides = array<i32>} : memref<1x32x16xf32, #tpu.memory_space<vmem>>, vector<1x32x16xf32>,
    } else {
    }
    return
  }
  func.func @transform_0(%arg0: i32, %arg1: i32, %arg2: i32) -> (i32, i32, i32) {
    %c0_i32 = arith.constant 0 : i32
    return %arg0, %arg1, %arg2 : i32, i32, i32
  }
  func.func @transform_1(%arg0: i32, %arg1: i32, %arg2: i32) -> (i32, i32, i32) {
    %c0_i32 = arith.constant 0 : i32
    %c0_i32_0 = arith.constant 0 : i32
    return %arg0, %arg2, %c0_i32 : i32, i32, i32
  }
  func.func @transform_2(%arg0: i32, %arg1: i32, %arg2: i32) -> (i32, i32) {
    %c0_i32 = arith.constant 0 : i32
    %c0_i32_0 = arith.constant 0 : i32
    %c0_i32_1 = arith.constant 0 : i32
    return %c0_i32, %c0_i32_0 : i32, i32
  }
  func.func @transform_3(%arg0: i32, %arg1: i32, %arg2: i32) -> (i32, i32, i32) {
    %c0_i32 = arith.constant 0 : i32
    %c0_i32_0 = arith.constant 0 : i32
    return %arg0, %arg1, %c0_i32 : i32, i32, i32
  }
  func.func @transform_4(%arg0: i32, %arg1: i32, %arg2: i32) -> (i32, i32, i32, i32) {
    %c0_i32 = arith.constant 0 : i32
    %c0_i32_0 = arith.constant 0 : i32
    %c0_i32_1 = arith.constant 0 : i32
    return %arg0, %arg1, %c0_i32, %c0_i32_0 : i32, i32, i32, i32
  }
}

module attributes {stable_mosaic.version = 11 : i64} {
  func.func @_fused_conv_kernel(%arg0: i32, %arg1: i32, %arg2: i32, %arg3: memref<1x128x128xbf16, #tpu.memory_space<vmem>>, %arg4: memref<1x128x8xbf16, #tpu.memory_space<vmem>>, %arg5: memref<1x8xf32, #tpu.memory_space<vmem>>, %arg6: memref<1x128x8xf32, #tpu.memory_space<vmem>>, %arg7: memref<1x1x8x8xf32, #tpu.memory_space<vmem>>, %arg8: memref<128x8xf32, #tpu.memory_space<vmem>>) attributes {dimension_semantics = [#tpu.dimension_semantics<parallel>, #tpu.dimension_semantics<parallel>, #tpu.dimension_semantics<arbitrary>], iteration_bounds = array<i64: 4, 1, 1>, scalar_prefetch = 0 : i64, scratch_operands = 1 : i64, tpu.core_type = #tpu.core_type<tc>, window_params = [{transform_indices = @transform_0, window_bounds = array<i64: 1, 128, 128>}, {transform_indices = @transform_1, window_bounds = array<i64: 1, 128, 8>}, {pipeline_mode = #tpu.pipeline_mode<synchronous>, transform_indices = @transform_2, window_bounds = array<i64: 1, 8>}, {transform_indices = @transform_3, window_bounds = array<i64: 1, 128, 8>}, {transform_indices = @transform_4, window_bounds = array<i64: 1, 1, 8, 8>}]} {
    %c0_i32 = arith.constant 0 : i32
    %0 = arith.cmpi eq, %arg2, %c0_i32 : i32
    %1 = arith.extui %0 : i1 to i32
    %c0_i32_0 = arith.constant 0 : i32
    %2 = arith.cmpi ne, %1, %c0_i32_0 : i32
    scf.if %2 {
      %cst_13 = arith.constant 0.000000e+00 : f32
      %16 = vector.broadcast %cst_13 : f32 to vector<128x8xf32>
      %c0_14 = arith.constant 0 : index
      %c0_15 = arith.constant 0 : index
      %17 = vector.load %arg8[%c0_14, %c0_15] : memref<128x8xf32, #tpu.memory_space<vmem>>, vector<128x8xf32>
      tpu.vector_store %arg8[%c0_14, %c0_15], %16 {strides = array<i32>} : memref<128x8xf32, #tpu.memory_space<vmem>>, vector<128x8xf32>,
    } else {
    }
    %c0 = arith.constant 0 : index
    %c0_1 = arith.constant 0 : index
    %c0_2 = arith.constant 0 : index
    %3 = vector.load %arg3[%c0, %c0_1, %c0_2] : memref<1x128x128xbf16, #tpu.memory_space<vmem>>, vector<1x128x128xbf16>
    %4 = vector.shape_cast %3 : vector<1x128x128xbf16> to vector<128x128xbf16>
    %cst = arith.constant 0.000000e+00 : bf16
    %5 = vector.broadcast %cst : bf16 to vector<128x128xbf16>
    %6 = arith.maximumf %4, %5 : vector<128x128xbf16>
    %c0_3 = arith.constant 0 : index
    %c0_4 = arith.constant 0 : index
    %7 = vector.load %arg8[%c0_3, %c0_4] : memref<128x8xf32, #tpu.memory_space<vmem>>, vector<128x8xf32>
    %c0_5 = arith.constant 0 : index
    %c0_6 = arith.constant 0 : index
    %c0_7 = arith.constant 0 : index
    %8 = vector.load %arg4[%c0_5, %c0_6, %c0_7] : memref<1x128x8xbf16, #tpu.memory_space<vmem>>, vector<1x128x8xbf16>
    %9 = vector.shape_cast %8 : vector<1x128x8xbf16> to vector<128x8xbf16>
    %cst_8 = arith.constant dense<0.000000e+00> : vector<128x8xf32>
    %10 = tpu.matmul %6, %9, %cst_8 {dimension_numbers = #tpu.dot_dimension_numbers<[1], [0], [0], [1], [0, 0, 1, 1], [], []>} : vector<128x128xbf16>, vector<128x8xbf16>, vector<128x8xf32> -> vector<128x8xf32>
    %11 = arith.addf %7, %10 : vector<128x8xf32>
    %c0_9 = arith.constant 0 : index
    %c0_10 = arith.constant 0 : index
    %12 = vector.load %arg8[%c0_9, %c0_10] : memref<128x8xf32, #tpu.memory_space<vmem>>, vector<128x8xf32>
    tpu.vector_store %arg8[%c0_9, %c0_10], %11 {strides = array<i32>} : memref<128x8xf32, #tpu.memory_space<vmem>>, vector<128x8xf32>,
    %c0_i32_11 = arith.constant 0 : i32
    %13 = arith.cmpi eq, %arg2, %c0_i32_11 : i32
    %14 = arith.extui %13 : i1 to i32
    %c0_i32_12 = arith.constant 0 : i32
    %15 = arith.cmpi ne, %14, %c0_i32_12 : i32
    scf.if %15 {
      %c0_13 = arith.constant 0 : index
      %c0_14 = arith.constant 0 : index
      %16 = vector.load %arg8[%c0_13, %c0_14] : memref<128x8xf32, #tpu.memory_space<vmem>>, vector<128x8xf32>
      %c0_15 = arith.constant 0 : index
      %c0_16 = arith.constant 0 : index
      %17 = vector.load %arg5[%c0_15, %c0_16] : memref<1x8xf32, #tpu.memory_space<vmem>>, vector<1x8xf32>
      %18 = vector.broadcast %17 : vector<1x8xf32> to vector<128x8xf32>
      %19 = arith.addf %16, %18 : vector<128x8xf32>
      %cst_17 = arith.constant dense<0.000000e+00> : vector<8xf32>
      %20 = vector.multi_reduction <add>, %19, %cst_17 [0] : vector<128x8xf32> to vector<8xf32>
      %21 = vector.shape_cast %20 : vector<8xf32> to vector<1x8xf32>
      %22 = arith.mulf %19, %19 : vector<128x8xf32>
      %cst_18 = arith.constant dense<0.000000e+00> : vector<8xf32>
      %23 = vector.multi_reduction <add>, %22, %cst_18 [0] : vector<128x8xf32> to vector<8xf32>
      %24 = vector.shape_cast %23 : vector<8xf32> to vector<1x8xf32>
      %cst_19 = arith.constant 0.000000e+00 : f32
      %25 = vector.broadcast %cst_19 : f32 to vector<6x8xf32>
      %26 = tpu.concatenate %21, %24, %25 in 0 : vector<1x8xf32>, vector<1x8xf32>, vector<6x8xf32> -> vector<8x8xf32>
      %c0_20 = arith.constant 0 : index
      %c0_21 = arith.constant 0 : index
      %c0_22 = arith.constant 0 : index
      %c0_23 = arith.constant 0 : index
      %27 = vector.load %arg7[%c0_20, %c0_21, %c0_22, %c0_23] : memref<1x1x8x8xf32, #tpu.memory_space<vmem>>, vector<1x1x8x8xf32>
      %28 = vector.shape_cast %27 : vector<1x1x8x8xf32> to vector<8x8xf32>
      %29 = vector.shape_cast %26 : vector<8x8xf32> to vector<1x1x8x8xf32>
      tpu.vector_store %arg7[%c0_20, %c0_21, %c0_22, %c0_23], %29 {strides = array<i32>} : memref<1x1x8x8xf32, #tpu.memory_space<vmem>>, vector<1x1x8x8xf32>,
      %c0_24 = arith.constant 0 : index
      %c0_25 = arith.constant 0 : index
      %c0_26 = arith.constant 0 : index
      %30 = vector.load %arg6[%c0_24, %c0_25, %c0_26] : memref<1x128x8xf32, #tpu.memory_space<vmem>>, vector<1x128x8xf32>
      %31 = vector.shape_cast %30 : vector<1x128x8xf32> to vector<128x8xf32>
      %32 = vector.shape_cast %19 : vector<128x8xf32> to vector<1x128x8xf32>
      tpu.vector_store %arg6[%c0_24, %c0_25, %c0_26], %32 {strides = array<i32>} : memref<1x128x8xf32, #tpu.memory_space<vmem>>, vector<1x128x8xf32>,
    } else {
    }
    return
  }
  func.func @transform_0(%arg0: i32, %arg1: i32, %arg2: i32) -> (i32, i32, i32) {
    %c0_i32 = arith.constant 0 : i32
    return %arg0, %arg1, %arg2 : i32, i32, i32
  }
  func.func @transform_1(%arg0: i32, %arg1: i32, %arg2: i32) -> (i32, i32, i32) {
    %c0_i32 = arith.constant 0 : i32
    %c0_i32_0 = arith.constant 0 : i32
    return %arg0, %arg2, %c0_i32 : i32, i32, i32
  }
  func.func @transform_2(%arg0: i32, %arg1: i32, %arg2: i32) -> (i32, i32) {
    %c0_i32 = arith.constant 0 : i32
    %c0_i32_0 = arith.constant 0 : i32
    %c0_i32_1 = arith.constant 0 : i32
    return %c0_i32, %c0_i32_0 : i32, i32
  }
  func.func @transform_3(%arg0: i32, %arg1: i32, %arg2: i32) -> (i32, i32, i32) {
    %c0_i32 = arith.constant 0 : i32
    %c0_i32_0 = arith.constant 0 : i32
    return %arg0, %arg1, %c0_i32 : i32, i32, i32
  }
  func.func @transform_4(%arg0: i32, %arg1: i32, %arg2: i32) -> (i32, i32, i32, i32) {
    %c0_i32 = arith.constant 0 : i32
    %c0_i32_0 = arith.constant 0 : i32
    %c0_i32_1 = arith.constant 0 : i32
    return %arg0, %arg1, %c0_i32, %c0_i32_0 : i32, i32, i32, i32
  }
}

module attributes {stable_mosaic.version = 11 : i64} {
  func.func @_affine_kernel(%arg0: i32, %arg1: memref<32x128xf32, #tpu.memory_space<vmem>>, %arg2: memref<1x128xf32, #tpu.memory_space<vmem>>, %arg3: memref<1x128xf32, #tpu.memory_space<vmem>>, %arg4: memref<32x128xf32, #tpu.memory_space<vmem>>) attributes {dimension_semantics = [#tpu.dimension_semantics<parallel>], iteration_bounds = array<i64: 1>, scalar_prefetch = 0 : i64, scratch_operands = 0 : i64, tpu.core_type = #tpu.core_type<tc>, window_params = [{transform_indices = @transform_0, window_bounds = array<i64: 32, 128>}, {pipeline_mode = #tpu.pipeline_mode<synchronous>, transform_indices = @transform_1, window_bounds = array<i64: 1, 128>}, {pipeline_mode = #tpu.pipeline_mode<synchronous>, transform_indices = @transform_2, window_bounds = array<i64: 1, 128>}, {transform_indices = @transform_3, window_bounds = array<i64: 32, 128>}]} {
    %c0 = arith.constant 0 : index
    %c0_0 = arith.constant 0 : index
    %0 = vector.load %arg1[%c0, %c0_0] : memref<32x128xf32, #tpu.memory_space<vmem>>, vector<32x128xf32>
    %c0_1 = arith.constant 0 : index
    %c0_2 = arith.constant 0 : index
    %1 = vector.load %arg2[%c0_1, %c0_2] : memref<1x128xf32, #tpu.memory_space<vmem>>, vector<1x128xf32>
    %2 = vector.broadcast %1 : vector<1x128xf32> to vector<32x128xf32>
    %3 = arith.mulf %0, %2 : vector<32x128xf32>
    %c0_3 = arith.constant 0 : index
    %c0_4 = arith.constant 0 : index
    %4 = vector.load %arg3[%c0_3, %c0_4] : memref<1x128xf32, #tpu.memory_space<vmem>>, vector<1x128xf32>
    %5 = vector.broadcast %4 : vector<1x128xf32> to vector<32x128xf32>
    %6 = arith.addf %3, %5 : vector<32x128xf32>
    %c0_5 = arith.constant 0 : index
    %c0_6 = arith.constant 0 : index
    %7 = vector.load %arg4[%c0_5, %c0_6] : memref<32x128xf32, #tpu.memory_space<vmem>>, vector<32x128xf32>
    tpu.vector_store %arg4[%c0_5, %c0_6], %6 {strides = array<i32>} : memref<32x128xf32, #tpu.memory_space<vmem>>, vector<32x128xf32>,
    return
  }
  func.func @transform_0(%arg0: i32) -> (i32, i32) {
    %c0_i32 = arith.constant 0 : i32
    %c0_i32_0 = arith.constant 0 : i32
    return %arg0, %c0_i32 : i32, i32
  }
  func.func @transform_1(%arg0: i32) -> (i32, i32) {
    %c0_i32 = arith.constant 0 : i32
    %c0_i32_0 = arith.constant 0 : i32
    %c0_i32_1 = arith.constant 0 : i32
    return %c0_i32, %c0_i32_0 : i32, i32
  }
  func.func @transform_2(%arg0: i32) -> (i32, i32) {
    %c0_i32 = arith.constant 0 : i32
    %c0_i32_0 = arith.constant 0 : i32
    %c0_i32_1 = arith.constant 0 : i32
    return %c0_i32, %c0_i32_0 : i32, i32
  }
  func.func @transform_3(%arg0: i32) -> (i32, i32) {
    %c0_i32 = arith.constant 0 : i32
    %c0_i32_0 = arith.constant 0 : i32
    return %arg0, %c0_i32 : i32, i32
  }
}

module attributes {stable_mosaic.version = 11 : i64} {
  func.func @_fused_conv_kernel(%arg0: i32, %arg1: i32, %arg2: i32, %arg3: memref<1x512x64xbf16, #tpu.memory_space<vmem>>, %arg4: memref<1x64x3xbf16, #tpu.memory_space<vmem>>, %arg5: memref<1x3xf32, #tpu.memory_space<vmem>>, %arg6: memref<1x512x3xf32, #tpu.memory_space<vmem>>, %arg7: memref<1x1x8x3xf32, #tpu.memory_space<vmem>>, %arg8: memref<512x3xf32, #tpu.memory_space<vmem>>) attributes {dimension_semantics = [#tpu.dimension_semantics<parallel>, #tpu.dimension_semantics<parallel>, #tpu.dimension_semantics<arbitrary>], iteration_bounds = array<i64: 4, 1, 1>, scalar_prefetch = 0 : i64, scratch_operands = 1 : i64, tpu.core_type = #tpu.core_type<tc>, window_params = [{transform_indices = @transform_0, window_bounds = array<i64: 1, 512, 64>}, {transform_indices = @transform_1, window_bounds = array<i64: 1, 64, 3>}, {pipeline_mode = #tpu.pipeline_mode<synchronous>, transform_indices = @transform_2, window_bounds = array<i64: 1, 3>}, {transform_indices = @transform_3, window_bounds = array<i64: 1, 512, 3>}, {transform_indices = @transform_4, window_bounds = array<i64: 1, 1, 8, 3>}]} {
    %c0_i32 = arith.constant 0 : i32
    %0 = arith.cmpi eq, %arg2, %c0_i32 : i32
    %1 = arith.extui %0 : i1 to i32
    %c0_i32_0 = arith.constant 0 : i32
    %2 = arith.cmpi ne, %1, %c0_i32_0 : i32
    scf.if %2 {
      %cst_13 = arith.constant 0.000000e+00 : f32
      %16 = vector.broadcast %cst_13 : f32 to vector<512x3xf32>
      %c0_14 = arith.constant 0 : index
      %c0_15 = arith.constant 0 : index
      %17 = vector.load %arg8[%c0_14, %c0_15] : memref<512x3xf32, #tpu.memory_space<vmem>>, vector<512x3xf32>
      tpu.vector_store %arg8[%c0_14, %c0_15], %16 {strides = array<i32>} : memref<512x3xf32, #tpu.memory_space<vmem>>, vector<512x3xf32>,
    } else {
    }
    %c0 = arith.constant 0 : index
    %c0_1 = arith.constant 0 : index
    %c0_2 = arith.constant 0 : index
    %3 = vector.load %arg3[%c0, %c0_1, %c0_2] : memref<1x512x64xbf16, #tpu.memory_space<vmem>>, vector<1x512x64xbf16>
    %4 = vector.shape_cast %3 : vector<1x512x64xbf16> to vector<512x64xbf16>
    %cst = arith.constant 0.000000e+00 : bf16
    %5 = vector.broadcast %cst : bf16 to vector<512x64xbf16>
    %6 = arith.maximumf %4, %5 : vector<512x64xbf16>
    %c0_3 = arith.constant 0 : index
    %c0_4 = arith.constant 0 : index
    %7 = vector.load %arg8[%c0_3, %c0_4] : memref<512x3xf32, #tpu.memory_space<vmem>>, vector<512x3xf32>
    %c0_5 = arith.constant 0 : index
    %c0_6 = arith.constant 0 : index
    %c0_7 = arith.constant 0 : index
    %8 = vector.load %arg4[%c0_5, %c0_6, %c0_7] : memref<1x64x3xbf16, #tpu.memory_space<vmem>>, vector<1x64x3xbf16>
    %9 = vector.shape_cast %8 : vector<1x64x3xbf16> to vector<64x3xbf16>
    %cst_8 = arith.constant dense<0.000000e+00> : vector<512x3xf32>
    %10 = tpu.matmul %6, %9, %cst_8 {dimension_numbers = #tpu.dot_dimension_numbers<[1], [0], [0], [1], [0, 0, 1, 1], [], []>} : vector<512x64xbf16>, vector<64x3xbf16>, vector<512x3xf32> -> vector<512x3xf32>
    %11 = arith.addf %7, %10 : vector<512x3xf32>
    %c0_9 = arith.constant 0 : index
    %c0_10 = arith.constant 0 : index
    %12 = vector.load %arg8[%c0_9, %c0_10] : memref<512x3xf32, #tpu.memory_space<vmem>>, vector<512x3xf32>
    tpu.vector_store %arg8[%c0_9, %c0_10], %11 {strides = array<i32>} : memref<512x3xf32, #tpu.memory_space<vmem>>, vector<512x3xf32>,
    %c0_i32_11 = arith.constant 0 : i32
    %13 = arith.cmpi eq, %arg2, %c0_i32_11 : i32
    %14 = arith.extui %13 : i1 to i32
    %c0_i32_12 = arith.constant 0 : i32
    %15 = arith.cmpi ne, %14, %c0_i32_12 : i32
    scf.if %15 {
      %c0_13 = arith.constant 0 : index
      %c0_14 = arith.constant 0 : index
      %16 = vector.load %arg8[%c0_13, %c0_14] : memref<512x3xf32, #tpu.memory_space<vmem>>, vector<512x3xf32>
      %c0_15 = arith.constant 0 : index
      %c0_16 = arith.constant 0 : index
      %17 = vector.load %arg5[%c0_15, %c0_16] : memref<1x3xf32, #tpu.memory_space<vmem>>, vector<1x3xf32>
      %18 = vector.broadcast %17 : vector<1x3xf32> to vector<512x3xf32>
      %19 = arith.addf %16, %18 : vector<512x3xf32>
      %cst_17 = arith.constant dense<0.000000e+00> : vector<3xf32>
      %20 = vector.multi_reduction <add>, %19, %cst_17 [0] : vector<512x3xf32> to vector<3xf32>
      %21 = vector.shape_cast %20 : vector<3xf32> to vector<1x3xf32>
      %22 = arith.mulf %19, %19 : vector<512x3xf32>
      %cst_18 = arith.constant dense<0.000000e+00> : vector<3xf32>
      %23 = vector.multi_reduction <add>, %22, %cst_18 [0] : vector<512x3xf32> to vector<3xf32>
      %24 = vector.shape_cast %23 : vector<3xf32> to vector<1x3xf32>
      %cst_19 = arith.constant 0.000000e+00 : f32
      %25 = vector.broadcast %cst_19 : f32 to vector<6x3xf32>
      %26 = tpu.concatenate %21, %24, %25 in 0 : vector<1x3xf32>, vector<1x3xf32>, vector<6x3xf32> -> vector<8x3xf32>
      %c0_20 = arith.constant 0 : index
      %c0_21 = arith.constant 0 : index
      %c0_22 = arith.constant 0 : index
      %c0_23 = arith.constant 0 : index
      %27 = vector.load %arg7[%c0_20, %c0_21, %c0_22, %c0_23] : memref<1x1x8x3xf32, #tpu.memory_space<vmem>>, vector<1x1x8x3xf32>
      %28 = vector.shape_cast %27 : vector<1x1x8x3xf32> to vector<8x3xf32>
      %29 = vector.shape_cast %26 : vector<8x3xf32> to vector<1x1x8x3xf32>
      tpu.vector_store %arg7[%c0_20, %c0_21, %c0_22, %c0_23], %29 {strides = array<i32>} : memref<1x1x8x3xf32, #tpu.memory_space<vmem>>, vector<1x1x8x3xf32>,
      %30 = math.tanh %19 : vector<512x3xf32>
      %c0_24 = arith.constant 0 : index
      %c0_25 = arith.constant 0 : index
      %c0_26 = arith.constant 0 : index
      %31 = vector.load %arg6[%c0_24, %c0_25, %c0_26] : memref<1x512x3xf32, #tpu.memory_space<vmem>>, vector<1x512x3xf32>
      %32 = vector.shape_cast %31 : vector<1x512x3xf32> to vector<512x3xf32>
      %33 = vector.shape_cast %30 : vector<512x3xf32> to vector<1x512x3xf32>
      tpu.vector_store %arg6[%c0_24, %c0_25, %c0_26], %33 {strides = array<i32>} : memref<1x512x3xf32, #tpu.memory_space<vmem>>, vector<1x512x3xf32>,
    } else {
    }
    return
  }
  func.func @transform_0(%arg0: i32, %arg1: i32, %arg2: i32) -> (i32, i32, i32) {
    %c0_i32 = arith.constant 0 : i32
    return %arg0, %arg1, %arg2 : i32, i32, i32
  }
  func.func @transform_1(%arg0: i32, %arg1: i32, %arg2: i32) -> (i32, i32, i32) {
    %c0_i32 = arith.constant 0 : i32
    %c0_i32_0 = arith.constant 0 : i32
    return %arg0, %arg2, %c0_i32 : i32, i32, i32
  }
  func.func @transform_2(%arg0: i32, %arg1: i32, %arg2: i32) -> (i32, i32) {
    %c0_i32 = arith.constant 0 : i32
    %c0_i32_0 = arith.constant 0 : i32
    %c0_i32_1 = arith.constant 0 : i32
    return %c0_i32, %c0_i32_0 : i32, i32
  }
  func.func @transform_3(%arg0: i32, %arg1: i32, %arg2: i32) -> (i32, i32, i32) {
    %c0_i32 = arith.constant 0 : i32
    %c0_i32_0 = arith.constant 0 : i32
    return %arg0, %arg1, %c0_i32 : i32, i32, i32
  }
  func.func @transform_4(%arg0: i32, %arg1: i32, %arg2: i32) -> (i32, i32, i32, i32) {
    %c0_i32 = arith.constant 0 : i32
    %c0_i32_0 = arith.constant 0 : i32
    %c0_i32_1 = arith.constant 0 : i32
    return %arg0, %arg1, %c0_i32, %c0_i32_0 : i32, i32, i32, i32
  }
}

</mosaic_0001>

<llo_original>
// kernel: _lambda_.17
$region0: #{_lambda_.17}
  #allocation0 [shape = 'u32[]', space=smem, size = 0x4, offset = 0x4, fixed_abs, tag = 'smem constant byte address 0x4 - core index']
  #allocation1 [shape = 'u32[144,128]{1,0:T(1,128)}', space=vmem, size = 0x12000, scoped, tag = 'internal scratch']
  #allocation2 [shape = 'f32[512,8]{1,0:T(8,128)}', space=vmem, size = 0x40000, scoped, tag = 'scratch operand']
  %s0 = inlined_call_operand.vmem [shape: bf16[1,512,48], index: 0, kind: input, shape index: {}]
  %s1 = inlined_call_operand.vmem [shape: bf16[1,48,8], index: 1, kind: input, shape index: {}]
  %s2 = inlined_call_operand.vmem [shape: f32[1,8], index: 2, kind: input, shape index: {}]
  %s3 = inlined_call_operand.vmem [shape: f32[1,512,8], index: 3, kind: output, shape index: {0}]
  %s4 = inlined_call_operand.hbm [shape: f32[1,1,8,8], index: 4, kind: output, shape index: {1}]
  %5 = xla_tuple %s3, %s4
  %s6 = sld [smem:[#allocation0]]
  $region38: #{_lambda_.17} parent=0
    _
  %s8 = ssub.s32 1, %s6
  %s9 = scalar_select 0, %s8, %s6
  $region1: #{_lambda_.17} parent=0
    #allocation3 [shape = 'u8[4096]{0}', space=vmem, size = 0x1000, scoped, tag = 'output window, operand 1, single buffered']
    #allocation4 [shape = 's32[1]{0}', space=sflag, size = 0x4, scoped, tag = 'scoped memory for _lambda_.17']
    %10 = vsyncpa [#allocation4], 0
    // Predicated region
    $region2: #{_lambda_.17} parent=1 // pred_check
      _
    $region3: #{_lambda_.17} parent=1 // pred_check_branch
      %12 = sbr.rel (0) target = $region5
    $region4: #{_lambda_.17} parent=1 // pred_region
      _
    $region5: #{_lambda_.17} parent=1 // pred_fallthru
      _
    // Predicated region
    $region6: #{_lambda_.17} parent=1 // pred_check
      _
    $region7: #{_lambda_.17} parent=1 // pred_check_branch
      %14 = sbr.rel (0) target = $region9
    $region8: #{_lambda_.17} parent=1 // pred_region
      _
    $region9: #{_lambda_.17} parent=1 // pred_fallthru
      _
    // Predicated region
    $region10: #{_lambda_.17} parent=1 // pred_check
      _
    $region11: #{_lambda_.17} parent=1 // pred_check_branch
      %16 = sbr.rel (0) target = $region13
    $region12: #{_lambda_.17} parent=1 // pred_region
      _
    $region13: #{_lambda_.17} parent=1 // pred_fallthru
      _
    %p18 = scmp.eq.s32.totalorder 0, 0
    // Predicated region
    $region14: #{_lambda_.17} parent=1 // pred_check
      %p19 = pneg %p18
    $region15: #{_lambda_.17} parent=1 // pred_check_branch
      %21 = sbr.rel (%p19) target = $region17
    $region16: #{_lambda_.17} parent=1 // pred_region
      %vm22 = vcmask 64512
      %23 = vst.msk [vmem:[#allocation2] sm:$0xff] %vm22, 0.0
      %24 = vst.msk [vmem:[#allocation2 + $0x8] sm:$0xff] %vm22, 0.0
      %25 = vst.msk [vmem:[#allocation2 + $0x10] sm:$0xff] %vm22, 0.0
      %26 = vst.msk [vmem:[#allocation2 + $0x18] sm:$0xff] %vm22, 0.0
      %27 = vst.msk [vmem:[#allocation2 + $0x20] sm:$0xff] %vm22, 0.0
      %28 = vst.msk [vmem:[#allocation2 + $0x28] sm:$0xff] %vm22, 0.0
      %29 = vst.msk [vmem:[#allocation2 + $0x30] sm:$0xff] %vm22, 0.0
      %30 = vst.msk [vmem:[#allocation2 + $0x38] sm:$0xff] %vm22, 0.0
      %31 = vst.msk [vmem:[#allocation2 + $0x40] sm:$0xff] %vm22, 0.0
      %32 = vst.msk [vmem:[#allocation2 + $0x48] sm:$0xff] %vm22, 0.0
      %33 = vst.msk [vmem:[#allocation2 + $0x50] sm:$0xff] %vm22, 0.0
      %34 = vst.msk [vmem:[#allocation2 + $0x58] sm:$0xff] %vm22, 0.0
      %35 = vst.msk [vmem:[#allocation2 + $0x60] sm:$0xff] %vm22, 0.0
      %36 = vst.msk [vmem:[#allocation2 + $0x68] sm:$0xff] %vm22, 0.0
      %37 = vst.msk [vmem:[#allocation2 + $0x70] sm:$0xff] %vm22, 0.0
      %38 = vst.msk [vmem:[#allocation2 + $0x78] sm:$0xff] %vm22, 0.0
      %39 = vst.msk [vmem:[#allocation2 + $0x80] sm:$0xff] %vm22, 0.0
      %40 = vst.msk [vmem:[#allocation2 + $0x88] sm:$0xff] %vm22, 0.0
      %41 = vst.msk [vmem:[#allocation2 + $0x90] sm:$0xff] %vm22, 0.0
      %42 = vst.msk [vmem:[#allocation2 + $0x98] sm:$0xff] %vm22, 0.0
      %43 = vst.msk [vmem:[#allocation2 + $0xa0] sm:$0xff] %vm22, 0.0
      %44 = vst.msk [vmem:[#allocation2 + $0xa8] sm:$0xff] %vm22, 0.0
      %45 = vst.msk [vmem:[#allocation2 + $0xb0] sm:$0xff] %vm22, 0.0
      %46 = vst.msk [vmem:[#allocation2 + $0xb8] sm:$0xff] %vm22, 0.0
      %47 = vst.msk [vmem:[#allocation2 + $0xc0] sm:$0xff] %vm22, 0.0
      %48 = vst.msk [vmem:[#allocation2 + $0xc8] sm:$0xff] %vm22, 0.0
      %49 = vst.msk [vmem:[#allocation2 + $0xd0] sm:$0xff] %vm22, 0.0
      %50 = vst.msk [vmem:[#allocation2 + $0xd8] sm:$0xff] %vm22, 0.0
      %51 = vst.msk [vmem:[#allocation2 + $0xe0] sm:$0xff] %vm22, 0.0
      %52 = vst.msk [vmem:[#allocation2 + $0xe8] sm:$0xff] %vm22, 0.0
      %53 = vst.msk [vmem:[#allocation2 + $0xf0] sm:$0xff] %vm22, 0.0
      %54 = vst.msk [vmem:[#allocation2 + $0xf8] sm:$0xff] %vm22, 0.0
      %55 = vst.msk [vmem:[#allocation2 + $0x100] sm:$0xff] %vm22, 0.0
      %56 = vst.msk [vmem:[#allocation2 + $0x108] sm:$0xff] %vm22, 0.0
      %57 = vst.msk [vmem:[#allocation2 + $0x110] sm:$0xff] %vm22, 0.0
      %58 = vst.msk [vmem:[#allocation2 + $0x118] sm:$0xff] %vm22, 0.0
      %59 = vst.msk [vmem:[#allocation2 + $0x120] sm:$0xff] %vm22, 0.0
      %60 = vst.msk [vmem:[#allocation2 + $0x128] sm:$0xff] %vm22, 0.0
      %61 = vst.msk [vmem:[#allocation2 + $0x130] sm:$0xff] %vm22, 0.0
      %62 = vst.msk [vmem:[#allocation2 + $0x138] sm:$0xff] %vm22, 0.0
      %63 = vst.msk [vmem:[#allocation2 + $0x140] sm:$0xff] %vm22, 0.0
      %64 = vst.msk [vmem:[#allocation2 + $0x148] sm:$0xff] %vm22, 0.0
      %65 = vst.msk [vmem:[#allocation2 + $0x150] sm:$0xff] %vm22, 0.0
      %66 = vst.msk [vmem:[#allocation2 + $0x158] sm:$0xff] %vm22, 0.0
      %67 = vst.msk [vmem:[#allocation2 + $0x160] sm:$0xff] %vm22, 0.0
      %68 = vst.msk [vmem:[#allocation2 + $0x168] sm:$0xff] %vm22, 0.0
      %69 = vst.msk [vmem:[#allocation2 + $0x170] sm:$0xff] %vm22, 0.0
      %70 = vst.msk [vmem:[#allocation2 + $0x178] sm:$0xff] %vm22, 0.0
      %71 = vst.msk [vmem:[#allocation2 + $0x180] sm:$0xff] %vm22, 0.0
      %72 = vst.msk [vmem:[#allocation2 + $0x188] sm:$0xff] %vm22, 0.0
      %73 = vst.msk [vmem:[#allocation2 + $0x190] sm:$0xff] %vm22, 0.0
      %74 = vst.msk [vmem:[#allocation2 + $0x198] sm:$0xff] %vm22, 0.0
      %75 = vst.msk [vmem:[#allocation2 + $0x1a0] sm:$0xff] %vm22, 0.0
      %76 = vst.msk [vmem:[#allocation2 + $0x1a8] sm:$0xff] %vm22, 0.0
      %77 = vst.msk [vmem:[#allocation2 + $0x1b0] sm:$0xff] %vm22, 0.0
      %78 = vst.msk [vmem:[#allocation2 + $0x1b8] sm:$0xff] %vm22, 0.0
      %79 = vst.msk [vmem:[#allocation2 + $0x1c0] sm:$0xff] %vm22, 0.0
      %80 = vst.msk [vmem:[#allocation2 + $0x1c8] sm:$0xff] %vm22, 0.0
      %81 = vst.msk [vmem:[#allocation2 + $0x1d0] sm:$0xff] %vm22, 0.0
      %82 = vst.msk [vmem:[#allocation2 + $0x1d8] sm:$0xff] %vm22, 0.0
      %83 = vst.msk [vmem:[#allocation2 + $0x1e0] sm:$0xff] %vm22, 0.0
      %84 = vst.msk [vmem:[#allocation2 + $0x1e8] sm:$0xff] %vm22, 0.0
      %85 = vst.msk [vmem:[#allocation2 + $0x1f0] sm:$0xff] %vm22, 0.0
      %86 = vst.msk [vmem:[#allocation2 + $0x1f8] sm:$0xff] %vm22, 0.0
    $region17: #{_lambda_.17} parent=1 // pred_fallthru
      _
    %v87 = vld [vmem:[%s0] sm:$0xf]
    %v88 = vld [vmem:[%s0 + $0x4] sm:$0xf]
    %v89 = vld [vmem:[%s0 + $0x8] sm:$0xf]
    %v90 = vld [vmem:[%s0 + $0xc] sm:$0xf]
    %v91 = vld [vmem:[%s0 + $0x10] sm:$0xf]
    %v92 = vld [vmem:[%s0 + $0x14] sm:$0xf]
    %v93 = vld [vmem:[%s0 + $0x18] sm:$0xf]
    %v94 = vld [vmem:[%s0 + $0x1c] sm:$0xf]
    %v95 = vld [vmem:[%s0 + $0x20] sm:$0xf]
    %v96 = vld [vmem:[%s0 + $0x24] sm:$0xf]
    %v97 = vld [vmem:[%s0 + $0x28] sm:$0xf]
    %v98 = vld [vmem:[%s0 + $0x2c] sm:$0xf]
    %v99 = vld [vmem:[%s0 + $0x30] sm:$0xf]
    %v100 = vld [vmem:[%s0 + $0x34] sm:$0xf]
    %v101 = vld [vmem:[%s0 + $0x38] sm:$0xf]
    %v102 = vld [vmem:[%s0 + $0x3c] sm:$0xf]
    %v103 = vld [vmem:[%s0 + $0x40] sm:$0xf]
    %v104 = vld [vmem:[%s0 + $0x44] sm:$0xf]
    %v105 = vld [vmem:[%s0 + $0x48] sm:$0xf]
    %v106 = vld [vmem:[%s0 + $0x4c] sm:$0xf]
    %v107 = vld [vmem:[%s0 + $0x50] sm:$0xf]
    %v108 = vld [vmem:[%s0 + $0x54] sm:$0xf]
    %v109 = vld [vmem:[%s0 + $0x58] sm:$0xf]
    %v110 = vld [vmem:[%s0 + $0x5c] sm:$0xf]
    %v111 = vld [vmem:[%s0 + $0x60] sm:$0xf]
    %v112 = vld [vmem:[%s0 + $0x64] sm:$0xf]
    %v113 = vld [vmem:[%s0 + $0x68] sm:$0xf]
    %v114 = vld [vmem:[%s0 + $0x6c] sm:$0xf]
    %v115 = vld [vmem:[%s0 + $0x70] sm:$0xf]
    %v116 = vld [vmem:[%s0 + $0x74] sm:$0xf]
    %v117 = vld [vmem:[%s0 + $0x78] sm:$0xf]
    %v118 = vld [vmem:[%s0 + $0x7c] sm:$0xf]
    %v119 = vld [vmem:[%s0 + $0x80] sm:$0xf]
    %v120 = vld [vmem:[%s0 + $0x84] sm:$0xf]
    %v121 = vld [vmem:[%s0 + $0x88] sm:$0xf]
    %v122 = vld [vmem:[%s0 + $0x8c] sm:$0xf]
    %v123 = vld [vmem:[%s0 + $0x90] sm:$0xf]
    %v124 = vld [vmem:[%s0 + $0x94] sm:$0xf]
    %v125 = vld [vmem:[%s0 + $0x98] sm:$0xf]
    %v126 = vld [vmem:[%s0 + $0x9c] sm:$0xf]
    %v127 = vld [vmem:[%s0 + $0xa0] sm:$0xf]
    %v128 = vld [vmem:[%s0 + $0xa4] sm:$0xf]
    %v129 = vld [vmem:[%s0 + $0xa8] sm:$0xf]
    %v130 = vld [vmem:[%s0 + $0xac] sm:$0xf]
    %v131 = vld [vmem:[%s0 + $0xb0] sm:$0xf]
    %v132 = vld [vmem:[%s0 + $0xb4] sm:$0xf]
    %v133 = vld [vmem:[%s0 + $0xb8] sm:$0xf]
    %v134 = vld [vmem:[%s0 + $0xbc] sm:$0xf]
    %v135 = vld [vmem:[%s0 + $0xc0] sm:$0xf]
    %v136 = vld [vmem:[%s0 + $0xc4] sm:$0xf]
    %v137 = vld [vmem:[%s0 + $0xc8] sm:$0xf]
    %v138 = vld [vmem:[%s0 + $0xcc] sm:$0xf]
    %v139 = vld [vmem:[%s0 + $0xd0] sm:$0xf]
    %v140 = vld [vmem:[%s0 + $0xd4] sm:$0xf]
    %v141 = vld [vmem:[%s0 + $0xd8] sm:$0xf]
    %v142 = vld [vmem:[%s0 + $0xdc] sm:$0xf]
    %v143 = vld [vmem:[%s0 + $0xe0] sm:$0xf]
    %v144 = vld [vmem:[%s0 + $0xe4] sm:$0xf]
    %v145 = vld [vmem:[%s0 + $0xe8] sm:$0xf]
    %v146 = vld [vmem:[%s0 + $0xec] sm:$0xf]
    %v147 = vld [vmem:[%s0 + $0xf0] sm:$0xf]
    %v148 = vld [vmem:[%s0 + $0xf4] sm:$0xf]
    %v149 = vld [vmem:[%s0 + $0xf8] sm:$0xf]
    %v150 = vld [vmem:[%s0 + $0xfc] sm:$0xf]
    %v151 = vld [vmem:[#allocation2] sm:$0xff]
    %v152 = vld [vmem:[#allocation2 + $0x8] sm:$0xff]
    %v153 = vld [vmem:[#allocation2 + $0x10] sm:$0xff]
    %v154 = vld [vmem:[#allocation2 + $0x18] sm:$0xff]
    %v155 = vld [vmem:[#allocation2 + $0x20] sm:$0xff]
    %v156 = vld [vmem:[#allocation2 + $0x28] sm:$0xff]
    %v157 = vld [vmem:[#allocation2 + $0x30] sm:$0xff]
    %v158 = vld [vmem:[#allocation2 + $0x38] sm:$0xff]
    %v159 = vld [vmem:[#allocation2 + $0x40] sm:$0xff]
    %v160 = vld [vmem:[#allocation2 + $0x48] sm:$0xff]
    %v161 = vld [vmem:[#allocation2 + $0x50] sm:$0xff]
    %v162 = vld [vmem:[#allocation2 + $0x58] sm:$0xff]
    %v163 = vld [vmem:[#allocation2 + $0x60] sm:$0xff]
    %v164 = vld [vmem:[#allocation2 + $0x68] sm:$0xff]
    %v165 = vld [vmem:[#allocation2 + $0x70] sm:$0xff]
    %v166 = vld [vmem:[#allocation2 + $0x78] sm:$0xff]
    %v167 = vld [vmem:[#allocation2 + $0x80] sm:$0xff]
    %v168 = vld [vmem:[#allocation2 + $0x88] sm:$0xff]
    %v169 = vld [vmem:[#allocation2 + $0x90] sm:$0xff]
    %v170 = vld [vmem:[#allocation2 + $0x98] sm:$0xff]
    %v171 = vld [vmem:[#allocation2 + $0xa0] sm:$0xff]
    %v172 = vld [vmem:[#allocation2 + $0xa8] sm:$0xff]
    %v173 = vld [vmem:[#allocation2 + $0xb0] sm:$0xff]
    %v174 = vld [vmem:[#allocation2 + $0xb8] sm:$0xff]
    %v175 = vld [vmem:[#allocation2 + $0xc0] sm:$0xff]
    %v176 = vld [vmem:[#allocation2 + $0xc8] sm:$0xff]
    %v177 = vld [vmem:[#allocation2 + $0xd0] sm:$0xff]
    %v178 = vld [vmem:[#allocation2 + $0xd8] sm:$0xff]
    %v179 = vld [vmem:[#allocation2 + $0xe0] sm:$0xff]
    %v180 = vld [vmem:[#allocation2 + $0xe8] sm:$0xff]
    %v181 = vld [vmem:[#allocation2 + $0xf0] sm:$0xff]
    %v182 = vld [vmem:[#allocation2 + $0xf8] sm:$0xff]
    %v183 = vld [vmem:[#allocation2 + $0x100] sm:$0xff]
    %v184 = vld [vmem:[#allocation2 + $0x108] sm:$0xff]
    %v185 = vld [vmem:[#allocation2 + $0x110] sm:$0xff]
    %v186 = vld [vmem:[#allocation2 + $0x118] sm:$0xff]
    %v187 = vld [vmem:[#allocation2 + $0x120] sm:$0xff]
    %v188 = vld [vmem:[#allocation2 + $0x128] sm:$0xff]
    %v189 = vld [vmem:[#allocation2 + $0x130] sm:$0xff]
    %v190 = vld [vmem:[#allocation2 + $0x138] sm:$0xff]
    %v191 = vld [vmem:[#allocation2 + $0x140] sm:$0xff]
    %v192 = vld [vmem:[#allocation2 + $0x148] sm:$0xff]
    %v193 = vld [vmem:[#allocation2 + $0x150] sm:$0xff]
    %v194 = vld [vmem:[#allocation2 + $0x158] sm:$0xff]
    %v195 = vld [vmem:[#allocation2 + $0x160] sm:$0xff]
    %v196 = vld [vmem:[#allocation2 + $0x168] sm:$0xff]
    %v197 = vld [vmem:[#allocation2 + $0x170] sm:$0xff]
    %v198 = vld [vmem:[#allocation2 + $0x178] sm:$0xff]
    %v199 = vld [vmem:[#allocation2 + $0x180] sm:$0xff]
    %v200 = vld [vmem:[#allocation2 + $0x188] sm:$0xff]
    %v201 = vld [vmem:[#allocation2 + $0x190] sm:$0xff]
    %v202 = vld [vmem:[#allocation2 + $0x198] sm:$0xff]
    %v203 = vld [vmem:[#allocation2 + $0x1a0] sm:$0xff]
    %v204 = vld [vmem:[#allocation2 + $0x1a8] sm:$0xff]
    %v205 = vld [vmem:[#allocation2 + $0x1b0] sm:$0xff]
    %v206 = vld [vmem:[#allocation2 + $0x1b8] sm:$0xff]
    %v207 = vld [vmem:[#allocation2 + $0x1c0] sm:$0xff]
    %v208 = vld [vmem:[#allocation2 + $0x1c8] sm:$0xff]
    %v209 = vld [vmem:[#allocation2 + $0x1d0] sm:$0xff]
    %v210 = vld [vmem:[#allocation2 + $0x1d8] sm:$0xff]
    %v211 = vld [vmem:[#allocation2 + $0x1e0] sm:$0xff]
    %v212 = vld [vmem:[#allocation2 + $0x1e8] sm:$0xff]
    %v213 = vld [vmem:[#allocation2 + $0x1f0] sm:$0xff]
    %v214 = vld [vmem:[#allocation2 + $0x1f8] sm:$0xff]
    %v215 = vld [vmem:[%s1] sm:$0xf]
    %v216 = vld [vmem:[%s1 + $0x4] sm:$0xf]
    %v217 = vld [vmem:[%s1 + $0x8] sm:$0xf]
    %v218 = vld [vmem:[%s1 + $0xc] sm:$0xf]
    %v219 = vld [vmem:[%s1 + $0x10] sm:$0xf]
    %v220 = vld [vmem:[%s1 + $0x14] sm:$0xf]
    %v285 = vunpack.c.l.b16 %v87
    %v286 = vunpack.c.l.b16 %v88
    %v287 = vunpack.c.l.b16 %v89
    %v288 = vunpack.c.l.b16 %v90
    %v289 = vunpack.c.l.b16 %v91
    %v290 = vunpack.c.l.b16 %v92
    %v291 = vunpack.c.l.b16 %v93
    %v292 = vunpack.c.l.b16 %v94
    %v293 = vunpack.c.l.b16 %v95
    %v294 = vunpack.c.l.b16 %v96
    %v295 = vunpack.c.l.b16 %v97
    %v296 = vunpack.c.l.b16 %v98
    %v297 = vunpack.c.l.b16 %v99
    %v298 = vunpack.c.l.b16 %v100
    %v299 = vunpack.c.l.b16 %v101
    %v300 = vunpack.c.l.b16 %v102
    %v301 = vunpack.c.l.b16 %v103
    %v302 = vunpack.c.l.b16 %v104
    %v303 = vunpack.c.l.b16 %v105
    %v304 = vunpack.c.l.b16 %v106
    %v305 = vunpack.c.l.b16 %v107
    %v306 = vunpack.c.l.b16 %v108
    %v307 = vunpack.c.l.b16 %v109
    %v308 = vunpack.c.l.b16 %v110
    %v309 = vunpack.c.l.b16 %v111
    %v310 = vunpack.c.l.b16 %v112
    %v311 = vunpack.c.l.b16 %v113
    %v312 = vunpack.c.l.b16 %v114
    %v313 = vunpack.c.l.b16 %v115
    %v314 = vunpack.c.l.b16 %v116
    %v315 = vunpack.c.l.b16 %v117
    %v316 = vunpack.c.l.b16 %v118
    %v317 = vunpack.c.l.b16 %v119
    %v318 = vunpack.c.l.b16 %v120
    %v319 = vunpack.c.l.b16 %v121
    %v320 = vunpack.c.l.b16 %v122
    %v321 = vunpack.c.l.b16 %v123
    %v322 = vunpack.c.l.b16 %v124
    %v323 = vunpack.c.l.b16 %v125
    %v324 = vunpack.c.l.b16 %v126
    %v325 = vunpack.c.l.b16 %v127
    %v326 = vunpack.c.l.b16 %v128
    %v327 = vunpack.c.l.b16 %v129
    %v328 = vunpack.c.l.b16 %v130
    %v329 = vunpack.c.l.b16 %v131
    %v330 = vunpack.c.l.b16 %v132
    %v331 = vunpack.c.l.b16 %v133
    %v332 = vunpack.c.l.b16 %v134
    %v333 = vunpack.c.l.b16 %v135
    %v334 = vunpack.c.l.b16 %v136
    %v335 = vunpack.c.l.b16 %v137
    %v336 = vunpack.c.l.b16 %v138
    %v337 = vunpack.c.l.b16 %v139
    %v338 = vunpack.c.l.b16 %v140
    %v339 = vunpack.c.l.b16 %v141
    %v340 = vunpack.c.l.b16 %v142
    %v341 = vunpack.c.l.b16 %v143
    %v342 = vunpack.c.l.b16 %v144
    %v343 = vunpack.c.l.b16 %v145
    %v344 = vunpack.c.l.b16 %v146
    %v345 = vunpack.c.l.b16 %v147
    %v346 = vunpack.c.l.b16 %v148
    %v347 = vunpack.c.l.b16 %v149
    %v348 = vunpack.c.l.b16 %v150
    %v349 = vpack.c.b16 %v286, %v285
    %v350 = vpack.c.b16 %v288, %v287
    %v351 = vpack.c.b16 %v290, %v289
    %v352 = vpack.c.b16 %v292, %v291
    %v353 = vpack.c.b16 %v294, %v293
    %v354 = vpack.c.b16 %v296, %v295
    %v355 = vpack.c.b16 %v298, %v297
    %v356 = vpack.c.b16 %v300, %v299
    %v357 = vpack.c.b16 %v302, %v301
    %v358 = vpack.c.b16 %v304, %v303
    %v359 = vpack.c.b16 %v306, %v305
    %v360 = vpack.c.b16 %v308, %v307
    %v361 = vpack.c.b16 %v310, %v309
    %v362 = vpack.c.b16 %v312, %v311
    %v363 = vpack.c.b16 %v314, %v313
    %v364 = vpack.c.b16 %v316, %v315
    %v365 = vpack.c.b16 %v318, %v317
    %v366 = vpack.c.b16 %v320, %v319
    %v367 = vpack.c.b16 %v322, %v321
    %v368 = vpack.c.b16 %v324, %v323
    %v369 = vpack.c.b16 %v326, %v325
    %v370 = vpack.c.b16 %v328, %v327
    %v371 = vpack.c.b16 %v330, %v329
    %v372 = vpack.c.b16 %v332, %v331
    %v373 = vpack.c.b16 %v334, %v333
    %v374 = vpack.c.b16 %v336, %v335
    %v375 = vpack.c.b16 %v338, %v337
    %v376 = vpack.c.b16 %v340, %v339
    %v377 = vpack.c.b16 %v342, %v341
    %v378 = vpack.c.b16 %v344, %v343
    %v379 = vpack.c.b16 %v346, %v345
    %v380 = vpack.c.b16 %v348, %v347
    %v387 = vunpack.c.l.b16 %v215
    %v388 = vunpack.c.l.b16 %v216
    %v389 = vunpack.c.l.b16 %v217
    %v390 = vunpack.c.l.b16 %v218
    %v391 = vunpack.c.l.b16 %v219
    %v392 = vunpack.c.l.b16 %v220
    %v393 = vpack.c.b16 %v388, %v387
    %v394 = vpack.c.b16 %v390, %v389
    %v395 = vpack.c.b16 %v392, %v391
    %vm399 = vcmask 392192
    %v401 = vsel %vm399, %v349, 0
    %v404 = vsel %vm399, %v350, 0
    %v407 = vsel %vm399, %v351, 0
    %v410 = vsel %vm399, %v352, 0
    %v413 = vsel %vm399, %v353, 0
    %v416 = vsel %vm399, %v354, 0
    %v419 = vsel %vm399, %v355, 0
    %v422 = vsel %vm399, %v356, 0
    %v425 = vsel %vm399, %v357, 0
    %v428 = vsel %vm399, %v358, 0
    %v431 = vsel %vm399, %v359, 0
    %v434 = vsel %vm399, %v360, 0
    %v437 = vsel %vm399, %v361, 0
    %v440 = vsel %vm399, %v362, 0
    %v443 = vsel %vm399, %v363, 0
    %v446 = vsel %vm399, %v364, 0
    %v449 = vsel %vm399, %v365, 0
    %v452 = vsel %vm399, %v366, 0
    %v455 = vsel %vm399, %v367, 0
    %v458 = vsel %vm399, %v368, 0
    %v461 = vsel %vm399, %v369, 0
    %v464 = vsel %vm399, %v370, 0
    %v467 = vsel %vm399, %v371, 0
    %v470 = vsel %vm399, %v372, 0
    %v473 = vsel %vm399, %v373, 0
    %v476 = vsel %vm399, %v374, 0
    %v479 = vsel %vm399, %v375, 0
    %v482 = vsel %vm399, %v376, 0
    %v485 = vsel %vm399, %v377, 0
    %v488 = vsel %vm399, %v378, 0
    %v491 = vsel %vm399, %v379, 0
    %v494 = vsel %vm399, %v380, 0
    %496 = vmatprep.subr.bf16.mxu0 0
    %497 = vmatpush1.bf16.msra.mxu0 0
    %498 = vmatprep.subr.bf16.mxu0 0
    %499 = vmatpush1.bf16.msra.mxu0 0
    %500 = vmatprep.subr.bf16.mxu0 0
    %501 = vmatpush1.bf16.msra.mxu0 0
    %502 = vmatprep.subr.bf16.mxu0 0
    %503 = vmatpush1.bf16.msra.mxu0 0
    %504 = vmatprep.subr.bf16.mxu0 0
    %505 = vmatpush1.bf16.msra.mxu0 0
    %506 = vmatprep.subr.bf16.mxu0 0
    %507 = vmatpush1.bf16.msra.mxu0 %v395
    %508 = vmatprep.subr.bf16.mxu0 0
    %509 = vmatpush1.bf16.msra.mxu0 %v394
    %510 = vmatprep.subr.bf16.mxu0 0
    %511 = vmatpush1.bf16.msra.mxu0 %v393
    %512 = vmatprep.subr.bf16.mxu0 0
    %513 = vmatpush2.bf16.msra.mxu0 0
    %514 = vmatprep.subr.bf16.mxu0 0
    %515 = vmatpush2.bf16.msra.mxu0 0
    %516 = vmatprep.subr.bf16.mxu0 0
    %517 = vmatpush2.bf16.msra.mxu0 0
    %518 = vmatprep.subr.bf16.mxu0 0
    %519 = vmatpush2.bf16.msra.mxu0 0
    %520 = vmatprep.subr.bf16.mxu0 0
    %521 = vmatpush2.bf16.msra.mxu0 0
    %522 = vmatprep.subr.bf16.mxu0 0
    %523 = vmatpush2.bf16.msra.mxu0 0
    %524 = vmatprep.subr.bf16.mxu0 0
    %525 = vmatpush2.bf16.msra.mxu0 0
    %526 = vmatprep.subr.bf16.mxu0 0
    %527 = vmatpush2.bf16.msra.mxu0 0
    %528 = vmatprep.mubr.bf16.mxu0 0
    %529 = vmatmul.mubr.bf16.gmra.mxu0 %v401
    %v530 = vpop.f32.mrf.mxu0
    %v531 = vadd.f32 0.0, %v530
    %v532 = vpop.f32.mrf.mxu0
    %v533 = vpop.f32.mrf.mxu0
    %v534 = vadd.f32 0.0, %v533
    %v535 = vpop.f32.mrf.mxu0
    %536 = vmatprep.mubr.bf16.mxu0 0
    %537 = vmatmul.mubr.bf16.gmra.mxu0 %v404
    %v538 = vpop.f32.mrf.mxu0
    %v539 = vadd.f32 0.0, %v538
    %v540 = vpop.f32.mrf.mxu0
    %v541 = vpop.f32.mrf.mxu0
    %v542 = vadd.f32 0.0, %v541
    %v543 = vpop.f32.mrf.mxu0
    %544 = vmatprep.mubr.bf16.mxu0 0
    %545 = vmatmul.mubr.bf16.gmra.mxu0 %v407
    %v546 = vpop.f32.mrf.mxu0
    %v547 = vadd.f32 0.0, %v546
    %v548 = vpop.f32.mrf.mxu0
    %v549 = vpop.f32.mrf.mxu0
    %v550 = vadd.f32 0.0, %v549
    %v551 = vpop.f32.mrf.mxu0
    %552 = vmatprep.mubr.bf16.mxu0 0
    %553 = vmatmul.mubr.bf16.gmra.mxu0 %v410
    %v554 = vpop.f32.mrf.mxu0
    %v555 = vadd.f32 0.0, %v554
    %v556 = vpop.f32.mrf.mxu0
    %v557 = vpop.f32.mrf.mxu0
    %v558 = vadd.f32 0.0, %v557
    %v559 = vpop.f32.mrf.mxu0
    %560 = vmatprep.mubr.bf16.mxu0 0
    %561 = vmatmul.mubr.bf16.gmra.mxu0 %v413
    %v562 = vpop.f32.mrf.mxu0
    %v563 = vadd.f32 0.0, %v562
    %v564 = vpop.f32.mrf.mxu0
    %v565 = vpop.f32.mrf.mxu0
    %v566 = vadd.f32 0.0, %v565
    %v567 = vpop.f32.mrf.mxu0
    %568 = vmatprep.mubr.bf16.mxu0 0
    %569 = vmatmul.mubr.bf16.gmra.mxu0 %v416
    %v570 = vpop.f32.mrf.mxu0
    %v571 = vadd.f32 0.0, %v570
    %v572 = vpop.f32.mrf.mxu0
    %v573 = vpop.f32.mrf.mxu0
    %v574 = vadd.f32 0.0, %v573
    %v575 = vpop.f32.mrf.mxu0
    %576 = vmatprep.mubr.bf16.mxu0 0
    %577 = vmatmul.mubr.bf16.gmra.mxu0 %v419
    %v578 = vpop.f32.mrf.mxu0
    %v579 = vadd.f32 0.0, %v578
    %v580 = vpop.f32.mrf.mxu0
    %v581 = vpop.f32.mrf.mxu0
    %v582 = vadd.f32 0.0, %v581
    %v583 = vpop.f32.mrf.mxu0
    %584 = vmatprep.mubr.bf16.mxu0 0
    %585 = vmatmul.mubr.bf16.gmra.mxu0 %v422
    %v586 = vpop.f32.mrf.mxu0
    %v587 = vadd.f32 0.0, %v586
    %v588 = vpop.f32.mrf.mxu0
    %v589 = vpop.f32.mrf.mxu0
    %v590 = vadd.f32 0.0, %v589
    %v591 = vpop.f32.mrf.mxu0
    %592 = vmatprep.mubr.bf16.mxu0 0
    %593 = vmatmul.mubr.bf16.gmra.mxu0 %v425
    %v594 = vpop.f32.mrf.mxu0
    %v595 = vadd.f32 0.0, %v594
    %v596 = vpop.f32.mrf.mxu0
    %v597 = vpop.f32.mrf.mxu0
    %v598 = vadd.f32 0.0, %v597
    %v599 = vpop.f32.mrf.mxu0
    %600 = vmatprep.mubr.bf16.mxu0 0
    %601 = vmatmul.mubr.bf16.gmra.mxu0 %v428
    %v602 = vpop.f32.mrf.mxu0
    %v603 = vadd.f32 0.0, %v602
    %v604 = vpop.f32.mrf.mxu0
    %v605 = vpop.f32.mrf.mxu0
    %v606 = vadd.f32 0.0, %v605
    %v607 = vpop.f32.mrf.mxu0
    %608 = vmatprep.mubr.bf16.mxu0 0
    %609 = vmatmul.mubr.bf16.gmra.mxu0 %v431
    %v610 = vpop.f32.mrf.mxu0
    %v611 = vadd.f32 0.0, %v610
    %v612 = vpop.f32.mrf.mxu0
    %v613 = vpop.f32.mrf.mxu0
    %v614 = vadd.f32 0.0, %v613
    %v615 = vpop.f32.mrf.mxu0
    %616 = vmatprep.mubr.bf16.mxu0 0
    %617 = vmatmul.mubr.bf16.gmra.mxu0 %v434
    %v618 = vpop.f32.mrf.mxu0
    %v619 = vadd.f32 0.0, %v618
    %v620 = vpop.f32.mrf.mxu0
    %v621 = vpop.f32.mrf.mxu0
    %v622 = vadd.f32 0.0, %v621
    %v623 = vpop.f32.mrf.mxu0
    %624 = vmatprep.mubr.bf16.mxu0 0
    %625 = vmatmul.mubr.bf16.gmra.mxu0 %v437
    %v626 = vpop.f32.mrf.mxu0
    %v627 = vadd.f32 0.0, %v626
    %v628 = vpop.f32.mrf.mxu0
    %v629 = vpop.f32.mrf.mxu0
    %v630 = vadd.f32 0.0, %v629
    %v631 = vpop.f32.mrf.mxu0
    %632 = vmatprep.mubr.bf16.mxu0 0
    %633 = vmatmul.mubr.bf16.gmra.mxu0 %v440
    %v634 = vpop.f32.mrf.mxu0
    %v635 = vadd.f32 0.0, %v634
    %v636 = vpop.f32.mrf.mxu0
    %v637 = vpop.f32.mrf.mxu0
    %v638 = vadd.f32 0.0, %v637
    %v639 = vpop.f32.mrf.mxu0
    %640 = vmatprep.mubr.bf16.mxu0 0
    %641 = vmatmul.mubr.bf16.gmra.mxu0 %v443
    %v642 = vpop.f32.mrf.mxu0
    %v643 = vadd.f32 0.0, %v642
    %v644 = vpop.f32.mrf.mxu0
    %v645 = vpop.f32.mrf.mxu0
    %v646 = vadd.f32 0.0, %v645
    %v647 = vpop.f32.mrf.mxu0
    %648 = vmatprep.mubr.bf16.mxu0 0
    %649 = vmatmul.mubr.bf16.gmra.mxu0 %v446
    %v650 = vpop.f32.mrf.mxu0
    %v651 = vadd.f32 0.0, %v650
    %v652 = vpop.f32.mrf.mxu0
    %v653 = vpop.f32.mrf.mxu0
    %v654 = vadd.f32 0.0, %v653
    %v655 = vpop.f32.mrf.mxu0
    %656 = vmatprep.mubr.bf16.mxu0 0
    %657 = vmatmul.mubr.bf16.gmra.mxu0 %v449
    %v658 = vpop.f32.mrf.mxu0
    %v659 = vadd.f32 0.0, %v658
    %v660 = vpop.f32.mrf.mxu0
    %v661 = vpop.f32.mrf.mxu0
    %v662 = vadd.f32 0.0, %v661
    %v663 = vpop.f32.mrf.mxu0
    %664 = vmatprep.mubr.bf16.mxu0 0
    %665 = vmatmul.mubr.bf16.gmra.mxu0 %v452
    %v666 = vpop.f32.mrf.mxu0
    %v667 = vadd.f32 0.0, %v666
    %v668 = vpop.f32.mrf.mxu0
    %v669 = vpop.f32.mrf.mxu0
    %v670 = vadd.f32 0.0, %v669
    %v671 = vpop.f32.mrf.mxu0
    %672 = vmatprep.mubr.bf16.mxu0 0
    %673 = vmatmul.mubr.bf16.gmra.mxu0 %v455
    %v674 = vpop.f32.mrf.mxu0
    %v675 = vadd.f32 0.0, %v674
    %v676 = vpop.f32.mrf.mxu0
    %v677 = vpop.f32.mrf.mxu0
    %v678 = vadd.f32 0.0, %v677
    %v679 = vpop.f32.mrf.mxu0
    %680 = vmatprep.mubr.bf16.mxu0 0
    %681 = vmatmul.mubr.bf16.gmra.mxu0 %v458
    %v682 = vpop.f32.mrf.mxu0
    %v683 = vadd.f32 0.0, %v682
    %v684 = vpop.f32.mrf.mxu0
    %v685 = vpop.f32.mrf.mxu0
    %v686 = vadd.f32 0.0, %v685
    %v687 = vpop.f32.mrf.mxu0
    %688 = vmatprep.mubr.bf16.mxu0 0
    %689 = vmatmul.mubr.bf16.gmra.mxu0 %v461
    %v690 = vpop.f32.mrf.mxu0
    %v691 = vadd.f32 0.0, %v690
    %v692 = vpop.f32.mrf.mxu0
    %v693 = vpop.f32.mrf.mxu0
    %v694 = vadd.f32 0.0, %v693
    %v695 = vpop.f32.mrf.mxu0
    %696 = vmatprep.mubr.bf16.mxu0 0
    %697 = vmatmul.mubr.bf16.gmra.mxu0 %v464
    %v698 = vpop.f32.mrf.mxu0
    %v699 = vadd.f32 0.0, %v698
    %v700 = vpop.f32.mrf.mxu0
    %v701 = vpop.f32.mrf.mxu0
    %v702 = vadd.f32 0.0, %v701
    %v703 = vpop.f32.mrf.mxu0
    %704 = vmatprep.mubr.bf16.mxu0 0
    %705 = vmatmul.mubr.bf16.gmra.mxu0 %v467
    %v706 = vpop.f32.mrf.mxu0
    %v707 = vadd.f32 0.0, %v706
    %v708 = vpop.f32.mrf.mxu0
    %v709 = vpop.f32.mrf.mxu0
    %v710 = vadd.f32 0.0, %v709
    %v711 = vpop.f32.mrf.mxu0
    %712 = vmatprep.mubr.bf16.mxu0 0
    %713 = vmatmul.mubr.bf16.gmra.mxu0 %v470
    %v714 = vpop.f32.mrf.mxu0
    %v715 = vadd.f32 0.0, %v714
    %v716 = vpop.f32.mrf.mxu0
    %v717 = vpop.f32.mrf.mxu0
    %v718 = vadd.f32 0.0, %v717
    %v719 = vpop.f32.mrf.mxu0
    %720 = vmatprep.mubr.bf16.mxu0 0
    %721 = vmatmul.mubr.bf16.gmra.mxu0 %v473
    %v722 = vpop.f32.mrf.mxu0
    %v723 = vadd.f32 0.0, %v722
    %v724 = vpop.f32.mrf.mxu0
    %v725 = vpop.f32.mrf.mxu0
    %v726 = vadd.f32 0.0, %v725
    %v727 = vpop.f32.mrf.mxu0
    %728 = vmatprep.mubr.bf16.mxu0 0
    %729 = vmatmul.mubr.bf16.gmra.mxu0 %v476
    %v730 = vpop.f32.mrf.mxu0
    %v731 = vadd.f32 0.0, %v730
    %v732 = vpop.f32.mrf.mxu0
    %v733 = vpop.f32.mrf.mxu0
    %v734 = vadd.f32 0.0, %v733
    %v735 = vpop.f32.mrf.mxu0
    %736 = vmatprep.mubr.bf16.mxu0 0
    %737 = vmatmul.mubr.bf16.gmra.mxu0 %v479
    %v738 = vpop.f32.mrf.mxu0
    %v739 = vadd.f32 0.0, %v738
    %v740 = vpop.f32.mrf.mxu0
    %v741 = vpop.f32.mrf.mxu0
    %v742 = vadd.f32 0.0, %v741
    %v743 = vpop.f32.mrf.mxu0
    %744 = vmatprep.mubr.bf16.mxu0 0
    %745 = vmatmul.mubr.bf16.gmra.mxu0 %v482
    %v746 = vpop.f32.mrf.mxu0
    %v747 = vadd.f32 0.0, %v746
    %v748 = vpop.f32.mrf.mxu0
    %v749 = vpop.f32.mrf.mxu0
    %v750 = vadd.f32 0.0, %v749
    %v751 = vpop.f32.mrf.mxu0
    %752 = vmatprep.mubr.bf16.mxu0 0
    %753 = vmatmul.mubr.bf16.gmra.mxu0 %v485
    %v754 = vpop.f32.mrf.mxu0
    %v755 = vadd.f32 0.0, %v754
    %v756 = vpop.f32.mrf.mxu0
    %v757 = vpop.f32.mrf.mxu0
    %v758 = vadd.f32 0.0, %v757
    %v759 = vpop.f32.mrf.mxu0
    %760 = vmatprep.mubr.bf16.mxu0 0
    %761 = vmatmul.mubr.bf16.gmra.mxu0 %v488
    %v762 = vpop.f32.mrf.mxu0
    %v763 = vadd.f32 0.0, %v762
    %v764 = vpop.f32.mrf.mxu0
    %v765 = vpop.f32.mrf.mxu0
    %v766 = vadd.f32 0.0, %v765
    %v767 = vpop.f32.mrf.mxu0
    %768 = vmatprep.mubr.bf16.mxu0 0
    %769 = vmatmul.mubr.bf16.gmra.mxu0 %v491
    %v770 = vpop.f32.mrf.mxu0
    %v771 = vadd.f32 0.0, %v770
    %v772 = vpop.f32.mrf.mxu0
    %v773 = vpop.f32.mrf.mxu0
    %v774 = vadd.f32 0.0, %v773
    %v775 = vpop.f32.mrf.mxu0
    %776 = vmatprep.mubr.bf16.mxu0 0
    %777 = vmatmul.mubr.bf16.gmra.mxu0 %v494
    %v778 = vpop.f32.mrf.mxu0
    %v779 = vadd.f32 0.0, %v778
    %v780 = vpop.f32.mrf.mxu0
    %v781 = vpop.f32.mrf.mxu0
    %v782 = vadd.f32 0.0, %v781
    %v783 = vpop.f32.mrf.mxu0
    %784 = vdwg.mxu0
    %v785 = vadd.f32 %v151, %v531
    %v786 = vadd.f32 %v152, %v534
    %v787 = vadd.f32 %v153, %v539
    %v788 = vadd.f32 %v154, %v542
    %v789 = vadd.f32 %v155, %v547
    %v790 = vadd.f32 %v156, %v550
    %v791 = vadd.f32 %v157, %v555
    %v792 = vadd.f32 %v158, %v558
    %v793 = vadd.f32 %v159, %v563
    %v794 = vadd.f32 %v160, %v566
    %v795 = vadd.f32 %v161, %v571
    %v796 = vadd.f32 %v162, %v574
    %v797 = vadd.f32 %v163, %v579
    %v798 = vadd.f32 %v164, %v582
    %v799 = vadd.f32 %v165, %v587
    %v800 = vadd.f32 %v166, %v590
    %v801 = vadd.f32 %v167, %v595
    %v802 = vadd.f32 %v168, %v598
    %v803 = vadd.f32 %v169, %v603
    %v804 = vadd.f32 %v170, %v606
    %v805 = vadd.f32 %v171, %v611
    %v806 = vadd.f32 %v172, %v614
    %v807 = vadd.f32 %v173, %v619
    %v808 = vadd.f32 %v174, %v622
    %v809 = vadd.f32 %v175, %v627
    %v810 = vadd.f32 %v176, %v630
    %v811 = vadd.f32 %v177, %v635
    %v812 = vadd.f32 %v178, %v638
    %v813 = vadd.f32 %v179, %v643
    %v814 = vadd.f32 %v180, %v646
    %v815 = vadd.f32 %v181, %v651
    %v816 = vadd.f32 %v182, %v654
    %v817 = vadd.f32 %v183, %v659
    %v818 = vadd.f32 %v184, %v662
    %v819 = vadd.f32 %v185, %v667
    %v820 = vadd.f32 %v186, %v670
    %v821 = vadd.f32 %v187, %v675
    %v822 = vadd.f32 %v188, %v678
    %v823 = vadd.f32 %v189, %v683
    %v824 = vadd.f32 %v190, %v686
    %v825 = vadd.f32 %v191, %v691
    %v826 = vadd.f32 %v192, %v694
    %v827 = vadd.f32 %v193, %v699
    %v828 = vadd.f32 %v194, %v702
    %v829 = vadd.f32 %v195, %v707
    %v830 = vadd.f32 %v196, %v710
    %v831 = vadd.f32 %v197, %v715
    %v832 = vadd.f32 %v198, %v718
    %v833 = vadd.f32 %v199, %v723
    %v834 = vadd.f32 %v200, %v726
    %v835 = vadd.f32 %v201, %v731
    %v836 = vadd.f32 %v202, %v734
    %v837 = vadd.f32 %v203, %v739
    %v838 = vadd.f32 %v204, %v742
    %v839 = vadd.f32 %v205, %v747
    %v840 = vadd.f32 %v206, %v750
    %v841 = vadd.f32 %v207, %v755
    %v842 = vadd.f32 %v208, %v758
    %v843 = vadd.f32 %v209, %v763
    %v844 = vadd.f32 %v210, %v766
    %v845 = vadd.f32 %v211, %v771
    %v846 = vadd.f32 %v212, %v774
    %v847 = vadd.f32 %v213, %v779
    %v848 = vadd.f32 %v214, %v782
    %vm849 = vcmask 64512
    %850 = vst.msk [vmem:[#allocation2] sm:$0xff] %vm849, %v785
    %851 = vst.msk [vmem:[#allocation2 + $0x8] sm:$0xff] %vm849, %v786
    %852 = vst.msk [vmem:[#allocation2 + $0x10] sm:$0xff] %vm849, %v787
    %853 = vst.msk [vmem:[#allocation2 + $0x18] sm:$0xff] %vm849, %v788
    %854 = vst.msk [vmem:[#allocation2 + $0x20] sm:$0xff] %vm849, %v789
    %855 = vst.msk [vmem:[#allocation2 + $0x28] sm:$0xff] %vm849, %v790
    %856 = vst.msk [vmem:[#allocation2 + $0x30] sm:$0xff] %vm849, %v791
    %857 = vst.msk [vmem:[#allocation2 + $0x38] sm:$0xff] %vm849, %v792
    %858 = vst.msk [vmem:[#allocation2 + $0x40] sm:$0xff] %vm849, %v793
    %859 = vst.msk [vmem:[#allocation2 + $0x48] sm:$0xff] %vm849, %v794
    %860 = vst.msk [vmem:[#allocation2 + $0x50] sm:$0xff] %vm849, %v795
    %861 = vst.msk [vmem:[#allocation2 + $0x58] sm:$0xff] %vm849, %v796
    %862 = vst.msk [vmem:[#allocation2 + $0x60] sm:$0xff] %vm849, %v797
    %863 = vst.msk [vmem:[#allocation2 + $0x68] sm:$0xff] %vm849, %v798
    %864 = vst.msk [vmem:[#allocation2 + $0x70] sm:$0xff] %vm849, %v799
    %865 = vst.msk [vmem:[#allocation2 + $0x78] sm:$0xff] %vm849, %v800
    %866 = vst.msk [vmem:[#allocation2 + $0x80] sm:$0xff] %vm849, %v801
    %867 = vst.msk [vmem:[#allocation2 + $0x88] sm:$0xff] %vm849, %v802
    %868 = vst.msk [vmem:[#allocation2 + $0x90] sm:$0xff] %vm849, %v803
    %869 = vst.msk [vmem:[#allocation2 + $0x98] sm:$0xff] %vm849, %v804
    %870 = vst.msk [vmem:[#allocation2 + $0xa0] sm:$0xff] %vm849, %v805
    %871 = vst.msk [vmem:[#allocation2 + $0xa8] sm:$0xff] %vm849, %v806
    %872 = vst.msk [vmem:[#allocation2 + $0xb0] sm:$0xff] %vm849, %v807
    %873 = vst.msk [vmem:[#allocation2 + $0xb8] sm:$0xff] %vm849, %v808
    %874 = vst.msk [vmem:[#allocation2 + $0xc0] sm:$0xff] %vm849, %v809
    %875 = vst.msk [vmem:[#allocation2 + $0xc8] sm:$0xff] %vm849, %v810
    %876 = vst.msk [vmem:[#allocation2 + $0xd0] sm:$0xff] %vm849, %v811
    %877 = vst.msk [vmem:[#allocation2 + $0xd8] sm:$0xff] %vm849, %v812
    %878 = vst.msk [vmem:[#allocation2 + $0xe0] sm:$0xff] %vm849, %v813
    %879 = vst.msk [vmem:[#allocation2 + $0xe8] sm:$0xff] %vm849, %v814
    %880 = vst.msk [vmem:[#allocation2 + $0xf0] sm:$0xff] %vm849, %v815
    %881 = vst.msk [vmem:[#allocation2 + $0xf8] sm:$0xff] %vm849, %v816
    %882 = vst.msk [vmem:[#allocation2 + $0x100] sm:$0xff] %vm849, %v817
    %883 = vst.msk [vmem:[#allocation2 + $0x108] sm:$0xff] %vm849, %v818
    %884 = vst.msk [vmem:[#allocation2 + $0x110] sm:$0xff] %vm849, %v819
    %885 = vst.msk [vmem:[#allocation2 + $0x118] sm:$0xff] %vm849, %v820
    %886 = vst.msk [vmem:[#allocation2 + $0x120] sm:$0xff] %vm849, %v821
    %887 = vst.msk [vmem:[#allocation2 + $0x128] sm:$0xff] %vm849, %v822
    %888 = vst.msk [vmem:[#allocation2 + $0x130] sm:$0xff] %vm849, %v823
    %889 = vst.msk [vmem:[#allocation2 + $0x138] sm:$0xff] %vm849, %v824
    %890 = vst.msk [vmem:[#allocation2 + $0x140] sm:$0xff] %vm849, %v825
    %891 = vst.msk [vmem:[#allocation2 + $0x148] sm:$0xff] %vm849, %v826
    %892 = vst.msk [vmem:[#allocation2 + $0x150] sm:$0xff] %vm849, %v827
    %893 = vst.msk [vmem:[#allocation2 + $0x158] sm:$0xff] %vm849, %v828
    %894 = vst.msk [vmem:[#allocation2 + $0x160] sm:$0xff] %vm849, %v829
    %895 = vst.msk [vmem:[#allocation2 + $0x168] sm:$0xff] %vm849, %v830
    %896 = vst.msk [vmem:[#allocation2 + $0x170] sm:$0xff] %vm849, %v831
    %897 = vst.msk [vmem:[#allocation2 + $0x178] sm:$0xff] %vm849, %v832
    %898 = vst.msk [vmem:[#allocation2 + $0x180] sm:$0xff] %vm849, %v833
    %899 = vst.msk [vmem:[#allocation2 + $0x188] sm:$0xff] %vm849, %v834
    %900 = vst.msk [vmem:[#allocation2 + $0x190] sm:$0xff] %vm849, %v835
    %901 = vst.msk [vmem:[#allocation2 + $0x198] sm:$0xff] %vm849, %v836
    %902 = vst.msk [vmem:[#allocation2 + $0x1a0] sm:$0xff] %vm849, %v837
    %903 = vst.msk [vmem:[#allocation2 + $0x1a8] sm:$0xff] %vm849, %v838
    %904 = vst.msk [vmem:[#allocation2 + $0x1b0] sm:$0xff] %vm849, %v839
    %905 = vst.msk [vmem:[#allocation2 + $0x1b8] sm:$0xff] %vm849, %v840
    %906 = vst.msk [vmem:[#allocation2 + $0x1c0] sm:$0xff] %vm849, %v841
    %907 = vst.msk [vmem:[#allocation2 + $0x1c8] sm:$0xff] %vm849, %v842
    %908 = vst.msk [vmem:[#allocation2 + $0x1d0] sm:$0xff] %vm849, %v843
    %909 = vst.msk [vmem:[#allocation2 + $0x1d8] sm:$0xff] %vm849, %v844
    %910 = vst.msk [vmem:[#allocation2 + $0x1e0] sm:$0xff] %vm849, %v845
    %911 = vst.msk [vmem:[#allocation2 + $0x1e8] sm:$0xff] %vm849, %v846
    %912 = vst.msk [vmem:[#allocation2 + $0x1f0] sm:$0xff] %vm849, %v847
    %913 = vst.msk [vmem:[#allocation2 + $0x1f8] sm:$0xff] %vm849, %v848
    // Predicated region
    $region18: #{_lambda_.17} parent=1 // pred_check
      %p914 = pneg %p18
    $region19: #{_lambda_.17} parent=1 // pred_check_branch
      %916 = sbr.rel (%p914) target = $region21
    $region20: #{_lambda_.17} parent=1 // pred_region
      %v917 = vld [vmem:[#allocation2] sm:$0xff]
      %v918 = vld [vmem:[#allocation2 + $0x8] sm:$0xff]
      %v919 = vld [vmem:[#allocation2 + $0x10] sm:$0xff]
      %v920 = vld [vmem:[#allocation2 + $0x18] sm:$0xff]
      %v921 = vld [vmem:[#allocation2 + $0x20] sm:$0xff]
      %v922 = vld [vmem:[#allocation2 + $0x28] sm:$0xff]
      %v923 = vld [vmem:[#allocation2 + $0x30] sm:$0xff]
      %v924 = vld [vmem:[#allocation2 + $0x38] sm:$0xff]
      %v925 = vld [vmem:[#allocation2 + $0x40] sm:$0xff]
      %v926 = vld [vmem:[#allocation2 + $0x48] sm:$0xff]
      %v927 = vld [vmem:[#allocation2 + $0x50] sm:$0xff]
      %v928 = vld [vmem:[#allocation2 + $0x58] sm:$0xff]
      %v929 = vld [vmem:[#allocation2 + $0x60] sm:$0xff]
      %v930 = vld [vmem:[#allocation2 + $0x68] sm:$0xff]
      %v931 = vld [vmem:[#allocation2 + $0x70] sm:$0xff]
      %v932 = vld [vmem:[#allocation2 + $0x78] sm:$0xff]
      %v933 = vld [vmem:[#allocation2 + $0x80] sm:$0xff]
      %v934 = vld [vmem:[#allocation2 + $0x88] sm:$0xff]
      %v935 = vld [vmem:[#allocation2 + $0x90] sm:$0xff]
      %v936 = vld [vmem:[#allocation2 + $0x98] sm:$0xff]
      %v937 = vld [vmem:[#allocation2 + $0xa0] sm:$0xff]
      %v938 = vld [vmem:[#allocation2 + $0xa8] sm:$0xff]
      %v939 = vld [vmem:[#allocation2 + $0xb0] sm:$0xff]
      %v940 = vld [vmem:[#allocation2 + $0xb8] sm:$0xff]
      %v941 = vld [vmem:[#allocation2 + $0xc0] sm:$0xff]
      %v942 = vld [vmem:[#allocation2 + $0xc8] sm:$0xff]
      %v943 = vld [vmem:[#allocation2 + $0xd0] sm:$0xff]
      %v944 = vld [vmem:[#allocation2 + $0xd8] sm:$0xff]
      %v945 = vld [vmem:[#allocation2 + $0xe0] sm:$0xff]
      %v946 = vld [vmem:[#allocation2 + $0xe8] sm:$0xff]
      %v947 = vld [vmem:[#allocation2 + $0xf0] sm:$0xff]
      %v948 = vld [vmem:[#allocation2 + $0xf8] sm:$0xff]
      %v949 = vld [vmem:[#allocation2 + $0x100] sm:$0xff]
      %v950 = vld [vmem:[#allocation2 + $0x108] sm:$0xff]
      %v951 = vld [vmem:[#allocation2 + $0x110] sm:$0xff]
      %v952 = vld [vmem:[#allocation2 + $0x118] sm:$0xff]
      %v953 = vld [vmem:[#allocation2 + $0x120] sm:$0xff]
      %v954 = vld [vmem:[#allocation2 + $0x128] sm:$0xff]
      %v955 = vld [vmem:[#allocation2 + $0x130] sm:$0xff]
      %v956 = vld [vmem:[#allocation2 + $0x138] sm:$0xff]
      %v957 = vld [vmem:[#allocation2 + $0x140] sm:$0xff]
      %v958 = vld [vmem:[#allocation2 + $0x148] sm:$0xff]
      %v959 = vld [vmem:[#allocation2 + $0x150] sm:$0xff]
      %v960 = vld [vmem:[#allocation2 + $0x158] sm:$0xff]
      %v961 = vld [vmem:[#allocation2 + $0x160] sm:$0xff]
      %v962 = vld [vmem:[#allocation2 + $0x168] sm:$0xff]
      %v963 = vld [vmem:[#allocation2 + $0x170] sm:$0xff]
      %v964 = vld [vmem:[#allocation2 + $0x178] sm:$0xff]
      %v965 = vld [vmem:[#allocation2 + $0x180] sm:$0xff]
      %v966 = vld [vmem:[#allocation2 + $0x188] sm:$0xff]
      %v967 = vld [vmem:[#allocation2 + $0x190] sm:$0xff]
      %v968 = vld [vmem:[#allocation2 + $0x198] sm:$0xff]
      %v969 = vld [vmem:[#allocation2 + $0x1a0] sm:$0xff]
      %v970 = vld [vmem:[#allocation2 + $0x1a8] sm:$0xff]
      %v971 = vld [vmem:[#allocation2 + $0x1b0] sm:$0xff]
      %v972 = vld [vmem:[#allocation2 + $0x1b8] sm:$0xff]
      %v973 = vld [vmem:[#allocation2 + $0x1c0] sm:$0xff]
      %v974 = vld [vmem:[#allocation2 + $0x1c8] sm:$0xff]
      %v975 = vld [vmem:[#allocation2 + $0x1d0] sm:$0xff]
      %v976 = vld [vmem:[#allocation2 + $0x1d8] sm:$0xff]
      %v977 = vld [vmem:[#allocation2 + $0x1e0] sm:$0xff]
      %v978 = vld [vmem:[#allocation2 + $0x1e8] sm:$0xff]
      %v979 = vld [vmem:[#allocation2 + $0x1f0] sm:$0xff]
      %v980 = vld [vmem:[#allocation2 + $0x1f8] sm:$0xff]
      %v981 = vld [vmem:[%s2] sm:$0x1]
      %v983 = vlaneseq
      %v984 = vshrl.u32 %v983, 7
      %v985 = vsub.s32 0, %v984
      %v986 = vrot.slane %v981, %v985
      %v988 = vadd.f32 %v917, %v986
      %v989 = vadd.f32 %v918, %v986
      %v990 = vadd.f32 %v919, %v986
      %v991 = vadd.f32 %v920, %v986
      %v992 = vadd.f32 %v921, %v986
      %v993 = vadd.f32 %v922, %v986
      %v994 = vadd.f32 %v923, %v986
      %v995 = vadd.f32 %v924, %v986
      %v996 = vadd.f32 %v925, %v986
      %v997 = vadd.f32 %v926, %v986
      %v998 = vadd.f32 %v927, %v986
      %v999 = vadd.f32 %v928, %v986
      %v1000 = vadd.f32 %v929, %v986
      %v1001 = vadd.f32 %v930, %v986
      %v1002 = vadd.f32 %v931, %v986
      %v1003 = vadd.f32 %v932, %v986
      %v1004 = vadd.f32 %v933, %v986
      %v1005 = vadd.f32 %v934, %v986
      %v1006 = vadd.f32 %v935, %v986
      %v1007 = vadd.f32 %v936, %v986
      %v1008 = vadd.f32 %v937, %v986
      %v1009 = vadd.f32 %v938, %v986
      %v1010 = vadd.f32 %v939, %v986
      %v1011 = vadd.f32 %v940, %v986
      %v1012 = vadd.f32 %v941, %v986
      %v1013 = vadd.f32 %v942, %v986
      %v1014 = vadd.f32 %v943, %v986
      %v1015 = vadd.f32 %v944, %v986
      %v1016 = vadd.f32 %v945, %v986
      %v1017 = vadd.f32 %v946, %v986
      %v1018 = vadd.f32 %v947, %v986
      %v1019 = vadd.f32 %v948, %v986
      %v1020 = vadd.f32 %v949, %v986
      %v1021 = vadd.f32 %v950, %v986
      %v1022 = vadd.f32 %v951, %v986
      %v1023 = vadd.f32 %v952, %v986
      %v1024 = vadd.f32 %v953, %v986
      %v1025 = vadd.f32 %v954, %v986
      %v1026 = vadd.f32 %v955, %v986
      %v1027 = vadd.f32 %v956, %v986
      %v1028 = vadd.f32 %v957, %v986
      %v1029 = vadd.f32 %v958, %v986
      %v1030 = vadd.f32 %v959, %v986
      %v1031 = vadd.f32 %v960, %v986
      %v1032 = vadd.f32 %v961, %v986
      %v1033 = vadd.f32 %v962, %v986
      %v1034 = vadd.f32 %v963, %v986
      %v1035 = vadd.f32 %v964, %v986
      %v1036 = vadd.f32 %v965, %v986
      %v1037 = vadd.f32 %v966, %v986
      %v1038 = vadd.f32 %v967, %v986
      %v1039 = vadd.f32 %v968, %v986
      %v1040 = vadd.f32 %v969, %v986
      %v1041 = vadd.f32 %v970, %v986
      %v1042 = vadd.f32 %v971, %v986
      %v1043 = vadd.f32 %v972, %v986
      %v1044 = vadd.f32 %v973, %v986
      %v1045 = vadd.f32 %v974, %v986
      %v1046 = vadd.f32 %v975, %v986
      %v1047 = vadd.f32 %v976, %v986
      %v1048 = vadd.f32 %v977, %v986
      %v1049 = vadd.f32 %v978, %v986
      %v1050 = vadd.f32 %v979, %v986
      %v1051 = vadd.f32 %v980, %v986
      %v1052 = vsel %vm849, %v988, 0.0
      %v1053 = vsel %vm849, %v989, 0.0
      %v1054 = vadd.f32 %v1052, %v1053
      %v1055 = vsel %vm849, %v990, 0.0
      %v1056 = vadd.f32 %v1054, %v1055
      %v1057 = vsel %vm849, %v991, 0.0
      %v1058 = vadd.f32 %v1056, %v1057
      %v1059 = vsel %vm849, %v992, 0.0
      %v1060 = vadd.f32 %v1058, %v1059
      %v1061 = vsel %vm849, %v993, 0.0
      %v1062 = vadd.f32 %v1060, %v1061
      %v1063 = vsel %vm849, %v994, 0.0
      %v1064 = vadd.f32 %v1062, %v1063
      %v1065 = vsel %vm849, %v995, 0.0
      %v1066 = vadd.f32 %v1064, %v1065
      %v1067 = vsel %vm849, %v996, 0.0
      %v1068 = vadd.f32 %v1066, %v1067
      %v1069 = vsel %vm849, %v997, 0.0
      %v1070 = vadd.f32 %v1068, %v1069
      %v1071 = vsel %vm849, %v998, 0.0
      %v1072 = vadd.f32 %v1070, %v1071
      %v1073 = vsel %vm849, %v999, 0.0
      %v1074 = vadd.f32 %v1072, %v1073
      %v1075 = vsel %vm849, %v1000, 0.0
      %v1076 = vadd.f32 %v1074, %v1075
      %v1077 = vsel %vm849, %v1001, 0.0
      %v1078 = vadd.f32 %v1076, %v1077
      %v1079 = vsel %vm849, %v1002, 0.0
      %v1080 = vadd.f32 %v1078, %v1079
      %v1081 = vsel %vm849, %v1003, 0.0
      %v1082 = vadd.f32 %v1080, %v1081
      %v1083 = vsel %vm849, %v1004, 0.0
      %v1084 = vadd.f32 %v1082, %v1083
      %v1085 = vsel %vm849, %v1005, 0.0
      %v1086 = vadd.f32 %v1084, %v1085
      %v1087 = vsel %vm849, %v1006, 0.0
      %v1088 = vadd.f32 %v1086, %v1087
      %v1089 = vsel %vm849, %v1007, 0.0
      %v1090 = vadd.f32 %v1088, %v1089
      %v1091 = vsel %vm849, %v1008, 0.0
      %v1092 = vadd.f32 %v1090, %v1091
      %v1093 = vsel %vm849, %v1009, 0.0
      %v1094 = vadd.f32 %v1092, %v1093
      %v1095 = vsel %vm849, %v1010, 0.0
      %v1096 = vadd.f32 %v1094, %v1095
      %v1097 = vsel %vm849, %v1011, 0.0
      %v1098 = vadd.f32 %v1096, %v1097
      %v1099 = vsel %vm849, %v1012, 0.0
      %v1100 = vadd.f32 %v1098, %v1099
      %v1101 = vsel %vm849, %v1013, 0.0
      %v1102 = vadd.f32 %v1100, %v1101
      %v1103 = vsel %vm849, %v1014, 0.0
      %v1104 = vadd.f32 %v1102, %v1103
      %v1105 = vsel %vm849, %v1015, 0.0
      %v1106 = vadd.f32 %v1104, %v1105
      %v1107 = vsel %vm849, %v1016, 0.0
      %v1108 = vadd.f32 %v1106, %v1107
      %v1109 = vsel %vm849, %v1017, 0.0
      %v1110 = vadd.f32 %v1108, %v1109
      %v1111 = vsel %vm849, %v1018, 0.0
      %v1112 = vadd.f32 %v1110, %v1111
      %v1113 = vsel %vm849, %v1019, 0.0
      %v1114 = vadd.f32 %v1112, %v1113
      %v1115 = vsel %vm849, %v1020, 0.0
      %v1116 = vadd.f32 %v1114, %v1115
      %v1117 = vsel %vm849, %v1021, 0.0
      %v1118 = vadd.f32 %v1116, %v1117
      %v1119 = vsel %vm849, %v1022, 0.0
      %v1120 = vadd.f32 %v1118, %v1119
      %v1121 = vsel %vm849, %v1023, 0.0
      %v1122 = vadd.f32 %v1120, %v1121
      %v1123 = vsel %vm849, %v1024, 0.0
      %v1124 = vadd.f32 %v1122, %v1123
      %v1125 = vsel %vm849, %v1025, 0.0
      %v1126 = vadd.f32 %v1124, %v1125
      %v1127 = vsel %vm849, %v1026, 0.0
      %v1128 = vadd.f32 %v1126, %v1127
      %v1129 = vsel %vm849, %v1027, 0.0
      %v1130 = vadd.f32 %v1128, %v1129
      %v1131 = vsel %vm849, %v1028, 0.0
      %v1132 = vadd.f32 %v1130, %v1131
      %v1133 = vsel %vm849, %v1029, 0.0
      %v1134 = vadd.f32 %v1132, %v1133
      %v1135 = vsel %vm849, %v1030, 0.0
      %v1136 = vadd.f32 %v1134, %v1135
      %v1137 = vsel %vm849, %v1031, 0.0
      %v1138 = vadd.f32 %v1136, %v1137
      %v1139 = vsel %vm849, %v1032, 0.0
      %v1140 = vadd.f32 %v1138, %v1139
      %v1141 = vsel %vm849, %v1033, 0.0
      %v1142 = vadd.f32 %v1140, %v1141
      %v1143 = vsel %vm849, %v1034, 0.0
      %v1144 = vadd.f32 %v1142, %v1143
      %v1145 = vsel %vm849, %v1035, 0.0
      %v1146 = vadd.f32 %v1144, %v1145
      %v1147 = vsel %vm849, %v1036, 0.0
      %v1148 = vadd.f32 %v1146, %v1147
      %v1149 = vsel %vm849, %v1037, 0.0
      %v1150 = vadd.f32 %v1148, %v1149
      %v1151 = vsel %vm849, %v1038, 0.0
      %v1152 = vadd.f32 %v1150, %v1151
      %v1153 = vsel %vm849, %v1039, 0.0
      %v1154 = vadd.f32 %v1152, %v1153
      %v1155 = vsel %vm849, %v1040, 0.0
      %v1156 = vadd.f32 %v1154, %v1155
      %v1157 = vsel %vm849, %v1041, 0.0
      %v1158 = vadd.f32 %v1156, %v1157
      %v1159 = vsel %vm849, %v1042, 0.0
      %v1160 = vadd.f32 %v1158, %v1159
      %v1161 = vsel %vm849, %v1043, 0.0
      %v1162 = vadd.f32 %v1160, %v1161
      %v1163 = vsel %vm849, %v1044, 0.0
      %v1164 = vadd.f32 %v1162, %v1163
      %v1165 = vsel %vm849, %v1045, 0.0
      %v1166 = vadd.f32 %v1164, %v1165
      %v1167 = vsel %vm849, %v1046, 0.0
      %v1168 = vadd.f32 %v1166, %v1167
      %v1169 = vsel %vm849, %v1047, 0.0
      %v1170 = vadd.f32 %v1168, %v1169
      %v1171 = vsel %vm849, %v1048, 0.0
      %v1172 = vadd.f32 %v1170, %v1171
      %v1173 = vsel %vm849, %v1049, 0.0
      %v1174 = vadd.f32 %v1172, %v1173
      %v1175 = vsel %vm849, %v1050, 0.0
      %v1176 = vadd.f32 %v1174, %v1175
      %v1177 = vsel %vm849, %v1051, 0.0
      %v1178 = vadd.f32 %v1176, %v1177
      %v1179 = vrot.slane %v1178, 4
      %v1180 = vadd.f32 %v1178, %v1179
      %v1181 = vrot.slane %v1180, 2
      %v1182 = vadd.f32 %v1180, %v1181
      %v1183 = vrot.slane %v1182, 1
      %v1184 = vadd.f32 %v1182, %v1183
      %v1185 = vmul.f32 %v988, %v988
      %v1186 = vmul.f32 %v989, %v989
      %v1187 = vmul.f32 %v990, %v990
      %v1188 = vmul.f32 %v991, %v991
      %v1189 = vmul.f32 %v992, %v992
      %v1190 = vmul.f32 %v993, %v993
      %v1191 = vmul.f32 %v994, %v994
      %v1192 = vmul.f32 %v995, %v995
      %v1193 = vmul.f32 %v996, %v996
      %v1194 = vmul.f32 %v997, %v997
      %v1195 = vmul.f32 %v998, %v998
      %v1196 = vmul.f32 %v999, %v999
      %v1197 = vmul.f32 %v1000, %v1000
      %v1198 = vmul.f32 %v1001, %v1001
      %v1199 = vmul.f32 %v1002, %v1002
      %v1200 = vmul.f32 %v1003, %v1003
      %v1201 = vmul.f32 %v1004, %v1004
      %v1202 = vmul.f32 %v1005, %v1005
      %v1203 = vmul.f32 %v1006, %v1006
      %v1204 = vmul.f32 %v1007, %v1007
      %v1205 = vmul.f32 %v1008, %v1008
      %v1206 = vmul.f32 %v1009, %v1009
      %v1207 = vmul.f32 %v1010, %v1010
      %v1208 = vmul.f32 %v1011, %v1011
      %v1209 = vmul.f32 %v1012, %v1012
      %v1210 = vmul.f32 %v1013, %v1013
      %v1211 = vmul.f32 %v1014, %v1014
      %v1212 = vmul.f32 %v1015, %v1015
      %v1213 = vmul.f32 %v1016, %v1016
      %v1214 = vmul.f32 %v1017, %v1017
      %v1215 = vmul.f32 %v1018, %v1018
      %v1216 = vmul.f32 %v1019, %v1019
      %v1217 = vmul.f32 %v1020, %v1020
      %v1218 = vmul.f32 %v1021, %v1021
      %v1219 = vmul.f32 %v1022, %v1022
      %v1220 = vmul.f32 %v1023, %v1023
      %v1221 = vmul.f32 %v1024, %v1024
      %v1222 = vmul.f32 %v1025, %v1025
      %v1223 = vmul.f32 %v1026, %v1026
      %v1224 = vmul.f32 %v1027, %v1027
      %v1225 = vmul.f32 %v1028, %v1028
      %v1226 = vmul.f32 %v1029, %v1029
      %v1227 = vmul.f32 %v1030, %v1030
      %v1228 = vmul.f32 %v1031, %v1031
      %v1229 = vmul.f32 %v1032, %v1032
      %v1230 = vmul.f32 %v1033, %v1033
      %v1231 = vmul.f32 %v1034, %v1034
      %v1232 = vmul.f32 %v1035, %v1035
      %v1233 = vmul.f32 %v1036, %v1036
      %v1234 = vmul.f32 %v1037, %v1037
      %v1235 = vmul.f32 %v1038, %v1038
      %v1236 = vmul.f32 %v1039, %v1039
      %v1237 = vmul.f32 %v1040, %v1040
      %v1238 = vmul.f32 %v1041, %v1041
      %v1239 = vmul.f32 %v1042, %v1042
      %v1240 = vmul.f32 %v1043, %v1043
      %v1241 = vmul.f32 %v1044, %v1044
      %v1242 = vmul.f32 %v1045, %v1045
      %v1243 = vmul.f32 %v1046, %v1046
      %v1244 = vmul.f32 %v1047, %v1047
      %v1245 = vmul.f32 %v1048, %v1048
      %v1246 = vmul.f32 %v1049, %v1049
      %v1247 = vmul.f32 %v1050, %v1050
      %v1248 = vmul.f32 %v1051, %v1051
      %v1249 = vsel %vm849, %v1185, 0.0
      %v1250 = vsel %vm849, %v1186, 0.0
      %v1251 = vadd.f32 %v1249, %v1250
      %v1252 = vsel %vm849, %v1187, 0.0
      %v1253 = vadd.f32 %v1251, %v1252
      %v1254 = vsel %vm849, %v1188, 0.0
      %v1255 = vadd.f32 %v1253, %v1254
      %v1256 = vsel %vm849, %v1189, 0.0
      %v1257 = vadd.f32 %v1255, %v1256
      %v1258 = vsel %vm849, %v1190, 0.0
      %v1259 = vadd.f32 %v1257, %v1258
      %v1260 = vsel %vm849, %v1191, 0.0
      %v1261 = vadd.f32 %v1259, %v1260
      %v1262 = vsel %vm849, %v1192, 0.0
      %v1263 = vadd.f32 %v1261, %v1262
      %v1264 = vsel %vm849, %v1193, 0.0
      %v1265 = vadd.f32 %v1263, %v1264
      %v1266 = vsel %vm849, %v1194, 0.0
      %v1267 = vadd.f32 %v1265, %v1266
      %v1268 = vsel %vm849, %v1195, 0.0
      %v1269 = vadd.f32 %v1267, %v1268
      %v1270 = vsel %vm849, %v1196, 0.0
      %v1271 = vadd.f32 %v1269, %v1270
      %v1272 = vsel %vm849, %v1197, 0.0
      %v1273 = vadd.f32 %v1271, %v1272
      %v1274 = vsel %vm849, %v1198, 0.0
      %v1275 = vadd.f32 %v1273, %v1274
      %v1276 = vsel %vm849, %v1199, 0.0
      %v1277 = vadd.f32 %v1275, %v1276
      %v1278 = vsel %vm849, %v1200, 0.0
      %v1279 = vadd.f32 %v1277, %v1278
      %v1280 = vsel %vm849, %v1201, 0.0
      %v1281 = vadd.f32 %v1279, %v1280
      %v1282 = vsel %vm849, %v1202, 0.0
      %v1283 = vadd.f32 %v1281, %v1282
      %v1284 = vsel %vm849, %v1203, 0.0
      %v1285 = vadd.f32 %v1283, %v1284
      %v1286 = vsel %vm849, %v1204, 0.0
      %v1287 = vadd.f32 %v1285, %v1286
      %v1288 = vsel %vm849, %v1205, 0.0
      %v1289 = vadd.f32 %v1287, %v1288
      %v1290 = vsel %vm849, %v1206, 0.0
      %v1291 = vadd.f32 %v1289, %v1290
      %v1292 = vsel %vm849, %v1207, 0.0
      %v1293 = vadd.f32 %v1291, %v1292
      %v1294 = vsel %vm849, %v1208, 0.0
      %v1295 = vadd.f32 %v1293, %v1294
      %v1296 = vsel %vm849, %v1209, 0.0
      %v1297 = vadd.f32 %v1295, %v1296
      %v1298 = vsel %vm849, %v1210, 0.0
      %v1299 = vadd.f32 %v1297, %v1298
      %v1300 = vsel %vm849, %v1211, 0.0
      %v1301 = vadd.f32 %v1299, %v1300
      %v1302 = vsel %vm849, %v1212, 0.0
      %v1303 = vadd.f32 %v1301, %v1302
      %v1304 = vsel %vm849, %v1213, 0.0
      %v1305 = vadd.f32 %v1303, %v1304
      %v1306 = vsel %vm849, %v1214, 0.0
      %v1307 = vadd.f32 %v1305, %v1306
      %v1308 = vsel %vm849, %v1215, 0.0
      %v1309 = vadd.f32 %v1307, %v1308
      %v1310 = vsel %vm849, %v1216, 0.0
      %v1311 = vadd.f32 %v1309, %v1310
      %v1312 = vsel %vm849, %v1217, 0.0
      %v1313 = vadd.f32 %v1311, %v1312
      %v1314 = vsel %vm849, %v1218, 0.0
      %v1315 = vadd.f32 %v1313, %v1314
      %v1316 = vsel %vm849, %v1219, 0.0
      %v1317 = vadd.f32 %v1315, %v1316
      %v1318 = vsel %vm849, %v1220, 0.0
      %v1319 = vadd.f32 %v1317, %v1318
      %v1320 = vsel %vm849, %v1221, 0.0
      %v1321 = vadd.f32 %v1319, %v1320
      %v1322 = vsel %vm849, %v1222, 0.0
      %v1323 = vadd.f32 %v1321, %v1322
      %v1324 = vsel %vm849, %v1223, 0.0
      %v1325 = vadd.f32 %v1323, %v1324
      %v1326 = vsel %vm849, %v1224, 0.0
      %v1327 = vadd.f32 %v1325, %v1326
      %v1328 = vsel %vm849, %v1225, 0.0
      %v1329 = vadd.f32 %v1327, %v1328
      %v1330 = vsel %vm849, %v1226, 0.0
      %v1331 = vadd.f32 %v1329, %v1330
      %v1332 = vsel %vm849, %v1227, 0.0
      %v1333 = vadd.f32 %v1331, %v1332
      %v1334 = vsel %vm849, %v1228, 0.0
      %v1335 = vadd.f32 %v1333, %v1334
      %v1336 = vsel %vm849, %v1229, 0.0
      %v1337 = vadd.f32 %v1335, %v1336
      %v1338 = vsel %vm849, %v1230, 0.0
      %v1339 = vadd.f32 %v1337, %v1338
      %v1340 = vsel %vm849, %v1231, 0.0
      %v1341 = vadd.f32 %v1339, %v1340
      %v1342 = vsel %vm849, %v1232, 0.0
      %v1343 = vadd.f32 %v1341, %v1342
      %v1344 = vsel %vm849, %v1233, 0.0
      %v1345 = vadd.f32 %v1343, %v1344
      %v1346 = vsel %vm849, %v1234, 0.0
      %v1347 = vadd.f32 %v1345, %v1346
      %v1348 = vsel %vm849, %v1235, 0.0
      %v1349 = vadd.f32 %v1347, %v1348
      %v1350 = vsel %vm849, %v1236, 0.0
      %v1351 = vadd.f32 %v1349, %v1350
      %v1352 = vsel %vm849, %v1237, 0.0
      %v1353 = vadd.f32 %v1351, %v1352
      %v1354 = vsel %vm849, %v1238, 0.0
      %v1355 = vadd.f32 %v1353, %v1354
      %v1356 = vsel %vm849, %v1239, 0.0
      %v1357 = vadd.f32 %v1355, %v1356
      %v1358 = vsel %vm849, %v1240, 0.0
      %v1359 = vadd.f32 %v1357, %v1358
      %v1360 = vsel %vm849, %v1241, 0.0
      %v1361 = vadd.f32 %v1359, %v1360
      %v1362 = vsel %vm849, %v1242, 0.0
      %v1363 = vadd.f32 %v1361, %v1362
      %v1364 = vsel %vm849, %v1243, 0.0
      %v1365 = vadd.f32 %v1363, %v1364
      %v1366 = vsel %vm849, %v1244, 0.0
      %v1367 = vadd.f32 %v1365, %v1366
      %v1368 = vsel %vm849, %v1245, 0.0
      %v1369 = vadd.f32 %v1367, %v1368
      %v1370 = vsel %vm849, %v1246, 0.0
      %v1371 = vadd.f32 %v1369, %v1370
      %v1372 = vsel %vm849, %v1247, 0.0
      %v1373 = vadd.f32 %v1371, %v1372
      %v1374 = vsel %vm849, %v1248, 0.0
      %v1375 = vadd.f32 %v1373, %v1374
      %v1376 = vrot.slane %v1375, 4
      %v1377 = vadd.f32 %v1375, %v1376
      %v1378 = vrot.slane %v1377, 2
      %v1379 = vadd.f32 %v1377, %v1378
      %v1380 = vrot.slane %v1379, 1
      %v1381 = vadd.f32 %v1379, %v1380
      %vm1382 = vcmask 1040384
      %v1383 = vsel %vm1382, %v1184, %v1381
      %vm1384 = vcmask 1041408
      %v1385 = vsel %vm1384, %v1383, 0.0
      %1386 = vst.msk [vmem:[#allocation3] sm:$0xff] %vm849, %v1385
      %1387 = vst.msk [vmem:[%s3] sm:$0xff] %vm849, %v988
      %1388 = vst.msk [vmem:[%s3 + $0x8] sm:$0xff] %vm849, %v989
      %1389 = vst.msk [vmem:[%s3 + $0x10] sm:$0xff] %vm849, %v990
      %1390 = vst.msk [vmem:[%s3 + $0x18] sm:$0xff] %vm849, %v991
      %1391 = vst.msk [vmem:[%s3 + $0x20] sm:$0xff] %vm849, %v992
      %1392 = vst.msk [vmem:[%s3 + $0x28] sm:$0xff] %vm849, %v993
      %1393 = vst.msk [vmem:[%s3 + $0x30] sm:$0xff] %vm849, %v994
      %1394 = vst.msk [vmem:[%s3 + $0x38] sm:$0xff] %vm849, %v995
      %1395 = vst.msk [vmem:[%s3 + $0x40] sm:$0xff] %vm849, %v996
      %1396 = vst.msk [vmem:[%s3 + $0x48] sm:$0xff] %vm849, %v997
      %1397 = vst.msk [vmem:[%s3 + $0x50] sm:$0xff] %vm849, %v998
      %1398 = vst.msk [vmem:[%s3 + $0x58] sm:$0xff] %vm849, %v999
      %1399 = vst.msk [vmem:[%s3 + $0x60] sm:$0xff] %vm849, %v1000
      %1400 = vst.msk [vmem:[%s3 + $0x68] sm:$0xff] %vm849, %v1001
      %1401 = vst.msk [vmem:[%s3 + $0x70] sm:$0xff] %vm849, %v1002
      %1402 = vst.msk [vmem:[%s3 + $0x78] sm:$0xff] %vm849, %v1003
      %1403 = vst.msk [vmem:[%s3 + $0x80] sm:$0xff] %vm849, %v1004
      %1404 = vst.msk [vmem:[%s3 + $0x88] sm:$0xff] %vm849, %v1005
      %1405 = vst.msk [vmem:[%s3 + $0x90] sm:$0xff] %vm849, %v1006
      %1406 = vst.msk [vmem:[%s3 + $0x98] sm:$0xff] %vm849, %v1007
      %1407 = vst.msk [vmem:[%s3 + $0xa0] sm:$0xff] %vm849, %v1008
      %1408 = vst.msk [vmem:[%s3 + $0xa8] sm:$0xff] %vm849, %v1009
      %1409 = vst.msk [vmem:[%s3 + $0xb0] sm:$0xff] %vm849, %v1010
      %1410 = vst.msk [vmem:[%s3 + $0xb8] sm:$0xff] %vm849, %v1011
      %1411 = vst.msk [vmem:[%s3 + $0xc0] sm:$0xff] %vm849, %v1012
      %1412 = vst.msk [vmem:[%s3 + $0xc8] sm:$0xff] %vm849, %v1013
      %1413 = vst.msk [vmem:[%s3 + $0xd0] sm:$0xff] %vm849, %v1014
      %1414 = vst.msk [vmem:[%s3 + $0xd8] sm:$0xff] %vm849, %v1015
      %1415 = vst.msk [vmem:[%s3 + $0xe0] sm:$0xff] %vm849, %v1016
      %1416 = vst.msk [vmem:[%s3 + $0xe8] sm:$0xff] %vm849, %v1017
      %1417 = vst.msk [vmem:[%s3 + $0xf0] sm:$0xff] %vm849, %v1018
      %1418 = vst.msk [vmem:[%s3 + $0xf8] sm:$0xff] %vm849, %v1019
      %1419 = vst.msk [vmem:[%s3 + $0x100] sm:$0xff] %vm849, %v1020
      %1420 = vst.msk [vmem:[%s3 + $0x108] sm:$0xff] %vm849, %v1021
      %1421 = vst.msk [vmem:[%s3 + $0x110] sm:$0xff] %vm849, %v1022
      %1422 = vst.msk [vmem:[%s3 + $0x118] sm:$0xff] %vm849, %v1023
      %1423 = vst.msk [vmem:[%s3 + $0x120] sm:$0xff] %vm849, %v1024
      %1424 = vst.msk [vmem:[%s3 + $0x128] sm:$0xff] %vm849, %v1025
      %1425 = vst.msk [vmem:[%s3 + $0x130] sm:$0xff] %vm849, %v1026
      %1426 = vst.msk [vmem:[%s3 + $0x138] sm:$0xff] %vm849, %v1027
      %1427 = vst.msk [vmem:[%s3 + $0x140] sm:$0xff] %vm849, %v1028
      %1428 = vst.msk [vmem:[%s3 + $0x148] sm:$0xff] %vm849, %v1029
      %1429 = vst.msk [vmem:[%s3 + $0x150] sm:$0xff] %vm849, %v1030
      %1430 = vst.msk [vmem:[%s3 + $0x158] sm:$0xff] %vm849, %v1031
      %1431 = vst.msk [vmem:[%s3 + $0x160] sm:$0xff] %vm849, %v1032
      %1432 = vst.msk [vmem:[%s3 + $0x168] sm:$0xff] %vm849, %v1033
      %1433 = vst.msk [vmem:[%s3 + $0x170] sm:$0xff] %vm849, %v1034
      %1434 = vst.msk [vmem:[%s3 + $0x178] sm:$0xff] %vm849, %v1035
      %1435 = vst.msk [vmem:[%s3 + $0x180] sm:$0xff] %vm849, %v1036
      %1436 = vst.msk [vmem:[%s3 + $0x188] sm:$0xff] %vm849, %v1037
      %1437 = vst.msk [vmem:[%s3 + $0x190] sm:$0xff] %vm849, %v1038
      %1438 = vst.msk [vmem:[%s3 + $0x198] sm:$0xff] %vm849, %v1039
      %1439 = vst.msk [vmem:[%s3 + $0x1a0] sm:$0xff] %vm849, %v1040
      %1440 = vst.msk [vmem:[%s3 + $0x1a8] sm:$0xff] %vm849, %v1041
      %1441 = vst.msk [vmem:[%s3 + $0x1b0] sm:$0xff] %vm849, %v1042
      %1442 = vst.msk [vmem:[%s3 + $0x1b8] sm:$0xff] %vm849, %v1043
      %1443 = vst.msk [vmem:[%s3 + $0x1c0] sm:$0xff] %vm849, %v1044
      %1444 = vst.msk [vmem:[%s3 + $0x1c8] sm:$0xff] %vm849, %v1045
      %1445 = vst.msk [vmem:[%s3 + $0x1d0] sm:$0xff] %vm849, %v1046
      %1446 = vst.msk [vmem:[%s3 + $0x1d8] sm:$0xff] %vm849, %v1047
      %1447 = vst.msk [vmem:[%s3 + $0x1e0] sm:$0xff] %vm849, %v1048
      %1448 = vst.msk [vmem:[%s3 + $0x1e8] sm:$0xff] %vm849, %v1049
      %1449 = vst.msk [vmem:[%s3 + $0x1f0] sm:$0xff] %vm849, %v1050
      %1450 = vst.msk [vmem:[%s3 + $0x1f8] sm:$0xff] %vm849, %v1051
    $region21: #{_lambda_.17} parent=1 // pred_fallthru
      _
    // Predicated region
    $region22: #{_lambda_.17} parent=1 // pred_check
      _
    $region23: #{_lambda_.17} parent=1 // pred_check_branch
      %1452 = sbr.rel (0) target = $region25
    $region24: #{_lambda_.17} parent=1 // pred_region
      _
    $region25: #{_lambda_.17} parent=1 // pred_fallthru
      _
    // Predicated region
    $region26: #{_lambda_.17} parent=1 // pred_check
      _
    $region27: #{_lambda_.17} parent=1 // pred_check_branch
      %1454 = sbr.rel (0) target = $region29
    $region28: #{_lambda_.17} parent=1 // pred_region
      %s1456 = ssub.s32 128, 128
      %1457 = vsyncadd [#allocation4], %s1456
      %s1459 = sshll.u32 [#allocation3], 4
      %s1460 = int_to_ptr.vmem [resolvable:$true] %s1459
      %1462 = dma.vmem_to_hbm [thread:$0]  %s1460, 128, %s4, [#allocation4]
    $region29: #{_lambda_.17} parent=1 // pred_fallthru
      _
    // Predicated region
    $region30: #{_lambda_.17} parent=1 // pred_check
      _
    $region31: #{_lambda_.17} parent=1 // pred_check_branch
      %1464 = sbr.rel (0) target = $region33
    $region32: #{_lambda_.17} parent=1 // pred_region
      _
    $region33: #{_lambda_.17} parent=1 // pred_fallthru
      _
    // Predicated region
    $region34: #{_lambda_.17} parent=1 // pred_check
      _
    $region35: #{_lambda_.17} parent=1 // pred_check_branch
      %1466 = sbr.rel (0) target = $region37
    $region36: #{_lambda_.17} parent=1 // pred_region
      %1467 = dma.done [#allocation4], 128
    $region37: #{_lambda_.17} parent=1 // pred_fallthru
      _
    %1468 = vsyncpa [#allocation4], 1

// kernel: _lambda_.18
$region0: #{_lambda_.18}
  #allocation0 [shape = 'u32[]', space=smem, size = 0x4, offset = 0x4, fixed_abs, tag = 'smem constant byte address 0x4 - core index']
  #allocation1 [shape = 'u32[144,128]{1,0:T(1,128)}', space=vmem, size = 0x12000, scoped, tag = 'internal scratch']
  #allocation2 [shape = 'f32[128,16]{1,0:T(8,128)}', space=vmem, size = 0x10000, scoped, tag = 'scratch operand']
  %s0 = inlined_call_operand.vmem [shape: bf16[1,128,128], index: 0, kind: input, shape index: {}]
  %s1 = inlined_call_operand.vmem [shape: bf16[1,128,16], index: 1, kind: input, shape index: {}]
  %s2 = inlined_call_operand.vmem [shape: f32[1,16], index: 2, kind: input, shape index: {}]
  %s3 = inlined_call_operand.vmem [shape: f32[1,128,16], index: 3, kind: output, shape index: {0}]
  %s4 = inlined_call_operand.vmem [shape: f32[1,1,8,16], index: 4, kind: output, shape index: {1}]
  %5 = xla_tuple %s3, %s4
  %s6 = sld [smem:[#allocation0]]
  $region38: #{_lambda_.18} parent=0
    _
  %s8 = ssub.s32 1, %s6
  %s9 = scalar_select 0, %s8, %s6
  // Predicated region
  $region2: #{_lambda_.18} parent=0 // pred_check
    _
  $region3: #{_lambda_.18} parent=0 // pred_check_branch
    %11 = sbr.rel (0) target = $region5
  $region4: #{_lambda_.18} parent=0 // pred_region
    _
  $region5: #{_lambda_.18} parent=0 // pred_fallthru
    _
  // Predicated region
  $region6: #{_lambda_.18} parent=0 // pred_check
    _
  $region7: #{_lambda_.18} parent=0 // pred_check_branch
    %13 = sbr.rel (0) target = $region9
  $region8: #{_lambda_.18} parent=0 // pred_region
    _
  $region9: #{_lambda_.18} parent=0 // pred_fallthru
    _
  // Predicated region
  $region10: #{_lambda_.18} parent=0 // pred_check
    _
  $region11: #{_lambda_.18} parent=0 // pred_check_branch
    %15 = sbr.rel (0) target = $region13
  $region12: #{_lambda_.18} parent=0 // pred_region
    _
  $region13: #{_lambda_.18} parent=0 // pred_fallthru
    _
  %p18 = scmp.eq.s32.totalorder 0, 0
  // Predicated region
  $region14: #{_lambda_.18} parent=0 // pred_check
    %p19 = pneg %p18
  $region15: #{_lambda_.18} parent=0 // pred_check_branch
    %21 = sbr.rel (%p19) target = $region17
  $region16: #{_lambda_.18} parent=0 // pred_region
    %vm22 = vcmask 130048
    %23 = vst.msk [vmem:[#allocation2] sm:$0xff] %vm22, 0.0
    %24 = vst.msk [vmem:[#allocation2 + $0x8] sm:$0xff] %vm22, 0.0
    %25 = vst.msk [vmem:[#allocation2 + $0x10] sm:$0xff] %vm22, 0.0
    %26 = vst.msk [vmem:[#allocation2 + $0x18] sm:$0xff] %vm22, 0.0
    %27 = vst.msk [vmem:[#allocation2 + $0x20] sm:$0xff] %vm22, 0.0
    %28 = vst.msk [vmem:[#allocation2 + $0x28] sm:$0xff] %vm22, 0.0
    %29 = vst.msk [vmem:[#allocation2 + $0x30] sm:$0xff] %vm22, 0.0
    %30 = vst.msk [vmem:[#allocation2 + $0x38] sm:$0xff] %vm22, 0.0
    %31 = vst.msk [vmem:[#allocation2 + $0x40] sm:$0xff] %vm22, 0.0
    %32 = vst.msk [vmem:[#allocation2 + $0x48] sm:$0xff] %vm22, 0.0
    %33 = vst.msk [vmem:[#allocation2 + $0x50] sm:$0xff] %vm22, 0.0
    %34 = vst.msk [vmem:[#allocation2 + $0x58] sm:$0xff] %vm22, 0.0
    %35 = vst.msk [vmem:[#allocation2 + $0x60] sm:$0xff] %vm22, 0.0
    %36 = vst.msk [vmem:[#allocation2 + $0x68] sm:$0xff] %vm22, 0.0
    %37 = vst.msk [vmem:[#allocation2 + $0x70] sm:$0xff] %vm22, 0.0
    %38 = vst.msk [vmem:[#allocation2 + $0x78] sm:$0xff] %vm22, 0.0
  $region17: #{_lambda_.18} parent=0 // pred_fallthru
    _
  %v39 = vld [vmem:[%s0] sm:$0xf]
  %v40 = vld [vmem:[%s0 + $0x4] sm:$0xf]
  %v41 = vld [vmem:[%s0 + $0x8] sm:$0xf]
  %v42 = vld [vmem:[%s0 + $0xc] sm:$0xf]
  %v43 = vld [vmem:[%s0 + $0x10] sm:$0xf]
  %v44 = vld [vmem:[%s0 + $0x14] sm:$0xf]
  %v45 = vld [vmem:[%s0 + $0x18] sm:$0xf]
  %v46 = vld [vmem:[%s0 + $0x1c] sm:$0xf]
  %v47 = vld [vmem:[%s0 + $0x20] sm:$0xf]
  %v48 = vld [vmem:[%s0 + $0x24] sm:$0xf]
  %v49 = vld [vmem:[%s0 + $0x28] sm:$0xf]
  %v50 = vld [vmem:[%s0 + $0x2c] sm:$0xf]
  %v51 = vld [vmem:[%s0 + $0x30] sm:$0xf]
  %v52 = vld [vmem:[%s0 + $0x34] sm:$0xf]
  %v53 = vld [vmem:[%s0 + $0x38] sm:$0xf]
  %v54 = vld [vmem:[%s0 + $0x3c] sm:$0xf]
  %vm55 = vcmp.ge.bf16.partialorder %v39, 0
  %vm56 = vcmp.ge.bf16.partialorder %v40, 0
  %vm57 = vcmp.ge.bf16.partialorder %v41, 0
  %vm58 = vcmp.ge.bf16.partialorder %v42, 0
  %vm59 = vcmp.ge.bf16.partialorder %v43, 0
  %vm60 = vcmp.ge.bf16.partialorder %v44, 0
  %vm61 = vcmp.ge.bf16.partialorder %v45, 0
  %vm62 = vcmp.ge.bf16.partialorder %v46, 0
  %vm63 = vcmp.ge.bf16.partialorder %v47, 0
  %vm64 = vcmp.ge.bf16.partialorder %v48, 0
  %vm65 = vcmp.ge.bf16.partialorder %v49, 0
  %vm66 = vcmp.ge.bf16.partialorder %v50, 0
  %vm67 = vcmp.ge.bf16.partialorder %v51, 0
  %vm68 = vcmp.ge.bf16.partialorder %v52, 0
  %vm69 = vcmp.ge.bf16.partialorder %v53, 0
  %vm70 = vcmp.ge.bf16.partialorder %v54, 0
  %v71 = vmul.bf16 %v39, 1045249613
  %v72 = vmul.bf16 %v40, 1045249613
  %v73 = vmul.bf16 %v41, 1045249613
  %v74 = vmul.bf16 %v42, 1045249613
  %v75 = vmul.bf16 %v43, 1045249613
  %v76 = vmul.bf16 %v44, 1045249613
  %v77 = vmul.bf16 %v45, 1045249613
  %v78 = vmul.bf16 %v46, 1045249613
  %v79 = vmul.bf16 %v47, 1045249613
  %v80 = vmul.bf16 %v48, 1045249613
  %v81 = vmul.bf16 %v49, 1045249613
  %v82 = vmul.bf16 %v50, 1045249613
  %v83 = vmul.bf16 %v51, 1045249613
  %v84 = vmul.bf16 %v52, 1045249613
  %v85 = vmul.bf16 %v53, 1045249613
  %v86 = vmul.bf16 %v54, 1045249613
  %v87 = vsel %vm55, %v39, %v71
  %v88 = vsel %vm56, %v40, %v72
  %v89 = vsel %vm57, %v41, %v73
  %v90 = vsel %vm58, %v42, %v74
  %v91 = vsel %vm59, %v43, %v75
  %v92 = vsel %vm60, %v44, %v76
  %v93 = vsel %vm61, %v45, %v77
  %v94 = vsel %vm62, %v46, %v78
  %v95 = vsel %vm63, %v47, %v79
  %v96 = vsel %vm64, %v48, %v80
  %v97 = vsel %vm65, %v49, %v81
  %v98 = vsel %vm66, %v50, %v82
  %v99 = vsel %vm67, %v51, %v83
  %v100 = vsel %vm68, %v52, %v84
  %v101 = vsel %vm69, %v53, %v85
  %v102 = vsel %vm70, %v54, %v86
  %v103 = vld [vmem:[#allocation2] sm:$0xff]
  %v104 = vld [vmem:[#allocation2 + $0x8] sm:$0xff]
  %v105 = vld [vmem:[#allocation2 + $0x10] sm:$0xff]
  %v106 = vld [vmem:[#allocation2 + $0x18] sm:$0xff]
  %v107 = vld [vmem:[#allocation2 + $0x20] sm:$0xff]
  %v108 = vld [vmem:[#allocation2 + $0x28] sm:$0xff]
  %v109 = vld [vmem:[#allocation2 + $0x30] sm:$0xff]
  %v110 = vld [vmem:[#allocation2 + $0x38] sm:$0xff]
  %v111 = vld [vmem:[#allocation2 + $0x40] sm:$0xff]
  %v112 = vld [vmem:[#allocation2 + $0x48] sm:$0xff]
  %v113 = vld [vmem:[#allocation2 + $0x50] sm:$0xff]
  %v114 = vld [vmem:[#allocation2 + $0x58] sm:$0xff]
  %v115 = vld [vmem:[#allocation2 + $0x60] sm:$0xff]
  %v116 = vld [vmem:[#allocation2 + $0x68] sm:$0xff]
  %v117 = vld [vmem:[#allocation2 + $0x70] sm:$0xff]
  %v118 = vld [vmem:[#allocation2 + $0x78] sm:$0xff]
  %v119 = vld [vmem:[%s1] sm:$0xf]
  %v120 = vld [vmem:[%s1 + $0x4] sm:$0xf]
  %v121 = vld [vmem:[%s1 + $0x8] sm:$0xf]
  %v122 = vld [vmem:[%s1 + $0xc] sm:$0xf]
  %v123 = vld [vmem:[%s1 + $0x10] sm:$0xf]
  %v124 = vld [vmem:[%s1 + $0x14] sm:$0xf]
  %v125 = vld [vmem:[%s1 + $0x18] sm:$0xf]
  %v126 = vld [vmem:[%s1 + $0x1c] sm:$0xf]
  %v127 = vld [vmem:[%s1 + $0x20] sm:$0xf]
  %v128 = vld [vmem:[%s1 + $0x24] sm:$0xf]
  %v129 = vld [vmem:[%s1 + $0x28] sm:$0xf]
  %v130 = vld [vmem:[%s1 + $0x2c] sm:$0xf]
  %v131 = vld [vmem:[%s1 + $0x30] sm:$0xf]
  %v132 = vld [vmem:[%s1 + $0x34] sm:$0xf]
  %v133 = vld [vmem:[%s1 + $0x38] sm:$0xf]
  %v134 = vld [vmem:[%s1 + $0x3c] sm:$0xf]
  %v151 = vunpack.c.l.b16 %v87
  %v152 = vunpack.c.l.b16 %v88
  %v153 = vunpack.c.l.b16 %v89
  %v154 = vunpack.c.l.b16 %v90
  %v155 = vunpack.c.l.b16 %v91
  %v156 = vunpack.c.l.b16 %v92
  %v157 = vunpack.c.l.b16 %v93
  %v158 = vunpack.c.l.b16 %v94
  %v159 = vunpack.c.l.b16 %v95
  %v160 = vunpack.c.l.b16 %v96
  %v161 = vunpack.c.l.b16 %v97
  %v162 = vunpack.c.l.b16 %v98
  %v163 = vunpack.c.l.b16 %v99
  %v164 = vunpack.c.l.b16 %v100
  %v165 = vunpack.c.l.b16 %v101
  %v166 = vunpack.c.l.b16 %v102
  %v167 = vpack.c.b16 %v152, %v151
  %v168 = vpack.c.b16 %v154, %v153
  %v169 = vpack.c.b16 %v156, %v155
  %v170 = vpack.c.b16 %v158, %v157
  %v171 = vpack.c.b16 %v160, %v159
  %v172 = vpack.c.b16 %v162, %v161
  %v173 = vpack.c.b16 %v164, %v163
  %v174 = vpack.c.b16 %v166, %v165
  %v199 = vunpack.c.l.b16 %v119
  %v200 = vunpack.c.l.b16 %v120
  %v201 = vunpack.c.l.b16 %v121
  %v202 = vunpack.c.l.b16 %v122
  %v203 = vunpack.c.l.b16 %v123
  %v204 = vunpack.c.l.b16 %v124
  %v205 = vunpack.c.l.b16 %v125
  %v206 = vunpack.c.l.b16 %v126
  %v207 = vunpack.c.l.b16 %v127
  %v208 = vunpack.c.l.b16 %v128
  %v209 = vunpack.c.l.b16 %v129
  %v210 = vunpack.c.l.b16 %v130
  %v211 = vunpack.c.l.b16 %v131
  %v212 = vunpack.c.l.b16 %v132
  %v213 = vunpack.c.l.b16 %v133
  %v214 = vunpack.c.l.b16 %v134
  %v215 = vpack.c.b16 %v200, %v199
  %v216 = vpack.c.b16 %v202, %v201
  %v217 = vpack.c.b16 %v204, %v203
  %v218 = vpack.c.b16 %v206, %v205
  %v219 = vpack.c.b16 %v208, %v207
  %v220 = vpack.c.b16 %v210, %v209
  %v221 = vpack.c.b16 %v212, %v211
  %v222 = vpack.c.b16 %v214, %v213
  %231 = vmatprep.subr.bf16.mxu0 0
  %232 = vmatpush1.bf16.msra.mxu0 %v222
  %233 = vmatprep.subr.bf16.mxu0 0
  %234 = vmatpush1.bf16.msra.mxu0 %v221
  %235 = vmatprep.subr.bf16.mxu0 0
  %236 = vmatpush1.bf16.msra.mxu0 %v220
  %237 = vmatprep.subr.bf16.mxu0 0
  %238 = vmatpush1.bf16.msra.mxu0 %v219
  %239 = vmatprep.subr.bf16.mxu0 0
  %240 = vmatpush1.bf16.msra.mxu0 %v218
  %241 = vmatprep.subr.bf16.mxu0 0
  %242 = vmatpush1.bf16.msra.mxu0 %v217
  %243 = vmatprep.subr.bf16.mxu0 0
  %244 = vmatpush1.bf16.msra.mxu0 %v216
  %245 = vmatprep.subr.bf16.mxu0 0
  %246 = vmatpush1.bf16.msra.mxu0 %v215
  %247 = vmatprep.subr.bf16.mxu0 0
  %248 = vmatpush2.bf16.msra.mxu0 0
  %249 = vmatprep.subr.bf16.mxu0 0
  %250 = vmatpush2.bf16.msra.mxu0 0
  %251 = vmatprep.subr.bf16.mxu0 0
  %252 = vmatpush2.bf16.msra.mxu0 0
  %253 = vmatprep.subr.bf16.mxu0 0
  %254 = vmatpush2.bf16.msra.mxu0 0
  %255 = vmatprep.subr.bf16.mxu0 0
  %256 = vmatpush2.bf16.msra.mxu0 0
  %257 = vmatprep.subr.bf16.mxu0 0
  %258 = vmatpush2.bf16.msra.mxu0 0
  %259 = vmatprep.subr.bf16.mxu0 0
  %260 = vmatpush2.bf16.msra.mxu0 0
  %261 = vmatprep.subr.bf16.mxu0 0
  %262 = vmatpush2.bf16.msra.mxu0 0
  %263 = vmatprep.mubr.bf16.mxu0 0
  %264 = vmatmul.mubr.bf16.gmra.mxu0 %v167
  %v265 = vpop.f32.mrf.mxu0
  %v266 = vadd.f32 0.0, %v265
  %v267 = vpop.f32.mrf.mxu0
  %v268 = vpop.f32.mrf.mxu0
  %v269 = vadd.f32 0.0, %v268
  %v270 = vpop.f32.mrf.mxu0
  %271 = vmatprep.mubr.bf16.mxu0 0
  %272 = vmatmul.mubr.bf16.gmra.mxu0 %v168
  %v273 = vpop.f32.mrf.mxu0
  %v274 = vadd.f32 0.0, %v273
  %v275 = vpop.f32.mrf.mxu0
  %v276 = vpop.f32.mrf.mxu0
  %v277 = vadd.f32 0.0, %v276
  %v278 = vpop.f32.mrf.mxu0
  %279 = vmatprep.mubr.bf16.mxu0 0
  %280 = vmatmul.mubr.bf16.gmra.mxu0 %v169
  %v281 = vpop.f32.mrf.mxu0
  %v282 = vadd.f32 0.0, %v281
  %v283 = vpop.f32.mrf.mxu0
  %v284 = vpop.f32.mrf.mxu0
  %v285 = vadd.f32 0.0, %v284
  %v286 = vpop.f32.mrf.mxu0
  %287 = vmatprep.mubr.bf16.mxu0 0
  %288 = vmatmul.mubr.bf16.gmra.mxu0 %v170
  %v289 = vpop.f32.mrf.mxu0
  %v290 = vadd.f32 0.0, %v289
  %v291 = vpop.f32.mrf.mxu0
  %v292 = vpop.f32.mrf.mxu0
  %v293 = vadd.f32 0.0, %v292
  %v294 = vpop.f32.mrf.mxu0
  %295 = vmatprep.mubr.bf16.mxu0 0
  %296 = vmatmul.mubr.bf16.gmra.mxu0 %v171
  %v297 = vpop.f32.mrf.mxu0
  %v298 = vadd.f32 0.0, %v297
  %v299 = vpop.f32.mrf.mxu0
  %v300 = vpop.f32.mrf.mxu0
  %v301 = vadd.f32 0.0, %v300
  %v302 = vpop.f32.mrf.mxu0
  %303 = vmatprep.mubr.bf16.mxu0 0
  %304 = vmatmul.mubr.bf16.gmra.mxu0 %v172
  %v305 = vpop.f32.mrf.mxu0
  %v306 = vadd.f32 0.0, %v305
  %v307 = vpop.f32.mrf.mxu0
  %v308 = vpop.f32.mrf.mxu0
  %v309 = vadd.f32 0.0, %v308
  %v310 = vpop.f32.mrf.mxu0
  %311 = vmatprep.mubr.bf16.mxu0 0
  %312 = vmatmul.mubr.bf16.gmra.mxu0 %v173
  %v313 = vpop.f32.mrf.mxu0
  %v314 = vadd.f32 0.0, %v313
  %v315 = vpop.f32.mrf.mxu0
  %v316 = vpop.f32.mrf.mxu0
  %v317 = vadd.f32 0.0, %v316
  %v318 = vpop.f32.mrf.mxu0
  %319 = vmatprep.mubr.bf16.mxu0 0
  %320 = vmatmul.mubr.bf16.gmra.mxu0 %v174
  %v321 = vpop.f32.mrf.mxu0
  %v322 = vadd.f32 0.0, %v321
  %v323 = vpop.f32.mrf.mxu0
  %v324 = vpop.f32.mrf.mxu0
  %v325 = vadd.f32 0.0, %v324
  %v326 = vpop.f32.mrf.mxu0
  %327 = vdwg.mxu0
  %v328 = vadd.f32 %v103, %v266
  %v329 = vadd.f32 %v104, %v269
  %v330 = vadd.f32 %v105, %v274
  %v331 = vadd.f32 %v106, %v277
  %v332 = vadd.f32 %v107, %v282
  %v333 = vadd.f32 %v108, %v285
  %v334 = vadd.f32 %v109, %v290
  %v335 = vadd.f32 %v110, %v293
  %v336 = vadd.f32 %v111, %v298
  %v337 = vadd.f32 %v112, %v301
  %v338 = vadd.f32 %v113, %v306
  %v339 = vadd.f32 %v114, %v309
  %v340 = vadd.f32 %v115, %v314
  %v341 = vadd.f32 %v116, %v317
  %v342 = vadd.f32 %v117, %v322
  %v343 = vadd.f32 %v118, %v325
  %vm344 = vcmask 130048
  %345 = vst.msk [vmem:[#allocation2] sm:$0xff] %vm344, %v328
  %346 = vst.msk [vmem:[#allocation2 + $0x8] sm:$0xff] %vm344, %v329
  %347 = vst.msk [vmem:[#allocation2 + $0x10] sm:$0xff] %vm344, %v330
  %348 = vst.msk [vmem:[#allocation2 + $0x18] sm:$0xff] %vm344, %v331
  %349 = vst.msk [vmem:[#allocation2 + $0x20] sm:$0xff] %vm344, %v332
  %350 = vst.msk [vmem:[#allocation2 + $0x28] sm:$0xff] %vm344, %v333
  %351 = vst.msk [vmem:[#allocation2 + $0x30] sm:$0xff] %vm344, %v334
  %352 = vst.msk [vmem:[#allocation2 + $0x38] sm:$0xff] %vm344, %v335
  %353 = vst.msk [vmem:[#allocation2 + $0x40] sm:$0xff] %vm344, %v336
  %354 = vst.msk [vmem:[#allocation2 + $0x48] sm:$0xff] %vm344, %v337
  %355 = vst.msk [vmem:[#allocation2 + $0x50] sm:$0xff] %vm344, %v338
  %356 = vst.msk [vmem:[#allocation2 + $0x58] sm:$0xff] %vm344, %v339
  %357 = vst.msk [vmem:[#allocation2 + $0x60] sm:$0xff] %vm344, %v340
  %358 = vst.msk [vmem:[#allocation2 + $0x68] sm:$0xff] %vm344, %v341
  %359 = vst.msk [vmem:[#allocation2 + $0x70] sm:$0xff] %vm344, %v342
  %360 = vst.msk [vmem:[#allocation2 + $0x78] sm:$0xff] %vm344, %v343
  // Predicated region
  $region18: #{_lambda_.18} parent=0 // pred_check
    %p361 = pneg %p18
  $region19: #{_lambda_.18} parent=0 // pred_check_branch
    %363 = sbr.rel (%p361) target = $region21
  $region20: #{_lambda_.18} parent=0 // pred_region
    %v364 = vld [vmem:[#allocation2] sm:$0xff]
    %v365 = vld [vmem:[#allocation2 + $0x8] sm:$0xff]
    %v366 = vld [vmem:[#allocation2 + $0x10] sm:$0xff]
    %v367 = vld [vmem:[#allocation2 + $0x18] sm:$0xff]
    %v368 = vld [vmem:[#allocation2 + $0x20] sm:$0xff]
    %v369 = vld [vmem:[#allocation2 + $0x28] sm:$0xff]
    %v370 = vld [vmem:[#allocation2 + $0x30] sm:$0xff]
    %v371 = vld [vmem:[#allocation2 + $0x38] sm:$0xff]
    %v372 = vld [vmem:[#allocation2 + $0x40] sm:$0xff]
    %v373 = vld [vmem:[#allocation2 + $0x48] sm:$0xff]
    %v374 = vld [vmem:[#allocation2 + $0x50] sm:$0xff]
    %v375 = vld [vmem:[#allocation2 + $0x58] sm:$0xff]
    %v376 = vld [vmem:[#allocation2 + $0x60] sm:$0xff]
    %v377 = vld [vmem:[#allocation2 + $0x68] sm:$0xff]
    %v378 = vld [vmem:[#allocation2 + $0x70] sm:$0xff]
    %v379 = vld [vmem:[#allocation2 + $0x78] sm:$0xff]
    %v380 = vld [vmem:[%s2] sm:$0x1]
    %v382 = vlaneseq
    %v383 = vshrl.u32 %v382, 7
    %v384 = vsub.s32 0, %v383
    %v385 = vrot.slane %v380, %v384
    %v387 = vadd.f32 %v364, %v385
    %v388 = vadd.f32 %v365, %v385
    %v389 = vadd.f32 %v366, %v385
    %v390 = vadd.f32 %v367, %v385
    %v391 = vadd.f32 %v368, %v385
    %v392 = vadd.f32 %v369, %v385
    %v393 = vadd.f32 %v370, %v385
    %v394 = vadd.f32 %v371, %v385
    %v395 = vadd.f32 %v372, %v385
    %v396 = vadd.f32 %v373, %v385
    %v397 = vadd.f32 %v374, %v385
    %v398 = vadd.f32 %v375, %v385
    %v399 = vadd.f32 %v376, %v385
    %v400 = vadd.f32 %v377, %v385
    %v401 = vadd.f32 %v378, %v385
    %v402 = vadd.f32 %v379, %v385
    %v403 = vsel %vm344, %v387, 0.0
    %v404 = vsel %vm344, %v388, 0.0
    %v405 = vadd.f32 %v403, %v404
    %v406 = vsel %vm344, %v389, 0.0
    %v407 = vadd.f32 %v405, %v406
    %v408 = vsel %vm344, %v390, 0.0
    %v409 = vadd.f32 %v407, %v408
    %v410 = vsel %vm344, %v391, 0.0
    %v411 = vadd.f32 %v409, %v410
    %v412 = vsel %vm344, %v392, 0.0
    %v413 = vadd.f32 %v411, %v412
    %v414 = vsel %vm344, %v393, 0.0
    %v415 = vadd.f32 %v413, %v414
    %v416 = vsel %vm344, %v394, 0.0
    %v417 = vadd.f32 %v415, %v416
    %v418 = vsel %vm344, %v395, 0.0
    %v419 = vadd.f32 %v417, %v418
    %v420 = vsel %vm344, %v396, 0.0
    %v421 = vadd.f32 %v419, %v420
    %v422 = vsel %vm344, %v397, 0.0
    %v423 = vadd.f32 %v421, %v422
    %v424 = vsel %vm344, %v398, 0.0
    %v425 = vadd.f32 %v423, %v424
    %v426 = vsel %vm344, %v399, 0.0
    %v427 = vadd.f32 %v425, %v426
    %v428 = vsel %vm344, %v400, 0.0
    %v429 = vadd.f32 %v427, %v428
    %v430 = vsel %vm344, %v401, 0.0
    %v431 = vadd.f32 %v429, %v430
    %v432 = vsel %vm344, %v402, 0.0
    %v433 = vadd.f32 %v431, %v432
    %v434 = vrot.slane %v433, 4
    %v435 = vadd.f32 %v433, %v434
    %v436 = vrot.slane %v435, 2
    %v437 = vadd.f32 %v435, %v436
    %v438 = vrot.slane %v437, 1
    %v439 = vadd.f32 %v437, %v438
    %v440 = vmul.f32 %v387, %v387
    %v441 = vmul.f32 %v388, %v388
    %v442 = vmul.f32 %v389, %v389
    %v443 = vmul.f32 %v390, %v390
    %v444 = vmul.f32 %v391, %v391
    %v445 = vmul.f32 %v392, %v392
    %v446 = vmul.f32 %v393, %v393
    %v447 = vmul.f32 %v394, %v394
    %v448 = vmul.f32 %v395, %v395
    %v449 = vmul.f32 %v396, %v396
    %v450 = vmul.f32 %v397, %v397
    %v451 = vmul.f32 %v398, %v398
    %v452 = vmul.f32 %v399, %v399
    %v453 = vmul.f32 %v400, %v400
    %v454 = vmul.f32 %v401, %v401
    %v455 = vmul.f32 %v402, %v402
    %v456 = vsel %vm344, %v440, 0.0
    %v457 = vsel %vm344, %v441, 0.0
    %v458 = vadd.f32 %v456, %v457
    %v459 = vsel %vm344, %v442, 0.0
    %v460 = vadd.f32 %v458, %v459
    %v461 = vsel %vm344, %v443, 0.0
    %v462 = vadd.f32 %v460, %v461
    %v463 = vsel %vm344, %v444, 0.0
    %v464 = vadd.f32 %v462, %v463
    %v465 = vsel %vm344, %v445, 0.0
    %v466 = vadd.f32 %v464, %v465
    %v467 = vsel %vm344, %v446, 0.0
    %v468 = vadd.f32 %v466, %v467
    %v469 = vsel %vm344, %v447, 0.0
    %v470 = vadd.f32 %v468, %v469
    %v471 = vsel %vm344, %v448, 0.0
    %v472 = vadd.f32 %v470, %v471
    %v473 = vsel %vm344, %v449, 0.0
    %v474 = vadd.f32 %v472, %v473
    %v475 = vsel %vm344, %v450, 0.0
    %v476 = vadd.f32 %v474, %v475
    %v477 = vsel %vm344, %v451, 0.0
    %v478 = vadd.f32 %v476, %v477
    %v479 = vsel %vm344, %v452, 0.0
    %v480 = vadd.f32 %v478, %v479
    %v481 = vsel %vm344, %v453, 0.0
    %v482 = vadd.f32 %v480, %v481
    %v483 = vsel %vm344, %v454, 0.0
    %v484 = vadd.f32 %v482, %v483
    %v485 = vsel %vm344, %v455, 0.0
    %v486 = vadd.f32 %v484, %v485
    %v487 = vrot.slane %v486, 4
    %v488 = vadd.f32 %v486, %v487
    %v489 = vrot.slane %v488, 2
    %v490 = vadd.f32 %v488, %v489
    %v491 = vrot.slane %v490, 1
    %v492 = vadd.f32 %v490, %v491
    %vm493 = vcmask 1040384
    %v494 = vsel %vm493, %v439, %v492
    %vm495 = vcmask 1041408
    %v496 = vsel %vm495, %v494, 0.0
    %497 = vst.msk [vmem:[%s4] sm:$0xff] %vm344, %v496
    %498 = vst.msk [vmem:[%s3] sm:$0xff] %vm344, %v387
    %499 = vst.msk [vmem:[%s3 + $0x8] sm:$0xff] %vm344, %v388
    %500 = vst.msk [vmem:[%s3 + $0x10] sm:$0xff] %vm344, %v389
    %501 = vst.msk [vmem:[%s3 + $0x18] sm:$0xff] %vm344, %v390
    %502 = vst.msk [vmem:[%s3 + $0x20] sm:$0xff] %vm344, %v391
    %503 = vst.msk [vmem:[%s3 + $0x28] sm:$0xff] %vm344, %v392
    %504 = vst.msk [vmem:[%s3 + $0x30] sm:$0xff] %vm344, %v393
    %505 = vst.msk [vmem:[%s3 + $0x38] sm:$0xff] %vm344, %v394
    %506 = vst.msk [vmem:[%s3 + $0x40] sm:$0xff] %vm344, %v395
    %507 = vst.msk [vmem:[%s3 + $0x48] sm:$0xff] %vm344, %v396
    %508 = vst.msk [vmem:[%s3 + $0x50] sm:$0xff] %vm344, %v397
    %509 = vst.msk [vmem:[%s3 + $0x58] sm:$0xff] %vm344, %v398
    %510 = vst.msk [vmem:[%s3 + $0x60] sm:$0xff] %vm344, %v399
    %511 = vst.msk [vmem:[%s3 + $0x68] sm:$0xff] %vm344, %v400
    %512 = vst.msk [vmem:[%s3 + $0x70] sm:$0xff] %vm344, %v401
    %513 = vst.msk [vmem:[%s3 + $0x78] sm:$0xff] %vm344, %v402
  $region21: #{_lambda_.18} parent=0 // pred_fallthru
    _
  // Predicated region
  $region22: #{_lambda_.18} parent=0 // pred_check
    _
  $region23: #{_lambda_.18} parent=0 // pred_check_branch
    %515 = sbr.rel (0) target = $region25
  $region24: #{_lambda_.18} parent=0 // pred_region
    _
  $region25: #{_lambda_.18} parent=0 // pred_fallthru
    _
  // Predicated region
  $region26: #{_lambda_.18} parent=0 // pred_check
    _
  $region27: #{_lambda_.18} parent=0 // pred_check_branch
    %517 = sbr.rel (0) target = $region29
  $region28: #{_lambda_.18} parent=0 // pred_region
    _
  $region29: #{_lambda_.18} parent=0 // pred_fallthru
    _
  // Predicated region
  $region30: #{_lambda_.18} parent=0 // pred_check
    _
  $region31: #{_lambda_.18} parent=0 // pred_check_branch
    %519 = sbr.rel (0) target = $region33
  $region32: #{_lambda_.18} parent=0 // pred_region
    _
  $region33: #{_lambda_.18} parent=0 // pred_fallthru
    _
  // Predicated region
  $region34: #{_lambda_.18} parent=0 // pred_check
    _
  $region35: #{_lambda_.18} parent=0 // pred_check_branch
    %521 = sbr.rel (0) target = $region37
  $region36: #{_lambda_.18} parent=0 // pred_region
    _
  $region37: #{_lambda_.18} parent=0 // pred_fallthru
    _

// kernel: squeeze.22
$region0: #{squeeze.22}
  %s0 = inlined_call_operand.vmem [shape: f32[1,128,16], index: 0, kind: input, shape index: {}]
  %s1 = inlined_call_operand.vmem [shape: f32[16,128], index: 1, kind: output, shape index: {}]
  %v2 = vld [vmem:[%s0] ss:$8 sm:$0xf]
  %v3 = vld [vmem:[%s0] ss:$8 sm:$0xf0]
  %vm4 = vcmask 1047556
  %v5 = vsel %vm4, %v3, %v2
  %vm6 = vcmask 130048
  %7 = vst.msk [vmem:[%s1] sm:$0xff] %vm6, %v5
  %s8 = scalar_lea.vmem %s0, 64
  %v9 = vld [vmem:[%s8] ss:$8 sm:$0xf]
  %s10 = scalar_lea.vmem %s0, 64
  %v11 = vld [vmem:[%s10] ss:$8 sm:$0xf0]
  %vm12 = vcmask 1047556
  %v13 = vsel %vm12, %v11, %v9
  %vm14 = vcmask 130048
  %s15 = scalar_lea.vmem %s1, 8
  %16 = vst.msk [vmem:[%s15] sm:$0xff] %vm14, %v13
  %s17 = scalar_lea.vmem %s0, 7
  %v18 = vld [vmem:[%s17] ss:$8 sm:$0xf]
  %s19 = scalar_lea.vmem %s0, 7
  %v20 = vld [vmem:[%s19] ss:$8 sm:$0xf0]
  %vm21 = vcmask 1047556
  %v22 = vsel %vm21, %v20, %v18
  %23 = vrot.lane.b32.xlu0 %v22, 112
  %v24 = vpop.permute.xlu0 %23
  %vm25 = vcmask 1048448
  %26 = vst.msk [vmem:[%s1] sm:$0xff] %vm25, %v24
  %s27 = scalar_lea.vmem %s0, 71
  %v28 = vld [vmem:[%s27] ss:$8 sm:$0xf]
  %s29 = scalar_lea.vmem %s0, 71
  %v30 = vld [vmem:[%s29] ss:$8 sm:$0xf0]
  %vm31 = vcmask 1047556
  %v32 = vsel %vm31, %v30, %v28
  %33 = vrot.lane.b32.xlu0 %v32, 112
  %v34 = vpop.permute.xlu0 %33
  %vm35 = vcmask 1048448
  %s36 = scalar_lea.vmem %s1, 8
  %37 = vst.msk [vmem:[%s36] sm:$0xff] %vm35, %v34
  %s38 = scalar_lea.vmem %s0, 6
  %v39 = vld [vmem:[%s38] ss:$8 sm:$0xf]
  %s40 = scalar_lea.vmem %s0, 6
  %v41 = vld [vmem:[%s40] ss:$8 sm:$0xf0]
  %vm42 = vcmask 1047556
  %v43 = vsel %vm42, %v41, %v39
  %44 = vrot.lane.b32.xlu0 %v43, 96
  %v45 = vpop.permute.xlu0 %44
  %vm46 = vcmask 917248
  %47 = vst.msk [vmem:[%s1] sm:$0xff] %vm46, %v45
  %s48 = scalar_lea.vmem %s0, 70
  %v49 = vld [vmem:[%s48] ss:$8 sm:$0xf]
  %s50 = scalar_lea.vmem %s0, 70
  %v51 = vld [vmem:[%s50] ss:$8 sm:$0xf0]
  %vm52 = vcmask 1047556
  %v53 = vsel %vm52, %v51, %v49
  %54 = vrot.lane.b32.xlu0 %v53, 96
  %v55 = vpop.permute.xlu0 %54
  %vm56 = vcmask 917248
  %s57 = scalar_lea.vmem %s1, 8
  %58 = vst.msk [vmem:[%s57] sm:$0xff] %vm56, %v55
  %s59 = scalar_lea.vmem %s0, 5
  %v60 = vld [vmem:[%s59] ss:$8 sm:$0xf]
  %s61 = scalar_lea.vmem %s0, 5
  %v62 = vld [vmem:[%s61] ss:$8 sm:$0xf0]
  %vm63 = vcmask 1047556
  %v64 = vsel %vm63, %v62, %v60
  %65 = vrot.lane.b32.xlu0 %v64, 80
  %v66 = vpop.permute.xlu0 %65
  %vm67 = vcmask 786048
  %68 = vst.msk [vmem:[%s1] sm:$0xff] %vm67, %v66
  %s69 = scalar_lea.vmem %s0, 69
  %v70 = vld [vmem:[%s69] ss:$8 sm:$0xf]
  %s71 = scalar_lea.vmem %s0, 69
  %v72 = vld [vmem:[%s71] ss:$8 sm:$0xf0]
  %vm73 = vcmask 1047556
  %v74 = vsel %vm73, %v72, %v70
  %75 = vrot.lane.b32.xlu0 %v74, 80
  %v76 = vpop.permute.xlu0 %75
  %vm77 = vcmask 786048
  %s78 = scalar_lea.vmem %s1, 8
  %79 = vst.msk [vmem:[%s78] sm:$0xff] %vm77, %v76
  %s80 = scalar_lea.vmem %s0, 4
  %v81 = vld [vmem:[%s80] ss:$8 sm:$0xf]
  %s82 = scalar_lea.vmem %s0, 4
  %v83 = vld [vmem:[%s82] ss:$8 sm:$0xf0]
  %vm84 = vcmask 1047556
  %v85 = vsel %vm84, %v83, %v81
  %86 = vrot.lane.b32.xlu0 %v85, 64
  %v87 = vpop.permute.xlu0 %86
  %vm88 = vcmask 654848
  %89 = vst.msk [vmem:[%s1] sm:$0xff] %vm88, %v87
  %s90 = scalar_lea.vmem %s0, 68
  %v91 = vld [vmem:[%s90] ss:$8 sm:$0xf]
  %s92 = scalar_lea.vmem %s0, 68
  %v93 = vld [vmem:[%s92] ss:$8 sm:$0xf0]
  %vm94 = vcmask 1047556
  %v95 = vsel %vm94, %v93, %v91
  %96 = vrot.lane.b32.xlu0 %v95, 64
  %v97 = vpop.permute.xlu0 %96
  %vm98 = vcmask 654848
  %s99 = scalar_lea.vmem %s1, 8
  %100 = vst.msk [vmem:[%s99] sm:$0xff] %vm98, %v97
  %s101 = scalar_lea.vmem %s0, 3
  %v102 = vld [vmem:[%s101] ss:$8 sm:$0xf]
  %s103 = scalar_lea.vmem %s0, 3
  %v104 = vld [vmem:[%s103] ss:$8 sm:$0xf0]
  %vm105 = vcmask 1047556
  %v106 = vsel %vm105, %v104, %v102
  %107 = vrot.lane.b32.xlu0 %v106, 48
  %v108 = vpop.permute.xlu0 %107
  %vm109 = vcmask 523648
  %110 = vst.msk [vmem:[%s1] sm:$0xff] %vm109, %v108
  %s111 = scalar_lea.vmem %s0, 67
  %v112 = vld [vmem:[%s111] ss:$8 sm:$0xf]
  %s113 = scalar_lea.vmem %s0, 67
  %v114 = vld [vmem:[%s113] ss:$8 sm:$0xf0]
  %vm115 = vcmask 1047556
  %v116 = vsel %vm115, %v114, %v112
  %117 = vrot.lane.b32.xlu0 %v116, 48
  %v118 = vpop.permute.xlu0 %117
  %vm119 = vcmask 523648
  %s120 = scalar_lea.vmem %s1, 8
  %121 = vst.msk [vmem:[%s120] sm:$0xff] %vm119, %v118
  %s122 = scalar_lea.vmem %s0, 2
  %v123 = vld [vmem:[%s122] ss:$8 sm:$0xf]
  %s124 = scalar_lea.vmem %s0, 2
  %v125 = vld [vmem:[%s124] ss:$8 sm:$0xf0]
  %vm126 = vcmask 1047556
  %v127 = vsel %vm126, %v125, %v123
  %128 = vrot.lane.b32.xlu0 %v127, 32
  %v129 = vpop.permute.xlu0 %128
  %vm130 = vcmask 392448
  %131 = vst.msk [vmem:[%s1] sm:$0xff] %vm130, %v129
  %s132 = scalar_lea.vmem %s0, 66
  %v133 = vld [vmem:[%s132] ss:$8 sm:$0xf]
  %s134 = scalar_lea.vmem %s0, 66
  %v135 = vld [vmem:[%s134] ss:$8 sm:$0xf0]
  %vm136 = vcmask 1047556
  %v137 = vsel %vm136, %v135, %v133
  %138 = vrot.lane.b32.xlu0 %v137, 32
  %v139 = vpop.permute.xlu0 %138
  %vm140 = vcmask 392448
  %s141 = scalar_lea.vmem %s1, 8
  %142 = vst.msk [vmem:[%s141] sm:$0xff] %vm140, %v139
  %s143 = scalar_lea.vmem %s0, 1
  %v144 = vld [vmem:[%s143] ss:$8 sm:$0xf]
  %s145 = scalar_lea.vmem %s0, 1
  %v146 = vld [vmem:[%s145] ss:$8 sm:$0xf0]
  %vm147 = vcmask 1047556
  %v148 = vsel %vm147, %v146, %v144
  %149 = vrot.lane.b32.xlu0 %v148, 16
  %v150 = vpop.permute.xlu0 %149
  %vm151 = vcmask 261248
  %152 = vst.msk [vmem:[%s1] sm:$0xff] %vm151, %v150
  %s153 = scalar_lea.vmem %s0, 65
  %v154 = vld [vmem:[%s153] ss:$8 sm:$0xf]
  %s155 = scalar_lea.vmem %s0, 65
  %v156 = vld [vmem:[%s155] ss:$8 sm:$0xf0]
  %vm157 = vcmask 1047556
  %v158 = vsel %vm157, %v156, %v154
  %159 = vrot.lane.b32.xlu0 %v158, 16
  %v160 = vpop.permute.xlu0 %159
  %vm161 = vcmask 261248
  %s162 = scalar_lea.vmem %s1, 8
  %163 = vst.msk [vmem:[%s162] sm:$0xff] %vm161, %v160

// kernel: tile.73
$region0: #{tile.73}
  #allocation0 [shape = 's32[1]{0}', space=sflag, size = 0x4, scoped, tag = 'scoped memory for tile.73']
  %s0 = inlined_call_operand.vmem [shape: f32[16], index: 0, kind: input, shape index: {}]
  %s1 = inlined_call_operand.vmem [shape: f32[8,16], index: 1, kind: output, shape index: {}]
  // Predicated region
  $region2: #{tile.73} parent=0 // pred_check
    _
  $region3: #{tile.73} parent=0 // pred_check_branch
    %3 = sbr.rel (0) target = $region5
  $region4: #{tile.73} parent=0 // pred_region
    _
  $region5: #{tile.73} parent=0 // pred_fallthru
    _
  %v4 = vld [vmem:[%s0] ss:$0 sm:$0xff]
  %5 = vst [vmem:[%s1] sm:$0xff] %v4

// kernel: tile.74
$region0: #{tile.74}
  %s0 = inlined_call_operand.vmem [shape: f32[8,16], index: 0, kind: input, shape index: {}]
  %s1 = inlined_call_operand.vmem [shape: f32[1,128], index: 1, kind: output, shape index: {}]
  $region1: #{tile.74} parent=0
    #allocation0 [shape = 'u8[4096]{0}', space=vmem, size = 0x1000, scoped, tag = 'scoped mem for output reshape']
    %v2 = vld [vmem:[%s0] sm:$0x1]
    %vm3 = vcmask 130048
    %4 = vst.msk [vmem:[#allocation0] sm:$0x1] %vm3, %v2
    %s5 = scalar_lea.vmem %s0, 7
    %v6 = vld [vmem:[%s5] sm:$0x1]
    %7 = vrot.lane.b32.xlu0 %v6, 112
    %v8 = vpop.permute.xlu0 %7
    %vm9 = vcmask 1048448
    %10 = vst.msk [vmem:[#allocation0] sm:$0x1] %vm9, %v8
    %s11 = scalar_lea.vmem %s0, 6
    %v12 = vld [vmem:[%s11] sm:$0x1]
    %13 = vrot.lane.b32.xlu0 %v12, 96
    %v14 = vpop.permute.xlu0 %13
    %vm15 = vcmask 917248
    %16 = vst.msk [vmem:[#allocation0] sm:$0x1] %vm15, %v14
    %s17 = scalar_lea.vmem %s0, 5
    %v18 = vld [vmem:[%s17] sm:$0x1]
    %19 = vrot.lane.b32.xlu0 %v18, 80
    %v20 = vpop.permute.xlu0 %19
    %vm21 = vcmask 786048
    %22 = vst.msk [vmem:[#allocation0] sm:$0x1] %vm21, %v20
    %s23 = scalar_lea.vmem %s0, 4
    %v24 = vld [vmem:[%s23] sm:$0x1]
    %25 = vrot.lane.b32.xlu0 %v24, 64
    %v26 = vpop.permute.xlu0 %25
    %vm27 = vcmask 654848
    %28 = vst.msk [vmem:[#allocation0] sm:$0x1] %vm27, %v26
    %s29 = scalar_lea.vmem %s0, 3
    %v30 = vld [vmem:[%s29] sm:$0x1]
    %31 = vrot.lane.b32.xlu0 %v30, 48
    %v32 = vpop.permute.xlu0 %31
    %vm33 = vcmask 523648
    %34 = vst.msk [vmem:[#allocation0] sm:$0x1] %vm33, %v32
    %s35 = scalar_lea.vmem %s0, 2
    %v36 = vld [vmem:[%s35] sm:$0x1]
    %37 = vrot.lane.b32.xlu0 %v36, 32
    %v38 = vpop.permute.xlu0 %37
    %vm39 = vcmask 392448
    %40 = vst.msk [vmem:[#allocation0] sm:$0x1] %vm39, %v38
    %s41 = scalar_lea.vmem %s0, 1
    %v42 = vld [vmem:[%s41] sm:$0x1]
    %43 = vrot.lane.b32.xlu0 %v42, 16
    %v44 = vpop.permute.xlu0 %43
    %vm45 = vcmask 261248
    %46 = vst.msk [vmem:[#allocation0] sm:$0x1] %vm45, %v44
    %s48 = sshll.u32 1, 1
    %s49 = ssub.s32 %s48, 1
    %v51 = vld [vmem:[#allocation0] sm:%s49]
    %s52 = sshll.u32 1, 1
    %s53 = ssub.s32 %s52, 1
    %54 = vst [vmem:[%s1] sm:%s53] %v51

// kernel: _lambda_.19
$region0: #{_lambda_.19}
  #allocation0 [shape = 'u32[]', space=smem, size = 0x4, offset = 0x4, fixed_abs, tag = 'smem constant byte address 0x4 - core index']
  #allocation1 [shape = 'u32[144,128]{1,0:T(1,128)}', space=vmem, size = 0x12000, scoped, tag = 'internal scratch']
  %s0 = inlined_call_operand.vmem [shape: f32[16,128], index: 0, kind: input, shape index: {}]
  %s1 = inlined_call_operand.vmem [shape: f32[1,128], index: 1, kind: input, shape index: {}]
  %s2 = inlined_call_operand.vmem [shape: f32[1,128], index: 2, kind: input, shape index: {}]
  %s3 = inlined_call_operand.vmem [shape: f32[16,128], index: 3, kind: output, shape index: {}]
  %s4 = sld [smem:[#allocation0]]
  $region22: #{_lambda_.19} parent=0
    _
  %s6 = ssub.s32 1, %s4
  %s7 = scalar_select 0, %s6, %s4
  // Predicated region
  $region2: #{_lambda_.19} parent=0 // pred_check
    _
  $region3: #{_lambda_.19} parent=0 // pred_check_branch
    %9 = sbr.rel (0) target = $region5
  $region4: #{_lambda_.19} parent=0 // pred_region
    _
  $region5: #{_lambda_.19} parent=0 // pred_fallthru
    _
  // Predicated region
  $region6: #{_lambda_.19} parent=0 // pred_check
    _
  $region7: #{_lambda_.19} parent=0 // pred_check_branch
    %11 = sbr.rel (0) target = $region9
  $region8: #{_lambda_.19} parent=0 // pred_region
    _
  $region9: #{_lambda_.19} parent=0 // pred_fallthru
    _
  // Predicated region
  $region10: #{_lambda_.19} parent=0 // pred_check
    _
  $region11: #{_lambda_.19} parent=0 // pred_check_branch
    %13 = sbr.rel (0) target = $region13
  $region12: #{_lambda_.19} parent=0 // pred_region
    _
  $region13: #{_lambda_.19} parent=0 // pred_fallthru
    _
  %v14 = vld [vmem:[%s0] sm:$0xff]
  %v15 = vld [vmem:[%s0 + $0x8] sm:$0xff]
  %v16 = vld [vmem:[%s1] sm:$0x1]
  %v18 = vlaneseq
  %v19 = vshrl.u32 %v18, 7
  %v20 = vsub.s32 0, %v19
  %v21 = vrot.slane %v16, %v20
  %v23 = vmul.f32 %v14, %v21
  %v24 = vmul.f32 %v15, %v21
  %v25 = vld [vmem:[%s2] sm:$0x1]
  %v27 = vlaneseq
  %v28 = vshrl.u32 %v27, 7
  %v29 = vsub.s32 0, %v28
  %v30 = vrot.slane %v25, %v29
  %v32 = vadd.f32 %v23, %v30
  %v33 = vadd.f32 %v24, %v30
  %34 = vst [vmem:[%s3] sm:$0xff] %v32
  %35 = vst [vmem:[%s3 + $0x8] sm:$0xff] %v33
  // Predicated region
  $region14: #{_lambda_.19} parent=0 // pred_check
    _
  $region15: #{_lambda_.19} parent=0 // pred_check_branch
    %37 = sbr.rel (0) target = $region17
  $region16: #{_lambda_.19} parent=0 // pred_region
    _
  $region17: #{_lambda_.19} parent=0 // pred_fallthru
    _
  // Predicated region
  $region18: #{_lambda_.19} parent=0 // pred_check
    _
  $region19: #{_lambda_.19} parent=0 // pred_check_branch
    %39 = sbr.rel (0) target = $region21
  $region20: #{_lambda_.19} parent=0 // pred_region
    _
  $region21: #{_lambda_.19} parent=0 // pred_fallthru
    _

// kernel: squeeze.25
$region0: #{squeeze.25}
  %s0 = inlined_call_operand.vmem [shape: f32[1,32,32], index: 0, kind: input, shape index: {}]
  %s1 = inlined_call_operand.vmem [shape: f32[8,128], index: 1, kind: output, shape index: {}]
  %v2 = vld [vmem:[%s0] ss:$4 sm:$0xff]
  %vm3 = vcmask 261120
  %4 = vst.msk [vmem:[%s1] sm:$0xff] %vm3, %v2
  %s5 = scalar_lea.vmem %s0, 3
  %v6 = vld [vmem:[%s5] ss:$4 sm:$0xff]
  %7 = vrot.lane.b32.xlu0 %v6, 96
  %v8 = vpop.permute.xlu0 %7
  %vm9 = vcmask 1048320
  %10 = vst.msk [vmem:[%s1] sm:$0xff] %vm9, %v8
  %s11 = scalar_lea.vmem %s0, 2
  %v12 = vld [vmem:[%s11] ss:$4 sm:$0xff]
  %13 = vrot.lane.b32.xlu0 %v12, 64
  %v14 = vpop.permute.xlu0 %13
  %vm15 = vcmask 785920
  %16 = vst.msk [vmem:[%s1] sm:$0xff] %vm15, %v14
  %s17 = scalar_lea.vmem %s0, 1
  %v18 = vld [vmem:[%s17] ss:$4 sm:$0xff]
  %19 = vrot.lane.b32.xlu0 %v18, 32
  %v20 = vpop.permute.xlu0 %19
  %vm21 = vcmask 523520
  %22 = vst.msk [vmem:[%s1] sm:$0xff] %vm21, %v20

// kernel: tile.83
$region0: #{tile.83}
  #allocation0 [shape = 's32[1]{0}', space=sflag, size = 0x4, scoped, tag = 'scoped memory for tile.83']
  %s0 = inlined_call_operand.vmem [shape: f32[32], index: 0, kind: input, shape index: {}]
  %s1 = inlined_call_operand.vmem [shape: f32[4,32], index: 1, kind: output, shape index: {}]
  // Predicated region
  $region2: #{tile.83} parent=0 // pred_check
    _
  $region3: #{tile.83} parent=0 // pred_check_branch
    %3 = sbr.rel (0) target = $region5
  $region4: #{tile.83} parent=0 // pred_region
    _
  $region5: #{tile.83} parent=0 // pred_fallthru
    _
  %v4 = vld [vmem:[%s0] ss:$0 sm:$0xff]
  %5 = vst [vmem:[%s1] sm:$0xf] %v4

// kernel: tile.84
$region0: #{tile.84}
  %s0 = inlined_call_operand.vmem [shape: f32[4,32], index: 0, kind: input, shape index: {}]
  %s1 = inlined_call_operand.vmem [shape: f32[1,128], index: 1, kind: output, shape index: {}]
  $region1: #{tile.84} parent=0
    #allocation0 [shape = 'u8[4096]{0}', space=vmem, size = 0x1000, scoped, tag = 'scoped mem for output reshape']
    #allocation1 [shape = 'u8[4096]{0}', space=vmem, size = 0x1000, scoped, tag = 'scoped mem for input reshape']
    %s3 = sshll.u32 1, 4
    %s4 = ssub.s32 %s3, 1
    %v5 = vld [vmem:[%s0] sm:%s4]
    %6 = vst [vmem:[#allocation1] sm:%s4] %v5
    %v7 = vld [vmem:[#allocation1] sm:$0x1]
    %vm8 = vcmask 261120
    %9 = vst.msk [vmem:[#allocation0] sm:$0x1] %vm8, %v7
    %s10 = scalar_lea.vmem [#allocation1], 3
    %v11 = vld [vmem:[%s10] sm:$0x1]
    %12 = vrot.lane.b32.xlu0 %v11, 96
    %v13 = vpop.permute.xlu0 %12
    %vm14 = vcmask 1048320
    %15 = vst.msk [vmem:[#allocation0] sm:$0x1] %vm14, %v13
    %s16 = scalar_lea.vmem [#allocation1], 2
    %v17 = vld [vmem:[%s16] sm:$0x1]
    %18 = vrot.lane.b32.xlu0 %v17, 64
    %v19 = vpop.permute.xlu0 %18
    %vm20 = vcmask 785920
    %21 = vst.msk [vmem:[#allocation0] sm:$0x1] %vm20, %v19
    %s22 = scalar_lea.vmem [#allocation1], 1
    %v23 = vld [vmem:[%s22] sm:$0x1]
    %24 = vrot.lane.b32.xlu0 %v23, 32
    %v25 = vpop.permute.xlu0 %24
    %vm26 = vcmask 523520
    %27 = vst.msk [vmem:[#allocation0] sm:$0x1] %vm26, %v25
    %s29 = sshll.u32 1, 1
    %s30 = ssub.s32 %s29, 1
    %v32 = vld [vmem:[#allocation0] sm:%s30]
    %s33 = sshll.u32 1, 1
    %s34 = ssub.s32 %s33, 1
    %35 = vst [vmem:[%s1] sm:%s34] %v32

// kernel: _lambda_.20
$region0: #{_lambda_.20}
  #allocation0 [shape = 'u32[]', space=smem, size = 0x4, offset = 0x4, fixed_abs, tag = 'smem constant byte address 0x4 - core index']
  #allocation1 [shape = 'u32[144,128]{1,0:T(1,128)}', space=vmem, size = 0x12000, scoped, tag = 'internal scratch']
  #allocation2 [shape = 'f32[32,32]{1,0:T(8,128)}', space=vmem, size = 0x4000, scoped, tag = 'scratch operand']
  %s0 = inlined_call_operand.vmem [shape: bf16[1,32,256], index: 0, kind: input, shape index: {}]
  %s1 = inlined_call_operand.vmem [shape: bf16[1,256,32], index: 1, kind: input, shape index: {}]
  %s2 = inlined_call_operand.vmem [shape: f32[1,32], index: 2, kind: input, shape index: {}]
  %s3 = inlined_call_operand.vmem [shape: f32[1,32,32], index: 3, kind: output, shape index: {0}]
  %s4 = inlined_call_operand.vmem [shape: f32[1,1,8,32], index: 4, kind: output, shape index: {1}]
  %5 = xla_tuple %s3, %s4
  %s6 = sld [smem:[#allocation0]]
  $region38: #{_lambda_.20} parent=0
    _
  %s8 = ssub.s32 1, %s6
  %s9 = scalar_select 0, %s8, %s6
  // Predicated region
  $region2: #{_lambda_.20} parent=0 // pred_check
    _
  $region3: #{_lambda_.20} parent=0 // pred_check_branch
    %11 = sbr.rel (0) target = $region5
  $region4: #{_lambda_.20} parent=0 // pred_region
    _
  $region5: #{_lambda_.20} parent=0 // pred_fallthru
    _
  // Predicated region
  $region6: #{_lambda_.20} parent=0 // pred_check
    _
  $region7: #{_lambda_.20} parent=0 // pred_check_branch
    %13 = sbr.rel (0) target = $region9
  $region8: #{_lambda_.20} parent=0 // pred_region
    _
  $region9: #{_lambda_.20} parent=0 // pred_fallthru
    _
  // Predicated region
  $region10: #{_lambda_.20} parent=0 // pred_check
    _
  $region11: #{_lambda_.20} parent=0 // pred_check_branch
    %15 = sbr.rel (0) target = $region13
  $region12: #{_lambda_.20} parent=0 // pred_region
    _
  $region13: #{_lambda_.20} parent=0 // pred_fallthru
    _
  %p18 = scmp.eq.s32.totalorder 0, 0
  // Predicated region
  $region14: #{_lambda_.20} parent=0 // pred_check
    %p19 = pneg %p18
  $region15: #{_lambda_.20} parent=0 // pred_check_branch
    %21 = sbr.rel (%p19) target = $region17
  $region16: #{_lambda_.20} parent=0 // pred_region
    %vm22 = vcmask 261120
    %23 = vst.msk [vmem:[#allocation2] sm:$0xff] %vm22, 0.0
    %24 = vst.msk [vmem:[#allocation2 + $0x8] sm:$0xff] %vm22, 0.0
    %25 = vst.msk [vmem:[#allocation2 + $0x10] sm:$0xff] %vm22, 0.0
    %26 = vst.msk [vmem:[#allocation2 + $0x18] sm:$0xff] %vm22, 0.0
  $region17: #{_lambda_.20} parent=0 // pred_fallthru
    _
  %v27 = vld [vmem:[%s0] sm:$0xff]
  %v28 = vld [vmem:[%s0 + $0x8] sm:$0xff]
  %v29 = vld [vmem:[%s0 + $0x10] sm:$0xff]
  %v30 = vld [vmem:[%s0 + $0x18] sm:$0xff]
  %vm31 = vcmp.ge.bf16.partialorder %v27, 0
  %vm32 = vcmp.ge.bf16.partialorder %v28, 0
  %vm33 = vcmp.ge.bf16.partialorder %v29, 0
  %vm34 = vcmp.ge.bf16.partialorder %v30, 0
  %v35 = vmul.bf16 %v27, 1045249613
  %v36 = vmul.bf16 %v28, 1045249613
  %v37 = vmul.bf16 %v29, 1045249613
  %v38 = vmul.bf16 %v30, 1045249613
  %v39 = vsel %vm31, %v27, %v35
  %v40 = vsel %vm32, %v28, %v36
  %v41 = vsel %vm33, %v29, %v37
  %v42 = vsel %vm34, %v30, %v38
  %v43 = vld [vmem:[#allocation2] sm:$0xff]
  %v44 = vld [vmem:[#allocation2 + $0x8] sm:$0xff]
  %v45 = vld [vmem:[#allocation2 + $0x10] sm:$0xff]
  %v46 = vld [vmem:[#allocation2 + $0x18] sm:$0xff]
  %v47 = vld [vmem:[%s1] sm:$0xf]
  %v48 = vld [vmem:[%s1 + $0x4] sm:$0xf]
  %v49 = vld [vmem:[%s1 + $0x8] sm:$0xf]
  %v50 = vld [vmem:[%s1 + $0xc] sm:$0xf]
  %v51 = vld [vmem:[%s1 + $0x10] sm:$0xf]
  %v52 = vld [vmem:[%s1 + $0x14] sm:$0xf]
  %v53 = vld [vmem:[%s1 + $0x18] sm:$0xf]
  %v54 = vld [vmem:[%s1 + $0x1c] sm:$0xf]
  %v55 = vld [vmem:[%s1 + $0x20] sm:$0xf]
  %v56 = vld [vmem:[%s1 + $0x24] sm:$0xf]
  %v57 = vld [vmem:[%s1 + $0x28] sm:$0xf]
  %v58 = vld [vmem:[%s1 + $0x2c] sm:$0xf]
  %v59 = vld [vmem:[%s1 + $0x30] sm:$0xf]
  %v60 = vld [vmem:[%s1 + $0x34] sm:$0xf]
  %v61 = vld [vmem:[%s1 + $0x38] sm:$0xf]
  %v62 = vld [vmem:[%s1 + $0x3c] sm:$0xf]
  %v63 = vld [vmem:[%s1 + $0x40] sm:$0xf]
  %v64 = vld [vmem:[%s1 + $0x44] sm:$0xf]
  %v65 = vld [vmem:[%s1 + $0x48] sm:$0xf]
  %v66 = vld [vmem:[%s1 + $0x4c] sm:$0xf]
  %v67 = vld [vmem:[%s1 + $0x50] sm:$0xf]
  %v68 = vld [vmem:[%s1 + $0x54] sm:$0xf]
  %v69 = vld [vmem:[%s1 + $0x58] sm:$0xf]
  %v70 = vld [vmem:[%s1 + $0x5c] sm:$0xf]
  %v71 = vld [vmem:[%s1 + $0x60] sm:$0xf]
  %v72 = vld [vmem:[%s1 + $0x64] sm:$0xf]
  %v73 = vld [vmem:[%s1 + $0x68] sm:$0xf]
  %v74 = vld [vmem:[%s1 + $0x6c] sm:$0xf]
  %v75 = vld [vmem:[%s1 + $0x70] sm:$0xf]
  %v76 = vld [vmem:[%s1 + $0x74] sm:$0xf]
  %v77 = vld [vmem:[%s1 + $0x78] sm:$0xf]
  %v78 = vld [vmem:[%s1 + $0x7c] sm:$0xf]
  %v83 = vunpack.c.l.b16 %v39
  %v84 = vunpack.c.h.b16 %v39
  %v85 = vunpack.c.l.b16 %v40
  %v86 = vunpack.c.h.b16 %v40
  %v87 = vunpack.c.l.b16 %v41
  %v88 = vunpack.c.h.b16 %v41
  %v89 = vunpack.c.l.b16 %v42
  %v90 = vunpack.c.h.b16 %v42
  %v91 = vpack.c.b16 %v85, %v83
  %v92 = vpack.c.b16 %v86, %v84
  %v93 = vpack.c.b16 %v89, %v87
  %v94 = vpack.c.b16 %v90, %v88
  %v131 = vunpack.c.l.b16 %v47
  %v132 = vunpack.c.l.b16 %v48
  %v133 = vunpack.c.l.b16 %v49
  %v134 = vunpack.c.l.b16 %v50
  %v135 = vunpack.c.l.b16 %v51
  %v136 = vunpack.c.l.b16 %v52
  %v137 = vunpack.c.l.b16 %v53
  %v138 = vunpack.c.l.b16 %v54
  %v139 = vunpack.c.l.b16 %v55
  %v140 = vunpack.c.l.b16 %v56
  %v141 = vunpack.c.l.b16 %v57
  %v142 = vunpack.c.l.b16 %v58
  %v143 = vunpack.c.l.b16 %v59
  %v144 = vunpack.c.l.b16 %v60
  %v145 = vunpack.c.l.b16 %v61
  %v146 = vunpack.c.l.b16 %v62
  %v147 = vunpack.c.l.b16 %v63
  %v148 = vunpack.c.l.b16 %v64
  %v149 = vunpack.c.l.b16 %v65
  %v150 = vunpack.c.l.b16 %v66
  %v151 = vunpack.c.l.b16 %v67
  %v152 = vunpack.c.l.b16 %v68
  %v153 = vunpack.c.l.b16 %v69
  %v154 = vunpack.c.l.b16 %v70
  %v155 = vunpack.c.l.b16 %v71
  %v156 = vunpack.c.l.b16 %v72
  %v157 = vunpack.c.l.b16 %v73
  %v158 = vunpack.c.l.b16 %v74
  %v159 = vunpack.c.l.b16 %v75
  %v160 = vunpack.c.l.b16 %v76
  %v161 = vunpack.c.l.b16 %v77
  %v162 = vunpack.c.l.b16 %v78
  %v163 = vpack.c.b16 %v132, %v131
  %v164 = vpack.c.b16 %v134, %v133
  %v165 = vpack.c.b16 %v136, %v135
  %v166 = vpack.c.b16 %v138, %v137
  %v167 = vpack.c.b16 %v140, %v139
  %v168 = vpack.c.b16 %v142, %v141
  %v169 = vpack.c.b16 %v144, %v143
  %v170 = vpack.c.b16 %v146, %v145
  %v171 = vpack.c.b16 %v148, %v147
  %v172 = vpack.c.b16 %v150, %v149
  %v173 = vpack.c.b16 %v152, %v151
  %v174 = vpack.c.b16 %v154, %v153
  %v175 = vpack.c.b16 %v156, %v155
  %v176 = vpack.c.b16 %v158, %v157
  %v177 = vpack.c.b16 %v160, %v159
  %v178 = vpack.c.b16 %v162, %v161
  %195 = vmatprep.subr.bf16.mxu0 0
  %196 = vmatpush1.bf16.msra.mxu0 %v170
  %197 = vmatprep.subr.bf16.mxu0 0
  %198 = vmatpush1.bf16.msra.mxu0 %v169
  %199 = vmatprep.subr.bf16.mxu0 0
  %200 = vmatpush1.bf16.msra.mxu0 %v168
  %201 = vmatprep.subr.bf16.mxu0 0
  %202 = vmatpush1.bf16.msra.mxu0 %v167
  %203 = vmatprep.subr.bf16.mxu0 0
  %204 = vmatpush1.bf16.msra.mxu0 %v166
  %205 = vmatprep.subr.bf16.mxu0 0
  %206 = vmatpush1.bf16.msra.mxu0 %v165
  %207 = vmatprep.subr.bf16.mxu0 0
  %208 = vmatpush1.bf16.msra.mxu0 %v164
  %209 = vmatprep.subr.bf16.mxu0 0
  %210 = vmatpush1.bf16.msra.mxu0 %v163
  %211 = vmatprep.subr.bf16.mxu0 0
  %212 = vmatpush2.bf16.msra.mxu0 %v178
  %213 = vmatprep.subr.bf16.mxu0 0
  %214 = vmatpush2.bf16.msra.mxu0 %v177
  %215 = vmatprep.subr.bf16.mxu0 0
  %216 = vmatpush2.bf16.msra.mxu0 %v176
  %217 = vmatprep.subr.bf16.mxu0 0
  %218 = vmatpush2.bf16.msra.mxu0 %v175
  %219 = vmatprep.subr.bf16.mxu0 0
  %220 = vmatpush2.bf16.msra.mxu0 %v174
  %221 = vmatprep.subr.bf16.mxu0 0
  %222 = vmatpush2.bf16.msra.mxu0 %v173
  %223 = vmatprep.subr.bf16.mxu0 0
  %224 = vmatpush2.bf16.msra.mxu0 %v172
  %225 = vmatprep.subr.bf16.mxu0 0
  %226 = vmatpush2.bf16.msra.mxu0 %v171
  %227 = vmatprep.mubr.bf16.mxu0 %v92
  %228 = vmatmul.mubr.bf16.gmra.mxu0 %v91
  %v229 = vpop.f32.mrf.mxu0
  %v230 = vadd.f32 0.0, %v229
  %v231 = vpop.f32.mrf.mxu0
  %v232 = vpop.f32.mrf.mxu0
  %v233 = vadd.f32 0.0, %v232
  %v234 = vpop.f32.mrf.mxu0
  %235 = vmatprep.mubr.bf16.mxu0 %v94
  %236 = vmatmul.mubr.bf16.gmra.mxu0 %v93
  %v237 = vpop.f32.mrf.mxu0
  %v238 = vadd.f32 0.0, %v237
  %v239 = vpop.f32.mrf.mxu0
  %v240 = vpop.f32.mrf.mxu0
  %v241 = vadd.f32 0.0, %v240
  %v242 = vpop.f32.mrf.mxu0
  %243 = vdwg.mxu0
  %v244 = vadd.f32 %v43, %v230
  %v245 = vadd.f32 %v44, %v233
  %v246 = vadd.f32 %v45, %v238
  %v247 = vadd.f32 %v46, %v241
  %vm248 = vcmask 261120
  %249 = vst.msk [vmem:[#allocation2] sm:$0xff] %vm248, %v244
  %250 = vst.msk [vmem:[#allocation2 + $0x8] sm:$0xff] %vm248, %v245
  %251 = vst.msk [vmem:[#allocation2 + $0x10] sm:$0xff] %vm248, %v246
  %252 = vst.msk [vmem:[#allocation2 + $0x18] sm:$0xff] %vm248, %v247
  // Predicated region
  $region18: #{_lambda_.20} parent=0 // pred_check
    %p253 = pneg %p18
  $region19: #{_lambda_.20} parent=0 // pred_check_branch
    %255 = sbr.rel (%p253) target = $region21
  $region20: #{_lambda_.20} parent=0 // pred_region
    %v256 = vld [vmem:[#allocation2] sm:$0xff]
    %v257 = vld [vmem:[#allocation2 + $0x8] sm:$0xff]
    %v258 = vld [vmem:[#allocation2 + $0x10] sm:$0xff]
    %v259 = vld [vmem:[#allocation2 + $0x18] sm:$0xff]
    %v260 = vld [vmem:[%s2] sm:$0x1]
    %v262 = vlaneseq
    %v263 = vshrl.u32 %v262, 7
    %v264 = vsub.s32 0, %v263
    %v265 = vrot.slane %v260, %v264
    %v267 = vadd.f32 %v256, %v265
    %v268 = vadd.f32 %v257, %v265
    %v269 = vadd.f32 %v258, %v265
    %v270 = vadd.f32 %v259, %v265
    %v271 = vsel %vm248, %v267, 0.0
    %v272 = vsel %vm248, %v268, 0.0
    %v273 = vadd.f32 %v271, %v272
    %v274 = vsel %vm248, %v269, 0.0
    %v275 = vadd.f32 %v273, %v274
    %v276 = vsel %vm248, %v270, 0.0
    %v277 = vadd.f32 %v275, %v276
    %v278 = vrot.slane %v277, 4
    %v279 = vadd.f32 %v277, %v278
    %v280 = vrot.slane %v279, 2
    %v281 = vadd.f32 %v279, %v280
    %v282 = vrot.slane %v281, 1
    %v283 = vadd.f32 %v281, %v282
    %v284 = vmul.f32 %v267, %v267
    %v285 = vmul.f32 %v268, %v268
    %v286 = vmul.f32 %v269, %v269
    %v287 = vmul.f32 %v270, %v270
    %v288 = vsel %vm248, %v284, 0.0
    %v289 = vsel %vm248, %v285, 0.0
    %v290 = vadd.f32 %v288, %v289
    %v291 = vsel %vm248, %v286, 0.0
    %v292 = vadd.f32 %v290, %v291
    %v293 = vsel %vm248, %v287, 0.0
    %v294 = vadd.f32 %v292, %v293
    %v295 = vrot.slane %v294, 4
    %v296 = vadd.f32 %v294, %v295
    %v297 = vrot.slane %v296, 2
    %v298 = vadd.f32 %v296, %v297
    %v299 = vrot.slane %v298, 1
    %v300 = vadd.f32 %v298, %v299
    %vm301 = vcmask 1040384
    %v302 = vsel %vm301, %v283, %v300
    %vm303 = vcmask 1041408
    %v304 = vsel %vm303, %v302, 0.0
    %305 = vst.msk [vmem:[%s4] sm:$0xff] %vm248, %v304
    %306 = vst.msk [vmem:[%s3] sm:$0xff] %vm248, %v267
    %307 = vst.msk [vmem:[%s3 + $0x8] sm:$0xff] %vm248, %v268
    %308 = vst.msk [vmem:[%s3 + $0x10] sm:$0xff] %vm248, %v269
    %309 = vst.msk [vmem:[%s3 + $0x18] sm:$0xff] %vm248, %v270
  $region21: #{_lambda_.20} parent=0 // pred_fallthru
    _
  // Predicated region
  $region22: #{_lambda_.20} parent=0 // pred_check
    _
  $region23: #{_lambda_.20} parent=0 // pred_check_branch
    %311 = sbr.rel (0) target = $region25
  $region24: #{_lambda_.20} parent=0 // pred_region
    _
  $region25: #{_lambda_.20} parent=0 // pred_fallthru
    _
  // Predicated region
  $region26: #{_lambda_.20} parent=0 // pred_check
    _
  $region27: #{_lambda_.20} parent=0 // pred_check_branch
    %313 = sbr.rel (0) target = $region29
  $region28: #{_lambda_.20} parent=0 // pred_region
    _
  $region29: #{_lambda_.20} parent=0 // pred_fallthru
    _
  // Predicated region
  $region30: #{_lambda_.20} parent=0 // pred_check
    _
  $region31: #{_lambda_.20} parent=0 // pred_check_branch
    %315 = sbr.rel (0) target = $region33
  $region32: #{_lambda_.20} parent=0 // pred_region
    _
  $region33: #{_lambda_.20} parent=0 // pred_fallthru
    _
  // Predicated region
  $region34: #{_lambda_.20} parent=0 // pred_check
    _
  $region35: #{_lambda_.20} parent=0 // pred_check_branch
    %317 = sbr.rel (0) target = $region37
  $region36: #{_lambda_.20} parent=0 // pred_region
    _
  $region37: #{_lambda_.20} parent=0 // pred_fallthru
    _

// kernel: _lambda_.21
$region0: #{_lambda_.21}
  #allocation0 [shape = 'u32[]', space=smem, size = 0x4, offset = 0x4, fixed_abs, tag = 'smem constant byte address 0x4 - core index']
  #allocation1 [shape = 'u32[144,128]{1,0:T(1,128)}', space=vmem, size = 0x12000, scoped, tag = 'internal scratch']
  %s0 = inlined_call_operand.vmem [shape: f32[8,128], index: 0, kind: input, shape index: {}]
  %s1 = inlined_call_operand.vmem [shape: f32[1,128], index: 1, kind: input, shape index: {}]
  %s2 = inlined_call_operand.vmem [shape: f32[1,128], index: 2, kind: input, shape index: {}]
  %s3 = inlined_call_operand.vmem [shape: f32[8,128], index: 3, kind: output, shape index: {}]
  %s4 = sld [smem:[#allocation0]]
  $region22: #{_lambda_.21} parent=0
    _
  %s6 = ssub.s32 1, %s4
  %s7 = scalar_select 0, %s6, %s4
  // Predicated region
  $region2: #{_lambda_.21} parent=0 // pred_check
    _
  $region3: #{_lambda_.21} parent=0 // pred_check_branch
    %9 = sbr.rel (0) target = $region5
  $region4: #{_lambda_.21} parent=0 // pred_region
    _
  $region5: #{_lambda_.21} parent=0 // pred_fallthru
    _
  // Predicated region
  $region6: #{_lambda_.21} parent=0 // pred_check
    _
  $region7: #{_lambda_.21} parent=0 // pred_check_branch
    %11 = sbr.rel (0) target = $region9
  $region8: #{_lambda_.21} parent=0 // pred_region
    _
  $region9: #{_lambda_.21} parent=0 // pred_fallthru
    _
  // Predicated region
  $region10: #{_lambda_.21} parent=0 // pred_check
    _
  $region11: #{_lambda_.21} parent=0 // pred_check_branch
    %13 = sbr.rel (0) target = $region13
  $region12: #{_lambda_.21} parent=0 // pred_region
    _
  $region13: #{_lambda_.21} parent=0 // pred_fallthru
    _
  %v14 = vld [vmem:[%s0] sm:$0xff]
  %v15 = vld [vmem:[%s1] sm:$0x1]
  %v17 = vlaneseq
  %v18 = vshrl.u32 %v17, 7
  %v19 = vsub.s32 0, %v18
  %v20 = vrot.slane %v15, %v19
  %v22 = vmul.f32 %v14, %v20
  %v23 = vld [vmem:[%s2] sm:$0x1]
  %v25 = vlaneseq
  %v26 = vshrl.u32 %v25, 7
  %v27 = vsub.s32 0, %v26
  %v28 = vrot.slane %v23, %v27
  %v30 = vadd.f32 %v22, %v28
  %31 = vst [vmem:[%s3] sm:$0xff] %v30
  // Predicated region
  $region14: #{_lambda_.21} parent=0 // pred_check
    _
  $region15: #{_lambda_.21} parent=0 // pred_check_branch
    %33 = sbr.rel (0) target = $region17
  $region16: #{_lambda_.21} parent=0 // pred_region
    _
  $region17: #{_lambda_.21} parent=0 // pred_fallthru
    _
  // Predicated region
  $region18: #{_lambda_.21} parent=0 // pred_check
    _
  $region19: #{_lambda_.21} parent=0 // pred_check_branch
    %35 = sbr.rel (0) target = $region21
  $region20: #{_lambda_.21} parent=0 // pred_region
    _
  $region21: #{_lambda_.21} parent=0 // pred_fallthru
    _

// kernel: squeeze.28
$region0: #{squeeze.28}
  %s0 = inlined_call_operand.vmem [shape: f32[1,8,64], index: 0, kind: input, shape index: {}]
  %s1 = inlined_call_operand.vmem [shape: f32[4,128], index: 1, kind: output, shape index: {}]
  $region1: #{squeeze.28} parent=0
    #allocation0 [shape = 'u8[4096]{0}', space=vmem, size = 0x1000, scoped, tag = 'scoped mem for output reshape']
    %v2 = vld [vmem:[%s0] ss:$2 sm:$0xf]
    %vm3 = vcmask 523264
    %4 = vst.msk [vmem:[#allocation0] sm:$0xf] %vm3, %v2
    %s5 = scalar_lea.vmem %s0, 1
    %v6 = vld [vmem:[%s5] ss:$2 sm:$0xf]
    %7 = vrot.lane.b32.xlu0 %v6, 64
    %v8 = vpop.permute.xlu0 %7
    %vm9 = vcmask 1048064
    %10 = vst.msk [vmem:[#allocation0] sm:$0xf] %vm9, %v8
    %s12 = sshll.u32 1, 4
    %s13 = ssub.s32 %s12, 1
    %v15 = vld [vmem:[#allocation0] sm:%s13]
    %s16 = sshll.u32 1, 4
    %s17 = ssub.s32 %s16, 1
    %18 = vst [vmem:[%s1] sm:%s17] %v15

// kernel: tile.93
$region0: #{tile.93}
  #allocation0 [shape = 's32[1]{0}', space=sflag, size = 0x4, scoped, tag = 'scoped memory for tile.93']
  %s0 = inlined_call_operand.vmem [shape: f32[64], index: 0, kind: input, shape index: {}]
  %s1 = inlined_call_operand.vmem [shape: f32[2,64], index: 1, kind: output, shape index: {}]
  // Predicated region
  $region2: #{tile.93} parent=0 // pred_check
    _
  $region3: #{tile.93} parent=0 // pred_check_branch
    %3 = sbr.rel (0) target = $region5
  $region4: #{tile.93} parent=0 // pred_region
    _
  $region5: #{tile.93} parent=0 // pred_fallthru
    _
  %v4 = vld [vmem:[%s0] ss:$0 sm:$0xff]
  %5 = vst [vmem:[%s1] sm:$0x3] %v4

// kernel: tile.94
$region0: #{tile.94}
  %s0 = inlined_call_operand.vmem [shape: f32[2,64], index: 0, kind: input, shape index: {}]
  %s1 = inlined_call_operand.vmem [shape: f32[1,128], index: 1, kind: output, shape index: {}]
  $region1: #{tile.94} parent=0
    #allocation0 [shape = 'u8[4096]{0}', space=vmem, size = 0x1000, scoped, tag = 'scoped mem for output reshape']
    #allocation1 [shape = 'u8[4096]{0}', space=vmem, size = 0x1000, scoped, tag = 'scoped mem for input reshape']
    %s3 = sshll.u32 1, 2
    %s4 = ssub.s32 %s3, 1
    %v5 = vld [vmem:[%s0] sm:%s4]
    %6 = vst [vmem:[#allocation1] sm:%s4] %v5
    %v7 = vld [vmem:[#allocation1] sm:$0x1]
    %vm8 = vcmask 523264
    %9 = vst.msk [vmem:[#allocation0] sm:$0x1] %vm8, %v7
    %s10 = scalar_lea.vmem [#allocation1], 1
    %v11 = vld [vmem:[%s10] sm:$0x1]
    %12 = vrot.lane.b32.xlu0 %v11, 64
    %v13 = vpop.permute.xlu0 %12
    %vm14 = vcmask 1048064
    %15 = vst.msk [vmem:[#allocation0] sm:$0x1] %vm14, %v13
    %s17 = sshll.u32 1, 1
    %s18 = ssub.s32 %s17, 1
    %v20 = vld [vmem:[#allocation0] sm:%s18]
    %s21 = sshll.u32 1, 1
    %s22 = ssub.s32 %s21, 1
    %23 = vst [vmem:[%s1] sm:%s22] %v20

// kernel: _lambda_.23
$region0: #{_lambda_.23}
  #allocation0 [shape = 'u32[]', space=smem, size = 0x4, offset = 0x4, fixed_abs, tag = 'smem constant byte address 0x4 - core index']
  #allocation1 [shape = 'u32[144,128]{1,0:T(1,128)}', space=vmem, size = 0x12000, scoped, tag = 'internal scratch']
  %s0 = inlined_call_operand.vmem [shape: f32[4,128], index: 0, kind: input, shape index: {}]
  %s1 = inlined_call_operand.vmem [shape: f32[1,128], index: 1, kind: input, shape index: {}]
  %s2 = inlined_call_operand.vmem [shape: f32[1,128], index: 2, kind: input, shape index: {}]
  %s3 = inlined_call_operand.vmem [shape: f32[4,128], index: 3, kind: output, shape index: {}]
  %s4 = sld [smem:[#allocation0]]
  $region22: #{_lambda_.23} parent=0
    _
  %s6 = ssub.s32 1, %s4
  %s7 = scalar_select 0, %s6, %s4
  // Predicated region
  $region2: #{_lambda_.23} parent=0 // pred_check
    _
  $region3: #{_lambda_.23} parent=0 // pred_check_branch
    %9 = sbr.rel (0) target = $region5
  $region4: #{_lambda_.23} parent=0 // pred_region
    _
  $region5: #{_lambda_.23} parent=0 // pred_fallthru
    _
  // Predicated region
  $region6: #{_lambda_.23} parent=0 // pred_check
    _
  $region7: #{_lambda_.23} parent=0 // pred_check_branch
    %11 = sbr.rel (0) target = $region9
  $region8: #{_lambda_.23} parent=0 // pred_region
    _
  $region9: #{_lambda_.23} parent=0 // pred_fallthru
    _
  // Predicated region
  $region10: #{_lambda_.23} parent=0 // pred_check
    _
  $region11: #{_lambda_.23} parent=0 // pred_check_branch
    %13 = sbr.rel (0) target = $region13
  $region12: #{_lambda_.23} parent=0 // pred_region
    _
  $region13: #{_lambda_.23} parent=0 // pred_fallthru
    _
  %v14 = vld [vmem:[%s0] sm:$0xf]
  %v15 = vld [vmem:[%s1] sm:$0x1]
  %v17 = vlaneseq
  %v18 = vshrl.u32 %v17, 7
  %v19 = vsub.s32 0, %v18
  %v20 = vrot.slane %v15, %v19
  %v22 = vmul.f32 %v14, %v20
  %v23 = vld [vmem:[%s2] sm:$0x1]
  %v25 = vlaneseq
  %v26 = vshrl.u32 %v25, 7
  %v27 = vsub.s32 0, %v26
  %v28 = vrot.slane %v23, %v27
  %v30 = vadd.f32 %v22, %v28
  %31 = vst [vmem:[%s3] sm:$0xf] %v30
  // Predicated region
  $region14: #{_lambda_.23} parent=0 // pred_check
    _
  $region15: #{_lambda_.23} parent=0 // pred_check_branch
    %33 = sbr.rel (0) target = $region17
  $region16: #{_lambda_.23} parent=0 // pred_region
    _
  $region17: #{_lambda_.23} parent=0 // pred_fallthru
    _
  // Predicated region
  $region18: #{_lambda_.23} parent=0 // pred_check
    _
  $region19: #{_lambda_.23} parent=0 // pred_check_branch
    %35 = sbr.rel (0) target = $region21
  $region20: #{_lambda_.23} parent=0 // pred_region
    _
  $region21: #{_lambda_.23} parent=0 // pred_fallthru
    _

// kernel: _lambda_.22
$region0: #{_lambda_.22}
  #allocation0 [shape = 'u32[]', space=smem, size = 0x4, offset = 0x4, fixed_abs, tag = 'smem constant byte address 0x4 - core index']
  #allocation1 [shape = 'u32[144,128]{1,0:T(1,128)}', space=vmem, size = 0x12000, scoped, tag = 'internal scratch']
  #allocation2 [shape = 'f32[8,64]{1,0:T(8,128)}', space=vmem, size = 0x1000, scoped, tag = 'scratch operand']
  %s0 = inlined_call_operand.vmem [shape: bf16[1,8,512], index: 0, kind: input, shape index: {}]
  %s1 = inlined_call_operand.vmem [shape: bf16[1,512,64], index: 1, kind: input, shape index: {}]
  %s2 = inlined_call_operand.vmem [shape: f32[1,64], index: 2, kind: input, shape index: {}]
  %s3 = inlined_call_operand.vmem [shape: f32[1,8,64], index: 3, kind: output, shape index: {0}]
  %s4 = inlined_call_operand.vmem [shape: f32[1,1,8,64], index: 4, kind: output, shape index: {1}]
  %5 = xla_tuple %s3, %s4
  %s6 = sld [smem:[#allocation0]]
  $region38: #{_lambda_.22} parent=0
    _
  %s8 = ssub.s32 1, %s6
  %s9 = scalar_select 0, %s8, %s6
  // Predicated region
  $region2: #{_lambda_.22} parent=0 // pred_check
    _
  $region3: #{_lambda_.22} parent=0 // pred_check_branch
    %11 = sbr.rel (0) target = $region5
  $region4: #{_lambda_.22} parent=0 // pred_region
    _
  $region5: #{_lambda_.22} parent=0 // pred_fallthru
    _
  // Predicated region
  $region6: #{_lambda_.22} parent=0 // pred_check
    _
  $region7: #{_lambda_.22} parent=0 // pred_check_branch
    %13 = sbr.rel (0) target = $region9
  $region8: #{_lambda_.22} parent=0 // pred_region
    _
  $region9: #{_lambda_.22} parent=0 // pred_fallthru
    _
  // Predicated region
  $region10: #{_lambda_.22} parent=0 // pred_check
    _
  $region11: #{_lambda_.22} parent=0 // pred_check_branch
    %15 = sbr.rel (0) target = $region13
  $region12: #{_lambda_.22} parent=0 // pred_region
    _
  $region13: #{_lambda_.22} parent=0 // pred_fallthru
    _
  %p18 = scmp.eq.s32.totalorder 0, 0
  // Predicated region
  $region14: #{_lambda_.22} parent=0 // pred_check
    %p19 = pneg %p18
  $region15: #{_lambda_.22} parent=0 // pred_check_branch
    %21 = sbr.rel (%p19) target = $region17
  $region16: #{_lambda_.22} parent=0 // pred_region
    %vm22 = vcmask 523264
    %23 = vst.msk [vmem:[#allocation2] sm:$0xff] %vm22, 0.0
  $region17: #{_lambda_.22} parent=0 // pred_fallthru
    _
  %v24 = vld [vmem:[%s0] sm:$0xff]
  %v25 = vld [vmem:[%s0 + $0x8] sm:$0xff]
  %vm26 = vcmp.ge.bf16.partialorder %v24, 0
  %vm27 = vcmp.ge.bf16.partialorder %v25, 0
  %v28 = vmul.bf16 %v24, 1045249613
  %v29 = vmul.bf16 %v25, 1045249613
  %v30 = vsel %vm26, %v24, %v28
  %v31 = vsel %vm27, %v25, %v29
  %v32 = vld [vmem:[#allocation2] sm:$0xff]
  %v33 = vld [vmem:[%s1] sm:$0xf]
  %v34 = vld [vmem:[%s1 + $0x4] sm:$0xf]
  %v35 = vld [vmem:[%s1 + $0x8] sm:$0xf]
  %v36 = vld [vmem:[%s1 + $0xc] sm:$0xf]
  %v37 = vld [vmem:[%s1 + $0x10] sm:$0xf]
  %v38 = vld [vmem:[%s1 + $0x14] sm:$0xf]
  %v39 = vld [vmem:[%s1 + $0x18] sm:$0xf]
  %v40 = vld [vmem:[%s1 + $0x1c] sm:$0xf]
  %v41 = vld [vmem:[%s1 + $0x20] sm:$0xf]
  %v42 = vld [vmem:[%s1 + $0x24] sm:$0xf]
  %v43 = vld [vmem:[%s1 + $0x28] sm:$0xf]
  %v44 = vld [vmem:[%s1 + $0x2c] sm:$0xf]
  %v45 = vld [vmem:[%s1 + $0x30] sm:$0xf]
  %v46 = vld [vmem:[%s1 + $0x34] sm:$0xf]
  %v47 = vld [vmem:[%s1 + $0x38] sm:$0xf]
  %v48 = vld [vmem:[%s1 + $0x3c] sm:$0xf]
  %v49 = vld [vmem:[%s1 + $0x40] sm:$0xf]
  %v50 = vld [vmem:[%s1 + $0x44] sm:$0xf]
  %v51 = vld [vmem:[%s1 + $0x48] sm:$0xf]
  %v52 = vld [vmem:[%s1 + $0x4c] sm:$0xf]
  %v53 = vld [vmem:[%s1 + $0x50] sm:$0xf]
  %v54 = vld [vmem:[%s1 + $0x54] sm:$0xf]
  %v55 = vld [vmem:[%s1 + $0x58] sm:$0xf]
  %v56 = vld [vmem:[%s1 + $0x5c] sm:$0xf]
  %v57 = vld [vmem:[%s1 + $0x60] sm:$0xf]
  %v58 = vld [vmem:[%s1 + $0x64] sm:$0xf]
  %v59 = vld [vmem:[%s1 + $0x68] sm:$0xf]
  %v60 = vld [vmem:[%s1 + $0x6c] sm:$0xf]
  %v61 = vld [vmem:[%s1 + $0x70] sm:$0xf]
  %v62 = vld [vmem:[%s1 + $0x74] sm:$0xf]
  %v63 = vld [vmem:[%s1 + $0x78] sm:$0xf]
  %v64 = vld [vmem:[%s1 + $0x7c] sm:$0xf]
  %v65 = vld [vmem:[%s1 + $0x80] sm:$0xf]
  %v66 = vld [vmem:[%s1 + $0x84] sm:$0xf]
  %v67 = vld [vmem:[%s1 + $0x88] sm:$0xf]
  %v68 = vld [vmem:[%s1 + $0x8c] sm:$0xf]
  %v69 = vld [vmem:[%s1 + $0x90] sm:$0xf]
  %v70 = vld [vmem:[%s1 + $0x94] sm:$0xf]
  %v71 = vld [vmem:[%s1 + $0x98] sm:$0xf]
  %v72 = vld [vmem:[%s1 + $0x9c] sm:$0xf]
  %v73 = vld [vmem:[%s1 + $0xa0] sm:$0xf]
  %v74 = vld [vmem:[%s1 + $0xa4] sm:$0xf]
  %v75 = vld [vmem:[%s1 + $0xa8] sm:$0xf]
  %v76 = vld [vmem:[%s1 + $0xac] sm:$0xf]
  %v77 = vld [vmem:[%s1 + $0xb0] sm:$0xf]
  %v78 = vld [vmem:[%s1 + $0xb4] sm:$0xf]
  %v79 = vld [vmem:[%s1 + $0xb8] sm:$0xf]
  %v80 = vld [vmem:[%s1 + $0xbc] sm:$0xf]
  %v81 = vld [vmem:[%s1 + $0xc0] sm:$0xf]
  %v82 = vld [vmem:[%s1 + $0xc4] sm:$0xf]
  %v83 = vld [vmem:[%s1 + $0xc8] sm:$0xf]
  %v84 = vld [vmem:[%s1 + $0xcc] sm:$0xf]
  %v85 = vld [vmem:[%s1 + $0xd0] sm:$0xf]
  %v86 = vld [vmem:[%s1 + $0xd4] sm:$0xf]
  %v87 = vld [vmem:[%s1 + $0xd8] sm:$0xf]
  %v88 = vld [vmem:[%s1 + $0xdc] sm:$0xf]
  %v89 = vld [vmem:[%s1 + $0xe0] sm:$0xf]
  %v90 = vld [vmem:[%s1 + $0xe4] sm:$0xf]
  %v91 = vld [vmem:[%s1 + $0xe8] sm:$0xf]
  %v92 = vld [vmem:[%s1 + $0xec] sm:$0xf]
  %v93 = vld [vmem:[%s1 + $0xf0] sm:$0xf]
  %v94 = vld [vmem:[%s1 + $0xf4] sm:$0xf]
  %v95 = vld [vmem:[%s1 + $0xf8] sm:$0xf]
  %v96 = vld [vmem:[%s1 + $0xfc] sm:$0xf]
  %v99 = vunpack.c.l.b16 %v30
  %v100 = vunpack.c.h.b16 %v30
  %v101 = vunpack.c.l.b16 %v31
  %v102 = vunpack.c.h.b16 %v31
  %v103 = vpack.c.b16 %v99, %v99
  %v104 = vpack.c.b16 %v100, %v100
  %v105 = vpack.c.b16 %v101, %v101
  %v106 = vpack.c.b16 %v102, %v102
  %v175 = vunpack.c.l.b16 %v33
  %v176 = vunpack.c.l.b16 %v34
  %v177 = vunpack.c.l.b16 %v35
  %v178 = vunpack.c.l.b16 %v36
  %v179 = vunpack.c.l.b16 %v37
  %v180 = vunpack.c.l.b16 %v38
  %v181 = vunpack.c.l.b16 %v39
  %v182 = vunpack.c.l.b16 %v40
  %v183 = vunpack.c.l.b16 %v41
  %v184 = vunpack.c.l.b16 %v42
  %v185 = vunpack.c.l.b16 %v43
  %v186 = vunpack.c.l.b16 %v44
  %v187 = vunpack.c.l.b16 %v45
  %v188 = vunpack.c.l.b16 %v46
  %v189 = vunpack.c.l.b16 %v47
  %v190 = vunpack.c.l.b16 %v48
  %v191 = vunpack.c.l.b16 %v49
  %v192 = vunpack.c.l.b16 %v50
  %v193 = vunpack.c.l.b16 %v51
  %v194 = vunpack.c.l.b16 %v52
  %v195 = vunpack.c.l.b16 %v53
  %v196 = vunpack.c.l.b16 %v54
  %v197 = vunpack.c.l.b16 %v55
  %v198 = vunpack.c.l.b16 %v56
  %v199 = vunpack.c.l.b16 %v57
  %v200 = vunpack.c.l.b16 %v58
  %v201 = vunpack.c.l.b16 %v59
  %v202 = vunpack.c.l.b16 %v60
  %v203 = vunpack.c.l.b16 %v61
  %v204 = vunpack.c.l.b16 %v62
  %v205 = vunpack.c.l.b16 %v63
  %v206 = vunpack.c.l.b16 %v64
  %v207 = vunpack.c.l.b16 %v65
  %v208 = vunpack.c.l.b16 %v66
  %v209 = vunpack.c.l.b16 %v67
  %v210 = vunpack.c.l.b16 %v68
  %v211 = vunpack.c.l.b16 %v69
  %v212 = vunpack.c.l.b16 %v70
  %v213 = vunpack.c.l.b16 %v71
  %v214 = vunpack.c.l.b16 %v72
  %v215 = vunpack.c.l.b16 %v73
  %v216 = vunpack.c.l.b16 %v74
  %v217 = vunpack.c.l.b16 %v75
  %v218 = vunpack.c.l.b16 %v76
  %v219 = vunpack.c.l.b16 %v77
  %v220 = vunpack.c.l.b16 %v78
  %v221 = vunpack.c.l.b16 %v79
  %v222 = vunpack.c.l.b16 %v80
  %v223 = vunpack.c.l.b16 %v81
  %v224 = vunpack.c.l.b16 %v82
  %v225 = vunpack.c.l.b16 %v83
  %v226 = vunpack.c.l.b16 %v84
  %v227 = vunpack.c.l.b16 %v85
  %v228 = vunpack.c.l.b16 %v86
  %v229 = vunpack.c.l.b16 %v87
  %v230 = vunpack.c.l.b16 %v88
  %v231 = vunpack.c.l.b16 %v89
  %v232 = vunpack.c.l.b16 %v90
  %v233 = vunpack.c.l.b16 %v91
  %v234 = vunpack.c.l.b16 %v92
  %v235 = vunpack.c.l.b16 %v93
  %v236 = vunpack.c.l.b16 %v94
  %v237 = vunpack.c.l.b16 %v95
  %v238 = vunpack.c.l.b16 %v96
  %v239 = vpack.c.b16 %v176, %v175
  %v240 = vpack.c.b16 %v178, %v177
  %v241 = vpack.c.b16 %v180, %v179
  %v242 = vpack.c.b16 %v182, %v181
  %v243 = vpack.c.b16 %v184, %v183
  %v244 = vpack.c.b16 %v186, %v185
  %v245 = vpack.c.b16 %v188, %v187
  %v246 = vpack.c.b16 %v190, %v189
  %v247 = vpack.c.b16 %v192, %v191
  %v248 = vpack.c.b16 %v194, %v193
  %v249 = vpack.c.b16 %v196, %v195
  %v250 = vpack.c.b16 %v198, %v197
  %v251 = vpack.c.b16 %v200, %v199
  %v252 = vpack.c.b16 %v202, %v201
  %v253 = vpack.c.b16 %v204, %v203
  %v254 = vpack.c.b16 %v206, %v205
  %v255 = vpack.c.b16 %v208, %v207
  %v256 = vpack.c.b16 %v210, %v209
  %v257 = vpack.c.b16 %v212, %v211
  %v258 = vpack.c.b16 %v214, %v213
  %v259 = vpack.c.b16 %v216, %v215
  %v260 = vpack.c.b16 %v218, %v217
  %v261 = vpack.c.b16 %v220, %v219
  %v262 = vpack.c.b16 %v222, %v221
  %v263 = vpack.c.b16 %v224, %v223
  %v264 = vpack.c.b16 %v226, %v225
  %v265 = vpack.c.b16 %v228, %v227
  %v266 = vpack.c.b16 %v230, %v229
  %v267 = vpack.c.b16 %v232, %v231
  %v268 = vpack.c.b16 %v234, %v233
  %v269 = vpack.c.b16 %v236, %v235
  %v270 = vpack.c.b16 %v238, %v237
  %303 = vmatprep.subr.bf16.mxu0 0
  %304 = vmatpush1.bf16.msra.mxu0 %v246
  %305 = vmatprep.subr.bf16.mxu0 0
  %306 = vmatpush1.bf16.msra.mxu0 %v245
  %307 = vmatprep.subr.bf16.mxu0 0
  %308 = vmatpush1.bf16.msra.mxu0 %v244
  %309 = vmatprep.subr.bf16.mxu0 0
  %310 = vmatpush1.bf16.msra.mxu0 %v243
  %311 = vmatprep.subr.bf16.mxu0 0
  %312 = vmatpush1.bf16.msra.mxu0 %v242
  %313 = vmatprep.subr.bf16.mxu0 0
  %314 = vmatpush1.bf16.msra.mxu0 %v241
  %315 = vmatprep.subr.bf16.mxu0 0
  %316 = vmatpush1.bf16.msra.mxu0 %v240
  %317 = vmatprep.subr.bf16.mxu0 0
  %318 = vmatpush1.bf16.msra.mxu0 %v239
  %319 = vmatprep.subr.bf16.mxu0 0
  %320 = vmatpush2.bf16.msra.mxu0 %v254
  %321 = vmatprep.subr.bf16.mxu0 0
  %322 = vmatpush2.bf16.msra.mxu0 %v253
  %323 = vmatprep.subr.bf16.mxu0 0
  %324 = vmatpush2.bf16.msra.mxu0 %v252
  %325 = vmatprep.subr.bf16.mxu0 0
  %326 = vmatpush2.bf16.msra.mxu0 %v251
  %327 = vmatprep.subr.bf16.mxu0 0
  %328 = vmatpush2.bf16.msra.mxu0 %v250
  %329 = vmatprep.subr.bf16.mxu0 0
  %330 = vmatpush2.bf16.msra.mxu0 %v249
  %331 = vmatprep.subr.bf16.mxu0 0
  %332 = vmatpush2.bf16.msra.mxu0 %v248
  %333 = vmatprep.subr.bf16.mxu0 0
  %334 = vmatpush2.bf16.msra.mxu0 %v247
  %335 = vmatprep.mubr.bf16.mxu0 %v104
  %336 = vmatmul.mubr.bf16.gmra.mxu0 %v103
  %v337 = vpop.f32.mrf.mxu0
  %v338 = vadd.f32 0.0, %v337
  %v339 = vpop.f32.mrf.mxu0
  %v340 = vpop.f32.mrf.mxu0
  %v341 = vpop.f32.mrf.mxu0
  %342 = vdwg.mxu0
  %343 = vmatprep.subr.bf16.mxu0 0
  %344 = vmatpush1.bf16.msra.mxu0 %v262
  %345 = vmatprep.subr.bf16.mxu0 0
  %346 = vmatpush1.bf16.msra.mxu0 %v261
  %347 = vmatprep.subr.bf16.mxu0 0
  %348 = vmatpush1.bf16.msra.mxu0 %v260
  %349 = vmatprep.subr.bf16.mxu0 0
  %350 = vmatpush1.bf16.msra.mxu0 %v259
  %351 = vmatprep.subr.bf16.mxu0 0
  %352 = vmatpush1.bf16.msra.mxu0 %v258
  %353 = vmatprep.subr.bf16.mxu0 0
  %354 = vmatpush1.bf16.msra.mxu0 %v257
  %355 = vmatprep.subr.bf16.mxu0 0
  %356 = vmatpush1.bf16.msra.mxu0 %v256
  %357 = vmatprep.subr.bf16.mxu0 0
  %358 = vmatpush1.bf16.msra.mxu0 %v255
  %359 = vmatprep.subr.bf16.mxu0 0
  %360 = vmatpush2.bf16.msra.mxu0 %v270
  %361 = vmatprep.subr.bf16.mxu0 0
  %362 = vmatpush2.bf16.msra.mxu0 %v269
  %363 = vmatprep.subr.bf16.mxu0 0
  %364 = vmatpush2.bf16.msra.mxu0 %v268
  %365 = vmatprep.subr.bf16.mxu0 0
  %366 = vmatpush2.bf16.msra.mxu0 %v267
  %367 = vmatprep.subr.bf16.mxu0 0
  %368 = vmatpush2.bf16.msra.mxu0 %v266
  %369 = vmatprep.subr.bf16.mxu0 0
  %370 = vmatpush2.bf16.msra.mxu0 %v265
  %371 = vmatprep.subr.bf16.mxu0 0
  %372 = vmatpush2.bf16.msra.mxu0 %v264
  %373 = vmatprep.subr.bf16.mxu0 0
  %374 = vmatpush2.bf16.msra.mxu0 %v263
  %375 = vmatprep.mubr.bf16.mxu0 %v106
  %376 = vmatmul.mubr.bf16.gmra.mxu0 %v105
  %v377 = vpop.f32.mrf.mxu0
  %v378 = vadd.f32 %v338, %v377
  %v379 = vpop.f32.mrf.mxu0
  %v380 = vpop.f32.mrf.mxu0
  %v381 = vpop.f32.mrf.mxu0
  %382 = vdwg.mxu0
  %v383 = vadd.f32 %v32, %v378
  %vm384 = vcmask 523264
  %385 = vst.msk [vmem:[#allocation2] sm:$0xff] %vm384, %v383
  // Predicated region
  $region18: #{_lambda_.22} parent=0 // pred_check
    %p386 = pneg %p18
  $region19: #{_lambda_.22} parent=0 // pred_check_branch
    %388 = sbr.rel (%p386) target = $region21
  $region20: #{_lambda_.22} parent=0 // pred_region
    %v389 = vld [vmem:[#allocation2] sm:$0xff]
    %v390 = vld [vmem:[%s2] sm:$0x1]
    %v392 = vlaneseq
    %v393 = vshrl.u32 %v392, 7
    %v394 = vsub.s32 0, %v393
    %v395 = vrot.slane %v390, %v394
    %v397 = vadd.f32 %v389, %v395
    %v398 = vsel %vm384, %v397, 0.0
    %v399 = vrot.slane %v398, 4
    %v400 = vadd.f32 %v398, %v399
    %v401 = vrot.slane %v400, 2
    %v402 = vadd.f32 %v400, %v401
    %v403 = vrot.slane %v402, 1
    %v404 = vadd.f32 %v402, %v403
    %v405 = vmul.f32 %v397, %v397
    %v406 = vsel %vm384, %v405, 0.0
    %v407 = vrot.slane %v406, 4
    %v408 = vadd.f32 %v406, %v407
    %v409 = vrot.slane %v408, 2
    %v410 = vadd.f32 %v408, %v409
    %v411 = vrot.slane %v410, 1
    %v412 = vadd.f32 %v410, %v411
    %vm413 = vcmask 1040384
    %v414 = vsel %vm413, %v404, %v412
    %vm415 = vcmask 1041408
    %v416 = vsel %vm415, %v414, 0.0
    %417 = vst.msk [vmem:[%s4] sm:$0xff] %vm384, %v416
    %418 = vst.msk [vmem:[%s3] sm:$0xff] %vm384, %v397
  $region21: #{_lambda_.22} parent=0 // pred_fallthru
    _
  // Predicated region
  $region22: #{_lambda_.22} parent=0 // pred_check
    _
  $region23: #{_lambda_.22} parent=0 // pred_check_branch
    %420 = sbr.rel (0) target = $region25
  $region24: #{_lambda_.22} parent=0 // pred_region
    _
  $region25: #{_lambda_.22} parent=0 // pred_fallthru
    _
  // Predicated region
  $region26: #{_lambda_.22} parent=0 // pred_check
    _
  $region27: #{_lambda_.22} parent=0 // pred_check_branch
    %422 = sbr.rel (0) target = $region29
  $region28: #{_lambda_.22} parent=0 // pred_region
    _
  $region29: #{_lambda_.22} parent=0 // pred_fallthru
    _
  // Predicated region
  $region30: #{_lambda_.22} parent=0 // pred_check
    _
  $region31: #{_lambda_.22} parent=0 // pred_check_branch
    %424 = sbr.rel (0) target = $region33
  $region32: #{_lambda_.22} parent=0 // pred_region
    _
  $region33: #{_lambda_.22} parent=0 // pred_fallthru
    _
  // Predicated region
  $region34: #{_lambda_.22} parent=0 // pred_check
    _
  $region35: #{_lambda_.22} parent=0 // pred_check_branch
    %426 = sbr.rel (0) target = $region37
  $region36: #{_lambda_.22} parent=0 // pred_region
    _
  $region37: #{_lambda_.22} parent=0 // pred_fallthru
    _

// kernel: _lambda_.24
$region0: #{_lambda_.24}
  #allocation0 [shape = 'u32[]', space=smem, size = 0x4, offset = 0x4, fixed_abs, tag = 'smem constant byte address 0x4 - core index']
  #allocation1 [shape = 'u32[144,128]{1,0:T(1,128)}', space=vmem, size = 0x12000, scoped, tag = 'internal scratch']
  #allocation2 [shape = 'f32[2,64]{1,0:T(2,128)}', space=vmem, size = 0x400, scoped, tag = 'scratch operand']
  %s0 = inlined_call_operand.vmem [shape: bf16[1,2,1024], index: 0, kind: input, shape index: {}]
  %s1 = inlined_call_operand.vmem [shape: bf16[1,1024,64], index: 1, kind: input, shape index: {}]
  %s2 = inlined_call_operand.vmem [shape: f32[1,64], index: 2, kind: input, shape index: {}]
  %s3 = inlined_call_operand.vmem [shape: f32[1,2,64], index: 3, kind: output, shape index: {0}]
  %s4 = inlined_call_operand.hbm [shape: f32[1,1,8,64], index: 4, kind: output, shape index: {1}]
  %5 = xla_tuple %s3, %s4
  %s6 = sld [smem:[#allocation0]]
  $region38: #{_lambda_.24} parent=0
    _
  %s8 = ssub.s32 1, %s6
  %s9 = scalar_select 0, %s8, %s6
  $region1: #{_lambda_.24} parent=0
    #allocation3 [shape = 'u8[4096]{0}', space=vmem, size = 0x1000, scoped, tag = 'output window, operand 1, single buffered']
    #allocation4 [shape = 's32[1]{0}', space=sflag, size = 0x4, scoped, tag = 'scoped memory for _lambda_.24']
    %10 = vsyncpa [#allocation4], 0
    // Predicated region
    $region2: #{_lambda_.24} parent=1 // pred_check
      _
    $region3: #{_lambda_.24} parent=1 // pred_check_branch
      %12 = sbr.rel (0) target = $region5
    $region4: #{_lambda_.24} parent=1 // pred_region
      _
    $region5: #{_lambda_.24} parent=1 // pred_fallthru
      _
    // Predicated region
    $region6: #{_lambda_.24} parent=1 // pred_check
      _
    $region7: #{_lambda_.24} parent=1 // pred_check_branch
      %14 = sbr.rel (0) target = $region9
    $region8: #{_lambda_.24} parent=1 // pred_region
      _
    $region9: #{_lambda_.24} parent=1 // pred_fallthru
      _
    // Predicated region
    $region10: #{_lambda_.24} parent=1 // pred_check
      _
    $region11: #{_lambda_.24} parent=1 // pred_check_branch
      %16 = sbr.rel (0) target = $region13
    $region12: #{_lambda_.24} parent=1 // pred_region
      _
    $region13: #{_lambda_.24} parent=1 // pred_fallthru
      _
    %p19 = scmp.eq.s32.totalorder 0, 0
    // Predicated region
    $region14: #{_lambda_.24} parent=1 // pred_check
      %p20 = pneg %p19
    $region15: #{_lambda_.24} parent=1 // pred_check_branch
      %22 = sbr.rel (%p20) target = $region17
    $region16: #{_lambda_.24} parent=1 // pred_region
      %vm23 = vcmask 517120
      %24 = vst.msk [vmem:[#allocation2] sm:$0x3] %vm23, 0.0
    $region17: #{_lambda_.24} parent=1 // pred_fallthru
      _
    %v25 = vld [vmem:[%s0] sm:$0xff]
    %vm26 = vcmp.ge.bf16.partialorder %v25, 0
    %v27 = vmul.bf16 %v25, 1045249613
    %v28 = vsel %vm26, %v25, %v27
    %v29 = vld [vmem:[#allocation2] sm:$0x3]
    %v30 = vld [vmem:[%s1] sm:$0xf]
    %v31 = vld [vmem:[%s1 + $0x4] sm:$0xf]
    %v32 = vld [vmem:[%s1 + $0x8] sm:$0xf]
    %v33 = vld [vmem:[%s1 + $0xc] sm:$0xf]
    %v34 = vld [vmem:[%s1 + $0x10] sm:$0xf]
    %v35 = vld [vmem:[%s1 + $0x14] sm:$0xf]
    %v36 = vld [vmem:[%s1 + $0x18] sm:$0xf]
    %v37 = vld [vmem:[%s1 + $0x1c] sm:$0xf]
    %v38 = vld [vmem:[%s1 + $0x20] sm:$0xf]
    %v39 = vld [vmem:[%s1 + $0x24] sm:$0xf]
    %v40 = vld [vmem:[%s1 + $0x28] sm:$0xf]
    %v41 = vld [vmem:[%s1 + $0x2c] sm:$0xf]
    %v42 = vld [vmem:[%s1 + $0x30] sm:$0xf]
    %v43 = vld [vmem:[%s1 + $0x34] sm:$0xf]
    %v44 = vld [vmem:[%s1 + $0x38] sm:$0xf]
    %v45 = vld [vmem:[%s1 + $0x3c] sm:$0xf]
    %v46 = vld [vmem:[%s1 + $0x40] sm:$0xf]
    %v47 = vld [vmem:[%s1 + $0x44] sm:$0xf]
    %v48 = vld [vmem:[%s1 + $0x48] sm:$0xf]
    %v49 = vld [vmem:[%s1 + $0x4c] sm:$0xf]
    %v50 = vld [vmem:[%s1 + $0x50] sm:$0xf]
    %v51 = vld [vmem:[%s1 + $0x54] sm:$0xf]
    %v52 = vld [vmem:[%s1 + $0x58] sm:$0xf]
    %v53 = vld [vmem:[%s1 + $0x5c] sm:$0xf]
    %v54 = vld [vmem:[%s1 + $0x60] sm:$0xf]
    %v55 = vld [vmem:[%s1 + $0x64] sm:$0xf]
    %v56 = vld [vmem:[%s1 + $0x68] sm:$0xf]
    %v57 = vld [vmem:[%s1 + $0x6c] sm:$0xf]
    %v58 = vld [vmem:[%s1 + $0x70] sm:$0xf]
    %v59 = vld [vmem:[%s1 + $0x74] sm:$0xf]
    %v60 = vld [vmem:[%s1 + $0x78] sm:$0xf]
    %v61 = vld [vmem:[%s1 + $0x7c] sm:$0xf]
    %v62 = vld [vmem:[%s1 + $0x80] sm:$0xf]
    %v63 = vld [vmem:[%s1 + $0x84] sm:$0xf]
    %v64 = vld [vmem:[%s1 + $0x88] sm:$0xf]
    %v65 = vld [vmem:[%s1 + $0x8c] sm:$0xf]
    %v66 = vld [vmem:[%s1 + $0x90] sm:$0xf]
    %v67 = vld [vmem:[%s1 + $0x94] sm:$0xf]
    %v68 = vld [vmem:[%s1 + $0x98] sm:$0xf]
    %v69 = vld [vmem:[%s1 + $0x9c] sm:$0xf]
    %v70 = vld [vmem:[%s1 + $0xa0] sm:$0xf]
    %v71 = vld [vmem:[%s1 + $0xa4] sm:$0xf]
    %v72 = vld [vmem:[%s1 + $0xa8] sm:$0xf]
    %v73 = vld [vmem:[%s1 + $0xac] sm:$0xf]
    %v74 = vld [vmem:[%s1 + $0xb0] sm:$0xf]
    %v75 = vld [vmem:[%s1 + $0xb4] sm:$0xf]
    %v76 = vld [vmem:[%s1 + $0xb8] sm:$0xf]
    %v77 = vld [vmem:[%s1 + $0xbc] sm:$0xf]
    %v78 = vld [vmem:[%s1 + $0xc0] sm:$0xf]
    %v79 = vld [vmem:[%s1 + $0xc4] sm:$0xf]
    %v80 = vld [vmem:[%s1 + $0xc8] sm:$0xf]
    %v81 = vld [vmem:[%s1 + $0xcc] sm:$0xf]
    %v82 = vld [vmem:[%s1 + $0xd0] sm:$0xf]
    %v83 = vld [vmem:[%s1 + $0xd4] sm:$0xf]
    %v84 = vld [vmem:[%s1 + $0xd8] sm:$0xf]
    %v85 = vld [vmem:[%s1 + $0xdc] sm:$0xf]
    %v86 = vld [vmem:[%s1 + $0xe0] sm:$0xf]
    %v87 = vld [vmem:[%s1 + $0xe4] sm:$0xf]
    %v88 = vld [vmem:[%s1 + $0xe8] sm:$0xf]
    %v89 = vld [vmem:[%s1 + $0xec] sm:$0xf]
    %v90 = vld [vmem:[%s1 + $0xf0] sm:$0xf]
    %v91 = vld [vmem:[%s1 + $0xf4] sm:$0xf]
    %v92 = vld [vmem:[%s1 + $0xf8] sm:$0xf]
    %v93 = vld [vmem:[%s1 + $0xfc] sm:$0xf]
    %v94 = vld [vmem:[%s1 + $0x100] sm:$0xf]
    %v95 = vld [vmem:[%s1 + $0x104] sm:$0xf]
    %v96 = vld [vmem:[%s1 + $0x108] sm:$0xf]
    %v97 = vld [vmem:[%s1 + $0x10c] sm:$0xf]
    %v98 = vld [vmem:[%s1 + $0x110] sm:$0xf]
    %v99 = vld [vmem:[%s1 + $0x114] sm:$0xf]
    %v100 = vld [vmem:[%s1 + $0x118] sm:$0xf]
    %v101 = vld [vmem:[%s1 + $0x11c] sm:$0xf]
    %v102 = vld [vmem:[%s1 + $0x120] sm:$0xf]
    %v103 = vld [vmem:[%s1 + $0x124] sm:$0xf]
    %v104 = vld [vmem:[%s1 + $0x128] sm:$0xf]
    %v105 = vld [vmem:[%s1 + $0x12c] sm:$0xf]
    %v106 = vld [vmem:[%s1 + $0x130] sm:$0xf]
    %v107 = vld [vmem:[%s1 + $0x134] sm:$0xf]
    %v108 = vld [vmem:[%s1 + $0x138] sm:$0xf]
    %v109 = vld [vmem:[%s1 + $0x13c] sm:$0xf]
    %v110 = vld [vmem:[%s1 + $0x140] sm:$0xf]
    %v111 = vld [vmem:[%s1 + $0x144] sm:$0xf]
    %v112 = vld [vmem:[%s1 + $0x148] sm:$0xf]
    %v113 = vld [vmem:[%s1 + $0x14c] sm:$0xf]
    %v114 = vld [vmem:[%s1 + $0x150] sm:$0xf]
    %v115 = vld [vmem:[%s1 + $0x154] sm:$0xf]
    %v116 = vld [vmem:[%s1 + $0x158] sm:$0xf]
    %v117 = vld [vmem:[%s1 + $0x15c] sm:$0xf]
    %v118 = vld [vmem:[%s1 + $0x160] sm:$0xf]
    %v119 = vld [vmem:[%s1 + $0x164] sm:$0xf]
    %v120 = vld [vmem:[%s1 + $0x168] sm:$0xf]
    %v121 = vld [vmem:[%s1 + $0x16c] sm:$0xf]
    %v122 = vld [vmem:[%s1 + $0x170] sm:$0xf]
    %v123 = vld [vmem:[%s1 + $0x174] sm:$0xf]
    %v124 = vld [vmem:[%s1 + $0x178] sm:$0xf]
    %v125 = vld [vmem:[%s1 + $0x17c] sm:$0xf]
    %v126 = vld [vmem:[%s1 + $0x180] sm:$0xf]
    %v127 = vld [vmem:[%s1 + $0x184] sm:$0xf]
    %v128 = vld [vmem:[%s1 + $0x188] sm:$0xf]
    %v129 = vld [vmem:[%s1 + $0x18c] sm:$0xf]
    %v130 = vld [vmem:[%s1 + $0x190] sm:$0xf]
    %v131 = vld [vmem:[%s1 + $0x194] sm:$0xf]
    %v132 = vld [vmem:[%s1 + $0x198] sm:$0xf]
    %v133 = vld [vmem:[%s1 + $0x19c] sm:$0xf]
    %v134 = vld [vmem:[%s1 + $0x1a0] sm:$0xf]
    %v135 = vld [vmem:[%s1 + $0x1a4] sm:$0xf]
    %v136 = vld [vmem:[%s1 + $0x1a8] sm:$0xf]
    %v137 = vld [vmem:[%s1 + $0x1ac] sm:$0xf]
    %v138 = vld [vmem:[%s1 + $0x1b0] sm:$0xf]
    %v139 = vld [vmem:[%s1 + $0x1b4] sm:$0xf]
    %v140 = vld [vmem:[%s1 + $0x1b8] sm:$0xf]
    %v141 = vld [vmem:[%s1 + $0x1bc] sm:$0xf]
    %v142 = vld [vmem:[%s1 + $0x1c0] sm:$0xf]
    %v143 = vld [vmem:[%s1 + $0x1c4] sm:$0xf]
    %v144 = vld [vmem:[%s1 + $0x1c8] sm:$0xf]
    %v145 = vld [vmem:[%s1 + $0x1cc] sm:$0xf]
    %v146 = vld [vmem:[%s1 + $0x1d0] sm:$0xf]
    %v147 = vld [vmem:[%s1 + $0x1d4] sm:$0xf]
    %v148 = vld [vmem:[%s1 + $0x1d8] sm:$0xf]
    %v149 = vld [vmem:[%s1 + $0x1dc] sm:$0xf]
    %v150 = vld [vmem:[%s1 + $0x1e0] sm:$0xf]
    %v151 = vld [vmem:[%s1 + $0x1e4] sm:$0xf]
    %v152 = vld [vmem:[%s1 + $0x1e8] sm:$0xf]
    %v153 = vld [vmem:[%s1 + $0x1ec] sm:$0xf]
    %v154 = vld [vmem:[%s1 + $0x1f0] sm:$0xf]
    %v155 = vld [vmem:[%s1 + $0x1f4] sm:$0xf]
    %v156 = vld [vmem:[%s1 + $0x1f8] sm:$0xf]
    %v157 = vld [vmem:[%s1 + $0x1fc] sm:$0xf]
    %v159 = vcombine.high %v28, %v28
    %v161 = vunpack.c.l.s4 1966171168
    %v162 = vunpack.c.0.s8 %v161
    %v163 = vlaneseq
    %v164 = vshrl.u32 %v163, 7
    %v165 = vsub.s32 %v162, %v164
    %v166 = vrot.slane %v28, %v165
    %v168 = vunpack.c.l.s4 1966171168
    %v169 = vunpack.c.0.s8 %v168
    %v170 = vlaneseq
    %v171 = vshrl.u32 %v170, 7
    %v172 = vsub.s32 %v169, %v171
    %v173 = vrot.slane %v159, %v172
    %v174 = vcombine.high %v166, %v166
    %v175 = vcombine.high %v173, %v173
    %v177 = vunpack.c.l.s4 1966171168
    %v178 = vunpack.c.0.s8 %v177
    %v179 = vlaneseq
    %v180 = vshrl.u32 %v179, 7
    %v181 = vsub.s32 %v178, %v180
    %v182 = vrot.slane %v166, %v181
    %v184 = vunpack.c.l.s4 1966171168
    %v185 = vunpack.c.0.s8 %v184
    %v186 = vlaneseq
    %v187 = vshrl.u32 %v186, 7
    %v188 = vsub.s32 %v185, %v187
    %v189 = vrot.slane %v173, %v188
    %v191 = vunpack.c.l.s4 1966171168
    %v192 = vunpack.c.0.s8 %v191
    %v193 = vlaneseq
    %v194 = vshrl.u32 %v193, 7
    %v195 = vsub.s32 %v192, %v194
    %v196 = vrot.slane %v174, %v195
    %v198 = vunpack.c.l.s4 1966171168
    %v199 = vunpack.c.0.s8 %v198
    %v200 = vlaneseq
    %v201 = vshrl.u32 %v200, 7
    %v202 = vsub.s32 %v199, %v201
    %v203 = vrot.slane %v175, %v202
    %v204 = vcombine.high %v182, %v182
    %v205 = vcombine.high %v189, %v189
    %v206 = vcombine.high %v196, %v196
    %v207 = vcombine.high %v203, %v203
    %v344 = vunpack.c.l.b16 %v30
    %v345 = vunpack.c.l.b16 %v31
    %v346 = vunpack.c.l.b16 %v32
    %v347 = vunpack.c.l.b16 %v33
    %v348 = vunpack.c.l.b16 %v34
    %v349 = vunpack.c.l.b16 %v35
    %v350 = vunpack.c.l.b16 %v36
    %v351 = vunpack.c.l.b16 %v37
    %v352 = vunpack.c.l.b16 %v38
    %v353 = vunpack.c.l.b16 %v39
    %v354 = vunpack.c.l.b16 %v40
    %v355 = vunpack.c.l.b16 %v41
    %v356 = vunpack.c.l.b16 %v42
    %v357 = vunpack.c.l.b16 %v43
    %v358 = vunpack.c.l.b16 %v44
    %v359 = vunpack.c.l.b16 %v45
    %v360 = vunpack.c.l.b16 %v46
    %v361 = vunpack.c.l.b16 %v47
    %v362 = vunpack.c.l.b16 %v48
    %v363 = vunpack.c.l.b16 %v49
    %v364 = vunpack.c.l.b16 %v50
    %v365 = vunpack.c.l.b16 %v51
    %v366 = vunpack.c.l.b16 %v52
    %v367 = vunpack.c.l.b16 %v53
    %v368 = vunpack.c.l.b16 %v54
    %v369 = vunpack.c.l.b16 %v55
    %v370 = vunpack.c.l.b16 %v56
    %v371 = vunpack.c.l.b16 %v57
    %v372 = vunpack.c.l.b16 %v58
    %v373 = vunpack.c.l.b16 %v59
    %v374 = vunpack.c.l.b16 %v60
    %v375 = vunpack.c.l.b16 %v61
    %v376 = vunpack.c.l.b16 %v62
    %v377 = vunpack.c.l.b16 %v63
    %v378 = vunpack.c.l.b16 %v64
    %v379 = vunpack.c.l.b16 %v65
    %v380 = vunpack.c.l.b16 %v66
    %v381 = vunpack.c.l.b16 %v67
    %v382 = vunpack.c.l.b16 %v68
    %v383 = vunpack.c.l.b16 %v69
    %v384 = vunpack.c.l.b16 %v70
    %v385 = vunpack.c.l.b16 %v71
    %v386 = vunpack.c.l.b16 %v72
    %v387 = vunpack.c.l.b16 %v73
    %v388 = vunpack.c.l.b16 %v74
    %v389 = vunpack.c.l.b16 %v75
    %v390 = vunpack.c.l.b16 %v76
    %v391 = vunpack.c.l.b16 %v77
    %v392 = vunpack.c.l.b16 %v78
    %v393 = vunpack.c.l.b16 %v79
    %v394 = vunpack.c.l.b16 %v80
    %v395 = vunpack.c.l.b16 %v81
    %v396 = vunpack.c.l.b16 %v82
    %v397 = vunpack.c.l.b16 %v83
    %v398 = vunpack.c.l.b16 %v84
    %v399 = vunpack.c.l.b16 %v85
    %v400 = vunpack.c.l.b16 %v86
    %v401 = vunpack.c.l.b16 %v87
    %v402 = vunpack.c.l.b16 %v88
    %v403 = vunpack.c.l.b16 %v89
    %v404 = vunpack.c.l.b16 %v90
    %v405 = vunpack.c.l.b16 %v91
    %v406 = vunpack.c.l.b16 %v92
    %v407 = vunpack.c.l.b16 %v93
    %v408 = vunpack.c.l.b16 %v94
    %v409 = vunpack.c.l.b16 %v95
    %v410 = vunpack.c.l.b16 %v96
    %v411 = vunpack.c.l.b16 %v97
    %v412 = vunpack.c.l.b16 %v98
    %v413 = vunpack.c.l.b16 %v99
    %v414 = vunpack.c.l.b16 %v100
    %v415 = vunpack.c.l.b16 %v101
    %v416 = vunpack.c.l.b16 %v102
    %v417 = vunpack.c.l.b16 %v103
    %v418 = vunpack.c.l.b16 %v104
    %v419 = vunpack.c.l.b16 %v105
    %v420 = vunpack.c.l.b16 %v106
    %v421 = vunpack.c.l.b16 %v107
    %v422 = vunpack.c.l.b16 %v108
    %v423 = vunpack.c.l.b16 %v109
    %v424 = vunpack.c.l.b16 %v110
    %v425 = vunpack.c.l.b16 %v111
    %v426 = vunpack.c.l.b16 %v112
    %v427 = vunpack.c.l.b16 %v113
    %v428 = vunpack.c.l.b16 %v114
    %v429 = vunpack.c.l.b16 %v115
    %v430 = vunpack.c.l.b16 %v116
    %v431 = vunpack.c.l.b16 %v117
    %v432 = vunpack.c.l.b16 %v118
    %v433 = vunpack.c.l.b16 %v119
    %v434 = vunpack.c.l.b16 %v120
    %v435 = vunpack.c.l.b16 %v121
    %v436 = vunpack.c.l.b16 %v122
    %v437 = vunpack.c.l.b16 %v123
    %v438 = vunpack.c.l.b16 %v124
    %v439 = vunpack.c.l.b16 %v125
    %v440 = vunpack.c.l.b16 %v126
    %v441 = vunpack.c.l.b16 %v127
    %v442 = vunpack.c.l.b16 %v128
    %v443 = vunpack.c.l.b16 %v129
    %v444 = vunpack.c.l.b16 %v130
    %v445 = vunpack.c.l.b16 %v131
    %v446 = vunpack.c.l.b16 %v132
    %v447 = vunpack.c.l.b16 %v133
    %v448 = vunpack.c.l.b16 %v134
    %v449 = vunpack.c.l.b16 %v135
    %v450 = vunpack.c.l.b16 %v136
    %v451 = vunpack.c.l.b16 %v137
    %v452 = vunpack.c.l.b16 %v138
    %v453 = vunpack.c.l.b16 %v139
    %v454 = vunpack.c.l.b16 %v140
    %v455 = vunpack.c.l.b16 %v141
    %v456 = vunpack.c.l.b16 %v142
    %v457 = vunpack.c.l.b16 %v143
    %v458 = vunpack.c.l.b16 %v144
    %v459 = vunpack.c.l.b16 %v145
    %v460 = vunpack.c.l.b16 %v146
    %v461 = vunpack.c.l.b16 %v147
    %v462 = vunpack.c.l.b16 %v148
    %v463 = vunpack.c.l.b16 %v149
    %v464 = vunpack.c.l.b16 %v150
    %v465 = vunpack.c.l.b16 %v151
    %v466 = vunpack.c.l.b16 %v152
    %v467 = vunpack.c.l.b16 %v153
    %v468 = vunpack.c.l.b16 %v154
    %v469 = vunpack.c.l.b16 %v155
    %v470 = vunpack.c.l.b16 %v156
    %v471 = vunpack.c.l.b16 %v157
    %v472 = vpack.c.b16 %v345, %v344
    %v473 = vpack.c.b16 %v347, %v346
    %v474 = vpack.c.b16 %v349, %v348
    %v475 = vpack.c.b16 %v351, %v350
    %v476 = vpack.c.b16 %v353, %v352
    %v477 = vpack.c.b16 %v355, %v354
    %v478 = vpack.c.b16 %v357, %v356
    %v479 = vpack.c.b16 %v359, %v358
    %v480 = vpack.c.b16 %v361, %v360
    %v481 = vpack.c.b16 %v363, %v362
    %v482 = vpack.c.b16 %v365, %v364
    %v483 = vpack.c.b16 %v367, %v366
    %v484 = vpack.c.b16 %v369, %v368
    %v485 = vpack.c.b16 %v371, %v370
    %v486 = vpack.c.b16 %v373, %v372
    %v487 = vpack.c.b16 %v375, %v374
    %v488 = vpack.c.b16 %v377, %v376
    %v489 = vpack.c.b16 %v379, %v378
    %v490 = vpack.c.b16 %v381, %v380
    %v491 = vpack.c.b16 %v383, %v382
    %v492 = vpack.c.b16 %v385, %v384
    %v493 = vpack.c.b16 %v387, %v386
    %v494 = vpack.c.b16 %v389, %v388
    %v495 = vpack.c.b16 %v391, %v390
    %v496 = vpack.c.b16 %v393, %v392
    %v497 = vpack.c.b16 %v395, %v394
    %v498 = vpack.c.b16 %v397, %v396
    %v499 = vpack.c.b16 %v399, %v398
    %v500 = vpack.c.b16 %v401, %v400
    %v501 = vpack.c.b16 %v403, %v402
    %v502 = vpack.c.b16 %v405, %v404
    %v503 = vpack.c.b16 %v407, %v406
    %v504 = vpack.c.b16 %v409, %v408
    %v505 = vpack.c.b16 %v411, %v410
    %v506 = vpack.c.b16 %v413, %v412
    %v507 = vpack.c.b16 %v415, %v414
    %v508 = vpack.c.b16 %v417, %v416
    %v509 = vpack.c.b16 %v419, %v418
    %v510 = vpack.c.b16 %v421, %v420
    %v511 = vpack.c.b16 %v423, %v422
    %v512 = vpack.c.b16 %v425, %v424
    %v513 = vpack.c.b16 %v427, %v426
    %v514 = vpack.c.b16 %v429, %v428
    %v515 = vpack.c.b16 %v431, %v430
    %v516 = vpack.c.b16 %v433, %v432
    %v517 = vpack.c.b16 %v435, %v434
    %v518 = vpack.c.b16 %v437, %v436
    %v519 = vpack.c.b16 %v439, %v438
    %v520 = vpack.c.b16 %v441, %v440
    %v521 = vpack.c.b16 %v443, %v442
    %v522 = vpack.c.b16 %v445, %v444
    %v523 = vpack.c.b16 %v447, %v446
    %v524 = vpack.c.b16 %v449, %v448
    %v525 = vpack.c.b16 %v451, %v450
    %v526 = vpack.c.b16 %v453, %v452
    %v527 = vpack.c.b16 %v455, %v454
    %v528 = vpack.c.b16 %v457, %v456
    %v529 = vpack.c.b16 %v459, %v458
    %v530 = vpack.c.b16 %v461, %v460
    %v531 = vpack.c.b16 %v463, %v462
    %v532 = vpack.c.b16 %v465, %v464
    %v533 = vpack.c.b16 %v467, %v466
    %v534 = vpack.c.b16 %v469, %v468
    %v535 = vpack.c.b16 %v471, %v470
    %600 = vmatprep.subr.bf16.mxu0 0
    %601 = vmatpush1.bf16.msra.mxu0 %v479
    %602 = vmatprep.subr.bf16.mxu0 0
    %603 = vmatpush1.bf16.msra.mxu0 %v478
    %604 = vmatprep.subr.bf16.mxu0 0
    %605 = vmatpush1.bf16.msra.mxu0 %v477
    %606 = vmatprep.subr.bf16.mxu0 0
    %607 = vmatpush1.bf16.msra.mxu0 %v476
    %608 = vmatprep.subr.bf16.mxu0 0
    %609 = vmatpush1.bf16.msra.mxu0 %v475
    %610 = vmatprep.subr.bf16.mxu0 0
    %611 = vmatpush1.bf16.msra.mxu0 %v474
    %612 = vmatprep.subr.bf16.mxu0 0
    %613 = vmatpush1.bf16.msra.mxu0 %v473
    %614 = vmatprep.subr.bf16.mxu0 0
    %615 = vmatpush1.bf16.msra.mxu0 %v472
    %616 = vmatprep.subr.bf16.mxu0 0
    %617 = vmatpush2.bf16.msra.mxu0 %v487
    %618 = vmatprep.subr.bf16.mxu0 0
    %619 = vmatpush2.bf16.msra.mxu0 %v486
    %620 = vmatprep.subr.bf16.mxu0 0
    %621 = vmatpush2.bf16.msra.mxu0 %v485
    %622 = vmatprep.subr.bf16.mxu0 0
    %623 = vmatpush2.bf16.msra.mxu0 %v484
    %624 = vmatprep.subr.bf16.mxu0 0
    %625 = vmatpush2.bf16.msra.mxu0 %v483
    %626 = vmatprep.subr.bf16.mxu0 0
    %627 = vmatpush2.bf16.msra.mxu0 %v482
    %628 = vmatprep.subr.bf16.mxu0 0
    %629 = vmatpush2.bf16.msra.mxu0 %v481
    %630 = vmatprep.subr.bf16.mxu0 0
    %631 = vmatpush2.bf16.msra.mxu0 %v480
    %632 = vmatprep.mubr.bf16.mxu0 %v196
    %633 = vmatmul.mubr.bf16.gmra.mxu0 %v182
    %v634 = vpop.f32.mrf.mxu0
    %v635 = vadd.f32 0.0, %v634
    %v636 = vpop.f32.mrf.mxu0
    %v637 = vpop.f32.mrf.mxu0
    %v638 = vpop.f32.mrf.mxu0
    %639 = vdwg.mxu0
    %640 = vmatprep.subr.bf16.mxu0 0
    %641 = vmatpush1.bf16.msra.mxu0 %v495
    %642 = vmatprep.subr.bf16.mxu0 0
    %643 = vmatpush1.bf16.msra.mxu0 %v494
    %644 = vmatprep.subr.bf16.mxu0 0
    %645 = vmatpush1.bf16.msra.mxu0 %v493
    %646 = vmatprep.subr.bf16.mxu0 0
    %647 = vmatpush1.bf16.msra.mxu0 %v492
    %648 = vmatprep.subr.bf16.mxu0 0
    %649 = vmatpush1.bf16.msra.mxu0 %v491
    %650 = vmatprep.subr.bf16.mxu0 0
    %651 = vmatpush1.bf16.msra.mxu0 %v490
    %652 = vmatprep.subr.bf16.mxu0 0
    %653 = vmatpush1.bf16.msra.mxu0 %v489
    %654 = vmatprep.subr.bf16.mxu0 0
    %655 = vmatpush1.bf16.msra.mxu0 %v488
    %656 = vmatprep.subr.bf16.mxu0 0
    %657 = vmatpush2.bf16.msra.mxu0 %v503
    %658 = vmatprep.subr.bf16.mxu0 0
    %659 = vmatpush2.bf16.msra.mxu0 %v502
    %660 = vmatprep.subr.bf16.mxu0 0
    %661 = vmatpush2.bf16.msra.mxu0 %v501
    %662 = vmatprep.subr.bf16.mxu0 0
    %663 = vmatpush2.bf16.msra.mxu0 %v500
    %664 = vmatprep.subr.bf16.mxu0 0
    %665 = vmatpush2.bf16.msra.mxu0 %v499
    %666 = vmatprep.subr.bf16.mxu0 0
    %667 = vmatpush2.bf16.msra.mxu0 %v498
    %668 = vmatprep.subr.bf16.mxu0 0
    %669 = vmatpush2.bf16.msra.mxu0 %v497
    %670 = vmatprep.subr.bf16.mxu0 0
    %671 = vmatpush2.bf16.msra.mxu0 %v496
    %672 = vmatprep.mubr.bf16.mxu0 %v206
    %673 = vmatmul.mubr.bf16.gmra.mxu0 %v204
    %v674 = vpop.f32.mrf.mxu0
    %v675 = vadd.f32 %v635, %v674
    %v676 = vpop.f32.mrf.mxu0
    %v677 = vpop.f32.mrf.mxu0
    %v678 = vpop.f32.mrf.mxu0
    %679 = vdwg.mxu0
    %680 = vmatprep.subr.bf16.mxu0 0
    %681 = vmatpush1.bf16.msra.mxu0 %v511
    %682 = vmatprep.subr.bf16.mxu0 0
    %683 = vmatpush1.bf16.msra.mxu0 %v510
    %684 = vmatprep.subr.bf16.mxu0 0
    %685 = vmatpush1.bf16.msra.mxu0 %v509
    %686 = vmatprep.subr.bf16.mxu0 0
    %687 = vmatpush1.bf16.msra.mxu0 %v508
    %688 = vmatprep.subr.bf16.mxu0 0
    %689 = vmatpush1.bf16.msra.mxu0 %v507
    %690 = vmatprep.subr.bf16.mxu0 0
    %691 = vmatpush1.bf16.msra.mxu0 %v506
    %692 = vmatprep.subr.bf16.mxu0 0
    %693 = vmatpush1.bf16.msra.mxu0 %v505
    %694 = vmatprep.subr.bf16.mxu0 0
    %695 = vmatpush1.bf16.msra.mxu0 %v504
    %696 = vmatprep.subr.bf16.mxu0 0
    %697 = vmatpush2.bf16.msra.mxu0 %v519
    %698 = vmatprep.subr.bf16.mxu0 0
    %699 = vmatpush2.bf16.msra.mxu0 %v518
    %700 = vmatprep.subr.bf16.mxu0 0
    %701 = vmatpush2.bf16.msra.mxu0 %v517
    %702 = vmatprep.subr.bf16.mxu0 0
    %703 = vmatpush2.bf16.msra.mxu0 %v516
    %704 = vmatprep.subr.bf16.mxu0 0
    %705 = vmatpush2.bf16.msra.mxu0 %v515
    %706 = vmatprep.subr.bf16.mxu0 0
    %707 = vmatpush2.bf16.msra.mxu0 %v514
    %708 = vmatprep.subr.bf16.mxu0 0
    %709 = vmatpush2.bf16.msra.mxu0 %v513
    %710 = vmatprep.subr.bf16.mxu0 0
    %711 = vmatpush2.bf16.msra.mxu0 %v512
    %712 = vmatprep.mubr.bf16.mxu0 %v203
    %713 = vmatmul.mubr.bf16.gmra.mxu0 %v189
    %v714 = vpop.f32.mrf.mxu0
    %v715 = vadd.f32 %v675, %v714
    %v716 = vpop.f32.mrf.mxu0
    %v717 = vpop.f32.mrf.mxu0
    %v718 = vpop.f32.mrf.mxu0
    %719 = vdwg.mxu0
    %720 = vmatprep.subr.bf16.mxu0 0
    %721 = vmatpush1.bf16.msra.mxu0 %v527
    %722 = vmatprep.subr.bf16.mxu0 0
    %723 = vmatpush1.bf16.msra.mxu0 %v526
    %724 = vmatprep.subr.bf16.mxu0 0
    %725 = vmatpush1.bf16.msra.mxu0 %v525
    %726 = vmatprep.subr.bf16.mxu0 0
    %727 = vmatpush1.bf16.msra.mxu0 %v524
    %728 = vmatprep.subr.bf16.mxu0 0
    %729 = vmatpush1.bf16.msra.mxu0 %v523
    %730 = vmatprep.subr.bf16.mxu0 0
    %731 = vmatpush1.bf16.msra.mxu0 %v522
    %732 = vmatprep.subr.bf16.mxu0 0
    %733 = vmatpush1.bf16.msra.mxu0 %v521
    %734 = vmatprep.subr.bf16.mxu0 0
    %735 = vmatpush1.bf16.msra.mxu0 %v520
    %736 = vmatprep.subr.bf16.mxu0 0
    %737 = vmatpush2.bf16.msra.mxu0 %v535
    %738 = vmatprep.subr.bf16.mxu0 0
    %739 = vmatpush2.bf16.msra.mxu0 %v534
    %740 = vmatprep.subr.bf16.mxu0 0
    %741 = vmatpush2.bf16.msra.mxu0 %v533
    %742 = vmatprep.subr.bf16.mxu0 0
    %743 = vmatpush2.bf16.msra.mxu0 %v532
    %744 = vmatprep.subr.bf16.mxu0 0
    %745 = vmatpush2.bf16.msra.mxu0 %v531
    %746 = vmatprep.subr.bf16.mxu0 0
    %747 = vmatpush2.bf16.msra.mxu0 %v530
    %748 = vmatprep.subr.bf16.mxu0 0
    %749 = vmatpush2.bf16.msra.mxu0 %v529
    %750 = vmatprep.subr.bf16.mxu0 0
    %751 = vmatpush2.bf16.msra.mxu0 %v528
    %752 = vmatprep.mubr.bf16.mxu0 %v207
    %753 = vmatmul.mubr.bf16.gmra.mxu0 %v205
    %v754 = vpop.f32.mrf.mxu0
    %v755 = vadd.f32 %v715, %v754
    %v756 = vpop.f32.mrf.mxu0
    %v757 = vpop.f32.mrf.mxu0
    %v758 = vpop.f32.mrf.mxu0
    %759 = vdwg.mxu0
    %v760 = vadd.f32 %v29, %v755
    %vm761 = vcmask 517120
    %762 = vst.msk [vmem:[#allocation2] sm:$0x3] %vm761, %v760
    // Predicated region
    $region18: #{_lambda_.24} parent=1 // pred_check
      %p763 = pneg %p19
    $region19: #{_lambda_.24} parent=1 // pred_check_branch
      %765 = sbr.rel (%p763) target = $region21
    $region20: #{_lambda_.24} parent=1 // pred_region
      %v766 = vld [vmem:[#allocation2] sm:$0x3]
      %v767 = vld [vmem:[%s2] sm:$0x1]
      %v769 = vlaneseq
      %v770 = vshrl.u32 %v769, 7
      %v771 = vsub.s32 0, %v770
      %v772 = vrot.slane %v767, %v771
      %v774 = vadd.f32 %v766, %v772
      %v775 = vsel %vm761, %v774, 0.0
      %v776 = vrot.slane %v775, 4
      %v777 = vadd.f32 %v775, %v776
      %v778 = vrot.slane %v777, 2
      %v779 = vadd.f32 %v777, %v778
      %v780 = vrot.slane %v779, 1
      %v781 = vadd.f32 %v779, %v780
      %v782 = vmul.f32 %v774, %v774
      %v783 = vsel %vm761, %v782, 0.0
      %v784 = vrot.slane %v783, 4
      %v785 = vadd.f32 %v783, %v784
      %v786 = vrot.slane %v785, 2
      %v787 = vadd.f32 %v785, %v786
      %v788 = vrot.slane %v787, 1
      %v789 = vadd.f32 %v787, %v788
      %vm790 = vcmask 1040384
      %v791 = vsel %vm790, %v781, %v789
      %vm792 = vcmask 1041408
      %v793 = vsel %vm792, %v791, 0.0
      %vm794 = vcmask 523264
      %795 = vst.msk [vmem:[#allocation3] sm:$0xff] %vm794, %v793
      %796 = vst.msk [vmem:[%s3] sm:$0x3] %vm761, %v774
    $region21: #{_lambda_.24} parent=1 // pred_fallthru
      _
    // Predicated region
    $region22: #{_lambda_.24} parent=1 // pred_check
      _
    $region23: #{_lambda_.24} parent=1 // pred_check_branch
      %798 = sbr.rel (0) target = $region25
    $region24: #{_lambda_.24} parent=1 // pred_region
      _
    $region25: #{_lambda_.24} parent=1 // pred_fallthru
      _
    // Predicated region
    $region26: #{_lambda_.24} parent=1 // pred_check
      _
    $region27: #{_lambda_.24} parent=1 // pred_check_branch
      %800 = sbr.rel (0) target = $region29
    $region28: #{_lambda_.24} parent=1 // pred_region
      %s802 = ssub.s32 128, 128
      %803 = vsyncadd [#allocation4], %s802
      %s805 = sshll.u32 [#allocation3], 4
      %s806 = int_to_ptr.vmem [resolvable:$true] %s805
      %808 = dma.vmem_to_hbm [thread:$0]  %s806, 128, %s4, [#allocation4]
    $region29: #{_lambda_.24} parent=1 // pred_fallthru
      _
    // Predicated region
    $region30: #{_lambda_.24} parent=1 // pred_check
      _
    $region31: #{_lambda_.24} parent=1 // pred_check_branch
      %810 = sbr.rel (0) target = $region33
    $region32: #{_lambda_.24} parent=1 // pred_region
      _
    $region33: #{_lambda_.24} parent=1 // pred_fallthru
      _
    // Predicated region
    $region34: #{_lambda_.24} parent=1 // pred_check
      _
    $region35: #{_lambda_.24} parent=1 // pred_check_branch
      %812 = sbr.rel (0) target = $region37
    $region36: #{_lambda_.24} parent=1 // pred_region
      %813 = dma.done [#allocation4], 128
    $region37: #{_lambda_.24} parent=1 // pred_fallthru
      _
    %814 = vsyncpa [#allocation4], 1

// kernel: _lambda_.25
$region0: #{_lambda_.25}
  #allocation0 [shape = 'u32[]', space=smem, size = 0x4, offset = 0x4, fixed_abs, tag = 'smem constant byte address 0x4 - core index']
  #allocation1 [shape = 'u32[144,128]{1,0:T(1,128)}', space=vmem, size = 0x12000, scoped, tag = 'internal scratch']
  #allocation2 [shape = 'f32[2,64]{1,0:T(2,128)}', space=vmem, size = 0x400, scoped, tag = 'scratch operand']
  %s0 = inlined_call_operand.vmem [shape: bf16[4,2,256], index: 0, kind: input, shape index: {}]
  %s1 = inlined_call_operand.vmem [shape: bf16[4,256,64], index: 1, kind: input, shape index: {}]
  %s2 = inlined_call_operand.vmem [shape: f32[1,64], index: 2, kind: input, shape index: {}]
  %s3 = inlined_call_operand.vmem [shape: f32[4,2,64], index: 3, kind: output, shape index: {0}]
  %s4 = inlined_call_operand.vmem [shape: f32[4,1,8,64], index: 4, kind: output, shape index: {1}]
  %5 = xla_tuple %s3, %s4
  %s6 = sld [smem:[#allocation0]]
  $region61: #{_lambda_.25} parent=0
    _
  %s8 = ssub.s32 1, %s6
  %s9 = scalar_select 0, %s8, %s6
  loop: start=0, step=1, limit=6
  $region2: #{_lambda_.25} parent=0 // loop_pre_header
    _
  $region3: #{_lambda_.25} parent=0 // loop_header
    %s11 = sphi 0, %s15
    %p12 = scmp.ge.s32.totalorder %s11, 6
    %s18 = sphi 0, %s37
    %s19 = sphi 0, %s33
    %s20 = sphi 0, %s29
    %s21 = sphi 0, %s18
    %s22 = sphi 0, %s19
    %s23 = sphi 0, %s20
    %s24 = sphi 0, %s21
    %s25 = sphi 0, %s22
    %s26 = sphi 0, %s23
    %s44 = sphi 0, %s46
    %s47 = sphi 0, %s44
    %s48 = sphi 0, %s47
    %s64 = sphi 0, %s48
    %s72 = sphi 0, %s74
    %s75 = sphi 0, %s72
    %s76 = sphi 0, %s75
    %s92 = sphi 0, %s76
    %s96 = sphi 0, %s96
    %s98 = sphi 0, %s96
    %s99 = sphi 0, %s98
    %s113 = sphi 0, %s99
    %s121 = sphi 0, %s123
    %s124 = sphi 0, %s121
    %s125 = sphi 0, %s124
    %s141 = sphi 0, %s125
    %s149 = sphi 0, %s151
    %s152 = sphi 0, %s149
    %s153 = sphi 0, %s152
    %s169 = sphi 0, %s153
  $region4: #{_lambda_.25} parent=0 // loop_header_branch
    %14 = sbr.rel (%p12) target = $region8
  $region5: #{_lambda_.25} parent=0 // loop_body
    %s16 = ssub.s32 %s11, 1
    %s17 = ssub.s32 %s11, 2
    %s27 = sadd.s32 1, %s20
    %p28 = scmp.ge.s32.totalorder %s27, 1
    %s29 = scalar_select %p28, 0, %s27
    %s30 = sadd.s32 1, %s19
    %s31 = scalar_select %p28, %s30, %s19
    %p32 = scmp.ge.s32.totalorder %s31, 1
    %s33 = scalar_select %p32, 0, %s31
    %s34 = sadd.s32 1, %s18
    %s35 = scalar_select %p32, %s34, %s18
    %p36 = scmp.ge.s32.totalorder %s35, 4
    %s37 = scalar_select %p36, 0, %s35
    %s38 = ssub.s32 %s18, %s37
    %s39 = ssub.s32 %s19, %s33
    %s40 = sor.u32 %s38, %s39
    %s41 = ssub.s32 %s20, %s29
    %s42 = sor.u32 %s40, %s41
    %p43 = scmp.eq.s32.totalorder %s42, 0
    %s45 = sadd.s32 %s44, 1
    %s46 = scalar_select %p43, %s44, %s45
    %p49 = pneg %p43
    %p50 = scmp.eq.s32.totalorder %s11, 3
    %p51 = por %p49, %p50
    %p52 = scmp.ne.s32.totalorder %s44, %s47
    %p53 = scmp.eq.s32.totalorder %s11, 0
    %p54 = por %p52, %p53
    %p55 = scmp.ne.s32.totalorder %s44, %s47
    %p56 = scmp.eq.s32.totalorder %s16, 3
    %p57 = por %p55, %p56
    %p58 = scmp.ne.s32.totalorder %s47, %s48
    %p59 = scmp.eq.s32.totalorder %s16, 0
    %p60 = por %p58, %p59
    %p61 = scmp.ne.s32.totalorder %s47, %s48
    %p62 = scmp.eq.s32.totalorder %s17, 3
    %p63 = por %p61, %p62
    %p65 = scmp.ne.s32.totalorder %s48, %s64
    %p66 = scmp.eq.s32.totalorder %s17, 0
    %p67 = por %p65, %p66
    %s68 = ssub.s32 %s18, %s37
    %s69 = ssub.s32 %s20, %s29
    %s70 = sor.u32 %s68, %s69
    %p71 = scmp.eq.s32.totalorder %s70, 0
    %s73 = sadd.s32 %s72, 1
    %s74 = scalar_select %p71, %s72, %s73
    %p77 = pneg %p71
    %p78 = scmp.eq.s32.totalorder %s11, 3
    %p79 = por %p77, %p78
    %p80 = scmp.ne.s32.totalorder %s72, %s75
    %p81 = scmp.eq.s32.totalorder %s11, 0
    %p82 = por %p80, %p81
    %p83 = scmp.ne.s32.totalorder %s72, %s75
    %p84 = scmp.eq.s32.totalorder %s16, 3
    %p85 = por %p83, %p84
    %p86 = scmp.ne.s32.totalorder %s75, %s76
    %p87 = scmp.eq.s32.totalorder %s16, 0
    %p88 = por %p86, %p87
    %p89 = scmp.ne.s32.totalorder %s75, %s76
    %p90 = scmp.eq.s32.totalorder %s17, 3
    %p91 = por %p89, %p90
    %p93 = scmp.ne.s32.totalorder %s76, %s92
    %p94 = scmp.eq.s32.totalorder %s17, 0
    %p95 = por %p93, %p94
    %s97 = sadd.s32 %s96, 1
    %p100 = scmp.eq.s32.totalorder %s11, 3
    %p101 = scmp.ne.s32.totalorder %s96, %s98
    %p102 = scmp.eq.s32.totalorder %s11, 0
    %p103 = por %p101, %p102
    %p104 = scmp.ne.s32.totalorder %s96, %s98
    %p105 = scmp.eq.s32.totalorder %s16, 3
    %p106 = por %p104, %p105
    %p107 = scmp.ne.s32.totalorder %s98, %s99
    %p108 = scmp.eq.s32.totalorder %s16, 0
    %p109 = por %p107, %p108
    %p110 = scmp.ne.s32.totalorder %s98, %s99
    %p111 = scmp.eq.s32.totalorder %s17, 3
    %p112 = por %p110, %p111
    %p114 = scmp.ne.s32.totalorder %s99, %s113
    %p115 = scmp.eq.s32.totalorder %s17, 0
    %p116 = por %p114, %p115
    %s117 = ssub.s32 %s18, %s37
    %s118 = ssub.s32 %s19, %s33
    %s119 = sor.u32 %s117, %s118
    %p120 = scmp.eq.s32.totalorder %s119, 0
    %s122 = sadd.s32 %s121, 1
    %s123 = scalar_select %p120, %s121, %s122
    %p126 = pneg %p120
    %p127 = scmp.eq.s32.totalorder %s11, 3
    %p128 = por %p126, %p127
    %p129 = scmp.ne.s32.totalorder %s121, %s124
    %p130 = scmp.eq.s32.totalorder %s11, 0
    %p131 = por %p129, %p130
    %p132 = scmp.ne.s32.totalorder %s121, %s124
    %p133 = scmp.eq.s32.totalorder %s16, 3
    %p134 = por %p132, %p133
    %p135 = scmp.ne.s32.totalorder %s124, %s125
    %p136 = scmp.eq.s32.totalorder %s16, 0
    %p137 = por %p135, %p136
    %p138 = scmp.ne.s32.totalorder %s124, %s125
    %p139 = scmp.eq.s32.totalorder %s17, 3
    %p140 = por %p138, %p139
    %p142 = scmp.ne.s32.totalorder %s125, %s141
    %p143 = scmp.eq.s32.totalorder %s17, 0
    %p144 = por %p142, %p143
    %s145 = ssub.s32 %s18, %s37
    %s146 = ssub.s32 %s19, %s33
    %s147 = sor.u32 %s145, %s146
    %p148 = scmp.eq.s32.totalorder %s147, 0
    %s150 = sadd.s32 %s149, 1
    %s151 = scalar_select %p148, %s149, %s150
    %p154 = pneg %p148
    %p155 = scmp.eq.s32.totalorder %s11, 3
    %p156 = por %p154, %p155
    %p157 = scmp.ne.s32.totalorder %s149, %s152
    %p158 = scmp.eq.s32.totalorder %s11, 0
    %p159 = por %p157, %p158
    %p160 = scmp.ne.s32.totalorder %s149, %s152
    %p161 = scmp.eq.s32.totalorder %s16, 3
    %p162 = por %p160, %p161
    %p163 = scmp.ne.s32.totalorder %s152, %s153
    %p164 = scmp.eq.s32.totalorder %s16, 0
    %p165 = por %p163, %p164
    %p166 = scmp.ne.s32.totalorder %s152, %s153
    %p167 = scmp.eq.s32.totalorder %s17, 3
    %p168 = por %p166, %p167
    %p170 = scmp.ne.s32.totalorder %s153, %s169
    %p171 = scmp.eq.s32.totalorder %s17, 0
    %p172 = por %p170, %p171
    %p173 = scmp.le.s32.totalorder 1, %s11
    %p174 = scmp.lt.s32.totalorder %s11, 5
    %p175 = pnand %p173, %p174
    %p176 = pneg %p175
    // Predicated region
    $region9: #{_lambda_.25} parent=5 // pred_check
      _
    $region10: #{_lambda_.25} parent=5 // pred_check_branch
      %178 = sbr.rel (%p175) target = $region12
    $region11: #{_lambda_.25} parent=5 // pred_region
      %s179 = ssub.s32 %s11, 1
      // Predicated region
      $region13: #{_lambda_.25} parent=11 // pred_check
        %p180 = pneg %p109
      $region14: #{_lambda_.25} parent=11 // pred_check_branch
        %182 = sbr.rel (%p180) target = $region16
      $region15: #{_lambda_.25} parent=11 // pred_region
        _
      $region16: #{_lambda_.25} parent=11 // pred_fallthru
        _
    $region12: #{_lambda_.25} parent=5 // pred_fallthru
      _
    %p183 = scmp.lt.s32.totalorder %s11, 4
    // Predicated region
    $region17: #{_lambda_.25} parent=5 // pred_check
      %p184 = pneg %p183
    $region18: #{_lambda_.25} parent=5 // pred_check_branch
      %186 = sbr.rel (%p184) target = $region20
    $region19: #{_lambda_.25} parent=5 // pred_region
      // Predicated region
      $region21: #{_lambda_.25} parent=19 // pred_check
        %p187 = pneg %p54
      $region22: #{_lambda_.25} parent=19 // pred_check_branch
        %189 = sbr.rel (%p187) target = $region24
      $region23: #{_lambda_.25} parent=19 // pred_region
        %s190 = smul.u32 2, %s20
        %p191 = scmp.lt.s32.totalorder %s18, 3
        %s192 = scalar_select %p191, %s18, 3
        %p193 = scmp.lt.s32.totalorder %s19, 0
        %s194 = scalar_select %p193, %s19, 0
        %p195 = scmp.lt.s32.totalorder %s190, 1
        %s196 = scalar_select %p195, %s190, 1
        %s197 = smul.addr %s194, 2
        %s198 = sadd.s32 %s196, %s197
        %s199 = smul.addr %s192, 2
        %s200 = sadd.s32 %s198, %s199
        %s201 = scalar_lea.vmem %s0, %s200
        %s202 = smul.u32 2, %s20
      $region24: #{_lambda_.25} parent=19 // pred_fallthru
        _
      // Predicated region
      $region25: #{_lambda_.25} parent=19 // pred_check
        %p203 = pneg %p82
      $region26: #{_lambda_.25} parent=19 // pred_check_branch
        %205 = sbr.rel (%p203) target = $region28
      $region27: #{_lambda_.25} parent=19 // pred_region
        %s206 = smul.u32 32, %s20
        %p207 = scmp.lt.s32.totalorder %s18, 3
        %s208 = scalar_select %p207, %s18, 3
        %p209 = scmp.lt.s32.totalorder %s206, 31
        %s210 = scalar_select %p209, %s206, 31
        %s211 = smul.addr %s208, 32
        %s212 = sadd.s32 %s210, %s211
        %s213 = smul.addr %s212, 4
        %s214 = scalar_lea.vmem %s1, %s213
        %s215 = smul.u32 32, %s20
      $region28: #{_lambda_.25} parent=19 // pred_fallthru
        _
    $region20: #{_lambda_.25} parent=5 // pred_fallthru
      _
    %p216 = scmp.le.s32.totalorder 1, %s11
    %p217 = scmp.lt.s32.totalorder %s11, 5
    %p218 = pnand %p216, %p217
    %p219 = pneg %p218
    // Predicated region
    $region29: #{_lambda_.25} parent=5 // pred_check
      _
    $region30: #{_lambda_.25} parent=5 // pred_check_branch
      %221 = sbr.rel (%p218) target = $region32
    $region31: #{_lambda_.25} parent=5 // pred_region
      %s222 = ssub.s32 %s11, 1
      %s223 = smul.u32 2, %s23
      %p224 = scmp.lt.s32.totalorder %s21, 3
      %s225 = scalar_select %p224, %s21, 3
      %p226 = scmp.lt.s32.totalorder %s22, 0
      %s227 = scalar_select %p226, %s22, 0
      %p228 = scmp.lt.s32.totalorder %s223, 1
      %s229 = scalar_select %p228, %s223, 1
      %s230 = smul.addr %s227, 2
      %s231 = sadd.s32 %s229, %s230
      %s232 = smul.addr %s225, 2
      %s233 = sadd.s32 %s231, %s232
      %s234 = scalar_lea.vmem %s0, %s233
      %p235 = pneg %p60
      %p236 = pneg %p57
      %s237 = smul.u32 32, %s23
      %p238 = scmp.lt.s32.totalorder %s21, 3
      %s239 = scalar_select %p238, %s21, 3
      %p240 = scmp.lt.s32.totalorder %s237, 31
      %s241 = scalar_select %p240, %s237, 31
      %s242 = smul.addr %s239, 32
      %s243 = sadd.s32 %s241, %s242
      %s244 = smul.addr %s243, 4
      %s245 = scalar_lea.vmem %s1, %s244
      %p246 = pneg %p88
      %p247 = pneg %p85
      %p248 = pneg %p109
      %p249 = pneg %p106
      %p250 = pneg %p137
      %p251 = pneg %p134
      %p252 = scmp.lt.s32.totalorder %s21, 3
      %s253 = scalar_select %p252, %s21, 3
      %p254 = scmp.lt.s32.totalorder %s22, 0
      %s255 = scalar_select %p254, %s22, 0
      %s256 = sadd.s32 %s255, %s253
      %s257 = smul.addr %s256, 2
      %s258 = scalar_lea.vmem %s3, %s257
      %p259 = pneg %p165
      %p260 = pneg %p162
      %p261 = scmp.lt.s32.totalorder %s21, 3
      %s262 = scalar_select %p261, %s21, 3
      %p263 = scmp.lt.s32.totalorder %s22, 0
      %s264 = scalar_select %p263, %s22, 0
      %s265 = sadd.s32 %s264, %s262
      %s266 = smul.addr %s265, 8
      %s267 = scalar_lea.vmem %s4, %s266
      %s268 = smul.u32 2, %s23
      %p269 = scmp.lt.s32.totalorder %s21, 3
      %s270 = scalar_select %p269, %s21, 3
      %p271 = scmp.lt.s32.totalorder %s22, 0
      %s272 = scalar_select %p271, %s22, 0
      %p273 = scmp.lt.s32.totalorder %s268, 1
      %s274 = scalar_select %p273, %s268, 1
      %s275 = smul.addr %s272, 2
      %s276 = sadd.s32 %s274, %s275
      %s277 = smul.addr %s270, 2
      %s278 = sadd.s32 %s276, %s277
      %s279 = scalar_lea.vmem %s0, %s278
      %s280 = smul.u32 2, %s23
      %s281 = smul.u32 32, %s23
      %p282 = scmp.lt.s32.totalorder %s21, 3
      %s283 = scalar_select %p282, %s21, 3
      %p284 = scmp.lt.s32.totalorder %s281, 31
      %s285 = scalar_select %p284, %s281, 31
      %s286 = smul.addr %s283, 32
      %s287 = sadd.s32 %s285, %s286
      %s288 = smul.addr %s287, 4
      %s289 = scalar_lea.vmem %s1, %s288
      %s290 = smul.u32 32, %s23
      %p291 = scmp.lt.s32.totalorder %s21, 3
      %s292 = scalar_select %p291, %s21, 3
      %p293 = scmp.lt.s32.totalorder %s22, 0
      %s294 = scalar_select %p293, %s22, 0
      %s295 = sadd.s32 %s294, %s292
      %s296 = smul.addr %s295, 2
      %s297 = scalar_lea.vmem %s3, %s296
      %p298 = scmp.lt.s32.totalorder %s21, 3
      %s299 = scalar_select %p298, %s21, 3
      %p300 = scmp.lt.s32.totalorder %s22, 0
      %s301 = scalar_select %p300, %s22, 0
      %s302 = sadd.s32 %s301, %s299
      %s303 = smul.addr %s302, 8
      %s304 = scalar_lea.vmem %s4, %s303
      %p306 = scmp.eq.s32.totalorder %s23, 0
      // Predicated region
      $region33: #{_lambda_.25} parent=31 // pred_check
        %p307 = pneg %p306
      $region34: #{_lambda_.25} parent=31 // pred_check_branch
        %309 = sbr.rel (%p307) target = $region36
      $region35: #{_lambda_.25} parent=31 // pred_region
        %vm310 = vcmask 517120
        %311 = vst.msk [vmem:[#allocation2] sm:$0x3] %vm310, 0.0
      $region36: #{_lambda_.25} parent=31 // pred_fallthru
        _
      %v312 = vld [vmem:[%s279] sm:$0x3]
      %v313 = vmax.bf16 %v312, 0
      %v314 = vld [vmem:[#allocation2] sm:$0x3]
      %v315 = vld [vmem:[%s289] sm:$0xf]
      %v316 = vld [vmem:[%s289 + $0x4] sm:$0xf]
      %v317 = vld [vmem:[%s289 + $0x8] sm:$0xf]
      %v318 = vld [vmem:[%s289 + $0xc] sm:$0xf]
      %v319 = vld [vmem:[%s289 + $0x10] sm:$0xf]
      %v320 = vld [vmem:[%s289 + $0x14] sm:$0xf]
      %v321 = vld [vmem:[%s289 + $0x18] sm:$0xf]
      %v322 = vld [vmem:[%s289 + $0x1c] sm:$0xf]
      %v323 = vld [vmem:[%s289 + $0x20] sm:$0xf]
      %v324 = vld [vmem:[%s289 + $0x24] sm:$0xf]
      %v325 = vld [vmem:[%s289 + $0x28] sm:$0xf]
      %v326 = vld [vmem:[%s289 + $0x2c] sm:$0xf]
      %v327 = vld [vmem:[%s289 + $0x30] sm:$0xf]
      %v328 = vld [vmem:[%s289 + $0x34] sm:$0xf]
      %v329 = vld [vmem:[%s289 + $0x38] sm:$0xf]
      %v330 = vld [vmem:[%s289 + $0x3c] sm:$0xf]
      %v331 = vld [vmem:[%s289 + $0x40] sm:$0xf]
      %v332 = vld [vmem:[%s289 + $0x44] sm:$0xf]
      %v333 = vld [vmem:[%s289 + $0x48] sm:$0xf]
      %v334 = vld [vmem:[%s289 + $0x4c] sm:$0xf]
      %v335 = vld [vmem:[%s289 + $0x50] sm:$0xf]
      %v336 = vld [vmem:[%s289 + $0x54] sm:$0xf]
      %v337 = vld [vmem:[%s289 + $0x58] sm:$0xf]
      %v338 = vld [vmem:[%s289 + $0x5c] sm:$0xf]
      %v339 = vld [vmem:[%s289 + $0x60] sm:$0xf]
      %v340 = vld [vmem:[%s289 + $0x64] sm:$0xf]
      %v341 = vld [vmem:[%s289 + $0x68] sm:$0xf]
      %v342 = vld [vmem:[%s289 + $0x6c] sm:$0xf]
      %v343 = vld [vmem:[%s289 + $0x70] sm:$0xf]
      %v344 = vld [vmem:[%s289 + $0x74] sm:$0xf]
      %v345 = vld [vmem:[%s289 + $0x78] sm:$0xf]
      %v346 = vld [vmem:[%s289 + $0x7c] sm:$0xf]
      %v349 = vunpack.c.l.s4 1966171168
      %v350 = vunpack.c.0.s8 %v349
      %v351 = vlaneseq
      %v352 = vshrl.u32 %v351, 7
      %v353 = vsub.s32 %v350, %v352
      %v354 = vrot.slane %v313, %v353
      %v355 = vcombine.high %v354, %v354
      %v357 = vunpack.c.l.s4 1966171168
      %v358 = vunpack.c.0.s8 %v357
      %v359 = vlaneseq
      %v360 = vshrl.u32 %v359, 7
      %v361 = vsub.s32 %v358, %v360
      %v362 = vrot.slane %v354, %v361
      %v364 = vunpack.c.l.s4 1966171168
      %v365 = vunpack.c.0.s8 %v364
      %v366 = vlaneseq
      %v367 = vshrl.u32 %v366, 7
      %v368 = vsub.s32 %v365, %v367
      %v369 = vrot.slane %v355, %v368
      %v404 = vunpack.c.l.b16 %v315
      %v405 = vunpack.c.l.b16 %v316
      %v406 = vunpack.c.l.b16 %v317
      %v407 = vunpack.c.l.b16 %v318
      %v408 = vunpack.c.l.b16 %v319
      %v409 = vunpack.c.l.b16 %v320
      %v410 = vunpack.c.l.b16 %v321
      %v411 = vunpack.c.l.b16 %v322
      %v412 = vunpack.c.l.b16 %v323
      %v413 = vunpack.c.l.b16 %v324
      %v414 = vunpack.c.l.b16 %v325
      %v415 = vunpack.c.l.b16 %v326
      %v416 = vunpack.c.l.b16 %v327
      %v417 = vunpack.c.l.b16 %v328
      %v418 = vunpack.c.l.b16 %v329
      %v419 = vunpack.c.l.b16 %v330
      %v420 = vunpack.c.l.b16 %v331
      %v421 = vunpack.c.l.b16 %v332
      %v422 = vunpack.c.l.b16 %v333
      %v423 = vunpack.c.l.b16 %v334
      %v424 = vunpack.c.l.b16 %v335
      %v425 = vunpack.c.l.b16 %v336
      %v426 = vunpack.c.l.b16 %v337
      %v427 = vunpack.c.l.b16 %v338
      %v428 = vunpack.c.l.b16 %v339
      %v429 = vunpack.c.l.b16 %v340
      %v430 = vunpack.c.l.b16 %v341
      %v431 = vunpack.c.l.b16 %v342
      %v432 = vunpack.c.l.b16 %v343
      %v433 = vunpack.c.l.b16 %v344
      %v434 = vunpack.c.l.b16 %v345
      %v435 = vunpack.c.l.b16 %v346
      %v436 = vpack.c.b16 %v405, %v404
      %v437 = vpack.c.b16 %v407, %v406
      %v438 = vpack.c.b16 %v409, %v408
      %v439 = vpack.c.b16 %v411, %v410
      %v440 = vpack.c.b16 %v413, %v412
      %v441 = vpack.c.b16 %v415, %v414
      %v442 = vpack.c.b16 %v417, %v416
      %v443 = vpack.c.b16 %v419, %v418
      %v444 = vpack.c.b16 %v421, %v420
      %v445 = vpack.c.b16 %v423, %v422
      %v446 = vpack.c.b16 %v425, %v424
      %v447 = vpack.c.b16 %v427, %v426
      %v448 = vpack.c.b16 %v429, %v428
      %v449 = vpack.c.b16 %v431, %v430
      %v450 = vpack.c.b16 %v433, %v432
      %v451 = vpack.c.b16 %v435, %v434
      %468 = vmatprep.subr.bf16.mxu0 0
      %469 = vmatpush1.bf16.msra.mxu0 %v443
      %470 = vmatprep.subr.bf16.mxu0 0
      %471 = vmatpush1.bf16.msra.mxu0 %v442
      %472 = vmatprep.subr.bf16.mxu0 0
      %473 = vmatpush1.bf16.msra.mxu0 %v441
      %474 = vmatprep.subr.bf16.mxu0 0
      %475 = vmatpush1.bf16.msra.mxu0 %v440
      %476 = vmatprep.subr.bf16.mxu0 0
      %477 = vmatpush1.bf16.msra.mxu0 %v439
      %478 = vmatprep.subr.bf16.mxu0 0
      %479 = vmatpush1.bf16.msra.mxu0 %v438
      %480 = vmatprep.subr.bf16.mxu0 0
      %481 = vmatpush1.bf16.msra.mxu0 %v437
      %482 = vmatprep.subr.bf16.mxu0 0
      %483 = vmatpush1.bf16.msra.mxu0 %v436
      %484 = vmatprep.subr.bf16.mxu0 0
      %485 = vmatpush2.bf16.msra.mxu0 %v451
      %486 = vmatprep.subr.bf16.mxu0 0
      %487 = vmatpush2.bf16.msra.mxu0 %v450
      %488 = vmatprep.subr.bf16.mxu0 0
      %489 = vmatpush2.bf16.msra.mxu0 %v449
      %490 = vmatprep.subr.bf16.mxu0 0
      %491 = vmatpush2.bf16.msra.mxu0 %v448
      %492 = vmatprep.subr.bf16.mxu0 0
      %493 = vmatpush2.bf16.msra.mxu0 %v447
      %494 = vmatprep.subr.bf16.mxu0 0
      %495 = vmatpush2.bf16.msra.mxu0 %v446
      %496 = vmatprep.subr.bf16.mxu0 0
      %497 = vmatpush2.bf16.msra.mxu0 %v445
      %498 = vmatprep.subr.bf16.mxu0 0
      %499 = vmatpush2.bf16.msra.mxu0 %v444
      %500 = vmatprep.mubr.bf16.mxu0 %v369
      %501 = vmatmul.mubr.bf16.gmra.mxu0 %v362
      %v502 = vpop.f32.mrf.mxu0
      %v503 = vadd.f32 0.0, %v502
      %v504 = vpop.f32.mrf.mxu0
      %v505 = vpop.f32.mrf.mxu0
      %v506 = vpop.f32.mrf.mxu0
      %507 = vdwg.mxu0
      %v508 = vadd.f32 %v314, %v503
      %vm509 = vcmask 517120
      %510 = vst.msk [vmem:[#allocation2] sm:$0x3] %vm509, %v508
      // Predicated region
      $region37: #{_lambda_.25} parent=31 // pred_check
        %p511 = pneg %p306
      $region38: #{_lambda_.25} parent=31 // pred_check_branch
        %513 = sbr.rel (%p511) target = $region40
      $region39: #{_lambda_.25} parent=31 // pred_region
        %v514 = vld [vmem:[#allocation2] sm:$0x3]
        %v515 = vld [vmem:[%s2] sm:$0x1]
        %v517 = vlaneseq
        %v518 = vshrl.u32 %v517, 7
        %v519 = vsub.s32 0, %v518
        %v520 = vrot.slane %v515, %v519
        %v522 = vadd.f32 %v514, %v520
        %v523 = vsel %vm509, %v522, 0.0
        %v524 = vrot.slane %v523, 4
        %v525 = vadd.f32 %v523, %v524
        %v526 = vrot.slane %v525, 2
        %v527 = vadd.f32 %v525, %v526
        %v528 = vrot.slane %v527, 1
        %v529 = vadd.f32 %v527, %v528
        %v530 = vmul.f32 %v522, %v522
        %v531 = vsel %vm509, %v530, 0.0
        %v532 = vrot.slane %v531, 4
        %v533 = vadd.f32 %v531, %v532
        %v534 = vrot.slane %v533, 2
        %v535 = vadd.f32 %v533, %v534
        %v536 = vrot.slane %v535, 1
        %v537 = vadd.f32 %v535, %v536
        %vm538 = vcmask 1040384
        %v539 = vsel %vm538, %v529, %v537
        %vm540 = vcmask 1041408
        %v541 = vsel %vm540, %v539, 0.0
        %vm542 = vcmask 523264
        %543 = vst.msk [vmem:[%s304] sm:$0xff] %vm542, %v541
        %544 = vst.msk [vmem:[%s297] sm:$0x3] %vm509, %v522
      $region40: #{_lambda_.25} parent=31 // pred_fallthru
        _
      %p545 = scmp.lt.s32.totalorder %s21, 3
      %s546 = scalar_select %p545, %s21, 3
      %p547 = scmp.lt.s32.totalorder %s22, 0
      %s548 = scalar_select %p547, %s22, 0
      %s549 = sadd.s32 %s548, %s546
      %s550 = smul.addr %s549, 2
      %s551 = scalar_lea.vmem %s3, %s550
      %p552 = scmp.lt.s32.totalorder %s21, 3
      %s553 = scalar_select %p552, %s21, 3
      %p554 = scmp.lt.s32.totalorder %s22, 0
      %s555 = scalar_select %p554, %s22, 0
      %s556 = sadd.s32 %s555, %s553
      %s557 = smul.addr %s556, 8
      %s558 = scalar_lea.vmem %s4, %s557
      // Predicated region
      $region41: #{_lambda_.25} parent=31 // pred_check
        %p559 = pneg %p134
      $region42: #{_lambda_.25} parent=31 // pred_check_branch
        %561 = sbr.rel (%p559) target = $region44
      $region43: #{_lambda_.25} parent=31 // pred_region
        _
      $region44: #{_lambda_.25} parent=31 // pred_fallthru
        _
      // Predicated region
      $region45: #{_lambda_.25} parent=31 // pred_check
        %p562 = pneg %p162
      $region46: #{_lambda_.25} parent=31 // pred_check_branch
        %564 = sbr.rel (%p562) target = $region48
      $region47: #{_lambda_.25} parent=31 // pred_region
        _
      $region48: #{_lambda_.25} parent=31 // pred_fallthru
        _
    $region32: #{_lambda_.25} parent=5 // pred_fallthru
      _
    %p565 = scmp.le.s32.totalorder 2, %s11
    // Predicated region
    $region49: #{_lambda_.25} parent=5 // pred_check
      %p566 = pneg %p565
    $region50: #{_lambda_.25} parent=5 // pred_check_branch
      %568 = sbr.rel (%p566) target = $region52
    $region51: #{_lambda_.25} parent=5 // pred_region
      %s569 = ssub.s32 %s11, 2
      // Predicated region
      $region53: #{_lambda_.25} parent=51 // pred_check
        %p570 = pneg %p140
      $region54: #{_lambda_.25} parent=51 // pred_check_branch
        %572 = sbr.rel (%p570) target = $region56
      $region55: #{_lambda_.25} parent=51 // pred_region
        %p573 = scmp.lt.s32.totalorder %s24, 3
        %s574 = scalar_select %p573, %s24, 3
        %p575 = scmp.lt.s32.totalorder %s25, 0
        %s576 = scalar_select %p575, %s25, 0
        %s577 = sadd.s32 %s576, %s574
        %s578 = smul.addr %s577, 2
        %s579 = scalar_lea.vmem %s3, %s578
      $region56: #{_lambda_.25} parent=51 // pred_fallthru
        _
      // Predicated region
      $region57: #{_lambda_.25} parent=51 // pred_check
        %p580 = pneg %p168
      $region58: #{_lambda_.25} parent=51 // pred_check_branch
        %582 = sbr.rel (%p580) target = $region60
      $region59: #{_lambda_.25} parent=51 // pred_region
        %p583 = scmp.lt.s32.totalorder %s24, 3
        %s584 = scalar_select %p583, %s24, 3
        %p585 = scmp.lt.s32.totalorder %s25, 0
        %s586 = scalar_select %p585, %s25, 0
        %s587 = sadd.s32 %s586, %s584
        %s588 = smul.addr %s587, 8
        %s589 = scalar_lea.vmem %s4, %s588
      $region60: #{_lambda_.25} parent=51 // pred_fallthru
        _
    $region52: #{_lambda_.25} parent=5 // pred_fallthru
      _
  $region6: #{_lambda_.25} parent=0 // loop_footer
    %s15 = sadd.s32 1, %s11
  $region7: #{_lambda_.25} parent=0 // loop_footer_branch
    %10 = sbr.rel target = $region3
  $region8: #{_lambda_.25} parent=0 // loop_exit
    _

// kernel: _lambda_.27
$region0: #{_lambda_.27}
  #allocation0 [shape = 'u32[]', space=smem, size = 0x4, offset = 0x4, fixed_abs, tag = 'smem constant byte address 0x4 - core index']
  #allocation1 [shape = 'u32[144,128]{1,0:T(1,128)}', space=vmem, size = 0x12000, scoped, tag = 'internal scratch']
  #allocation2 [shape = 'f32[8,32]{1,0:T(8,128)}', space=vmem, size = 0x1000, scoped, tag = 'scratch operand']
  %s0 = inlined_call_operand.vmem [shape: bf16[4,8,512], index: 0, kind: input, shape index: {}]
  %s1 = inlined_call_operand.vmem [shape: bf16[4,512,32], index: 1, kind: input, shape index: {}]
  %s2 = inlined_call_operand.vmem [shape: f32[1,32], index: 2, kind: input, shape index: {}]
  %s3 = inlined_call_operand.vmem [shape: f32[4,8,32], index: 3, kind: output, shape index: {0}]
  %s4 = inlined_call_operand.vmem [shape: f32[4,1,8,32], index: 4, kind: output, shape index: {1}]
  %5 = xla_tuple %s3, %s4
  %s6 = sld [smem:[#allocation0]]
  $region61: #{_lambda_.27} parent=0
    _
  %s8 = ssub.s32 1, %s6
  %s9 = scalar_select 0, %s8, %s6
  loop: start=0, step=1, limit=6
  $region2: #{_lambda_.27} parent=0 // loop_pre_header
    _
  $region3: #{_lambda_.27} parent=0 // loop_header
    %s11 = sphi 0, %s15
    %p12 = scmp.ge.s32.totalorder %s11, 6
    %s18 = sphi 0, %s37
    %s19 = sphi 0, %s33
    %s20 = sphi 0, %s29
    %s21 = sphi 0, %s18
    %s22 = sphi 0, %s19
    %s23 = sphi 0, %s20
    %s24 = sphi 0, %s21
    %s25 = sphi 0, %s22
    %s26 = sphi 0, %s23
    %s44 = sphi 0, %s46
    %s47 = sphi 0, %s44
    %s48 = sphi 0, %s47
    %s64 = sphi 0, %s48
    %s72 = sphi 0, %s74
    %s75 = sphi 0, %s72
    %s76 = sphi 0, %s75
    %s92 = sphi 0, %s76
    %s96 = sphi 0, %s96
    %s98 = sphi 0, %s96
    %s99 = sphi 0, %s98
    %s113 = sphi 0, %s99
    %s121 = sphi 0, %s123
    %s124 = sphi 0, %s121
    %s125 = sphi 0, %s124
    %s141 = sphi 0, %s125
    %s149 = sphi 0, %s151
    %s152 = sphi 0, %s149
    %s153 = sphi 0, %s152
    %s169 = sphi 0, %s153
  $region4: #{_lambda_.27} parent=0 // loop_header_branch
    %14 = sbr.rel (%p12) target = $region8
  $region5: #{_lambda_.27} parent=0 // loop_body
    %s16 = ssub.s32 %s11, 1
    %s17 = ssub.s32 %s11, 2
    %s27 = sadd.s32 1, %s20
    %p28 = scmp.ge.s32.totalorder %s27, 1
    %s29 = scalar_select %p28, 0, %s27
    %s30 = sadd.s32 1, %s19
    %s31 = scalar_select %p28, %s30, %s19
    %p32 = scmp.ge.s32.totalorder %s31, 1
    %s33 = scalar_select %p32, 0, %s31
    %s34 = sadd.s32 1, %s18
    %s35 = scalar_select %p32, %s34, %s18
    %p36 = scmp.ge.s32.totalorder %s35, 4
    %s37 = scalar_select %p36, 0, %s35
    %s38 = ssub.s32 %s18, %s37
    %s39 = ssub.s32 %s19, %s33
    %s40 = sor.u32 %s38, %s39
    %s41 = ssub.s32 %s20, %s29
    %s42 = sor.u32 %s40, %s41
    %p43 = scmp.eq.s32.totalorder %s42, 0
    %s45 = sadd.s32 %s44, 1
    %s46 = scalar_select %p43, %s44, %s45
    %p49 = pneg %p43
    %p50 = scmp.eq.s32.totalorder %s11, 3
    %p51 = por %p49, %p50
    %p52 = scmp.ne.s32.totalorder %s44, %s47
    %p53 = scmp.eq.s32.totalorder %s11, 0
    %p54 = por %p52, %p53
    %p55 = scmp.ne.s32.totalorder %s44, %s47
    %p56 = scmp.eq.s32.totalorder %s16, 3
    %p57 = por %p55, %p56
    %p58 = scmp.ne.s32.totalorder %s47, %s48
    %p59 = scmp.eq.s32.totalorder %s16, 0
    %p60 = por %p58, %p59
    %p61 = scmp.ne.s32.totalorder %s47, %s48
    %p62 = scmp.eq.s32.totalorder %s17, 3
    %p63 = por %p61, %p62
    %p65 = scmp.ne.s32.totalorder %s48, %s64
    %p66 = scmp.eq.s32.totalorder %s17, 0
    %p67 = por %p65, %p66
    %s68 = ssub.s32 %s18, %s37
    %s69 = ssub.s32 %s20, %s29
    %s70 = sor.u32 %s68, %s69
    %p71 = scmp.eq.s32.totalorder %s70, 0
    %s73 = sadd.s32 %s72, 1
    %s74 = scalar_select %p71, %s72, %s73
    %p77 = pneg %p71
    %p78 = scmp.eq.s32.totalorder %s11, 3
    %p79 = por %p77, %p78
    %p80 = scmp.ne.s32.totalorder %s72, %s75
    %p81 = scmp.eq.s32.totalorder %s11, 0
    %p82 = por %p80, %p81
    %p83 = scmp.ne.s32.totalorder %s72, %s75
    %p84 = scmp.eq.s32.totalorder %s16, 3
    %p85 = por %p83, %p84
    %p86 = scmp.ne.s32.totalorder %s75, %s76
    %p87 = scmp.eq.s32.totalorder %s16, 0
    %p88 = por %p86, %p87
    %p89 = scmp.ne.s32.totalorder %s75, %s76
    %p90 = scmp.eq.s32.totalorder %s17, 3
    %p91 = por %p89, %p90
    %p93 = scmp.ne.s32.totalorder %s76, %s92
    %p94 = scmp.eq.s32.totalorder %s17, 0
    %p95 = por %p93, %p94
    %s97 = sadd.s32 %s96, 1
    %p100 = scmp.eq.s32.totalorder %s11, 3
    %p101 = scmp.ne.s32.totalorder %s96, %s98
    %p102 = scmp.eq.s32.totalorder %s11, 0
    %p103 = por %p101, %p102
    %p104 = scmp.ne.s32.totalorder %s96, %s98
    %p105 = scmp.eq.s32.totalorder %s16, 3
    %p106 = por %p104, %p105
    %p107 = scmp.ne.s32.totalorder %s98, %s99
    %p108 = scmp.eq.s32.totalorder %s16, 0
    %p109 = por %p107, %p108
    %p110 = scmp.ne.s32.totalorder %s98, %s99
    %p111 = scmp.eq.s32.totalorder %s17, 3
    %p112 = por %p110, %p111
    %p114 = scmp.ne.s32.totalorder %s99, %s113
    %p115 = scmp.eq.s32.totalorder %s17, 0
    %p116 = por %p114, %p115
    %s117 = ssub.s32 %s18, %s37
    %s118 = ssub.s32 %s19, %s33
    %s119 = sor.u32 %s117, %s118
    %p120 = scmp.eq.s32.totalorder %s119, 0
    %s122 = sadd.s32 %s121, 1
    %s123 = scalar_select %p120, %s121, %s122
    %p126 = pneg %p120
    %p127 = scmp.eq.s32.totalorder %s11, 3
    %p128 = por %p126, %p127
    %p129 = scmp.ne.s32.totalorder %s121, %s124
    %p130 = scmp.eq.s32.totalorder %s11, 0
    %p131 = por %p129, %p130
    %p132 = scmp.ne.s32.totalorder %s121, %s124
    %p133 = scmp.eq.s32.totalorder %s16, 3
    %p134 = por %p132, %p133
    %p135 = scmp.ne.s32.totalorder %s124, %s125
    %p136 = scmp.eq.s32.totalorder %s16, 0
    %p137 = por %p135, %p136
    %p138 = scmp.ne.s32.totalorder %s124, %s125
    %p139 = scmp.eq.s32.totalorder %s17, 3
    %p140 = por %p138, %p139
    %p142 = scmp.ne.s32.totalorder %s125, %s141
    %p143 = scmp.eq.s32.totalorder %s17, 0
    %p144 = por %p142, %p143
    %s145 = ssub.s32 %s18, %s37
    %s146 = ssub.s32 %s19, %s33
    %s147 = sor.u32 %s145, %s146
    %p148 = scmp.eq.s32.totalorder %s147, 0
    %s150 = sadd.s32 %s149, 1
    %s151 = scalar_select %p148, %s149, %s150
    %p154 = pneg %p148
    %p155 = scmp.eq.s32.totalorder %s11, 3
    %p156 = por %p154, %p155
    %p157 = scmp.ne.s32.totalorder %s149, %s152
    %p158 = scmp.eq.s32.totalorder %s11, 0
    %p159 = por %p157, %p158
    %p160 = scmp.ne.s32.totalorder %s149, %s152
    %p161 = scmp.eq.s32.totalorder %s16, 3
    %p162 = por %p160, %p161
    %p163 = scmp.ne.s32.totalorder %s152, %s153
    %p164 = scmp.eq.s32.totalorder %s16, 0
    %p165 = por %p163, %p164
    %p166 = scmp.ne.s32.totalorder %s152, %s153
    %p167 = scmp.eq.s32.totalorder %s17, 3
    %p168 = por %p166, %p167
    %p170 = scmp.ne.s32.totalorder %s153, %s169
    %p171 = scmp.eq.s32.totalorder %s17, 0
    %p172 = por %p170, %p171
    %p173 = scmp.le.s32.totalorder 1, %s11
    %p174 = scmp.lt.s32.totalorder %s11, 5
    %p175 = pnand %p173, %p174
    %p176 = pneg %p175
    // Predicated region
    $region9: #{_lambda_.27} parent=5 // pred_check
      _
    $region10: #{_lambda_.27} parent=5 // pred_check_branch
      %178 = sbr.rel (%p175) target = $region12
    $region11: #{_lambda_.27} parent=5 // pred_region
      %s179 = ssub.s32 %s11, 1
      // Predicated region
      $region13: #{_lambda_.27} parent=11 // pred_check
        %p180 = pneg %p109
      $region14: #{_lambda_.27} parent=11 // pred_check_branch
        %182 = sbr.rel (%p180) target = $region16
      $region15: #{_lambda_.27} parent=11 // pred_region
        _
      $region16: #{_lambda_.27} parent=11 // pred_fallthru
        _
    $region12: #{_lambda_.27} parent=5 // pred_fallthru
      _
    %p183 = scmp.lt.s32.totalorder %s11, 4
    // Predicated region
    $region17: #{_lambda_.27} parent=5 // pred_check
      %p184 = pneg %p183
    $region18: #{_lambda_.27} parent=5 // pred_check_branch
      %186 = sbr.rel (%p184) target = $region20
    $region19: #{_lambda_.27} parent=5 // pred_region
      // Predicated region
      $region21: #{_lambda_.27} parent=19 // pred_check
        %p187 = pneg %p54
      $region22: #{_lambda_.27} parent=19 // pred_check_branch
        %189 = sbr.rel (%p187) target = $region24
      $region23: #{_lambda_.27} parent=19 // pred_region
        %s190 = smul.u32 4, %s20
        %p191 = scmp.lt.s32.totalorder %s18, 3
        %s192 = scalar_select %p191, %s18, 3
        %p193 = scmp.lt.s32.totalorder %s19, 0
        %s194 = scalar_select %p193, %s19, 0
        %p195 = scmp.lt.s32.totalorder %s190, 3
        %s196 = scalar_select %p195, %s190, 3
        %s197 = smul.addr %s194, 4
        %s198 = sadd.s32 %s196, %s197
        %s199 = smul.addr %s192, 4
        %s200 = sadd.s32 %s198, %s199
        %s201 = smul.addr %s200, 4
        %s202 = scalar_lea.vmem %s0, %s201
        %s203 = smul.u32 4, %s20
      $region24: #{_lambda_.27} parent=19 // pred_fallthru
        _
      // Predicated region
      $region25: #{_lambda_.27} parent=19 // pred_check
        %p204 = pneg %p82
      $region26: #{_lambda_.27} parent=19 // pred_check_branch
        %206 = sbr.rel (%p204) target = $region28
      $region27: #{_lambda_.27} parent=19 // pred_region
        %s207 = smul.u32 64, %s20
        %p208 = scmp.lt.s32.totalorder %s18, 3
        %s209 = scalar_select %p208, %s18, 3
        %p210 = scmp.lt.s32.totalorder %s207, 63
        %s211 = scalar_select %p210, %s207, 63
        %s212 = smul.addr %s209, 64
        %s213 = sadd.s32 %s211, %s212
        %s214 = smul.addr %s213, 4
        %s215 = scalar_lea.vmem %s1, %s214
        %s216 = smul.u32 64, %s20
      $region28: #{_lambda_.27} parent=19 // pred_fallthru
        _
    $region20: #{_lambda_.27} parent=5 // pred_fallthru
      _
    %p217 = scmp.le.s32.totalorder 1, %s11
    %p218 = scmp.lt.s32.totalorder %s11, 5
    %p219 = pnand %p217, %p218
    %p220 = pneg %p219
    // Predicated region
    $region29: #{_lambda_.27} parent=5 // pred_check
      _
    $region30: #{_lambda_.27} parent=5 // pred_check_branch
      %222 = sbr.rel (%p219) target = $region32
    $region31: #{_lambda_.27} parent=5 // pred_region
      %s223 = ssub.s32 %s11, 1
      %s224 = smul.u32 4, %s23
      %p225 = scmp.lt.s32.totalorder %s21, 3
      %s226 = scalar_select %p225, %s21, 3
      %p227 = scmp.lt.s32.totalorder %s22, 0
      %s228 = scalar_select %p227, %s22, 0
      %p229 = scmp.lt.s32.totalorder %s224, 3
      %s230 = scalar_select %p229, %s224, 3
      %s231 = smul.addr %s228, 4
      %s232 = sadd.s32 %s230, %s231
      %s233 = smul.addr %s226, 4
      %s234 = sadd.s32 %s232, %s233
      %s235 = smul.addr %s234, 4
      %s236 = scalar_lea.vmem %s0, %s235
      %p237 = pneg %p60
      %p238 = pneg %p57
      %s239 = smul.u32 64, %s23
      %p240 = scmp.lt.s32.totalorder %s21, 3
      %s241 = scalar_select %p240, %s21, 3
      %p242 = scmp.lt.s32.totalorder %s239, 63
      %s243 = scalar_select %p242, %s239, 63
      %s244 = smul.addr %s241, 64
      %s245 = sadd.s32 %s243, %s244
      %s246 = smul.addr %s245, 4
      %s247 = scalar_lea.vmem %s1, %s246
      %p248 = pneg %p88
      %p249 = pneg %p85
      %p250 = pneg %p109
      %p251 = pneg %p106
      %p252 = pneg %p137
      %p253 = pneg %p134
      %p254 = scmp.lt.s32.totalorder %s21, 3
      %s255 = scalar_select %p254, %s21, 3
      %p256 = scmp.lt.s32.totalorder %s22, 0
      %s257 = scalar_select %p256, %s22, 0
      %s258 = sadd.s32 %s257, %s255
      %s259 = smul.addr %s258, 8
      %s260 = scalar_lea.vmem %s3, %s259
      %p261 = pneg %p165
      %p262 = pneg %p162
      %p263 = scmp.lt.s32.totalorder %s21, 3
      %s264 = scalar_select %p263, %s21, 3
      %p265 = scmp.lt.s32.totalorder %s22, 0
      %s266 = scalar_select %p265, %s22, 0
      %s267 = sadd.s32 %s266, %s264
      %s268 = smul.addr %s267, 8
      %s269 = scalar_lea.vmem %s4, %s268
      %s270 = smul.u32 4, %s23
      %p271 = scmp.lt.s32.totalorder %s21, 3
      %s272 = scalar_select %p271, %s21, 3
      %p273 = scmp.lt.s32.totalorder %s22, 0
      %s274 = scalar_select %p273, %s22, 0
      %p275 = scmp.lt.s32.totalorder %s270, 3
      %s276 = scalar_select %p275, %s270, 3
      %s277 = smul.addr %s274, 4
      %s278 = sadd.s32 %s276, %s277
      %s279 = smul.addr %s272, 4
      %s280 = sadd.s32 %s278, %s279
      %s281 = smul.addr %s280, 4
      %s282 = scalar_lea.vmem %s0, %s281
      %s283 = smul.u32 4, %s23
      %s284 = smul.u32 64, %s23
      %p285 = scmp.lt.s32.totalorder %s21, 3
      %s286 = scalar_select %p285, %s21, 3
      %p287 = scmp.lt.s32.totalorder %s284, 63
      %s288 = scalar_select %p287, %s284, 63
      %s289 = smul.addr %s286, 64
      %s290 = sadd.s32 %s288, %s289
      %s291 = smul.addr %s290, 4
      %s292 = scalar_lea.vmem %s1, %s291
      %s293 = smul.u32 64, %s23
      %p294 = scmp.lt.s32.totalorder %s21, 3
      %s295 = scalar_select %p294, %s21, 3
      %p296 = scmp.lt.s32.totalorder %s22, 0
      %s297 = scalar_select %p296, %s22, 0
      %s298 = sadd.s32 %s297, %s295
      %s299 = smul.addr %s298, 8
      %s300 = scalar_lea.vmem %s3, %s299
      %p301 = scmp.lt.s32.totalorder %s21, 3
      %s302 = scalar_select %p301, %s21, 3
      %p303 = scmp.lt.s32.totalorder %s22, 0
      %s304 = scalar_select %p303, %s22, 0
      %s305 = sadd.s32 %s304, %s302
      %s306 = smul.addr %s305, 8
      %s307 = scalar_lea.vmem %s4, %s306
      %p309 = scmp.eq.s32.totalorder %s23, 0
      // Predicated region
      $region33: #{_lambda_.27} parent=31 // pred_check
        %p310 = pneg %p309
      $region34: #{_lambda_.27} parent=31 // pred_check_branch
        %312 = sbr.rel (%p310) target = $region36
      $region35: #{_lambda_.27} parent=31 // pred_region
        %vm313 = vcmask 261120
        %314 = vst.msk [vmem:[#allocation2] sm:$0xff] %vm313, 0.0
      $region36: #{_lambda_.27} parent=31 // pred_fallthru
        _
      %v315 = vld [vmem:[%s282] sm:$0xff]
      %v316 = vld [vmem:[%s282 + $0x8] sm:$0xff]
      %v317 = vmax.bf16 %v315, 0
      %v318 = vmax.bf16 %v316, 0
      %v319 = vld [vmem:[#allocation2] sm:$0xff]
      %v320 = vld [vmem:[%s292] sm:$0xf]
      %v321 = vld [vmem:[%s292 + $0x4] sm:$0xf]
      %v322 = vld [vmem:[%s292 + $0x8] sm:$0xf]
      %v323 = vld [vmem:[%s292 + $0xc] sm:$0xf]
      %v324 = vld [vmem:[%s292 + $0x10] sm:$0xf]
      %v325 = vld [vmem:[%s292 + $0x14] sm:$0xf]
      %v326 = vld [vmem:[%s292 + $0x18] sm:$0xf]
      %v327 = vld [vmem:[%s292 + $0x1c] sm:$0xf]
      %v328 = vld [vmem:[%s292 + $0x20] sm:$0xf]
      %v329 = vld [vmem:[%s292 + $0x24] sm:$0xf]
      %v330 = vld [vmem:[%s292 + $0x28] sm:$0xf]
      %v331 = vld [vmem:[%s292 + $0x2c] sm:$0xf]
      %v332 = vld [vmem:[%s292 + $0x30] sm:$0xf]
      %v333 = vld [vmem:[%s292 + $0x34] sm:$0xf]
      %v334 = vld [vmem:[%s292 + $0x38] sm:$0xf]
      %v335 = vld [vmem:[%s292 + $0x3c] sm:$0xf]
      %v336 = vld [vmem:[%s292 + $0x40] sm:$0xf]
      %v337 = vld [vmem:[%s292 + $0x44] sm:$0xf]
      %v338 = vld [vmem:[%s292 + $0x48] sm:$0xf]
      %v339 = vld [vmem:[%s292 + $0x4c] sm:$0xf]
      %v340 = vld [vmem:[%s292 + $0x50] sm:$0xf]
      %v341 = vld [vmem:[%s292 + $0x54] sm:$0xf]
      %v342 = vld [vmem:[%s292 + $0x58] sm:$0xf]
      %v343 = vld [vmem:[%s292 + $0x5c] sm:$0xf]
      %v344 = vld [vmem:[%s292 + $0x60] sm:$0xf]
      %v345 = vld [vmem:[%s292 + $0x64] sm:$0xf]
      %v346 = vld [vmem:[%s292 + $0x68] sm:$0xf]
      %v347 = vld [vmem:[%s292 + $0x6c] sm:$0xf]
      %v348 = vld [vmem:[%s292 + $0x70] sm:$0xf]
      %v349 = vld [vmem:[%s292 + $0x74] sm:$0xf]
      %v350 = vld [vmem:[%s292 + $0x78] sm:$0xf]
      %v351 = vld [vmem:[%s292 + $0x7c] sm:$0xf]
      %v352 = vld [vmem:[%s292 + $0x80] sm:$0xf]
      %v353 = vld [vmem:[%s292 + $0x84] sm:$0xf]
      %v354 = vld [vmem:[%s292 + $0x88] sm:$0xf]
      %v355 = vld [vmem:[%s292 + $0x8c] sm:$0xf]
      %v356 = vld [vmem:[%s292 + $0x90] sm:$0xf]
      %v357 = vld [vmem:[%s292 + $0x94] sm:$0xf]
      %v358 = vld [vmem:[%s292 + $0x98] sm:$0xf]
      %v359 = vld [vmem:[%s292 + $0x9c] sm:$0xf]
      %v360 = vld [vmem:[%s292 + $0xa0] sm:$0xf]
      %v361 = vld [vmem:[%s292 + $0xa4] sm:$0xf]
      %v362 = vld [vmem:[%s292 + $0xa8] sm:$0xf]
      %v363 = vld [vmem:[%s292 + $0xac] sm:$0xf]
      %v364 = vld [vmem:[%s292 + $0xb0] sm:$0xf]
      %v365 = vld [vmem:[%s292 + $0xb4] sm:$0xf]
      %v366 = vld [vmem:[%s292 + $0xb8] sm:$0xf]
      %v367 = vld [vmem:[%s292 + $0xbc] sm:$0xf]
      %v368 = vld [vmem:[%s292 + $0xc0] sm:$0xf]
      %v369 = vld [vmem:[%s292 + $0xc4] sm:$0xf]
      %v370 = vld [vmem:[%s292 + $0xc8] sm:$0xf]
      %v371 = vld [vmem:[%s292 + $0xcc] sm:$0xf]
      %v372 = vld [vmem:[%s292 + $0xd0] sm:$0xf]
      %v373 = vld [vmem:[%s292 + $0xd4] sm:$0xf]
      %v374 = vld [vmem:[%s292 + $0xd8] sm:$0xf]
      %v375 = vld [vmem:[%s292 + $0xdc] sm:$0xf]
      %v376 = vld [vmem:[%s292 + $0xe0] sm:$0xf]
      %v377 = vld [vmem:[%s292 + $0xe4] sm:$0xf]
      %v378 = vld [vmem:[%s292 + $0xe8] sm:$0xf]
      %v379 = vld [vmem:[%s292 + $0xec] sm:$0xf]
      %v380 = vld [vmem:[%s292 + $0xf0] sm:$0xf]
      %v381 = vld [vmem:[%s292 + $0xf4] sm:$0xf]
      %v382 = vld [vmem:[%s292 + $0xf8] sm:$0xf]
      %v383 = vld [vmem:[%s292 + $0xfc] sm:$0xf]
      %v386 = vunpack.c.l.b16 %v317
      %v387 = vunpack.c.h.b16 %v317
      %v388 = vunpack.c.l.b16 %v318
      %v389 = vunpack.c.h.b16 %v318
      %v390 = vpack.c.b16 %v386, %v386
      %v391 = vpack.c.b16 %v387, %v387
      %v392 = vpack.c.b16 %v388, %v388
      %v393 = vpack.c.b16 %v389, %v389
      %v462 = vunpack.c.l.b16 %v320
      %v463 = vunpack.c.l.b16 %v321
      %v464 = vunpack.c.l.b16 %v322
      %v465 = vunpack.c.l.b16 %v323
      %v466 = vunpack.c.l.b16 %v324
      %v467 = vunpack.c.l.b16 %v325
      %v468 = vunpack.c.l.b16 %v326
      %v469 = vunpack.c.l.b16 %v327
      %v470 = vunpack.c.l.b16 %v328
      %v471 = vunpack.c.l.b16 %v329
      %v472 = vunpack.c.l.b16 %v330
      %v473 = vunpack.c.l.b16 %v331
      %v474 = vunpack.c.l.b16 %v332
      %v475 = vunpack.c.l.b16 %v333
      %v476 = vunpack.c.l.b16 %v334
      %v477 = vunpack.c.l.b16 %v335
      %v478 = vunpack.c.l.b16 %v336
      %v479 = vunpack.c.l.b16 %v337
      %v480 = vunpack.c.l.b16 %v338
      %v481 = vunpack.c.l.b16 %v339
      %v482 = vunpack.c.l.b16 %v340
      %v483 = vunpack.c.l.b16 %v341
      %v484 = vunpack.c.l.b16 %v342
      %v485 = vunpack.c.l.b16 %v343
      %v486 = vunpack.c.l.b16 %v344
      %v487 = vunpack.c.l.b16 %v345
      %v488 = vunpack.c.l.b16 %v346
      %v489 = vunpack.c.l.b16 %v347
      %v490 = vunpack.c.l.b16 %v348
      %v491 = vunpack.c.l.b16 %v349
      %v492 = vunpack.c.l.b16 %v350
      %v493 = vunpack.c.l.b16 %v351
      %v494 = vunpack.c.l.b16 %v352
      %v495 = vunpack.c.l.b16 %v353
      %v496 = vunpack.c.l.b16 %v354
      %v497 = vunpack.c.l.b16 %v355
      %v498 = vunpack.c.l.b16 %v356
      %v499 = vunpack.c.l.b16 %v357
      %v500 = vunpack.c.l.b16 %v358
      %v501 = vunpack.c.l.b16 %v359
      %v502 = vunpack.c.l.b16 %v360
      %v503 = vunpack.c.l.b16 %v361
      %v504 = vunpack.c.l.b16 %v362
      %v505 = vunpack.c.l.b16 %v363
      %v506 = vunpack.c.l.b16 %v364
      %v507 = vunpack.c.l.b16 %v365
      %v508 = vunpack.c.l.b16 %v366
      %v509 = vunpack.c.l.b16 %v367
      %v510 = vunpack.c.l.b16 %v368
      %v511 = vunpack.c.l.b16 %v369
      %v512 = vunpack.c.l.b16 %v370
      %v513 = vunpack.c.l.b16 %v371
      %v514 = vunpack.c.l.b16 %v372
      %v515 = vunpack.c.l.b16 %v373
      %v516 = vunpack.c.l.b16 %v374
      %v517 = vunpack.c.l.b16 %v375
      %v518 = vunpack.c.l.b16 %v376
      %v519 = vunpack.c.l.b16 %v377
      %v520 = vunpack.c.l.b16 %v378
      %v521 = vunpack.c.l.b16 %v379
      %v522 = vunpack.c.l.b16 %v380
      %v523 = vunpack.c.l.b16 %v381
      %v524 = vunpack.c.l.b16 %v382
      %v525 = vunpack.c.l.b16 %v383
      %v526 = vpack.c.b16 %v463, %v462
      %v527 = vpack.c.b16 %v465, %v464
      %v528 = vpack.c.b16 %v467, %v466
      %v529 = vpack.c.b16 %v469, %v468
      %v530 = vpack.c.b16 %v471, %v470
      %v531 = vpack.c.b16 %v473, %v472
      %v532 = vpack.c.b16 %v475, %v474
      %v533 = vpack.c.b16 %v477, %v476
      %v534 = vpack.c.b16 %v479, %v478
      %v535 = vpack.c.b16 %v481, %v480
      %v536 = vpack.c.b16 %v483, %v482
      %v537 = vpack.c.b16 %v485, %v484
      %v538 = vpack.c.b16 %v487, %v486
      %v539 = vpack.c.b16 %v489, %v488
      %v540 = vpack.c.b16 %v491, %v490
      %v541 = vpack.c.b16 %v493, %v492
      %v542 = vpack.c.b16 %v495, %v494
      %v543 = vpack.c.b16 %v497, %v496
      %v544 = vpack.c.b16 %v499, %v498
      %v545 = vpack.c.b16 %v501, %v500
      %v546 = vpack.c.b16 %v503, %v502
      %v547 = vpack.c.b16 %v505, %v504
      %v548 = vpack.c.b16 %v507, %v506
      %v549 = vpack.c.b16 %v509, %v508
      %v550 = vpack.c.b16 %v511, %v510
      %v551 = vpack.c.b16 %v513, %v512
      %v552 = vpack.c.b16 %v515, %v514
      %v553 = vpack.c.b16 %v517, %v516
      %v554 = vpack.c.b16 %v519, %v518
      %v555 = vpack.c.b16 %v521, %v520
      %v556 = vpack.c.b16 %v523, %v522
      %v557 = vpack.c.b16 %v525, %v524
      %590 = vmatprep.subr.bf16.mxu0 0
      %591 = vmatpush1.bf16.msra.mxu0 %v533
      %592 = vmatprep.subr.bf16.mxu0 0
      %593 = vmatpush1.bf16.msra.mxu0 %v532
      %594 = vmatprep.subr.bf16.mxu0 0
      %595 = vmatpush1.bf16.msra.mxu0 %v531
      %596 = vmatprep.subr.bf16.mxu0 0
      %597 = vmatpush1.bf16.msra.mxu0 %v530
      %598 = vmatprep.subr.bf16.mxu0 0
      %599 = vmatpush1.bf16.msra.mxu0 %v529
      %600 = vmatprep.subr.bf16.mxu0 0
      %601 = vmatpush1.bf16.msra.mxu0 %v528
      %602 = vmatprep.subr.bf16.mxu0 0
      %603 = vmatpush1.bf16.msra.mxu0 %v527
      %604 = vmatprep.subr.bf16.mxu0 0
      %605 = vmatpush1.bf16.msra.mxu0 %v526
      %606 = vmatprep.subr.bf16.mxu0 0
      %607 = vmatpush2.bf16.msra.mxu0 %v541
      %608 = vmatprep.subr.bf16.mxu0 0
      %609 = vmatpush2.bf16.msra.mxu0 %v540
      %610 = vmatprep.subr.bf16.mxu0 0
      %611 = vmatpush2.bf16.msra.mxu0 %v539
      %612 = vmatprep.subr.bf16.mxu0 0
      %613 = vmatpush2.bf16.msra.mxu0 %v538
      %614 = vmatprep.subr.bf16.mxu0 0
      %615 = vmatpush2.bf16.msra.mxu0 %v537
      %616 = vmatprep.subr.bf16.mxu0 0
      %617 = vmatpush2.bf16.msra.mxu0 %v536
      %618 = vmatprep.subr.bf16.mxu0 0
      %619 = vmatpush2.bf16.msra.mxu0 %v535
      %620 = vmatprep.subr.bf16.mxu0 0
      %621 = vmatpush2.bf16.msra.mxu0 %v534
      %622 = vmatprep.mubr.bf16.mxu0 %v391
      %623 = vmatmul.mubr.bf16.gmra.mxu0 %v390
      %v624 = vpop.f32.mrf.mxu0
      %v625 = vadd.f32 0.0, %v624
      %v626 = vpop.f32.mrf.mxu0
      %v627 = vpop.f32.mrf.mxu0
      %v628 = vpop.f32.mrf.mxu0
      %629 = vdwg.mxu0
      %630 = vmatprep.subr.bf16.mxu0 0
      %631 = vmatpush1.bf16.msra.mxu0 %v549
      %632 = vmatprep.subr.bf16.mxu0 0
      %633 = vmatpush1.bf16.msra.mxu0 %v548
      %634 = vmatprep.subr.bf16.mxu0 0
      %635 = vmatpush1.bf16.msra.mxu0 %v547
      %636 = vmatprep.subr.bf16.mxu0 0
      %637 = vmatpush1.bf16.msra.mxu0 %v546
      %638 = vmatprep.subr.bf16.mxu0 0
      %639 = vmatpush1.bf16.msra.mxu0 %v545
      %640 = vmatprep.subr.bf16.mxu0 0
      %641 = vmatpush1.bf16.msra.mxu0 %v544
      %642 = vmatprep.subr.bf16.mxu0 0
      %643 = vmatpush1.bf16.msra.mxu0 %v543
      %644 = vmatprep.subr.bf16.mxu0 0
      %645 = vmatpush1.bf16.msra.mxu0 %v542
      %646 = vmatprep.subr.bf16.mxu0 0
      %647 = vmatpush2.bf16.msra.mxu0 %v557
      %648 = vmatprep.subr.bf16.mxu0 0
      %649 = vmatpush2.bf16.msra.mxu0 %v556
      %650 = vmatprep.subr.bf16.mxu0 0
      %651 = vmatpush2.bf16.msra.mxu0 %v555
      %652 = vmatprep.subr.bf16.mxu0 0
      %653 = vmatpush2.bf16.msra.mxu0 %v554
      %654 = vmatprep.subr.bf16.mxu0 0
      %655 = vmatpush2.bf16.msra.mxu0 %v553
      %656 = vmatprep.subr.bf16.mxu0 0
      %657 = vmatpush2.bf16.msra.mxu0 %v552
      %658 = vmatprep.subr.bf16.mxu0 0
      %659 = vmatpush2.bf16.msra.mxu0 %v551
      %660 = vmatprep.subr.bf16.mxu0 0
      %661 = vmatpush2.bf16.msra.mxu0 %v550
      %662 = vmatprep.mubr.bf16.mxu0 %v393
      %663 = vmatmul.mubr.bf16.gmra.mxu0 %v392
      %v664 = vpop.f32.mrf.mxu0
      %v665 = vadd.f32 %v625, %v664
      %v666 = vpop.f32.mrf.mxu0
      %v667 = vpop.f32.mrf.mxu0
      %v668 = vpop.f32.mrf.mxu0
      %669 = vdwg.mxu0
      %v670 = vadd.f32 %v319, %v665
      %vm671 = vcmask 261120
      %672 = vst.msk [vmem:[#allocation2] sm:$0xff] %vm671, %v670
      // Predicated region
      $region37: #{_lambda_.27} parent=31 // pred_check
        %p673 = pneg %p309
      $region38: #{_lambda_.27} parent=31 // pred_check_branch
        %675 = sbr.rel (%p673) target = $region40
      $region39: #{_lambda_.27} parent=31 // pred_region
        %v676 = vld [vmem:[#allocation2] sm:$0xff]
        %v677 = vld [vmem:[%s2] sm:$0x1]
        %v679 = vlaneseq
        %v680 = vshrl.u32 %v679, 7
        %v681 = vsub.s32 0, %v680
        %v682 = vrot.slane %v677, %v681
        %v684 = vadd.f32 %v676, %v682
        %v685 = vsel %vm671, %v684, 0.0
        %v686 = vrot.slane %v685, 4
        %v687 = vadd.f32 %v685, %v686
        %v688 = vrot.slane %v687, 2
        %v689 = vadd.f32 %v687, %v688
        %v690 = vrot.slane %v689, 1
        %v691 = vadd.f32 %v689, %v690
        %v692 = vmul.f32 %v684, %v684
        %v693 = vsel %vm671, %v692, 0.0
        %v694 = vrot.slane %v693, 4
        %v695 = vadd.f32 %v693, %v694
        %v696 = vrot.slane %v695, 2
        %v697 = vadd.f32 %v695, %v696
        %v698 = vrot.slane %v697, 1
        %v699 = vadd.f32 %v697, %v698
        %vm700 = vcmask 1040384
        %v701 = vsel %vm700, %v691, %v699
        %vm702 = vcmask 1041408
        %v703 = vsel %vm702, %v701, 0.0
        %704 = vst.msk [vmem:[%s307] sm:$0xff] %vm671, %v703
        %705 = vst.msk [vmem:[%s300] sm:$0xff] %vm671, %v684
      $region40: #{_lambda_.27} parent=31 // pred_fallthru
        _
      %p706 = scmp.lt.s32.totalorder %s21, 3
      %s707 = scalar_select %p706, %s21, 3
      %p708 = scmp.lt.s32.totalorder %s22, 0
      %s709 = scalar_select %p708, %s22, 0
      %s710 = sadd.s32 %s709, %s707
      %s711 = smul.addr %s710, 8
      %s712 = scalar_lea.vmem %s3, %s711
      %p713 = scmp.lt.s32.totalorder %s21, 3
      %s714 = scalar_select %p713, %s21, 3
      %p715 = scmp.lt.s32.totalorder %s22, 0
      %s716 = scalar_select %p715, %s22, 0
      %s717 = sadd.s32 %s716, %s714
      %s718 = smul.addr %s717, 8
      %s719 = scalar_lea.vmem %s4, %s718
      // Predicated region
      $region41: #{_lambda_.27} parent=31 // pred_check
        %p720 = pneg %p134
      $region42: #{_lambda_.27} parent=31 // pred_check_branch
        %722 = sbr.rel (%p720) target = $region44
      $region43: #{_lambda_.27} parent=31 // pred_region
        _
      $region44: #{_lambda_.27} parent=31 // pred_fallthru
        _
      // Predicated region
      $region45: #{_lambda_.27} parent=31 // pred_check
        %p723 = pneg %p162
      $region46: #{_lambda_.27} parent=31 // pred_check_branch
        %725 = sbr.rel (%p723) target = $region48
      $region47: #{_lambda_.27} parent=31 // pred_region
        _
      $region48: #{_lambda_.27} parent=31 // pred_fallthru
        _
    $region32: #{_lambda_.27} parent=5 // pred_fallthru
      _
    %p726 = scmp.le.s32.totalorder 2, %s11
    // Predicated region
    $region49: #{_lambda_.27} parent=5 // pred_check
      %p727 = pneg %p726
    $region50: #{_lambda_.27} parent=5 // pred_check_branch
      %729 = sbr.rel (%p727) target = $region52
    $region51: #{_lambda_.27} parent=5 // pred_region
      %s730 = ssub.s32 %s11, 2
      // Predicated region
      $region53: #{_lambda_.27} parent=51 // pred_check
        %p731 = pneg %p140
      $region54: #{_lambda_.27} parent=51 // pred_check_branch
        %733 = sbr.rel (%p731) target = $region56
      $region55: #{_lambda_.27} parent=51 // pred_region
        %p734 = scmp.lt.s32.totalorder %s24, 3
        %s735 = scalar_select %p734, %s24, 3
        %p736 = scmp.lt.s32.totalorder %s25, 0
        %s737 = scalar_select %p736, %s25, 0
        %s738 = sadd.s32 %s737, %s735
        %s739 = smul.addr %s738, 8
        %s740 = scalar_lea.vmem %s3, %s739
      $region56: #{_lambda_.27} parent=51 // pred_fallthru
        _
      // Predicated region
      $region57: #{_lambda_.27} parent=51 // pred_check
        %p741 = pneg %p168
      $region58: #{_lambda_.27} parent=51 // pred_check_branch
        %743 = sbr.rel (%p741) target = $region60
      $region59: #{_lambda_.27} parent=51 // pred_region
        %p744 = scmp.lt.s32.totalorder %s24, 3
        %s745 = scalar_select %p744, %s24, 3
        %p746 = scmp.lt.s32.totalorder %s25, 0
        %s747 = scalar_select %p746, %s25, 0
        %s748 = sadd.s32 %s747, %s745
        %s749 = smul.addr %s748, 8
        %s750 = scalar_lea.vmem %s4, %s749
      $region60: #{_lambda_.27} parent=51 // pred_fallthru
        _
    $region52: #{_lambda_.27} parent=5 // pred_fallthru
      _
  $region6: #{_lambda_.27} parent=0 // loop_footer
    %s15 = sadd.s32 1, %s11
  $region7: #{_lambda_.27} parent=0 // loop_footer_branch
    %10 = sbr.rel target = $region3
  $region8: #{_lambda_.27} parent=0 // loop_exit
    _

// kernel: _lambda_.29
$region0: #{_lambda_.29}
  #allocation0 [shape = 'u32[]', space=smem, size = 0x4, offset = 0x4, fixed_abs, tag = 'smem constant byte address 0x4 - core index']
  #allocation1 [shape = 'u32[144,128]{1,0:T(1,128)}', space=vmem, size = 0x12000, scoped, tag = 'internal scratch']
  #allocation2 [shape = 'f32[32,16]{1,0:T(8,128)}', space=vmem, size = 0x4000, scoped, tag = 'scratch operand']
  %s0 = inlined_call_operand.vmem [shape: bf16[4,32,256], index: 0, kind: input, shape index: {}]
  %s1 = inlined_call_operand.vmem [shape: bf16[4,256,16], index: 1, kind: input, shape index: {}]
  %s2 = inlined_call_operand.vmem [shape: f32[1,16], index: 2, kind: input, shape index: {}]
  %s3 = inlined_call_operand.vmem [shape: f32[4,32,16], index: 3, kind: output, shape index: {0}]
  %s4 = inlined_call_operand.vmem [shape: f32[4,1,8,16], index: 4, kind: output, shape index: {1}]
  %5 = xla_tuple %s3, %s4
  %s6 = sld [smem:[#allocation0]]
  $region61: #{_lambda_.29} parent=0
    _
  %s8 = ssub.s32 1, %s6
  %s9 = scalar_select 0, %s8, %s6
  loop: start=0, step=1, limit=6
  $region2: #{_lambda_.29} parent=0 // loop_pre_header
    _
  $region3: #{_lambda_.29} parent=0 // loop_header
    %s11 = sphi 0, %s15
    %p12 = scmp.ge.s32.totalorder %s11, 6
    %s18 = sphi 0, %s37
    %s19 = sphi 0, %s33
    %s20 = sphi 0, %s29
    %s21 = sphi 0, %s18
    %s22 = sphi 0, %s19
    %s23 = sphi 0, %s20
    %s24 = sphi 0, %s21
    %s25 = sphi 0, %s22
    %s26 = sphi 0, %s23
    %s44 = sphi 0, %s46
    %s47 = sphi 0, %s44
    %s48 = sphi 0, %s47
    %s64 = sphi 0, %s48
    %s72 = sphi 0, %s74
    %s75 = sphi 0, %s72
    %s76 = sphi 0, %s75
    %s92 = sphi 0, %s76
    %s96 = sphi 0, %s96
    %s98 = sphi 0, %s96
    %s99 = sphi 0, %s98
    %s113 = sphi 0, %s99
    %s121 = sphi 0, %s123
    %s124 = sphi 0, %s121
    %s125 = sphi 0, %s124
    %s141 = sphi 0, %s125
    %s149 = sphi 0, %s151
    %s152 = sphi 0, %s149
    %s153 = sphi 0, %s152
    %s169 = sphi 0, %s153
  $region4: #{_lambda_.29} parent=0 // loop_header_branch
    %14 = sbr.rel (%p12) target = $region8
  $region5: #{_lambda_.29} parent=0 // loop_body
    %s16 = ssub.s32 %s11, 1
    %s17 = ssub.s32 %s11, 2
    %s27 = sadd.s32 1, %s20
    %p28 = scmp.ge.s32.totalorder %s27, 1
    %s29 = scalar_select %p28, 0, %s27
    %s30 = sadd.s32 1, %s19
    %s31 = scalar_select %p28, %s30, %s19
    %p32 = scmp.ge.s32.totalorder %s31, 1
    %s33 = scalar_select %p32, 0, %s31
    %s34 = sadd.s32 1, %s18
    %s35 = scalar_select %p32, %s34, %s18
    %p36 = scmp.ge.s32.totalorder %s35, 4
    %s37 = scalar_select %p36, 0, %s35
    %s38 = ssub.s32 %s18, %s37
    %s39 = ssub.s32 %s19, %s33
    %s40 = sor.u32 %s38, %s39
    %s41 = ssub.s32 %s20, %s29
    %s42 = sor.u32 %s40, %s41
    %p43 = scmp.eq.s32.totalorder %s42, 0
    %s45 = sadd.s32 %s44, 1
    %s46 = scalar_select %p43, %s44, %s45
    %p49 = pneg %p43
    %p50 = scmp.eq.s32.totalorder %s11, 3
    %p51 = por %p49, %p50
    %p52 = scmp.ne.s32.totalorder %s44, %s47
    %p53 = scmp.eq.s32.totalorder %s11, 0
    %p54 = por %p52, %p53
    %p55 = scmp.ne.s32.totalorder %s44, %s47
    %p56 = scmp.eq.s32.totalorder %s16, 3
    %p57 = por %p55, %p56
    %p58 = scmp.ne.s32.totalorder %s47, %s48
    %p59 = scmp.eq.s32.totalorder %s16, 0
    %p60 = por %p58, %p59
    %p61 = scmp.ne.s32.totalorder %s47, %s48
    %p62 = scmp.eq.s32.totalorder %s17, 3
    %p63 = por %p61, %p62
    %p65 = scmp.ne.s32.totalorder %s48, %s64
    %p66 = scmp.eq.s32.totalorder %s17, 0
    %p67 = por %p65, %p66
    %s68 = ssub.s32 %s18, %s37
    %s69 = ssub.s32 %s20, %s29
    %s70 = sor.u32 %s68, %s69
    %p71 = scmp.eq.s32.totalorder %s70, 0
    %s73 = sadd.s32 %s72, 1
    %s74 = scalar_select %p71, %s72, %s73
    %p77 = pneg %p71
    %p78 = scmp.eq.s32.totalorder %s11, 3
    %p79 = por %p77, %p78
    %p80 = scmp.ne.s32.totalorder %s72, %s75
    %p81 = scmp.eq.s32.totalorder %s11, 0
    %p82 = por %p80, %p81
    %p83 = scmp.ne.s32.totalorder %s72, %s75
    %p84 = scmp.eq.s32.totalorder %s16, 3
    %p85 = por %p83, %p84
    %p86 = scmp.ne.s32.totalorder %s75, %s76
    %p87 = scmp.eq.s32.totalorder %s16, 0
    %p88 = por %p86, %p87
    %p89 = scmp.ne.s32.totalorder %s75, %s76
    %p90 = scmp.eq.s32.totalorder %s17, 3
    %p91 = por %p89, %p90
    %p93 = scmp.ne.s32.totalorder %s76, %s92
    %p94 = scmp.eq.s32.totalorder %s17, 0
    %p95 = por %p93, %p94
    %s97 = sadd.s32 %s96, 1
    %p100 = scmp.eq.s32.totalorder %s11, 3
    %p101 = scmp.ne.s32.totalorder %s96, %s98
    %p102 = scmp.eq.s32.totalorder %s11, 0
    %p103 = por %p101, %p102
    %p104 = scmp.ne.s32.totalorder %s96, %s98
    %p105 = scmp.eq.s32.totalorder %s16, 3
    %p106 = por %p104, %p105
    %p107 = scmp.ne.s32.totalorder %s98, %s99
    %p108 = scmp.eq.s32.totalorder %s16, 0
    %p109 = por %p107, %p108
    %p110 = scmp.ne.s32.totalorder %s98, %s99
    %p111 = scmp.eq.s32.totalorder %s17, 3
    %p112 = por %p110, %p111
    %p114 = scmp.ne.s32.totalorder %s99, %s113
    %p115 = scmp.eq.s32.totalorder %s17, 0
    %p116 = por %p114, %p115
    %s117 = ssub.s32 %s18, %s37
    %s118 = ssub.s32 %s19, %s33
    %s119 = sor.u32 %s117, %s118
    %p120 = scmp.eq.s32.totalorder %s119, 0
    %s122 = sadd.s32 %s121, 1
    %s123 = scalar_select %p120, %s121, %s122
    %p126 = pneg %p120
    %p127 = scmp.eq.s32.totalorder %s11, 3
    %p128 = por %p126, %p127
    %p129 = scmp.ne.s32.totalorder %s121, %s124
    %p130 = scmp.eq.s32.totalorder %s11, 0
    %p131 = por %p129, %p130
    %p132 = scmp.ne.s32.totalorder %s121, %s124
    %p133 = scmp.eq.s32.totalorder %s16, 3
    %p134 = por %p132, %p133
    %p135 = scmp.ne.s32.totalorder %s124, %s125
    %p136 = scmp.eq.s32.totalorder %s16, 0
    %p137 = por %p135, %p136
    %p138 = scmp.ne.s32.totalorder %s124, %s125
    %p139 = scmp.eq.s32.totalorder %s17, 3
    %p140 = por %p138, %p139
    %p142 = scmp.ne.s32.totalorder %s125, %s141
    %p143 = scmp.eq.s32.totalorder %s17, 0
    %p144 = por %p142, %p143
    %s145 = ssub.s32 %s18, %s37
    %s146 = ssub.s32 %s19, %s33
    %s147 = sor.u32 %s145, %s146
    %p148 = scmp.eq.s32.totalorder %s147, 0
    %s150 = sadd.s32 %s149, 1
    %s151 = scalar_select %p148, %s149, %s150
    %p154 = pneg %p148
    %p155 = scmp.eq.s32.totalorder %s11, 3
    %p156 = por %p154, %p155
    %p157 = scmp.ne.s32.totalorder %s149, %s152
    %p158 = scmp.eq.s32.totalorder %s11, 0
    %p159 = por %p157, %p158
    %p160 = scmp.ne.s32.totalorder %s149, %s152
    %p161 = scmp.eq.s32.totalorder %s16, 3
    %p162 = por %p160, %p161
    %p163 = scmp.ne.s32.totalorder %s152, %s153
    %p164 = scmp.eq.s32.totalorder %s16, 0
    %p165 = por %p163, %p164
    %p166 = scmp.ne.s32.totalorder %s152, %s153
    %p167 = scmp.eq.s32.totalorder %s17, 3
    %p168 = por %p166, %p167
    %p170 = scmp.ne.s32.totalorder %s153, %s169
    %p171 = scmp.eq.s32.totalorder %s17, 0
    %p172 = por %p170, %p171
    %p173 = scmp.le.s32.totalorder 1, %s11
    %p174 = scmp.lt.s32.totalorder %s11, 5
    %p175 = pnand %p173, %p174
    %p176 = pneg %p175
    // Predicated region
    $region9: #{_lambda_.29} parent=5 // pred_check
      _
    $region10: #{_lambda_.29} parent=5 // pred_check_branch
      %178 = sbr.rel (%p175) target = $region12
    $region11: #{_lambda_.29} parent=5 // pred_region
      %s179 = ssub.s32 %s11, 1
      // Predicated region
      $region13: #{_lambda_.29} parent=11 // pred_check
        %p180 = pneg %p109
      $region14: #{_lambda_.29} parent=11 // pred_check_branch
        %182 = sbr.rel (%p180) target = $region16
      $region15: #{_lambda_.29} parent=11 // pred_region
        _
      $region16: #{_lambda_.29} parent=11 // pred_fallthru
        _
    $region12: #{_lambda_.29} parent=5 // pred_fallthru
      _
    %p183 = scmp.lt.s32.totalorder %s11, 4
    // Predicated region
    $region17: #{_lambda_.29} parent=5 // pred_check
      %p184 = pneg %p183
    $region18: #{_lambda_.29} parent=5 // pred_check_branch
      %186 = sbr.rel (%p184) target = $region20
    $region19: #{_lambda_.29} parent=5 // pred_region
      // Predicated region
      $region21: #{_lambda_.29} parent=19 // pred_check
        %p187 = pneg %p54
      $region22: #{_lambda_.29} parent=19 // pred_check_branch
        %189 = sbr.rel (%p187) target = $region24
      $region23: #{_lambda_.29} parent=19 // pred_region
        %s190 = smul.u32 4, %s19
        %s191 = smul.u32 2, %s20
        %p192 = scmp.lt.s32.totalorder %s18, 3
        %s193 = scalar_select %p192, %s18, 3
        %p194 = scmp.lt.s32.totalorder %s190, 3
        %s195 = scalar_select %p194, %s190, 3
        %p196 = scmp.lt.s32.totalorder %s191, 1
        %s197 = scalar_select %p196, %s191, 1
        %s198 = smul.addr %s195, 2
        %s199 = sadd.s32 %s197, %s198
        %s200 = smul.addr %s193, 8
        %s201 = sadd.s32 %s199, %s200
        %s202 = smul.addr %s201, 4
        %s203 = scalar_lea.vmem %s0, %s202
        %s204 = smul.u32 4, %s19
        %s205 = smul.u32 2, %s20
      $region24: #{_lambda_.29} parent=19 // pred_fallthru
        _
      // Predicated region
      $region25: #{_lambda_.29} parent=19 // pred_check
        %p206 = pneg %p82
      $region26: #{_lambda_.29} parent=19 // pred_check_branch
        %208 = sbr.rel (%p206) target = $region28
      $region27: #{_lambda_.29} parent=19 // pred_region
        %s209 = smul.u32 32, %s20
        %p210 = scmp.lt.s32.totalorder %s18, 3
        %s211 = scalar_select %p210, %s18, 3
        %p212 = scmp.lt.s32.totalorder %s209, 31
        %s213 = scalar_select %p212, %s209, 31
        %s214 = smul.addr %s211, 32
        %s215 = sadd.s32 %s213, %s214
        %s216 = smul.addr %s215, 4
        %s217 = scalar_lea.vmem %s1, %s216
        %s218 = smul.u32 32, %s20
      $region28: #{_lambda_.29} parent=19 // pred_fallthru
        _
    $region20: #{_lambda_.29} parent=5 // pred_fallthru
      _
    %p219 = scmp.le.s32.totalorder 1, %s11
    %p220 = scmp.lt.s32.totalorder %s11, 5
    %p221 = pnand %p219, %p220
    %p222 = pneg %p221
    // Predicated region
    $region29: #{_lambda_.29} parent=5 // pred_check
      _
    $region30: #{_lambda_.29} parent=5 // pred_check_branch
      %224 = sbr.rel (%p221) target = $region32
    $region31: #{_lambda_.29} parent=5 // pred_region
      %s225 = ssub.s32 %s11, 1
      %s226 = smul.u32 4, %s22
      %s227 = smul.u32 2, %s23
      %p228 = scmp.lt.s32.totalorder %s21, 3
      %s229 = scalar_select %p228, %s21, 3
      %p230 = scmp.lt.s32.totalorder %s226, 3
      %s231 = scalar_select %p230, %s226, 3
      %p232 = scmp.lt.s32.totalorder %s227, 1
      %s233 = scalar_select %p232, %s227, 1
      %s234 = smul.addr %s231, 2
      %s235 = sadd.s32 %s233, %s234
      %s236 = smul.addr %s229, 8
      %s237 = sadd.s32 %s235, %s236
      %s238 = smul.addr %s237, 4
      %s239 = scalar_lea.vmem %s0, %s238
      %p240 = pneg %p60
      %p241 = pneg %p57
      %s242 = smul.u32 32, %s23
      %p243 = scmp.lt.s32.totalorder %s21, 3
      %s244 = scalar_select %p243, %s21, 3
      %p245 = scmp.lt.s32.totalorder %s242, 31
      %s246 = scalar_select %p245, %s242, 31
      %s247 = smul.addr %s244, 32
      %s248 = sadd.s32 %s246, %s247
      %s249 = smul.addr %s248, 4
      %s250 = scalar_lea.vmem %s1, %s249
      %p251 = pneg %p88
      %p252 = pneg %p85
      %p253 = pneg %p109
      %p254 = pneg %p106
      %p255 = pneg %p137
      %p256 = pneg %p134
      %s257 = smul.u32 4, %s22
      %p258 = scmp.lt.s32.totalorder %s21, 3
      %s259 = scalar_select %p258, %s21, 3
      %p260 = scmp.lt.s32.totalorder %s257, 3
      %s261 = scalar_select %p260, %s257, 3
      %s262 = smul.addr %s259, 4
      %s263 = sadd.s32 %s261, %s262
      %s264 = smul.addr %s263, 8
      %s265 = scalar_lea.vmem %s3, %s264
      %p266 = pneg %p165
      %p267 = pneg %p162
      %p268 = scmp.lt.s32.totalorder %s21, 3
      %s269 = scalar_select %p268, %s21, 3
      %p270 = scmp.lt.s32.totalorder %s22, 0
      %s271 = scalar_select %p270, %s22, 0
      %s272 = sadd.s32 %s271, %s269
      %s273 = smul.addr %s272, 8
      %s274 = scalar_lea.vmem %s4, %s273
      %s275 = smul.u32 4, %s22
      %s276 = smul.u32 2, %s23
      %p277 = scmp.lt.s32.totalorder %s21, 3
      %s278 = scalar_select %p277, %s21, 3
      %p279 = scmp.lt.s32.totalorder %s275, 3
      %s280 = scalar_select %p279, %s275, 3
      %p281 = scmp.lt.s32.totalorder %s276, 1
      %s282 = scalar_select %p281, %s276, 1
      %s283 = smul.addr %s280, 2
      %s284 = sadd.s32 %s282, %s283
      %s285 = smul.addr %s278, 8
      %s286 = sadd.s32 %s284, %s285
      %s287 = smul.addr %s286, 4
      %s288 = scalar_lea.vmem %s0, %s287
      %s289 = smul.u32 4, %s22
      %s290 = smul.u32 2, %s23
      %s291 = smul.u32 32, %s23
      %p292 = scmp.lt.s32.totalorder %s21, 3
      %s293 = scalar_select %p292, %s21, 3
      %p294 = scmp.lt.s32.totalorder %s291, 31
      %s295 = scalar_select %p294, %s291, 31
      %s296 = smul.addr %s293, 32
      %s297 = sadd.s32 %s295, %s296
      %s298 = smul.addr %s297, 4
      %s299 = scalar_lea.vmem %s1, %s298
      %s300 = smul.u32 32, %s23
      %s301 = smul.u32 4, %s22
      %p302 = scmp.lt.s32.totalorder %s21, 3
      %s303 = scalar_select %p302, %s21, 3
      %p304 = scmp.lt.s32.totalorder %s301, 3
      %s305 = scalar_select %p304, %s301, 3
      %s306 = smul.addr %s303, 4
      %s307 = sadd.s32 %s305, %s306
      %s308 = smul.addr %s307, 8
      %s309 = scalar_lea.vmem %s3, %s308
      %s310 = smul.u32 4, %s22
      %p311 = scmp.lt.s32.totalorder %s21, 3
      %s312 = scalar_select %p311, %s21, 3
      %p313 = scmp.lt.s32.totalorder %s22, 0
      %s314 = scalar_select %p313, %s22, 0
      %s315 = sadd.s32 %s314, %s312
      %s316 = smul.addr %s315, 8
      %s317 = scalar_lea.vmem %s4, %s316
      %p319 = scmp.eq.s32.totalorder %s23, 0
      // Predicated region
      $region33: #{_lambda_.29} parent=31 // pred_check
        %p320 = pneg %p319
      $region34: #{_lambda_.29} parent=31 // pred_check_branch
        %322 = sbr.rel (%p320) target = $region36
      $region35: #{_lambda_.29} parent=31 // pred_region
        %vm323 = vcmask 130048
        %324 = vst.msk [vmem:[#allocation2] sm:$0xff] %vm323, 0.0
        %325 = vst.msk [vmem:[#allocation2 + $0x8] sm:$0xff] %vm323, 0.0
        %326 = vst.msk [vmem:[#allocation2 + $0x10] sm:$0xff] %vm323, 0.0
        %327 = vst.msk [vmem:[#allocation2 + $0x18] sm:$0xff] %vm323, 0.0
      $region36: #{_lambda_.29} parent=31 // pred_fallthru
        _
      %v328 = vld [vmem:[%s288] sm:$0xff]
      %v329 = vld [vmem:[%s288 + $0x8] sm:$0xff]
      %v330 = vld [vmem:[%s288 + $0x10] sm:$0xff]
      %v331 = vld [vmem:[%s288 + $0x18] sm:$0xff]
      %v332 = vmax.bf16 %v328, 0
      %v333 = vmax.bf16 %v329, 0
      %v334 = vmax.bf16 %v330, 0
      %v335 = vmax.bf16 %v331, 0
      %v336 = vld [vmem:[#allocation2] sm:$0xff]
      %v337 = vld [vmem:[#allocation2 + $0x8] sm:$0xff]
      %v338 = vld [vmem:[#allocation2 + $0x10] sm:$0xff]
      %v339 = vld [vmem:[#allocation2 + $0x18] sm:$0xff]
      %v340 = vld [vmem:[%s299] sm:$0xf]
      %v341 = vld [vmem:[%s299 + $0x4] sm:$0xf]
      %v342 = vld [vmem:[%s299 + $0x8] sm:$0xf]
      %v343 = vld [vmem:[%s299 + $0xc] sm:$0xf]
      %v344 = vld [vmem:[%s299 + $0x10] sm:$0xf]
      %v345 = vld [vmem:[%s299 + $0x14] sm:$0xf]
      %v346 = vld [vmem:[%s299 + $0x18] sm:$0xf]
      %v347 = vld [vmem:[%s299 + $0x1c] sm:$0xf]
      %v348 = vld [vmem:[%s299 + $0x20] sm:$0xf]
      %v349 = vld [vmem:[%s299 + $0x24] sm:$0xf]
      %v350 = vld [vmem:[%s299 + $0x28] sm:$0xf]
      %v351 = vld [vmem:[%s299 + $0x2c] sm:$0xf]
      %v352 = vld [vmem:[%s299 + $0x30] sm:$0xf]
      %v353 = vld [vmem:[%s299 + $0x34] sm:$0xf]
      %v354 = vld [vmem:[%s299 + $0x38] sm:$0xf]
      %v355 = vld [vmem:[%s299 + $0x3c] sm:$0xf]
      %v356 = vld [vmem:[%s299 + $0x40] sm:$0xf]
      %v357 = vld [vmem:[%s299 + $0x44] sm:$0xf]
      %v358 = vld [vmem:[%s299 + $0x48] sm:$0xf]
      %v359 = vld [vmem:[%s299 + $0x4c] sm:$0xf]
      %v360 = vld [vmem:[%s299 + $0x50] sm:$0xf]
      %v361 = vld [vmem:[%s299 + $0x54] sm:$0xf]
      %v362 = vld [vmem:[%s299 + $0x58] sm:$0xf]
      %v363 = vld [vmem:[%s299 + $0x5c] sm:$0xf]
      %v364 = vld [vmem:[%s299 + $0x60] sm:$0xf]
      %v365 = vld [vmem:[%s299 + $0x64] sm:$0xf]
      %v366 = vld [vmem:[%s299 + $0x68] sm:$0xf]
      %v367 = vld [vmem:[%s299 + $0x6c] sm:$0xf]
      %v368 = vld [vmem:[%s299 + $0x70] sm:$0xf]
      %v369 = vld [vmem:[%s299 + $0x74] sm:$0xf]
      %v370 = vld [vmem:[%s299 + $0x78] sm:$0xf]
      %v371 = vld [vmem:[%s299 + $0x7c] sm:$0xf]
      %v376 = vunpack.c.l.b16 %v332
      %v377 = vunpack.c.h.b16 %v332
      %v378 = vunpack.c.l.b16 %v333
      %v379 = vunpack.c.h.b16 %v333
      %v380 = vunpack.c.l.b16 %v334
      %v381 = vunpack.c.h.b16 %v334
      %v382 = vunpack.c.l.b16 %v335
      %v383 = vunpack.c.h.b16 %v335
      %v384 = vpack.c.b16 %v378, %v376
      %v385 = vpack.c.b16 %v379, %v377
      %v386 = vpack.c.b16 %v382, %v380
      %v387 = vpack.c.b16 %v383, %v381
      %v424 = vunpack.c.l.b16 %v340
      %v425 = vunpack.c.l.b16 %v341
      %v426 = vunpack.c.l.b16 %v342
      %v427 = vunpack.c.l.b16 %v343
      %v428 = vunpack.c.l.b16 %v344
      %v429 = vunpack.c.l.b16 %v345
      %v430 = vunpack.c.l.b16 %v346
      %v431 = vunpack.c.l.b16 %v347
      %v432 = vunpack.c.l.b16 %v348
      %v433 = vunpack.c.l.b16 %v349
      %v434 = vunpack.c.l.b16 %v350
      %v435 = vunpack.c.l.b16 %v351
      %v436 = vunpack.c.l.b16 %v352
      %v437 = vunpack.c.l.b16 %v353
      %v438 = vunpack.c.l.b16 %v354
      %v439 = vunpack.c.l.b16 %v355
      %v440 = vunpack.c.l.b16 %v356
      %v441 = vunpack.c.l.b16 %v357
      %v442 = vunpack.c.l.b16 %v358
      %v443 = vunpack.c.l.b16 %v359
      %v444 = vunpack.c.l.b16 %v360
      %v445 = vunpack.c.l.b16 %v361
      %v446 = vunpack.c.l.b16 %v362
      %v447 = vunpack.c.l.b16 %v363
      %v448 = vunpack.c.l.b16 %v364
      %v449 = vunpack.c.l.b16 %v365
      %v450 = vunpack.c.l.b16 %v366
      %v451 = vunpack.c.l.b16 %v367
      %v452 = vunpack.c.l.b16 %v368
      %v453 = vunpack.c.l.b16 %v369
      %v454 = vunpack.c.l.b16 %v370
      %v455 = vunpack.c.l.b16 %v371
      %v456 = vpack.c.b16 %v425, %v424
      %v457 = vpack.c.b16 %v427, %v426
      %v458 = vpack.c.b16 %v429, %v428
      %v459 = vpack.c.b16 %v431, %v430
      %v460 = vpack.c.b16 %v433, %v432
      %v461 = vpack.c.b16 %v435, %v434
      %v462 = vpack.c.b16 %v437, %v436
      %v463 = vpack.c.b16 %v439, %v438
      %v464 = vpack.c.b16 %v441, %v440
      %v465 = vpack.c.b16 %v443, %v442
      %v466 = vpack.c.b16 %v445, %v444
      %v467 = vpack.c.b16 %v447, %v446
      %v468 = vpack.c.b16 %v449, %v448
      %v469 = vpack.c.b16 %v451, %v450
      %v470 = vpack.c.b16 %v453, %v452
      %v471 = vpack.c.b16 %v455, %v454
      %488 = vmatprep.subr.bf16.mxu0 0
      %489 = vmatpush1.bf16.msra.mxu0 %v463
      %490 = vmatprep.subr.bf16.mxu0 0
      %491 = vmatpush1.bf16.msra.mxu0 %v462
      %492 = vmatprep.subr.bf16.mxu0 0
      %493 = vmatpush1.bf16.msra.mxu0 %v461
      %494 = vmatprep.subr.bf16.mxu0 0
      %495 = vmatpush1.bf16.msra.mxu0 %v460
      %496 = vmatprep.subr.bf16.mxu0 0
      %497 = vmatpush1.bf16.msra.mxu0 %v459
      %498 = vmatprep.subr.bf16.mxu0 0
      %499 = vmatpush1.bf16.msra.mxu0 %v458
      %500 = vmatprep.subr.bf16.mxu0 0
      %501 = vmatpush1.bf16.msra.mxu0 %v457
      %502 = vmatprep.subr.bf16.mxu0 0
      %503 = vmatpush1.bf16.msra.mxu0 %v456
      %504 = vmatprep.subr.bf16.mxu0 0
      %505 = vmatpush2.bf16.msra.mxu0 %v471
      %506 = vmatprep.subr.bf16.mxu0 0
      %507 = vmatpush2.bf16.msra.mxu0 %v470
      %508 = vmatprep.subr.bf16.mxu0 0
      %509 = vmatpush2.bf16.msra.mxu0 %v469
      %510 = vmatprep.subr.bf16.mxu0 0
      %511 = vmatpush2.bf16.msra.mxu0 %v468
      %512 = vmatprep.subr.bf16.mxu0 0
      %513 = vmatpush2.bf16.msra.mxu0 %v467
      %514 = vmatprep.subr.bf16.mxu0 0
      %515 = vmatpush2.bf16.msra.mxu0 %v466
      %516 = vmatprep.subr.bf16.mxu0 0
      %517 = vmatpush2.bf16.msra.mxu0 %v465
      %518 = vmatprep.subr.bf16.mxu0 0
      %519 = vmatpush2.bf16.msra.mxu0 %v464
      %520 = vmatprep.mubr.bf16.mxu0 %v385
      %521 = vmatmul.mubr.bf16.gmra.mxu0 %v384
      %v522 = vpop.f32.mrf.mxu0
      %v523 = vadd.f32 0.0, %v522
      %v524 = vpop.f32.mrf.mxu0
      %v525 = vpop.f32.mrf.mxu0
      %v526 = vadd.f32 0.0, %v525
      %v527 = vpop.f32.mrf.mxu0
      %528 = vmatprep.mubr.bf16.mxu0 %v387
      %529 = vmatmul.mubr.bf16.gmra.mxu0 %v386
      %v530 = vpop.f32.mrf.mxu0
      %v531 = vadd.f32 0.0, %v530
      %v532 = vpop.f32.mrf.mxu0
      %v533 = vpop.f32.mrf.mxu0
      %v534 = vadd.f32 0.0, %v533
      %v535 = vpop.f32.mrf.mxu0
      %536 = vdwg.mxu0
      %v537 = vadd.f32 %v336, %v523
      %v538 = vadd.f32 %v337, %v526
      %v539 = vadd.f32 %v338, %v531
      %v540 = vadd.f32 %v339, %v534
      %vm541 = vcmask 130048
      %542 = vst.msk [vmem:[#allocation2] sm:$0xff] %vm541, %v537
      %543 = vst.msk [vmem:[#allocation2 + $0x8] sm:$0xff] %vm541, %v538
      %544 = vst.msk [vmem:[#allocation2 + $0x10] sm:$0xff] %vm541, %v539
      %545 = vst.msk [vmem:[#allocation2 + $0x18] sm:$0xff] %vm541, %v540
      // Predicated region
      $region37: #{_lambda_.29} parent=31 // pred_check
        %p546 = pneg %p319
      $region38: #{_lambda_.29} parent=31 // pred_check_branch
        %548 = sbr.rel (%p546) target = $region40
      $region39: #{_lambda_.29} parent=31 // pred_region
        %v549 = vld [vmem:[#allocation2] sm:$0xff]
        %v550 = vld [vmem:[#allocation2 + $0x8] sm:$0xff]
        %v551 = vld [vmem:[#allocation2 + $0x10] sm:$0xff]
        %v552 = vld [vmem:[#allocation2 + $0x18] sm:$0xff]
        %v553 = vld [vmem:[%s2] sm:$0x1]
        %v555 = vlaneseq
        %v556 = vshrl.u32 %v555, 7
        %v557 = vsub.s32 0, %v556
        %v558 = vrot.slane %v553, %v557
        %v560 = vadd.f32 %v549, %v558
        %v561 = vadd.f32 %v550, %v558
        %v562 = vadd.f32 %v551, %v558
        %v563 = vadd.f32 %v552, %v558
        %v564 = vsel %vm541, %v560, 0.0
        %v565 = vsel %vm541, %v561, 0.0
        %v566 = vadd.f32 %v564, %v565
        %v567 = vsel %vm541, %v562, 0.0
        %v568 = vadd.f32 %v566, %v567
        %v569 = vsel %vm541, %v563, 0.0
        %v570 = vadd.f32 %v568, %v569
        %v571 = vrot.slane %v570, 4
        %v572 = vadd.f32 %v570, %v571
        %v573 = vrot.slane %v572, 2
        %v574 = vadd.f32 %v572, %v573
        %v575 = vrot.slane %v574, 1
        %v576 = vadd.f32 %v574, %v575
        %v577 = vmul.f32 %v560, %v560
        %v578 = vmul.f32 %v561, %v561
        %v579 = vmul.f32 %v562, %v562
        %v580 = vmul.f32 %v563, %v563
        %v581 = vsel %vm541, %v577, 0.0
        %v582 = vsel %vm541, %v578, 0.0
        %v583 = vadd.f32 %v581, %v582
        %v584 = vsel %vm541, %v579, 0.0
        %v585 = vadd.f32 %v583, %v584
        %v586 = vsel %vm541, %v580, 0.0
        %v587 = vadd.f32 %v585, %v586
        %v588 = vrot.slane %v587, 4
        %v589 = vadd.f32 %v587, %v588
        %v590 = vrot.slane %v589, 2
        %v591 = vadd.f32 %v589, %v590
        %v592 = vrot.slane %v591, 1
        %v593 = vadd.f32 %v591, %v592
        %vm594 = vcmask 1040384
        %v595 = vsel %vm594, %v576, %v593
        %vm596 = vcmask 1041408
        %v597 = vsel %vm596, %v595, 0.0
        %598 = vst.msk [vmem:[%s317] sm:$0xff] %vm541, %v597
        %599 = vst.msk [vmem:[%s309] sm:$0xff] %vm541, %v560
        %600 = vst.msk [vmem:[%s309 + $0x8] sm:$0xff] %vm541, %v561
        %601 = vst.msk [vmem:[%s309 + $0x10] sm:$0xff] %vm541, %v562
        %602 = vst.msk [vmem:[%s309 + $0x18] sm:$0xff] %vm541, %v563
      $region40: #{_lambda_.29} parent=31 // pred_fallthru
        _
      %s603 = smul.u32 4, %s22
      %p604 = scmp.lt.s32.totalorder %s21, 3
      %s605 = scalar_select %p604, %s21, 3
      %p606 = scmp.lt.s32.totalorder %s603, 3
      %s607 = scalar_select %p606, %s603, 3
      %s608 = smul.addr %s605, 4
      %s609 = sadd.s32 %s607, %s608
      %s610 = smul.addr %s609, 8
      %s611 = scalar_lea.vmem %s3, %s610
      %p612 = scmp.lt.s32.totalorder %s21, 3
      %s613 = scalar_select %p612, %s21, 3
      %p614 = scmp.lt.s32.totalorder %s22, 0
      %s615 = scalar_select %p614, %s22, 0
      %s616 = sadd.s32 %s615, %s613
      %s617 = smul.addr %s616, 8
      %s618 = scalar_lea.vmem %s4, %s617
      // Predicated region
      $region41: #{_lambda_.29} parent=31 // pred_check
        %p619 = pneg %p134
      $region42: #{_lambda_.29} parent=31 // pred_check_branch
        %621 = sbr.rel (%p619) target = $region44
      $region43: #{_lambda_.29} parent=31 // pred_region
        %s622 = smul.u32 4, %s22
      $region44: #{_lambda_.29} parent=31 // pred_fallthru
        _
      // Predicated region
      $region45: #{_lambda_.29} parent=31 // pred_check
        %p623 = pneg %p162
      $region46: #{_lambda_.29} parent=31 // pred_check_branch
        %625 = sbr.rel (%p623) target = $region48
      $region47: #{_lambda_.29} parent=31 // pred_region
        _
      $region48: #{_lambda_.29} parent=31 // pred_fallthru
        _
    $region32: #{_lambda_.29} parent=5 // pred_fallthru
      _
    %p626 = scmp.le.s32.totalorder 2, %s11
    // Predicated region
    $region49: #{_lambda_.29} parent=5 // pred_check
      %p627 = pneg %p626
    $region50: #{_lambda_.29} parent=5 // pred_check_branch
      %629 = sbr.rel (%p627) target = $region52
    $region51: #{_lambda_.29} parent=5 // pred_region
      %s630 = ssub.s32 %s11, 2
      // Predicated region
      $region53: #{_lambda_.29} parent=51 // pred_check
        %p631 = pneg %p140
      $region54: #{_lambda_.29} parent=51 // pred_check_branch
        %633 = sbr.rel (%p631) target = $region56
      $region55: #{_lambda_.29} parent=51 // pred_region
        %s634 = smul.u32 4, %s25
        %p635 = scmp.lt.s32.totalorder %s24, 3
        %s636 = scalar_select %p635, %s24, 3
        %p637 = scmp.lt.s32.totalorder %s634, 3
        %s638 = scalar_select %p637, %s634, 3
        %s639 = smul.addr %s636, 4
        %s640 = sadd.s32 %s638, %s639
        %s641 = smul.addr %s640, 8
        %s642 = scalar_lea.vmem %s3, %s641
      $region56: #{_lambda_.29} parent=51 // pred_fallthru
        _
      // Predicated region
      $region57: #{_lambda_.29} parent=51 // pred_check
        %p643 = pneg %p168
      $region58: #{_lambda_.29} parent=51 // pred_check_branch
        %645 = sbr.rel (%p643) target = $region60
      $region59: #{_lambda_.29} parent=51 // pred_region
        %p646 = scmp.lt.s32.totalorder %s24, 3
        %s647 = scalar_select %p646, %s24, 3
        %p648 = scmp.lt.s32.totalorder %s25, 0
        %s649 = scalar_select %p648, %s25, 0
        %s650 = sadd.s32 %s649, %s647
        %s651 = smul.addr %s650, 8
        %s652 = scalar_lea.vmem %s4, %s651
      $region60: #{_lambda_.29} parent=51 // pred_fallthru
        _
    $region52: #{_lambda_.29} parent=5 // pred_fallthru
      _
  $region6: #{_lambda_.29} parent=0 // loop_footer
    %s15 = sadd.s32 1, %s11
  $region7: #{_lambda_.29} parent=0 // loop_footer_branch
    %10 = sbr.rel target = $region3
  $region8: #{_lambda_.29} parent=0 // loop_exit
    _

// kernel: tile.133
$region0: #{tile.133}
  #allocation0 [shape = 's32[1]{0}', space=sflag, size = 0x4, scoped, tag = 'scoped memory for tile.133']
  %s0 = inlined_call_operand.vmem [shape: f32[8], index: 0, kind: input, shape index: {}]
  %s1 = inlined_call_operand.vmem [shape: f32[16,8], index: 1, kind: output, shape index: {}]
  // Predicated region
  $region2: #{tile.133} parent=0 // pred_check
    _
  $region3: #{tile.133} parent=0 // pred_check_branch
    %3 = sbr.rel (0) target = $region5
  $region4: #{tile.133} parent=0 // pred_region
    _
  $region5: #{tile.133} parent=0 // pred_fallthru
    _
  %v4 = vld [vmem:[%s0] ss:$0 sm:$0xff]
  %5 = vst [vmem:[%s1] sm:$0xff] %v4
  %s6 = scalar_lea.vmem %s1, 8
  %7 = vst [vmem:[%s6] sm:$0xff] %v4

// kernel: _lambda_.31
$region0: #{_lambda_.31}
  #allocation0 [shape = 'u32[]', space=smem, size = 0x4, offset = 0x4, fixed_abs, tag = 'smem constant byte address 0x4 - core index']
  #allocation1 [shape = 'u32[144,128]{1,0:T(1,128)}', space=vmem, size = 0x12000, scoped, tag = 'internal scratch']
  #allocation2 [shape = 'f32[128,8]{1,0:T(8,128)}', space=vmem, size = 0x10000, scoped, tag = 'scratch operand']
  %s0 = inlined_call_operand.vmem [shape: bf16[4,128,128], index: 0, kind: input, shape index: {}]
  %s1 = inlined_call_operand.vmem [shape: bf16[4,128,8], index: 1, kind: input, shape index: {}]
  %s2 = inlined_call_operand.vmem [shape: f32[1,8], index: 2, kind: input, shape index: {}]
  %s3 = inlined_call_operand.vmem [shape: f32[4,128,8], index: 3, kind: output, shape index: {0}]
  %s4 = inlined_call_operand.vmem [shape: f32[4,1,8,8], index: 4, kind: output, shape index: {1}]
  %5 = xla_tuple %s3, %s4
  %s6 = sld [smem:[#allocation0]]
  $region61: #{_lambda_.31} parent=0
    _
  %s8 = ssub.s32 1, %s6
  %s9 = scalar_select 0, %s8, %s6
  loop: start=0, step=1, limit=6
  $region2: #{_lambda_.31} parent=0 // loop_pre_header
    _
  $region3: #{_lambda_.31} parent=0 // loop_header
    %s11 = sphi 0, %s15
    %p12 = scmp.ge.s32.totalorder %s11, 6
    %s18 = sphi 0, %s37
    %s19 = sphi 0, %s33
    %s20 = sphi 0, %s29
    %s21 = sphi 0, %s18
    %s22 = sphi 0, %s19
    %s23 = sphi 0, %s20
    %s24 = sphi 0, %s21
    %s25 = sphi 0, %s22
    %s26 = sphi 0, %s23
    %s44 = sphi 0, %s46
    %s47 = sphi 0, %s44
    %s48 = sphi 0, %s47
    %s64 = sphi 0, %s48
    %s72 = sphi 0, %s74
    %s75 = sphi 0, %s72
    %s76 = sphi 0, %s75
    %s92 = sphi 0, %s76
    %s96 = sphi 0, %s96
    %s98 = sphi 0, %s96
    %s99 = sphi 0, %s98
    %s113 = sphi 0, %s99
    %s121 = sphi 0, %s123
    %s124 = sphi 0, %s121
    %s125 = sphi 0, %s124
    %s141 = sphi 0, %s125
    %s149 = sphi 0, %s151
    %s152 = sphi 0, %s149
    %s153 = sphi 0, %s152
    %s169 = sphi 0, %s153
  $region4: #{_lambda_.31} parent=0 // loop_header_branch
    %14 = sbr.rel (%p12) target = $region8
  $region5: #{_lambda_.31} parent=0 // loop_body
    %s16 = ssub.s32 %s11, 1
    %s17 = ssub.s32 %s11, 2
    %s27 = sadd.s32 1, %s20
    %p28 = scmp.ge.s32.totalorder %s27, 1
    %s29 = scalar_select %p28, 0, %s27
    %s30 = sadd.s32 1, %s19
    %s31 = scalar_select %p28, %s30, %s19
    %p32 = scmp.ge.s32.totalorder %s31, 1
    %s33 = scalar_select %p32, 0, %s31
    %s34 = sadd.s32 1, %s18
    %s35 = scalar_select %p32, %s34, %s18
    %p36 = scmp.ge.s32.totalorder %s35, 4
    %s37 = scalar_select %p36, 0, %s35
    %s38 = ssub.s32 %s18, %s37
    %s39 = ssub.s32 %s19, %s33
    %s40 = sor.u32 %s38, %s39
    %s41 = ssub.s32 %s20, %s29
    %s42 = sor.u32 %s40, %s41
    %p43 = scmp.eq.s32.totalorder %s42, 0
    %s45 = sadd.s32 %s44, 1
    %s46 = scalar_select %p43, %s44, %s45
    %p49 = pneg %p43
    %p50 = scmp.eq.s32.totalorder %s11, 3
    %p51 = por %p49, %p50
    %p52 = scmp.ne.s32.totalorder %s44, %s47
    %p53 = scmp.eq.s32.totalorder %s11, 0
    %p54 = por %p52, %p53
    %p55 = scmp.ne.s32.totalorder %s44, %s47
    %p56 = scmp.eq.s32.totalorder %s16, 3
    %p57 = por %p55, %p56
    %p58 = scmp.ne.s32.totalorder %s47, %s48
    %p59 = scmp.eq.s32.totalorder %s16, 0
    %p60 = por %p58, %p59
    %p61 = scmp.ne.s32.totalorder %s47, %s48
    %p62 = scmp.eq.s32.totalorder %s17, 3
    %p63 = por %p61, %p62
    %p65 = scmp.ne.s32.totalorder %s48, %s64
    %p66 = scmp.eq.s32.totalorder %s17, 0
    %p67 = por %p65, %p66
    %s68 = ssub.s32 %s18, %s37
    %s69 = ssub.s32 %s20, %s29
    %s70 = sor.u32 %s68, %s69
    %p71 = scmp.eq.s32.totalorder %s70, 0
    %s73 = sadd.s32 %s72, 1
    %s74 = scalar_select %p71, %s72, %s73
    %p77 = pneg %p71
    %p78 = scmp.eq.s32.totalorder %s11, 3
    %p79 = por %p77, %p78
    %p80 = scmp.ne.s32.totalorder %s72, %s75
    %p81 = scmp.eq.s32.totalorder %s11, 0
    %p82 = por %p80, %p81
    %p83 = scmp.ne.s32.totalorder %s72, %s75
    %p84 = scmp.eq.s32.totalorder %s16, 3
    %p85 = por %p83, %p84
    %p86 = scmp.ne.s32.totalorder %s75, %s76
    %p87 = scmp.eq.s32.totalorder %s16, 0
    %p88 = por %p86, %p87
    %p89 = scmp.ne.s32.totalorder %s75, %s76
    %p90 = scmp.eq.s32.totalorder %s17, 3
    %p91 = por %p89, %p90
    %p93 = scmp.ne.s32.totalorder %s76, %s92
    %p94 = scmp.eq.s32.totalorder %s17, 0
    %p95 = por %p93, %p94
    %s97 = sadd.s32 %s96, 1
    %p100 = scmp.eq.s32.totalorder %s11, 3
    %p101 = scmp.ne.s32.totalorder %s96, %s98
    %p102 = scmp.eq.s32.totalorder %s11, 0
    %p103 = por %p101, %p102
    %p104 = scmp.ne.s32.totalorder %s96, %s98
    %p105 = scmp.eq.s32.totalorder %s16, 3
    %p106 = por %p104, %p105
    %p107 = scmp.ne.s32.totalorder %s98, %s99
    %p108 = scmp.eq.s32.totalorder %s16, 0
    %p109 = por %p107, %p108
    %p110 = scmp.ne.s32.totalorder %s98, %s99
    %p111 = scmp.eq.s32.totalorder %s17, 3
    %p112 = por %p110, %p111
    %p114 = scmp.ne.s32.totalorder %s99, %s113
    %p115 = scmp.eq.s32.totalorder %s17, 0
    %p116 = por %p114, %p115
    %s117 = ssub.s32 %s18, %s37
    %s118 = ssub.s32 %s19, %s33
    %s119 = sor.u32 %s117, %s118
    %p120 = scmp.eq.s32.totalorder %s119, 0
    %s122 = sadd.s32 %s121, 1
    %s123 = scalar_select %p120, %s121, %s122
    %p126 = pneg %p120
    %p127 = scmp.eq.s32.totalorder %s11, 3
    %p128 = por %p126, %p127
    %p129 = scmp.ne.s32.totalorder %s121, %s124
    %p130 = scmp.eq.s32.totalorder %s11, 0
    %p131 = por %p129, %p130
    %p132 = scmp.ne.s32.totalorder %s121, %s124
    %p133 = scmp.eq.s32.totalorder %s16, 3
    %p134 = por %p132, %p133
    %p135 = scmp.ne.s32.totalorder %s124, %s125
    %p136 = scmp.eq.s32.totalorder %s16, 0
    %p137 = por %p135, %p136
    %p138 = scmp.ne.s32.totalorder %s124, %s125
    %p139 = scmp.eq.s32.totalorder %s17, 3
    %p140 = por %p138, %p139
    %p142 = scmp.ne.s32.totalorder %s125, %s141
    %p143 = scmp.eq.s32.totalorder %s17, 0
    %p144 = por %p142, %p143
    %s145 = ssub.s32 %s18, %s37
    %s146 = ssub.s32 %s19, %s33
    %s147 = sor.u32 %s145, %s146
    %p148 = scmp.eq.s32.totalorder %s147, 0
    %s150 = sadd.s32 %s149, 1
    %s151 = scalar_select %p148, %s149, %s150
    %p154 = pneg %p148
    %p155 = scmp.eq.s32.totalorder %s11, 3
    %p156 = por %p154, %p155
    %p157 = scmp.ne.s32.totalorder %s149, %s152
    %p158 = scmp.eq.s32.totalorder %s11, 0
    %p159 = por %p157, %p158
    %p160 = scmp.ne.s32.totalorder %s149, %s152
    %p161 = scmp.eq.s32.totalorder %s16, 3
    %p162 = por %p160, %p161
    %p163 = scmp.ne.s32.totalorder %s152, %s153
    %p164 = scmp.eq.s32.totalorder %s16, 0
    %p165 = por %p163, %p164
    %p166 = scmp.ne.s32.totalorder %s152, %s153
    %p167 = scmp.eq.s32.totalorder %s17, 3
    %p168 = por %p166, %p167
    %p170 = scmp.ne.s32.totalorder %s153, %s169
    %p171 = scmp.eq.s32.totalorder %s17, 0
    %p172 = por %p170, %p171
    %p173 = scmp.le.s32.totalorder 1, %s11
    %p174 = scmp.lt.s32.totalorder %s11, 5
    %p175 = pnand %p173, %p174
    %p176 = pneg %p175
    // Predicated region
    $region9: #{_lambda_.31} parent=5 // pred_check
      _
    $region10: #{_lambda_.31} parent=5 // pred_check_branch
      %178 = sbr.rel (%p175) target = $region12
    $region11: #{_lambda_.31} parent=5 // pred_region
      %s179 = ssub.s32 %s11, 1
      // Predicated region
      $region13: #{_lambda_.31} parent=11 // pred_check
        %p180 = pneg %p109
      $region14: #{_lambda_.31} parent=11 // pred_check_branch
        %182 = sbr.rel (%p180) target = $region16
      $region15: #{_lambda_.31} parent=11 // pred_region
        _
      $region16: #{_lambda_.31} parent=11 // pred_fallthru
        _
    $region12: #{_lambda_.31} parent=5 // pred_fallthru
      _
    %p183 = scmp.lt.s32.totalorder %s11, 4
    // Predicated region
    $region17: #{_lambda_.31} parent=5 // pred_check
      %p184 = pneg %p183
    $region18: #{_lambda_.31} parent=5 // pred_check_branch
      %186 = sbr.rel (%p184) target = $region20
    $region19: #{_lambda_.31} parent=5 // pred_region
      // Predicated region
      $region21: #{_lambda_.31} parent=19 // pred_check
        %p187 = pneg %p54
      $region22: #{_lambda_.31} parent=19 // pred_check_branch
        %189 = sbr.rel (%p187) target = $region24
      $region23: #{_lambda_.31} parent=19 // pred_region
        %s190 = smul.u32 16, %s19
        %p191 = scmp.lt.s32.totalorder %s18, 3
        %s192 = scalar_select %p191, %s18, 3
        %p193 = scmp.lt.s32.totalorder %s190, 15
        %s194 = scalar_select %p193, %s190, 15
        %p195 = scmp.lt.s32.totalorder %s20, 0
        %s196 = scalar_select %p195, %s20, 0
        %s197 = sadd.s32 %s196, %s194
        %s198 = smul.addr %s192, 16
        %s199 = sadd.s32 %s197, %s198
        %s200 = smul.addr %s199, 4
        %s201 = scalar_lea.vmem %s0, %s200
        %s202 = smul.u32 16, %s19
      $region24: #{_lambda_.31} parent=19 // pred_fallthru
        _
      // Predicated region
      $region25: #{_lambda_.31} parent=19 // pred_check
        %p203 = pneg %p82
      $region26: #{_lambda_.31} parent=19 // pred_check_branch
        %205 = sbr.rel (%p203) target = $region28
      $region27: #{_lambda_.31} parent=19 // pred_region
        %s206 = smul.u32 16, %s20
        %p207 = scmp.lt.s32.totalorder %s18, 3
        %s208 = scalar_select %p207, %s18, 3
        %p209 = scmp.lt.s32.totalorder %s206, 15
        %s210 = scalar_select %p209, %s206, 15
        %s211 = smul.addr %s208, 16
        %s212 = sadd.s32 %s210, %s211
        %s213 = smul.addr %s212, 4
        %s214 = scalar_lea.vmem %s1, %s213
        %s215 = smul.u32 16, %s20
      $region28: #{_lambda_.31} parent=19 // pred_fallthru
        _
    $region20: #{_lambda_.31} parent=5 // pred_fallthru
      _
    %p216 = scmp.le.s32.totalorder 1, %s11
    %p217 = scmp.lt.s32.totalorder %s11, 5
    %p218 = pnand %p216, %p217
    %p219 = pneg %p218
    // Predicated region
    $region29: #{_lambda_.31} parent=5 // pred_check
      _
    $region30: #{_lambda_.31} parent=5 // pred_check_branch
      %221 = sbr.rel (%p218) target = $region32
    $region31: #{_lambda_.31} parent=5 // pred_region
      %s222 = ssub.s32 %s11, 1
      %s223 = smul.u32 16, %s22
      %p224 = scmp.lt.s32.totalorder %s21, 3
      %s225 = scalar_select %p224, %s21, 3
      %p226 = scmp.lt.s32.totalorder %s223, 15
      %s227 = scalar_select %p226, %s223, 15
      %p228 = scmp.lt.s32.totalorder %s23, 0
      %s229 = scalar_select %p228, %s23, 0
      %s230 = sadd.s32 %s229, %s227
      %s231 = smul.addr %s225, 16
      %s232 = sadd.s32 %s230, %s231
      %s233 = smul.addr %s232, 4
      %s234 = scalar_lea.vmem %s0, %s233
      %p235 = pneg %p60
      %p236 = pneg %p57
      %s237 = smul.u32 16, %s23
      %p238 = scmp.lt.s32.totalorder %s21, 3
      %s239 = scalar_select %p238, %s21, 3
      %p240 = scmp.lt.s32.totalorder %s237, 15
      %s241 = scalar_select %p240, %s237, 15
      %s242 = smul.addr %s239, 16
      %s243 = sadd.s32 %s241, %s242
      %s244 = smul.addr %s243, 4
      %s245 = scalar_lea.vmem %s1, %s244
      %p246 = pneg %p88
      %p247 = pneg %p85
      %p248 = pneg %p109
      %p249 = pneg %p106
      %p250 = pneg %p137
      %p251 = pneg %p134
      %s252 = smul.u32 16, %s22
      %p253 = scmp.lt.s32.totalorder %s21, 3
      %s254 = scalar_select %p253, %s21, 3
      %p255 = scmp.lt.s32.totalorder %s252, 15
      %s256 = scalar_select %p255, %s252, 15
      %s257 = smul.addr %s254, 16
      %s258 = sadd.s32 %s256, %s257
      %s259 = smul.addr %s258, 8
      %s260 = scalar_lea.vmem %s3, %s259
      %p261 = pneg %p165
      %p262 = pneg %p162
      %p263 = scmp.lt.s32.totalorder %s21, 3
      %s264 = scalar_select %p263, %s21, 3
      %p265 = scmp.lt.s32.totalorder %s22, 0
      %s266 = scalar_select %p265, %s22, 0
      %s267 = sadd.s32 %s266, %s264
      %s268 = smul.addr %s267, 8
      %s269 = scalar_lea.vmem %s4, %s268
      %s270 = smul.u32 16, %s22
      %p271 = scmp.lt.s32.totalorder %s21, 3
      %s272 = scalar_select %p271, %s21, 3
      %p273 = scmp.lt.s32.totalorder %s270, 15
      %s274 = scalar_select %p273, %s270, 15
      %p275 = scmp.lt.s32.totalorder %s23, 0
      %s276 = scalar_select %p275, %s23, 0
      %s277 = sadd.s32 %s276, %s274
      %s278 = smul.addr %s272, 16
      %s279 = sadd.s32 %s277, %s278
      %s280 = smul.addr %s279, 4
      %s281 = scalar_lea.vmem %s0, %s280
      %s282 = smul.u32 16, %s22
      %s283 = smul.u32 16, %s23
      %p284 = scmp.lt.s32.totalorder %s21, 3
      %s285 = scalar_select %p284, %s21, 3
      %p286 = scmp.lt.s32.totalorder %s283, 15
      %s287 = scalar_select %p286, %s283, 15
      %s288 = smul.addr %s285, 16
      %s289 = sadd.s32 %s287, %s288
      %s290 = smul.addr %s289, 4
      %s291 = scalar_lea.vmem %s1, %s290
      %s292 = smul.u32 16, %s23
      %s293 = smul.u32 16, %s22
      %p294 = scmp.lt.s32.totalorder %s21, 3
      %s295 = scalar_select %p294, %s21, 3
      %p296 = scmp.lt.s32.totalorder %s293, 15
      %s297 = scalar_select %p296, %s293, 15
      %s298 = smul.addr %s295, 16
      %s299 = sadd.s32 %s297, %s298
      %s300 = smul.addr %s299, 8
      %s301 = scalar_lea.vmem %s3, %s300
      %s302 = smul.u32 16, %s22
      %p303 = scmp.lt.s32.totalorder %s21, 3
      %s304 = scalar_select %p303, %s21, 3
      %p305 = scmp.lt.s32.totalorder %s22, 0
      %s306 = scalar_select %p305, %s22, 0
      %s307 = sadd.s32 %s306, %s304
      %s308 = smul.addr %s307, 8
      %s309 = scalar_lea.vmem %s4, %s308
      %p311 = scmp.eq.s32.totalorder %s23, 0
      // Predicated region
      $region33: #{_lambda_.31} parent=31 // pred_check
        %p312 = pneg %p311
      $region34: #{_lambda_.31} parent=31 // pred_check_branch
        %314 = sbr.rel (%p312) target = $region36
      $region35: #{_lambda_.31} parent=31 // pred_region
        %vm315 = vcmask 64512
        %316 = vst.msk [vmem:[#allocation2] sm:$0xff] %vm315, 0.0
        %317 = vst.msk [vmem:[#allocation2 + $0x8] sm:$0xff] %vm315, 0.0
        %318 = vst.msk [vmem:[#allocation2 + $0x10] sm:$0xff] %vm315, 0.0
        %319 = vst.msk [vmem:[#allocation2 + $0x18] sm:$0xff] %vm315, 0.0
        %320 = vst.msk [vmem:[#allocation2 + $0x20] sm:$0xff] %vm315, 0.0
        %321 = vst.msk [vmem:[#allocation2 + $0x28] sm:$0xff] %vm315, 0.0
        %322 = vst.msk [vmem:[#allocation2 + $0x30] sm:$0xff] %vm315, 0.0
        %323 = vst.msk [vmem:[#allocation2 + $0x38] sm:$0xff] %vm315, 0.0
        %324 = vst.msk [vmem:[#allocation2 + $0x40] sm:$0xff] %vm315, 0.0
        %325 = vst.msk [vmem:[#allocation2 + $0x48] sm:$0xff] %vm315, 0.0
        %326 = vst.msk [vmem:[#allocation2 + $0x50] sm:$0xff] %vm315, 0.0
        %327 = vst.msk [vmem:[#allocation2 + $0x58] sm:$0xff] %vm315, 0.0
        %328 = vst.msk [vmem:[#allocation2 + $0x60] sm:$0xff] %vm315, 0.0
        %329 = vst.msk [vmem:[#allocation2 + $0x68] sm:$0xff] %vm315, 0.0
        %330 = vst.msk [vmem:[#allocation2 + $0x70] sm:$0xff] %vm315, 0.0
        %331 = vst.msk [vmem:[#allocation2 + $0x78] sm:$0xff] %vm315, 0.0
      $region36: #{_lambda_.31} parent=31 // pred_fallthru
        _
      %v332 = vld [vmem:[%s281] sm:$0xf]
      %v333 = vld [vmem:[%s281 + $0x4] sm:$0xf]
      %v334 = vld [vmem:[%s281 + $0x8] sm:$0xf]
      %v335 = vld [vmem:[%s281 + $0xc] sm:$0xf]
      %v336 = vld [vmem:[%s281 + $0x10] sm:$0xf]
      %v337 = vld [vmem:[%s281 + $0x14] sm:$0xf]
      %v338 = vld [vmem:[%s281 + $0x18] sm:$0xf]
      %v339 = vld [vmem:[%s281 + $0x1c] sm:$0xf]
      %v340 = vld [vmem:[%s281 + $0x20] sm:$0xf]
      %v341 = vld [vmem:[%s281 + $0x24] sm:$0xf]
      %v342 = vld [vmem:[%s281 + $0x28] sm:$0xf]
      %v343 = vld [vmem:[%s281 + $0x2c] sm:$0xf]
      %v344 = vld [vmem:[%s281 + $0x30] sm:$0xf]
      %v345 = vld [vmem:[%s281 + $0x34] sm:$0xf]
      %v346 = vld [vmem:[%s281 + $0x38] sm:$0xf]
      %v347 = vld [vmem:[%s281 + $0x3c] sm:$0xf]
      %v348 = vmax.bf16 %v332, 0
      %v349 = vmax.bf16 %v333, 0
      %v350 = vmax.bf16 %v334, 0
      %v351 = vmax.bf16 %v335, 0
      %v352 = vmax.bf16 %v336, 0
      %v353 = vmax.bf16 %v337, 0
      %v354 = vmax.bf16 %v338, 0
      %v355 = vmax.bf16 %v339, 0
      %v356 = vmax.bf16 %v340, 0
      %v357 = vmax.bf16 %v341, 0
      %v358 = vmax.bf16 %v342, 0
      %v359 = vmax.bf16 %v343, 0
      %v360 = vmax.bf16 %v344, 0
      %v361 = vmax.bf16 %v345, 0
      %v362 = vmax.bf16 %v346, 0
      %v363 = vmax.bf16 %v347, 0
      %v364 = vld [vmem:[#allocation2] sm:$0xff]
      %v365 = vld [vmem:[#allocation2 + $0x8] sm:$0xff]
      %v366 = vld [vmem:[#allocation2 + $0x10] sm:$0xff]
      %v367 = vld [vmem:[#allocation2 + $0x18] sm:$0xff]
      %v368 = vld [vmem:[#allocation2 + $0x20] sm:$0xff]
      %v369 = vld [vmem:[#allocation2 + $0x28] sm:$0xff]
      %v370 = vld [vmem:[#allocation2 + $0x30] sm:$0xff]
      %v371 = vld [vmem:[#allocation2 + $0x38] sm:$0xff]
      %v372 = vld [vmem:[#allocation2 + $0x40] sm:$0xff]
      %v373 = vld [vmem:[#allocation2 + $0x48] sm:$0xff]
      %v374 = vld [vmem:[#allocation2 + $0x50] sm:$0xff]
      %v375 = vld [vmem:[#allocation2 + $0x58] sm:$0xff]
      %v376 = vld [vmem:[#allocation2 + $0x60] sm:$0xff]
      %v377 = vld [vmem:[#allocation2 + $0x68] sm:$0xff]
      %v378 = vld [vmem:[#allocation2 + $0x70] sm:$0xff]
      %v379 = vld [vmem:[#allocation2 + $0x78] sm:$0xff]
      %v380 = vld [vmem:[%s291] sm:$0xf]
      %v381 = vld [vmem:[%s291 + $0x4] sm:$0xf]
      %v382 = vld [vmem:[%s291 + $0x8] sm:$0xf]
      %v383 = vld [vmem:[%s291 + $0xc] sm:$0xf]
      %v384 = vld [vmem:[%s291 + $0x10] sm:$0xf]
      %v385 = vld [vmem:[%s291 + $0x14] sm:$0xf]
      %v386 = vld [vmem:[%s291 + $0x18] sm:$0xf]
      %v387 = vld [vmem:[%s291 + $0x1c] sm:$0xf]
      %v388 = vld [vmem:[%s291 + $0x20] sm:$0xf]
      %v389 = vld [vmem:[%s291 + $0x24] sm:$0xf]
      %v390 = vld [vmem:[%s291 + $0x28] sm:$0xf]
      %v391 = vld [vmem:[%s291 + $0x2c] sm:$0xf]
      %v392 = vld [vmem:[%s291 + $0x30] sm:$0xf]
      %v393 = vld [vmem:[%s291 + $0x34] sm:$0xf]
      %v394 = vld [vmem:[%s291 + $0x38] sm:$0xf]
      %v395 = vld [vmem:[%s291 + $0x3c] sm:$0xf]
      %v412 = vunpack.c.l.b16 %v348
      %v413 = vunpack.c.l.b16 %v349
      %v414 = vunpack.c.l.b16 %v350
      %v415 = vunpack.c.l.b16 %v351
      %v416 = vunpack.c.l.b16 %v352
      %v417 = vunpack.c.l.b16 %v353
      %v418 = vunpack.c.l.b16 %v354
      %v419 = vunpack.c.l.b16 %v355
      %v420 = vunpack.c.l.b16 %v356
      %v421 = vunpack.c.l.b16 %v357
      %v422 = vunpack.c.l.b16 %v358
      %v423 = vunpack.c.l.b16 %v359
      %v424 = vunpack.c.l.b16 %v360
      %v425 = vunpack.c.l.b16 %v361
      %v426 = vunpack.c.l.b16 %v362
      %v427 = vunpack.c.l.b16 %v363
      %v428 = vpack.c.b16 %v413, %v412
      %v429 = vpack.c.b16 %v415, %v414
      %v430 = vpack.c.b16 %v417, %v416
      %v431 = vpack.c.b16 %v419, %v418
      %v432 = vpack.c.b16 %v421, %v420
      %v433 = vpack.c.b16 %v423, %v422
      %v434 = vpack.c.b16 %v425, %v424
      %v435 = vpack.c.b16 %v427, %v426
      %v460 = vunpack.c.l.b16 %v380
      %v461 = vunpack.c.l.b16 %v381
      %v462 = vunpack.c.l.b16 %v382
      %v463 = vunpack.c.l.b16 %v383
      %v464 = vunpack.c.l.b16 %v384
      %v465 = vunpack.c.l.b16 %v385
      %v466 = vunpack.c.l.b16 %v386
      %v467 = vunpack.c.l.b16 %v387
      %v468 = vunpack.c.l.b16 %v388
      %v469 = vunpack.c.l.b16 %v389
      %v470 = vunpack.c.l.b16 %v390
      %v471 = vunpack.c.l.b16 %v391
      %v472 = vunpack.c.l.b16 %v392
      %v473 = vunpack.c.l.b16 %v393
      %v474 = vunpack.c.l.b16 %v394
      %v475 = vunpack.c.l.b16 %v395
      %v476 = vpack.c.b16 %v461, %v460
      %v477 = vpack.c.b16 %v463, %v462
      %v478 = vpack.c.b16 %v465, %v464
      %v479 = vpack.c.b16 %v467, %v466
      %v480 = vpack.c.b16 %v469, %v468
      %v481 = vpack.c.b16 %v471, %v470
      %v482 = vpack.c.b16 %v473, %v472
      %v483 = vpack.c.b16 %v475, %v474
      %492 = vmatprep.subr.bf16.mxu0 0
      %493 = vmatpush1.bf16.msra.mxu0 %v483
      %494 = vmatprep.subr.bf16.mxu0 0
      %495 = vmatpush1.bf16.msra.mxu0 %v482
      %496 = vmatprep.subr.bf16.mxu0 0
      %497 = vmatpush1.bf16.msra.mxu0 %v481
      %498 = vmatprep.subr.bf16.mxu0 0
      %499 = vmatpush1.bf16.msra.mxu0 %v480
      %500 = vmatprep.subr.bf16.mxu0 0
      %501 = vmatpush1.bf16.msra.mxu0 %v479
      %502 = vmatprep.subr.bf16.mxu0 0
      %503 = vmatpush1.bf16.msra.mxu0 %v478
      %504 = vmatprep.subr.bf16.mxu0 0
      %505 = vmatpush1.bf16.msra.mxu0 %v477
      %506 = vmatprep.subr.bf16.mxu0 0
      %507 = vmatpush1.bf16.msra.mxu0 %v476
      %508 = vmatprep.subr.bf16.mxu0 0
      %509 = vmatpush2.bf16.msra.mxu0 0
      %510 = vmatprep.subr.bf16.mxu0 0
      %511 = vmatpush2.bf16.msra.mxu0 0
      %512 = vmatprep.subr.bf16.mxu0 0
      %513 = vmatpush2.bf16.msra.mxu0 0
      %514 = vmatprep.subr.bf16.mxu0 0
      %515 = vmatpush2.bf16.msra.mxu0 0
      %516 = vmatprep.subr.bf16.mxu0 0
      %517 = vmatpush2.bf16.msra.mxu0 0
      %518 = vmatprep.subr.bf16.mxu0 0
      %519 = vmatpush2.bf16.msra.mxu0 0
      %520 = vmatprep.subr.bf16.mxu0 0
      %521 = vmatpush2.bf16.msra.mxu0 0
      %522 = vmatprep.subr.bf16.mxu0 0
      %523 = vmatpush2.bf16.msra.mxu0 0
      %524 = vmatprep.mubr.bf16.mxu0 0
      %525 = vmatmul.mubr.bf16.gmra.mxu0 %v428
      %v526 = vpop.f32.mrf.mxu0
      %v527 = vadd.f32 0.0, %v526
      %v528 = vpop.f32.mrf.mxu0
      %v529 = vpop.f32.mrf.mxu0
      %v530 = vadd.f32 0.0, %v529
      %v531 = vpop.f32.mrf.mxu0
      %532 = vmatprep.mubr.bf16.mxu0 0
      %533 = vmatmul.mubr.bf16.gmra.mxu0 %v429
      %v534 = vpop.f32.mrf.mxu0
      %v535 = vadd.f32 0.0, %v534
      %v536 = vpop.f32.mrf.mxu0
      %v537 = vpop.f32.mrf.mxu0
      %v538 = vadd.f32 0.0, %v537
      %v539 = vpop.f32.mrf.mxu0
      %540 = vmatprep.mubr.bf16.mxu0 0
      %541 = vmatmul.mubr.bf16.gmra.mxu0 %v430
      %v542 = vpop.f32.mrf.mxu0
      %v543 = vadd.f32 0.0, %v542
      %v544 = vpop.f32.mrf.mxu0
      %v545 = vpop.f32.mrf.mxu0
      %v546 = vadd.f32 0.0, %v545
      %v547 = vpop.f32.mrf.mxu0
      %548 = vmatprep.mubr.bf16.mxu0 0
      %549 = vmatmul.mubr.bf16.gmra.mxu0 %v431
      %v550 = vpop.f32.mrf.mxu0
      %v551 = vadd.f32 0.0, %v550
      %v552 = vpop.f32.mrf.mxu0
      %v553 = vpop.f32.mrf.mxu0
      %v554 = vadd.f32 0.0, %v553
      %v555 = vpop.f32.mrf.mxu0
      %556 = vmatprep.mubr.bf16.mxu0 0
      %557 = vmatmul.mubr.bf16.gmra.mxu0 %v432
      %v558 = vpop.f32.mrf.mxu0
      %v559 = vadd.f32 0.0, %v558
      %v560 = vpop.f32.mrf.mxu0
      %v561 = vpop.f32.mrf.mxu0
      %v562 = vadd.f32 0.0, %v561
      %v563 = vpop.f32.mrf.mxu0
      %564 = vmatprep.mubr.bf16.mxu0 0
      %565 = vmatmul.mubr.bf16.gmra.mxu0 %v433
      %v566 = vpop.f32.mrf.mxu0
      %v567 = vadd.f32 0.0, %v566
      %v568 = vpop.f32.mrf.mxu0
      %v569 = vpop.f32.mrf.mxu0
      %v570 = vadd.f32 0.0, %v569
      %v571 = vpop.f32.mrf.mxu0
      %572 = vmatprep.mubr.bf16.mxu0 0
      %573 = vmatmul.mubr.bf16.gmra.mxu0 %v434
      %v574 = vpop.f32.mrf.mxu0
      %v575 = vadd.f32 0.0, %v574
      %v576 = vpop.f32.mrf.mxu0
      %v577 = vpop.f32.mrf.mxu0
      %v578 = vadd.f32 0.0, %v577
      %v579 = vpop.f32.mrf.mxu0
      %580 = vmatprep.mubr.bf16.mxu0 0
      %581 = vmatmul.mubr.bf16.gmra.mxu0 %v435
      %v582 = vpop.f32.mrf.mxu0
      %v583 = vadd.f32 0.0, %v582
      %v584 = vpop.f32.mrf.mxu0
      %v585 = vpop.f32.mrf.mxu0
      %v586 = vadd.f32 0.0, %v585
      %v587 = vpop.f32.mrf.mxu0
      %588 = vdwg.mxu0
      %v589 = vadd.f32 %v364, %v527
      %v590 = vadd.f32 %v365, %v530
      %v591 = vadd.f32 %v366, %v535
      %v592 = vadd.f32 %v367, %v538
      %v593 = vadd.f32 %v368, %v543
      %v594 = vadd.f32 %v369, %v546
      %v595 = vadd.f32 %v370, %v551
      %v596 = vadd.f32 %v371, %v554
      %v597 = vadd.f32 %v372, %v559
      %v598 = vadd.f32 %v373, %v562
      %v599 = vadd.f32 %v374, %v567
      %v600 = vadd.f32 %v375, %v570
      %v601 = vadd.f32 %v376, %v575
      %v602 = vadd.f32 %v377, %v578
      %v603 = vadd.f32 %v378, %v583
      %v604 = vadd.f32 %v379, %v586
      %vm605 = vcmask 64512
      %606 = vst.msk [vmem:[#allocation2] sm:$0xff] %vm605, %v589
      %607 = vst.msk [vmem:[#allocation2 + $0x8] sm:$0xff] %vm605, %v590
      %608 = vst.msk [vmem:[#allocation2 + $0x10] sm:$0xff] %vm605, %v591
      %609 = vst.msk [vmem:[#allocation2 + $0x18] sm:$0xff] %vm605, %v592
      %610 = vst.msk [vmem:[#allocation2 + $0x20] sm:$0xff] %vm605, %v593
      %611 = vst.msk [vmem:[#allocation2 + $0x28] sm:$0xff] %vm605, %v594
      %612 = vst.msk [vmem:[#allocation2 + $0x30] sm:$0xff] %vm605, %v595
      %613 = vst.msk [vmem:[#allocation2 + $0x38] sm:$0xff] %vm605, %v596
      %614 = vst.msk [vmem:[#allocation2 + $0x40] sm:$0xff] %vm605, %v597
      %615 = vst.msk [vmem:[#allocation2 + $0x48] sm:$0xff] %vm605, %v598
      %616 = vst.msk [vmem:[#allocation2 + $0x50] sm:$0xff] %vm605, %v599
      %617 = vst.msk [vmem:[#allocation2 + $0x58] sm:$0xff] %vm605, %v600
      %618 = vst.msk [vmem:[#allocation2 + $0x60] sm:$0xff] %vm605, %v601
      %619 = vst.msk [vmem:[#allocation2 + $0x68] sm:$0xff] %vm605, %v602
      %620 = vst.msk [vmem:[#allocation2 + $0x70] sm:$0xff] %vm605, %v603
      %621 = vst.msk [vmem:[#allocation2 + $0x78] sm:$0xff] %vm605, %v604
      // Predicated region
      $region37: #{_lambda_.31} parent=31 // pred_check
        %p622 = pneg %p311
      $region38: #{_lambda_.31} parent=31 // pred_check_branch
        %624 = sbr.rel (%p622) target = $region40
      $region39: #{_lambda_.31} parent=31 // pred_region
        %v625 = vld [vmem:[#allocation2] sm:$0xff]
        %v626 = vld [vmem:[#allocation2 + $0x8] sm:$0xff]
        %v627 = vld [vmem:[#allocation2 + $0x10] sm:$0xff]
        %v628 = vld [vmem:[#allocation2 + $0x18] sm:$0xff]
        %v629 = vld [vmem:[#allocation2 + $0x20] sm:$0xff]
        %v630 = vld [vmem:[#allocation2 + $0x28] sm:$0xff]
        %v631 = vld [vmem:[#allocation2 + $0x30] sm:$0xff]
        %v632 = vld [vmem:[#allocation2 + $0x38] sm:$0xff]
        %v633 = vld [vmem:[#allocation2 + $0x40] sm:$0xff]
        %v634 = vld [vmem:[#allocation2 + $0x48] sm:$0xff]
        %v635 = vld [vmem:[#allocation2 + $0x50] sm:$0xff]
        %v636 = vld [vmem:[#allocation2 + $0x58] sm:$0xff]
        %v637 = vld [vmem:[#allocation2 + $0x60] sm:$0xff]
        %v638 = vld [vmem:[#allocation2 + $0x68] sm:$0xff]
        %v639 = vld [vmem:[#allocation2 + $0x70] sm:$0xff]
        %v640 = vld [vmem:[#allocation2 + $0x78] sm:$0xff]
        %v641 = vld [vmem:[%s2] sm:$0x1]
        %v643 = vlaneseq
        %v644 = vshrl.u32 %v643, 7
        %v645 = vsub.s32 0, %v644
        %v646 = vrot.slane %v641, %v645
        %v648 = vadd.f32 %v625, %v646
        %v649 = vadd.f32 %v626, %v646
        %v650 = vadd.f32 %v627, %v646
        %v651 = vadd.f32 %v628, %v646
        %v652 = vadd.f32 %v629, %v646
        %v653 = vadd.f32 %v630, %v646
        %v654 = vadd.f32 %v631, %v646
        %v655 = vadd.f32 %v632, %v646
        %v656 = vadd.f32 %v633, %v646
        %v657 = vadd.f32 %v634, %v646
        %v658 = vadd.f32 %v635, %v646
        %v659 = vadd.f32 %v636, %v646
        %v660 = vadd.f32 %v637, %v646
        %v661 = vadd.f32 %v638, %v646
        %v662 = vadd.f32 %v639, %v646
        %v663 = vadd.f32 %v640, %v646
        %v664 = vsel %vm605, %v648, 0.0
        %v665 = vsel %vm605, %v649, 0.0
        %v666 = vadd.f32 %v664, %v665
        %v667 = vsel %vm605, %v650, 0.0
        %v668 = vadd.f32 %v666, %v667
        %v669 = vsel %vm605, %v651, 0.0
        %v670 = vadd.f32 %v668, %v669
        %v671 = vsel %vm605, %v652, 0.0
        %v672 = vadd.f32 %v670, %v671
        %v673 = vsel %vm605, %v653, 0.0
        %v674 = vadd.f32 %v672, %v673
        %v675 = vsel %vm605, %v654, 0.0
        %v676 = vadd.f32 %v674, %v675
        %v677 = vsel %vm605, %v655, 0.0
        %v678 = vadd.f32 %v676, %v677
        %v679 = vsel %vm605, %v656, 0.0
        %v680 = vadd.f32 %v678, %v679
        %v681 = vsel %vm605, %v657, 0.0
        %v682 = vadd.f32 %v680, %v681
        %v683 = vsel %vm605, %v658, 0.0
        %v684 = vadd.f32 %v682, %v683
        %v685 = vsel %vm605, %v659, 0.0
        %v686 = vadd.f32 %v684, %v685
        %v687 = vsel %vm605, %v660, 0.0
        %v688 = vadd.f32 %v686, %v687
        %v689 = vsel %vm605, %v661, 0.0
        %v690 = vadd.f32 %v688, %v689
        %v691 = vsel %vm605, %v662, 0.0
        %v692 = vadd.f32 %v690, %v691
        %v693 = vsel %vm605, %v663, 0.0
        %v694 = vadd.f32 %v692, %v693
        %v695 = vrot.slane %v694, 4
        %v696 = vadd.f32 %v694, %v695
        %v697 = vrot.slane %v696, 2
        %v698 = vadd.f32 %v696, %v697
        %v699 = vrot.slane %v698, 1
        %v700 = vadd.f32 %v698, %v699
        %v701 = vmul.f32 %v648, %v648
        %v702 = vmul.f32 %v649, %v649
        %v703 = vmul.f32 %v650, %v650
        %v704 = vmul.f32 %v651, %v651
        %v705 = vmul.f32 %v652, %v652
        %v706 = vmul.f32 %v653, %v653
        %v707 = vmul.f32 %v654, %v654
        %v708 = vmul.f32 %v655, %v655
        %v709 = vmul.f32 %v656, %v656
        %v710 = vmul.f32 %v657, %v657
        %v711 = vmul.f32 %v658, %v658
        %v712 = vmul.f32 %v659, %v659
        %v713 = vmul.f32 %v660, %v660
        %v714 = vmul.f32 %v661, %v661
        %v715 = vmul.f32 %v662, %v662
        %v716 = vmul.f32 %v663, %v663
        %v717 = vsel %vm605, %v701, 0.0
        %v718 = vsel %vm605, %v702, 0.0
        %v719 = vadd.f32 %v717, %v718
        %v720 = vsel %vm605, %v703, 0.0
        %v721 = vadd.f32 %v719, %v720
        %v722 = vsel %vm605, %v704, 0.0
        %v723 = vadd.f32 %v721, %v722
        %v724 = vsel %vm605, %v705, 0.0
        %v725 = vadd.f32 %v723, %v724
        %v726 = vsel %vm605, %v706, 0.0
        %v727 = vadd.f32 %v725, %v726
        %v728 = vsel %vm605, %v707, 0.0
        %v729 = vadd.f32 %v727, %v728
        %v730 = vsel %vm605, %v708, 0.0
        %v731 = vadd.f32 %v729, %v730
        %v732 = vsel %vm605, %v709, 0.0
        %v733 = vadd.f32 %v731, %v732
        %v734 = vsel %vm605, %v710, 0.0
        %v735 = vadd.f32 %v733, %v734
        %v736 = vsel %vm605, %v711, 0.0
        %v737 = vadd.f32 %v735, %v736
        %v738 = vsel %vm605, %v712, 0.0
        %v739 = vadd.f32 %v737, %v738
        %v740 = vsel %vm605, %v713, 0.0
        %v741 = vadd.f32 %v739, %v740
        %v742 = vsel %vm605, %v714, 0.0
        %v743 = vadd.f32 %v741, %v742
        %v744 = vsel %vm605, %v715, 0.0
        %v745 = vadd.f32 %v743, %v744
        %v746 = vsel %vm605, %v716, 0.0
        %v747 = vadd.f32 %v745, %v746
        %v748 = vrot.slane %v747, 4
        %v749 = vadd.f32 %v747, %v748
        %v750 = vrot.slane %v749, 2
        %v751 = vadd.f32 %v749, %v750
        %v752 = vrot.slane %v751, 1
        %v753 = vadd.f32 %v751, %v752
        %vm754 = vcmask 1040384
        %v755 = vsel %vm754, %v700, %v753
        %vm756 = vcmask 1041408
        %v757 = vsel %vm756, %v755, 0.0
        %758 = vst.msk [vmem:[%s309] sm:$0xff] %vm605, %v757
        %759 = vst.msk [vmem:[%s301] sm:$0xff] %vm605, %v648
        %760 = vst.msk [vmem:[%s301 + $0x8] sm:$0xff] %vm605, %v649
        %761 = vst.msk [vmem:[%s301 + $0x10] sm:$0xff] %vm605, %v650
        %762 = vst.msk [vmem:[%s301 + $0x18] sm:$0xff] %vm605, %v651
        %763 = vst.msk [vmem:[%s301 + $0x20] sm:$0xff] %vm605, %v652
        %764 = vst.msk [vmem:[%s301 + $0x28] sm:$0xff] %vm605, %v653
        %765 = vst.msk [vmem:[%s301 + $0x30] sm:$0xff] %vm605, %v654
        %766 = vst.msk [vmem:[%s301 + $0x38] sm:$0xff] %vm605, %v655
        %767 = vst.msk [vmem:[%s301 + $0x40] sm:$0xff] %vm605, %v656
        %768 = vst.msk [vmem:[%s301 + $0x48] sm:$0xff] %vm605, %v657
        %769 = vst.msk [vmem:[%s301 + $0x50] sm:$0xff] %vm605, %v658
        %770 = vst.msk [vmem:[%s301 + $0x58] sm:$0xff] %vm605, %v659
        %771 = vst.msk [vmem:[%s301 + $0x60] sm:$0xff] %vm605, %v660
        %772 = vst.msk [vmem:[%s301 + $0x68] sm:$0xff] %vm605, %v661
        %773 = vst.msk [vmem:[%s301 + $0x70] sm:$0xff] %vm605, %v662
        %774 = vst.msk [vmem:[%s301 + $0x78] sm:$0xff] %vm605, %v663
      $region40: #{_lambda_.31} parent=31 // pred_fallthru
        _
      %s775 = smul.u32 16, %s22
      %p776 = scmp.lt.s32.totalorder %s21, 3
      %s777 = scalar_select %p776, %s21, 3
      %p778 = scmp.lt.s32.totalorder %s775, 15
      %s779 = scalar_select %p778, %s775, 15
      %s780 = smul.addr %s777, 16
      %s781 = sadd.s32 %s779, %s780
      %s782 = smul.addr %s781, 8
      %s783 = scalar_lea.vmem %s3, %s782
      %p784 = scmp.lt.s32.totalorder %s21, 3
      %s785 = scalar_select %p784, %s21, 3
      %p786 = scmp.lt.s32.totalorder %s22, 0
      %s787 = scalar_select %p786, %s22, 0
      %s788 = sadd.s32 %s787, %s785
      %s789 = smul.addr %s788, 8
      %s790 = scalar_lea.vmem %s4, %s789
      // Predicated region
      $region41: #{_lambda_.31} parent=31 // pred_check
        %p791 = pneg %p134
      $region42: #{_lambda_.31} parent=31 // pred_check_branch
        %793 = sbr.rel (%p791) target = $region44
      $region43: #{_lambda_.31} parent=31 // pred_region
        %s794 = smul.u32 16, %s22
      $region44: #{_lambda_.31} parent=31 // pred_fallthru
        _
      // Predicated region
      $region45: #{_lambda_.31} parent=31 // pred_check
        %p795 = pneg %p162
      $region46: #{_lambda_.31} parent=31 // pred_check_branch
        %797 = sbr.rel (%p795) target = $region48
      $region47: #{_lambda_.31} parent=31 // pred_region
        _
      $region48: #{_lambda_.31} parent=31 // pred_fallthru
        _
    $region32: #{_lambda_.31} parent=5 // pred_fallthru
      _
    %p798 = scmp.le.s32.totalorder 2, %s11
    // Predicated region
    $region49: #{_lambda_.31} parent=5 // pred_check
      %p799 = pneg %p798
    $region50: #{_lambda_.31} parent=5 // pred_check_branch
      %801 = sbr.rel (%p799) target = $region52
    $region51: #{_lambda_.31} parent=5 // pred_region
      %s802 = ssub.s32 %s11, 2
      // Predicated region
      $region53: #{_lambda_.31} parent=51 // pred_check
        %p803 = pneg %p140
      $region54: #{_lambda_.31} parent=51 // pred_check_branch
        %805 = sbr.rel (%p803) target = $region56
      $region55: #{_lambda_.31} parent=51 // pred_region
        %s806 = smul.u32 16, %s25
        %p807 = scmp.lt.s32.totalorder %s24, 3
        %s808 = scalar_select %p807, %s24, 3
        %p809 = scmp.lt.s32.totalorder %s806, 15
        %s810 = scalar_select %p809, %s806, 15
        %s811 = smul.addr %s808, 16
        %s812 = sadd.s32 %s810, %s811
        %s813 = smul.addr %s812, 8
        %s814 = scalar_lea.vmem %s3, %s813
      $region56: #{_lambda_.31} parent=51 // pred_fallthru
        _
      // Predicated region
      $region57: #{_lambda_.31} parent=51 // pred_check
        %p815 = pneg %p168
      $region58: #{_lambda_.31} parent=51 // pred_check_branch
        %817 = sbr.rel (%p815) target = $region60
      $region59: #{_lambda_.31} parent=51 // pred_region
        %p818 = scmp.lt.s32.totalorder %s24, 3
        %s819 = scalar_select %p818, %s24, 3
        %p820 = scmp.lt.s32.totalorder %s25, 0
        %s821 = scalar_select %p820, %s25, 0
        %s822 = sadd.s32 %s821, %s819
        %s823 = smul.addr %s822, 8
        %s824 = scalar_lea.vmem %s4, %s823
      $region60: #{_lambda_.31} parent=51 // pred_fallthru
        _
    $region52: #{_lambda_.31} parent=5 // pred_fallthru
      _
  $region6: #{_lambda_.31} parent=0 // loop_footer
    %s15 = sadd.s32 1, %s11
  $region7: #{_lambda_.31} parent=0 // loop_footer_branch
    %10 = sbr.rel target = $region3
  $region8: #{_lambda_.31} parent=0 // loop_exit
    _

// kernel: tile.134
$region0: #{tile.134}
  %s0 = inlined_call_operand.vmem [shape: f32[16,8], index: 0, kind: input, shape index: {}]
  %s1 = inlined_call_operand.vmem [shape: f32[1,128], index: 1, kind: output, shape index: {}]
  $region1: #{tile.134} parent=0
    #allocation0 [shape = 'u8[4096]{0}', space=vmem, size = 0x1000, scoped, tag = 'scoped mem for output reshape']
    %v2 = vld [vmem:[%s0] sm:$0x1]
    %vm3 = vcmask 64512
    %4 = vst.msk [vmem:[#allocation0] sm:$0x1] %vm3, %v2
    %s5 = scalar_lea.vmem %s0, 15
    %v6 = vld [vmem:[%s5] sm:$0x1]
    %7 = vrot.lane.b32.xlu0 %v6, 120
    %v8 = vpop.permute.xlu0 %7
    %vm9 = vcmask 1048512
    %10 = vst.msk [vmem:[#allocation0] sm:$0x1] %vm9, %v8
    %s11 = scalar_lea.vmem %s0, 14
    %v12 = vld [vmem:[%s11] sm:$0x1]
    %13 = vrot.lane.b32.xlu0 %v12, 112
    %v14 = vpop.permute.xlu0 %13
    %vm15 = vcmask 982912
    %16 = vst.msk [vmem:[#allocation0] sm:$0x1] %vm15, %v14
    %s17 = scalar_lea.vmem %s0, 13
    %v18 = vld [vmem:[%s17] sm:$0x1]
    %19 = vrot.lane.b32.xlu0 %v18, 104
    %v20 = vpop.permute.xlu0 %19
    %vm21 = vcmask 917312
    %22 = vst.msk [vmem:[#allocation0] sm:$0x1] %vm21, %v20
    %s23 = scalar_lea.vmem %s0, 12
    %v24 = vld [vmem:[%s23] sm:$0x1]
    %25 = vrot.lane.b32.xlu0 %v24, 96
    %v26 = vpop.permute.xlu0 %25
    %vm27 = vcmask 851712
    %28 = vst.msk [vmem:[#allocation0] sm:$0x1] %vm27, %v26
    %s29 = scalar_lea.vmem %s0, 11
    %v30 = vld [vmem:[%s29] sm:$0x1]
    %31 = vrot.lane.b32.xlu0 %v30, 88
    %v32 = vpop.permute.xlu0 %31
    %vm33 = vcmask 786112
    %34 = vst.msk [vmem:[#allocation0] sm:$0x1] %vm33, %v32
    %s35 = scalar_lea.vmem %s0, 10
    %v36 = vld [vmem:[%s35] sm:$0x1]
    %37 = vrot.lane.b32.xlu0 %v36, 80
    %v38 = vpop.permute.xlu0 %37
    %vm39 = vcmask 720512
    %40 = vst.msk [vmem:[#allocation0] sm:$0x1] %vm39, %v38
    %s41 = scalar_lea.vmem %s0, 9
    %v42 = vld [vmem:[%s41] sm:$0x1]
    %43 = vrot.lane.b32.xlu0 %v42, 72
    %v44 = vpop.permute.xlu0 %43
    %vm45 = vcmask 654912
    %46 = vst.msk [vmem:[#allocation0] sm:$0x1] %vm45, %v44
    %s47 = scalar_lea.vmem %s0, 8
    %v48 = vld [vmem:[%s47] sm:$0x1]
    %49 = vrot.lane.b32.xlu0 %v48, 64
    %v50 = vpop.permute.xlu0 %49
    %vm51 = vcmask 589312
    %52 = vst.msk [vmem:[#allocation0] sm:$0x1] %vm51, %v50
    %s53 = scalar_lea.vmem %s0, 7
    %v54 = vld [vmem:[%s53] sm:$0x1]
    %55 = vrot.lane.b32.xlu0 %v54, 56
    %v56 = vpop.permute.xlu0 %55
    %vm57 = vcmask 523712
    %58 = vst.msk [vmem:[#allocation0] sm:$0x1] %vm57, %v56
    %s59 = scalar_lea.vmem %s0, 6
    %v60 = vld [vmem:[%s59] sm:$0x1]
    %61 = vrot.lane.b32.xlu0 %v60, 48
    %v62 = vpop.permute.xlu0 %61
    %vm63 = vcmask 458112
    %64 = vst.msk [vmem:[#allocation0] sm:$0x1] %vm63, %v62
    %s65 = scalar_lea.vmem %s0, 5
    %v66 = vld [vmem:[%s65] sm:$0x1]
    %67 = vrot.lane.b32.xlu0 %v66, 40
    %v68 = vpop.permute.xlu0 %67
    %vm69 = vcmask 392512
    %70 = vst.msk [vmem:[#allocation0] sm:$0x1] %vm69, %v68
    %s71 = scalar_lea.vmem %s0, 4
    %v72 = vld [vmem:[%s71] sm:$0x1]
    %73 = vrot.lane.b32.xlu0 %v72, 32
    %v74 = vpop.permute.xlu0 %73
    %vm75 = vcmask 326912
    %76 = vst.msk [vmem:[#allocation0] sm:$0x1] %vm75, %v74
    %s77 = scalar_lea.vmem %s0, 3
    %v78 = vld [vmem:[%s77] sm:$0x1]
    %79 = vrot.lane.b32.xlu0 %v78, 24
    %v80 = vpop.permute.xlu0 %79
    %vm81 = vcmask 261312
    %82 = vst.msk [vmem:[#allocation0] sm:$0x1] %vm81, %v80
    %s83 = scalar_lea.vmem %s0, 2
    %v84 = vld [vmem:[%s83] sm:$0x1]
    %85 = vrot.lane.b32.xlu0 %v84, 16
    %v86 = vpop.permute.xlu0 %85
    %vm87 = vcmask 195712
    %88 = vst.msk [vmem:[#allocation0] sm:$0x1] %vm87, %v86
    %s89 = scalar_lea.vmem %s0, 1
    %v90 = vld [vmem:[%s89] sm:$0x1]
    %91 = vrot.lane.b32.xlu0 %v90, 8
    %v92 = vpop.permute.xlu0 %91
    %vm93 = vcmask 130112
    %94 = vst.msk [vmem:[#allocation0] sm:$0x1] %vm93, %v92
    %s96 = sshll.u32 1, 1
    %s97 = ssub.s32 %s96, 1
    %v99 = vld [vmem:[#allocation0] sm:%s97]
    %s100 = sshll.u32 1, 1
    %s101 = ssub.s32 %s100, 1
    %102 = vst [vmem:[%s1] sm:%s101] %v99

// kernel: _lambda_.32
$region0: #{_lambda_.32}
  #allocation0 [shape = 'u32[]', space=smem, size = 0x4, offset = 0x4, fixed_abs, tag = 'smem constant byte address 0x4 - core index']
  #allocation1 [shape = 'u32[144,128]{1,0:T(1,128)}', space=vmem, size = 0x12000, scoped, tag = 'internal scratch']
  %s0 = inlined_call_operand.vmem [shape: f32[32,128], index: 0, kind: input, shape index: {}]
  %s1 = inlined_call_operand.vmem [shape: f32[1,128], index: 1, kind: input, shape index: {}]
  %s2 = inlined_call_operand.vmem [shape: f32[1,128], index: 2, kind: input, shape index: {}]
  %s3 = inlined_call_operand.vmem [shape: f32[32,128], index: 3, kind: output, shape index: {}]
  %s4 = sld [smem:[#allocation0]]
  $region22: #{_lambda_.32} parent=0
    _
  %s6 = ssub.s32 1, %s4
  %s7 = scalar_select 0, %s6, %s4
  // Predicated region
  $region2: #{_lambda_.32} parent=0 // pred_check
    _
  $region3: #{_lambda_.32} parent=0 // pred_check_branch
    %9 = sbr.rel (0) target = $region5
  $region4: #{_lambda_.32} parent=0 // pred_region
    _
  $region5: #{_lambda_.32} parent=0 // pred_fallthru
    _
  // Predicated region
  $region6: #{_lambda_.32} parent=0 // pred_check
    _
  $region7: #{_lambda_.32} parent=0 // pred_check_branch
    %11 = sbr.rel (0) target = $region9
  $region8: #{_lambda_.32} parent=0 // pred_region
    _
  $region9: #{_lambda_.32} parent=0 // pred_fallthru
    _
  // Predicated region
  $region10: #{_lambda_.32} parent=0 // pred_check
    _
  $region11: #{_lambda_.32} parent=0 // pred_check_branch
    %13 = sbr.rel (0) target = $region13
  $region12: #{_lambda_.32} parent=0 // pred_region
    _
  $region13: #{_lambda_.32} parent=0 // pred_fallthru
    _
  %v14 = vld [vmem:[%s0] sm:$0xff]
  %v15 = vld [vmem:[%s0 + $0x8] sm:$0xff]
  %v16 = vld [vmem:[%s0 + $0x10] sm:$0xff]
  %v17 = vld [vmem:[%s0 + $0x18] sm:$0xff]
  %v18 = vld [vmem:[%s1] sm:$0x1]
  %v20 = vlaneseq
  %v21 = vshrl.u32 %v20, 7
  %v22 = vsub.s32 0, %v21
  %v23 = vrot.slane %v18, %v22
  %v25 = vmul.f32 %v14, %v23
  %v26 = vmul.f32 %v15, %v23
  %v27 = vmul.f32 %v16, %v23
  %v28 = vmul.f32 %v17, %v23
  %v29 = vld [vmem:[%s2] sm:$0x1]
  %v31 = vlaneseq
  %v32 = vshrl.u32 %v31, 7
  %v33 = vsub.s32 0, %v32
  %v34 = vrot.slane %v29, %v33
  %v36 = vadd.f32 %v25, %v34
  %v37 = vadd.f32 %v26, %v34
  %v38 = vadd.f32 %v27, %v34
  %v39 = vadd.f32 %v28, %v34
  %40 = vst [vmem:[%s3] sm:$0xff] %v36
  %41 = vst [vmem:[%s3 + $0x8] sm:$0xff] %v37
  %42 = vst [vmem:[%s3 + $0x10] sm:$0xff] %v38
  %43 = vst [vmem:[%s3 + $0x18] sm:$0xff] %v39
  // Predicated region
  $region14: #{_lambda_.32} parent=0 // pred_check
    _
  $region15: #{_lambda_.32} parent=0 // pred_check_branch
    %45 = sbr.rel (0) target = $region17
  $region16: #{_lambda_.32} parent=0 // pred_region
    _
  $region17: #{_lambda_.32} parent=0 // pred_fallthru
    _
  // Predicated region
  $region18: #{_lambda_.32} parent=0 // pred_check
    _
  $region19: #{_lambda_.32} parent=0 // pred_check_branch
    %47 = sbr.rel (0) target = $region21
  $region20: #{_lambda_.32} parent=0 // pred_region
    _
  $region21: #{_lambda_.32} parent=0 // pred_fallthru
    _

// kernel: _lambda_.33
$region0: #{_lambda_.33}
  #allocation0 [shape = 'u32[]', space=smem, size = 0x4, offset = 0x4, fixed_abs, tag = 'smem constant byte address 0x4 - core index']
  #allocation1 [shape = 'u32[144,128]{1,0:T(1,128)}', space=vmem, size = 0x12000, scoped, tag = 'internal scratch']
  #allocation2 [shape = 'f32[512,3]{1,0:T(8,128)}', space=vmem, size = 0x40000, scoped, tag = 'scratch operand']
  %s0 = inlined_call_operand.vmem [shape: bf16[4,512,64], index: 0, kind: input, shape index: {}]
  %s1 = inlined_call_operand.vmem [shape: bf16[4,64,3], index: 1, kind: input, shape index: {}]
  %s2 = inlined_call_operand.vmem [shape: f32[1,3], index: 2, kind: input, shape index: {}]
  %s3 = inlined_call_operand.vmem [shape: f32[4,512,3], index: 3, kind: output, shape index: {0}]
  %s4 = inlined_call_operand.hbm [shape: f32[4,1,8,3], index: 4, kind: output, shape index: {1}]
  %5 = xla_tuple %s3, %s4
  %s6 = sld [smem:[#allocation0]]
  $region61: #{_lambda_.33} parent=0
    _
  %s8 = ssub.s32 1, %s6
  %s9 = scalar_select 0, %s8, %s6
  $region1: #{_lambda_.33} parent=0
    #allocation3 [shape = 'u8[8192]{0}', space=vmem, size = 0x2000, scoped, tag = 'output window, operand 1']
    #allocation4 [shape = 's32[2]{0}', space=sflag, size = 0x8, scoped, tag = 'scoped memory for _lambda_.33']
    %10 = vsyncpa [#allocation4], 0
    %s11 = scalar_lea.sflag [#allocation4], 1
    %12 = vsyncpa %s11, 0
    loop: start=0, step=1, limit=6
    $region2: #{_lambda_.33} parent=1 // loop_pre_header
      _
    $region3: #{_lambda_.33} parent=1 // loop_header
      %s14 = sphi 0, %s18
      %p15 = scmp.ge.s32.totalorder %s14, 6
      %s21 = sphi 0, %s40
      %s22 = sphi 0, %s36
      %s23 = sphi 0, %s32
      %s24 = sphi 0, %s21
      %s25 = sphi 0, %s22
      %s26 = sphi 0, %s23
      %s27 = sphi 0, %s24
      %s28 = sphi 0, %s25
      %s29 = sphi 0, %s26
      %s47 = sphi 0, %s49
      %s50 = sphi 0, %s47
      %s51 = sphi 0, %s50
      %s67 = sphi 0, %s51
      %s75 = sphi 0, %s77
      %s78 = sphi 0, %s75
      %s79 = sphi 0, %s78
      %s95 = sphi 0, %s79
      %s99 = sphi 0, %s99
      %s101 = sphi 0, %s99
      %s102 = sphi 0, %s101
      %s116 = sphi 0, %s102
      %s124 = sphi 0, %s126
      %s127 = sphi 0, %s124
      %s128 = sphi 0, %s127
      %s144 = sphi 0, %s128
      %s152 = sphi 0, %s154
      %s155 = sphi 0, %s152
      %s156 = sphi 0, %s155
      %s172 = sphi 0, %s156
    $region4: #{_lambda_.33} parent=1 // loop_header_branch
      %17 = sbr.rel (%p15) target = $region8
    $region5: #{_lambda_.33} parent=1 // loop_body
      %s19 = ssub.s32 %s14, 1
      %s20 = ssub.s32 %s14, 2
      %s30 = sadd.s32 1, %s23
      %p31 = scmp.ge.s32.totalorder %s30, 1
      %s32 = scalar_select %p31, 0, %s30
      %s33 = sadd.s32 1, %s22
      %s34 = scalar_select %p31, %s33, %s22
      %p35 = scmp.ge.s32.totalorder %s34, 1
      %s36 = scalar_select %p35, 0, %s34
      %s37 = sadd.s32 1, %s21
      %s38 = scalar_select %p35, %s37, %s21
      %p39 = scmp.ge.s32.totalorder %s38, 4
      %s40 = scalar_select %p39, 0, %s38
      %s41 = ssub.s32 %s21, %s40
      %s42 = ssub.s32 %s22, %s36
      %s43 = sor.u32 %s41, %s42
      %s44 = ssub.s32 %s23, %s32
      %s45 = sor.u32 %s43, %s44
      %p46 = scmp.eq.s32.totalorder %s45, 0
      %s48 = sadd.s32 %s47, 1
      %s49 = scalar_select %p46, %s47, %s48
      %p52 = pneg %p46
      %p53 = scmp.eq.s32.totalorder %s14, 3
      %p54 = por %p52, %p53
      %p55 = scmp.ne.s32.totalorder %s47, %s50
      %p56 = scmp.eq.s32.totalorder %s14, 0
      %p57 = por %p55, %p56
      %p58 = scmp.ne.s32.totalorder %s47, %s50
      %p59 = scmp.eq.s32.totalorder %s19, 3
      %p60 = por %p58, %p59
      %p61 = scmp.ne.s32.totalorder %s50, %s51
      %p62 = scmp.eq.s32.totalorder %s19, 0
      %p63 = por %p61, %p62
      %p64 = scmp.ne.s32.totalorder %s50, %s51
      %p65 = scmp.eq.s32.totalorder %s20, 3
      %p66 = por %p64, %p65
      %p68 = scmp.ne.s32.totalorder %s51, %s67
      %p69 = scmp.eq.s32.totalorder %s20, 0
      %p70 = por %p68, %p69
      %s71 = ssub.s32 %s21, %s40
      %s72 = ssub.s32 %s23, %s32
      %s73 = sor.u32 %s71, %s72
      %p74 = scmp.eq.s32.totalorder %s73, 0
      %s76 = sadd.s32 %s75, 1
      %s77 = scalar_select %p74, %s75, %s76
      %p80 = pneg %p74
      %p81 = scmp.eq.s32.totalorder %s14, 3
      %p82 = por %p80, %p81
      %p83 = scmp.ne.s32.totalorder %s75, %s78
      %p84 = scmp.eq.s32.totalorder %s14, 0
      %p85 = por %p83, %p84
      %p86 = scmp.ne.s32.totalorder %s75, %s78
      %p87 = scmp.eq.s32.totalorder %s19, 3
      %p88 = por %p86, %p87
      %p89 = scmp.ne.s32.totalorder %s78, %s79
      %p90 = scmp.eq.s32.totalorder %s19, 0
      %p91 = por %p89, %p90
      %p92 = scmp.ne.s32.totalorder %s78, %s79
      %p93 = scmp.eq.s32.totalorder %s20, 3
      %p94 = por %p92, %p93
      %p96 = scmp.ne.s32.totalorder %s79, %s95
      %p97 = scmp.eq.s32.totalorder %s20, 0
      %p98 = por %p96, %p97
      %s100 = sadd.s32 %s99, 1
      %p103 = scmp.eq.s32.totalorder %s14, 3
      %p104 = scmp.ne.s32.totalorder %s99, %s101
      %p105 = scmp.eq.s32.totalorder %s14, 0
      %p106 = por %p104, %p105
      %p107 = scmp.ne.s32.totalorder %s99, %s101
      %p108 = scmp.eq.s32.totalorder %s19, 3
      %p109 = por %p107, %p108
      %p110 = scmp.ne.s32.totalorder %s101, %s102
      %p111 = scmp.eq.s32.totalorder %s19, 0
      %p112 = por %p110, %p111
      %p113 = scmp.ne.s32.totalorder %s101, %s102
      %p114 = scmp.eq.s32.totalorder %s20, 3
      %p115 = por %p113, %p114
      %p117 = scmp.ne.s32.totalorder %s102, %s116
      %p118 = scmp.eq.s32.totalorder %s20, 0
      %p119 = por %p117, %p118
      %s120 = ssub.s32 %s21, %s40
      %s121 = ssub.s32 %s22, %s36
      %s122 = sor.u32 %s120, %s121
      %p123 = scmp.eq.s32.totalorder %s122, 0
      %s125 = sadd.s32 %s124, 1
      %s126 = scalar_select %p123, %s124, %s125
      %p129 = pneg %p123
      %p130 = scmp.eq.s32.totalorder %s14, 3
      %p131 = por %p129, %p130
      %p132 = scmp.ne.s32.totalorder %s124, %s127
      %p133 = scmp.eq.s32.totalorder %s14, 0
      %p134 = por %p132, %p133
      %p135 = scmp.ne.s32.totalorder %s124, %s127
      %p136 = scmp.eq.s32.totalorder %s19, 3
      %p137 = por %p135, %p136
      %p138 = scmp.ne.s32.totalorder %s127, %s128
      %p139 = scmp.eq.s32.totalorder %s19, 0
      %p140 = por %p138, %p139
      %p141 = scmp.ne.s32.totalorder %s127, %s128
      %p142 = scmp.eq.s32.totalorder %s20, 3
      %p143 = por %p141, %p142
      %p145 = scmp.ne.s32.totalorder %s128, %s144
      %p146 = scmp.eq.s32.totalorder %s20, 0
      %p147 = por %p145, %p146
      %s148 = ssub.s32 %s21, %s40
      %s149 = ssub.s32 %s22, %s36
      %s150 = sor.u32 %s148, %s149
      %p151 = scmp.eq.s32.totalorder %s150, 0
      %s153 = sadd.s32 %s152, 1
      %s154 = scalar_select %p151, %s152, %s153
      %p157 = pneg %p151
      %p158 = scmp.eq.s32.totalorder %s14, 3
      %p159 = por %p157, %p158
      %p160 = scmp.ne.s32.totalorder %s152, %s155
      %p161 = scmp.eq.s32.totalorder %s14, 0
      %p162 = por %p160, %p161
      %p163 = scmp.ne.s32.totalorder %s152, %s155
      %p164 = scmp.eq.s32.totalorder %s19, 3
      %p165 = por %p163, %p164
      %p166 = scmp.ne.s32.totalorder %s155, %s156
      %p167 = scmp.eq.s32.totalorder %s19, 0
      %p168 = por %p166, %p167
      %p169 = scmp.ne.s32.totalorder %s155, %s156
      %p170 = scmp.eq.s32.totalorder %s20, 3
      %p171 = por %p169, %p170
      %p173 = scmp.ne.s32.totalorder %s156, %s172
      %p174 = scmp.eq.s32.totalorder %s20, 0
      %p175 = por %p173, %p174
      %p176 = scmp.le.s32.totalorder 1, %s14
      %p177 = scmp.lt.s32.totalorder %s14, 5
      %p178 = pnand %p176, %p177
      %p179 = pneg %p178
      // Predicated region
      $region9: #{_lambda_.33} parent=5 // pred_check
        _
      $region10: #{_lambda_.33} parent=5 // pred_check_branch
        %181 = sbr.rel (%p178) target = $region12
      $region11: #{_lambda_.33} parent=5 // pred_region
        %s182 = ssub.s32 %s14, 1
        // Predicated region
        $region13: #{_lambda_.33} parent=11 // pred_check
          %p183 = pneg %p112
        $region14: #{_lambda_.33} parent=11 // pred_check_branch
          %185 = sbr.rel (%p183) target = $region16
        $region15: #{_lambda_.33} parent=11 // pred_region
          _
        $region16: #{_lambda_.33} parent=11 // pred_fallthru
          _
      $region12: #{_lambda_.33} parent=5 // pred_fallthru
        _
      %p186 = scmp.lt.s32.totalorder %s14, 4
      // Predicated region
      $region17: #{_lambda_.33} parent=5 // pred_check
        %p187 = pneg %p186
      $region18: #{_lambda_.33} parent=5 // pred_check_branch
        %189 = sbr.rel (%p187) target = $region20
      $region19: #{_lambda_.33} parent=5 // pred_region
        // Predicated region
        $region21: #{_lambda_.33} parent=19 // pred_check
          %p190 = pneg %p57
        $region22: #{_lambda_.33} parent=19 // pred_check_branch
          %192 = sbr.rel (%p190) target = $region24
        $region23: #{_lambda_.33} parent=19 // pred_region
          %s193 = smul.u32 64, %s22
          %p194 = scmp.lt.s32.totalorder %s21, 3
          %s195 = scalar_select %p194, %s21, 3
          %p196 = scmp.lt.s32.totalorder %s193, 63
          %s197 = scalar_select %p196, %s193, 63
          %p198 = scmp.lt.s32.totalorder %s23, 0
          %s199 = scalar_select %p198, %s23, 0
          %s200 = sadd.s32 %s199, %s197
          %s201 = smul.addr %s195, 64
          %s202 = sadd.s32 %s200, %s201
          %s203 = smul.addr %s202, 4
          %s204 = scalar_lea.vmem %s0, %s203
          %s205 = smul.u32 64, %s22
        $region24: #{_lambda_.33} parent=19 // pred_fallthru
          _
        // Predicated region
        $region25: #{_lambda_.33} parent=19 // pred_check
          %p206 = pneg %p85
        $region26: #{_lambda_.33} parent=19 // pred_check_branch
          %208 = sbr.rel (%p206) target = $region28
        $region27: #{_lambda_.33} parent=19 // pred_region
          %s209 = smul.u32 8, %s23
          %p210 = scmp.lt.s32.totalorder %s21, 3
          %s211 = scalar_select %p210, %s21, 3
          %p212 = scmp.lt.s32.totalorder %s209, 7
          %s213 = scalar_select %p212, %s209, 7
          %s214 = smul.addr %s211, 8
          %s215 = sadd.s32 %s213, %s214
          %s216 = smul.addr %s215, 4
          %s217 = scalar_lea.vmem %s1, %s216
          %s218 = smul.u32 8, %s23
        $region28: #{_lambda_.33} parent=19 // pred_fallthru
          _
      $region20: #{_lambda_.33} parent=5 // pred_fallthru
        _
      %p219 = scmp.le.s32.totalorder 1, %s14
      %p220 = scmp.lt.s32.totalorder %s14, 5
      %p221 = pnand %p219, %p220
      %p222 = pneg %p221
      // Predicated region
      $region29: #{_lambda_.33} parent=5 // pred_check
        _
      $region30: #{_lambda_.33} parent=5 // pred_check_branch
        %224 = sbr.rel (%p221) target = $region32
      $region31: #{_lambda_.33} parent=5 // pred_region
        %s225 = ssub.s32 %s14, 1
        %s226 = smul.u32 64, %s25
        %p227 = scmp.lt.s32.totalorder %s24, 3
        %s228 = scalar_select %p227, %s24, 3
        %p229 = scmp.lt.s32.totalorder %s226, 63
        %s230 = scalar_select %p229, %s226, 63
        %p231 = scmp.lt.s32.totalorder %s26, 0
        %s232 = scalar_select %p231, %s26, 0
        %s233 = sadd.s32 %s232, %s230
        %s234 = smul.addr %s228, 64
        %s235 = sadd.s32 %s233, %s234
        %s236 = smul.addr %s235, 4
        %s237 = scalar_lea.vmem %s0, %s236
        %p238 = pneg %p63
        %p239 = pneg %p60
        %s240 = smul.u32 8, %s26
        %p241 = scmp.lt.s32.totalorder %s24, 3
        %s242 = scalar_select %p241, %s24, 3
        %p243 = scmp.lt.s32.totalorder %s240, 7
        %s244 = scalar_select %p243, %s240, 7
        %s245 = smul.addr %s242, 8
        %s246 = sadd.s32 %s244, %s245
        %s247 = smul.addr %s246, 4
        %s248 = scalar_lea.vmem %s1, %s247
        %p249 = pneg %p91
        %p250 = pneg %p88
        %p251 = pneg %p112
        %p252 = pneg %p109
        %p253 = pneg %p140
        %p254 = pneg %p137
        %s255 = smul.u32 64, %s25
        %p256 = scmp.lt.s32.totalorder %s24, 3
        %s257 = scalar_select %p256, %s24, 3
        %p258 = scmp.lt.s32.totalorder %s255, 63
        %s259 = scalar_select %p258, %s255, 63
        %s260 = smul.addr %s257, 64
        %s261 = sadd.s32 %s259, %s260
        %s262 = smul.addr %s261, 8
        %s263 = scalar_lea.vmem %s3, %s262
        %p264 = pneg %p168
        %p265 = pneg %p165
        %s266 = sand.u32 %s155, 1
        %s267 = scalar_lea.sflag [#allocation4], %s266
        %s268 = sand.u32 %s155, 1
        %s269 = smul.addr %s268, 8
        %s270 = scalar_lea.vmem [#allocation3], %s269
        %s271 = smul.u32 64, %s25
        %p272 = scmp.lt.s32.totalorder %s24, 3
        %s273 = scalar_select %p272, %s24, 3
        %p274 = scmp.lt.s32.totalorder %s271, 63
        %s275 = scalar_select %p274, %s271, 63
        %p276 = scmp.lt.s32.totalorder %s26, 0
        %s277 = scalar_select %p276, %s26, 0
        %s278 = sadd.s32 %s277, %s275
        %s279 = smul.addr %s273, 64
        %s280 = sadd.s32 %s278, %s279
        %s281 = smul.addr %s280, 4
        %s282 = scalar_lea.vmem %s0, %s281
        %s283 = smul.u32 64, %s25
        %s284 = smul.u32 8, %s26
        %p285 = scmp.lt.s32.totalorder %s24, 3
        %s286 = scalar_select %p285, %s24, 3
        %p287 = scmp.lt.s32.totalorder %s284, 7
        %s288 = scalar_select %p287, %s284, 7
        %s289 = smul.addr %s286, 8
        %s290 = sadd.s32 %s288, %s289
        %s291 = smul.addr %s290, 4
        %s292 = scalar_lea.vmem %s1, %s291
        %s293 = smul.u32 8, %s26
        %s294 = smul.u32 64, %s25
        %p295 = scmp.lt.s32.totalorder %s24, 3
        %s296 = scalar_select %p295, %s24, 3
        %p297 = scmp.lt.s32.totalorder %s294, 63
        %s298 = scalar_select %p297, %s294, 63
        %s299 = smul.addr %s296, 64
        %s300 = sadd.s32 %s298, %s299
        %s301 = smul.addr %s300, 8
        %s302 = scalar_lea.vmem %s3, %s301
        %s303 = smul.u32 64, %s25
        %p305 = scmp.eq.s32.totalorder %s26, 0
        // Predicated region
        $region33: #{_lambda_.33} parent=31 // pred_check
          %p306 = pneg %p305
        $region34: #{_lambda_.33} parent=31 // pred_check_branch
          %308 = sbr.rel (%p306) target = $region36
        $region35: #{_lambda_.33} parent=31 // pred_region
          %vm309 = vcmask 23552
          %310 = vst.msk [vmem:[#allocation2] sm:$0xff] %vm309, 0.0
          %311 = vst.msk [vmem:[#allocation2 + $0x8] sm:$0xff] %vm309, 0.0
          %312 = vst.msk [vmem:[#allocation2 + $0x10] sm:$0xff] %vm309, 0.0
          %313 = vst.msk [vmem:[#allocation2 + $0x18] sm:$0xff] %vm309, 0.0
          %314 = vst.msk [vmem:[#allocation2 + $0x20] sm:$0xff] %vm309, 0.0
          %315 = vst.msk [vmem:[#allocation2 + $0x28] sm:$0xff] %vm309, 0.0
          %316 = vst.msk [vmem:[#allocation2 + $0x30] sm:$0xff] %vm309, 0.0
          %317 = vst.msk [vmem:[#allocation2 + $0x38] sm:$0xff] %vm309, 0.0
          %318 = vst.msk [vmem:[#allocation2 + $0x40] sm:$0xff] %vm309, 0.0
          %319 = vst.msk [vmem:[#allocation2 + $0x48] sm:$0xff] %vm309, 0.0
          %320 = vst.msk [vmem:[#allocation2 + $0x50] sm:$0xff] %vm309, 0.0
          %321 = vst.msk [vmem:[#allocation2 + $0x58] sm:$0xff] %vm309, 0.0
          %322 = vst.msk [vmem:[#allocation2 + $0x60] sm:$0xff] %vm309, 0.0
          %323 = vst.msk [vmem:[#allocation2 + $0x68] sm:$0xff] %vm309, 0.0
          %324 = vst.msk [vmem:[#allocation2 + $0x70] sm:$0xff] %vm309, 0.0
          %325 = vst.msk [vmem:[#allocation2 + $0x78] sm:$0xff] %vm309, 0.0
          %326 = vst.msk [vmem:[#allocation2 + $0x80] sm:$0xff] %vm309, 0.0
          %327 = vst.msk [vmem:[#allocation2 + $0x88] sm:$0xff] %vm309, 0.0
          %328 = vst.msk [vmem:[#allocation2 + $0x90] sm:$0xff] %vm309, 0.0
          %329 = vst.msk [vmem:[#allocation2 + $0x98] sm:$0xff] %vm309, 0.0
          %330 = vst.msk [vmem:[#allocation2 + $0xa0] sm:$0xff] %vm309, 0.0
          %331 = vst.msk [vmem:[#allocation2 + $0xa8] sm:$0xff] %vm309, 0.0
          %332 = vst.msk [vmem:[#allocation2 + $0xb0] sm:$0xff] %vm309, 0.0
          %333 = vst.msk [vmem:[#allocation2 + $0xb8] sm:$0xff] %vm309, 0.0
          %334 = vst.msk [vmem:[#allocation2 + $0xc0] sm:$0xff] %vm309, 0.0
          %335 = vst.msk [vmem:[#allocation2 + $0xc8] sm:$0xff] %vm309, 0.0
          %336 = vst.msk [vmem:[#allocation2 + $0xd0] sm:$0xff] %vm309, 0.0
          %337 = vst.msk [vmem:[#allocation2 + $0xd8] sm:$0xff] %vm309, 0.0
          %338 = vst.msk [vmem:[#allocation2 + $0xe0] sm:$0xff] %vm309, 0.0
          %339 = vst.msk [vmem:[#allocation2 + $0xe8] sm:$0xff] %vm309, 0.0
          %340 = vst.msk [vmem:[#allocation2 + $0xf0] sm:$0xff] %vm309, 0.0
          %341 = vst.msk [vmem:[#allocation2 + $0xf8] sm:$0xff] %vm309, 0.0
          %342 = vst.msk [vmem:[#allocation2 + $0x100] sm:$0xff] %vm309, 0.0
          %343 = vst.msk [vmem:[#allocation2 + $0x108] sm:$0xff] %vm309, 0.0
          %344 = vst.msk [vmem:[#allocation2 + $0x110] sm:$0xff] %vm309, 0.0
          %345 = vst.msk [vmem:[#allocation2 + $0x118] sm:$0xff] %vm309, 0.0
          %346 = vst.msk [vmem:[#allocation2 + $0x120] sm:$0xff] %vm309, 0.0
          %347 = vst.msk [vmem:[#allocation2 + $0x128] sm:$0xff] %vm309, 0.0
          %348 = vst.msk [vmem:[#allocation2 + $0x130] sm:$0xff] %vm309, 0.0
          %349 = vst.msk [vmem:[#allocation2 + $0x138] sm:$0xff] %vm309, 0.0
          %350 = vst.msk [vmem:[#allocation2 + $0x140] sm:$0xff] %vm309, 0.0
          %351 = vst.msk [vmem:[#allocation2 + $0x148] sm:$0xff] %vm309, 0.0
          %352 = vst.msk [vmem:[#allocation2 + $0x150] sm:$0xff] %vm309, 0.0
          %353 = vst.msk [vmem:[#allocation2 + $0x158] sm:$0xff] %vm309, 0.0
          %354 = vst.msk [vmem:[#allocation2 + $0x160] sm:$0xff] %vm309, 0.0
          %355 = vst.msk [vmem:[#allocation2 + $0x168] sm:$0xff] %vm309, 0.0
          %356 = vst.msk [vmem:[#allocation2 + $0x170] sm:$0xff] %vm309, 0.0
          %357 = vst.msk [vmem:[#allocation2 + $0x178] sm:$0xff] %vm309, 0.0
          %358 = vst.msk [vmem:[#allocation2 + $0x180] sm:$0xff] %vm309, 0.0
          %359 = vst.msk [vmem:[#allocation2 + $0x188] sm:$0xff] %vm309, 0.0
          %360 = vst.msk [vmem:[#allocation2 + $0x190] sm:$0xff] %vm309, 0.0
          %361 = vst.msk [vmem:[#allocation2 + $0x198] sm:$0xff] %vm309, 0.0
          %362 = vst.msk [vmem:[#allocation2 + $0x1a0] sm:$0xff] %vm309, 0.0
          %363 = vst.msk [vmem:[#allocation2 + $0x1a8] sm:$0xff] %vm309, 0.0
          %364 = vst.msk [vmem:[#allocation2 + $0x1b0] sm:$0xff] %vm309, 0.0
          %365 = vst.msk [vmem:[#allocation2 + $0x1b8] sm:$0xff] %vm309, 0.0
          %366 = vst.msk [vmem:[#allocation2 + $0x1c0] sm:$0xff] %vm309, 0.0
          %367 = vst.msk [vmem:[#allocation2 + $0x1c8] sm:$0xff] %vm309, 0.0
          %368 = vst.msk [vmem:[#allocation2 + $0x1d0] sm:$0xff] %vm309, 0.0
          %369 = vst.msk [vmem:[#allocation2 + $0x1d8] sm:$0xff] %vm309, 0.0
          %370 = vst.msk [vmem:[#allocation2 + $0x1e0] sm:$0xff] %vm309, 0.0
          %371 = vst.msk [vmem:[#allocation2 + $0x1e8] sm:$0xff] %vm309, 0.0
          %372 = vst.msk [vmem:[#allocation2 + $0x1f0] sm:$0xff] %vm309, 0.0
          %373 = vst.msk [vmem:[#allocation2 + $0x1f8] sm:$0xff] %vm309, 0.0
        $region36: #{_lambda_.33} parent=31 // pred_fallthru
          _
        %v374 = vld [vmem:[%s282] sm:$0xf]
        %v375 = vld [vmem:[%s282 + $0x4] sm:$0xf]
        %v376 = vld [vmem:[%s282 + $0x8] sm:$0xf]
        %v377 = vld [vmem:[%s282 + $0xc] sm:$0xf]
        %v378 = vld [vmem:[%s282 + $0x10] sm:$0xf]
        %v379 = vld [vmem:[%s282 + $0x14] sm:$0xf]
        %v380 = vld [vmem:[%s282 + $0x18] sm:$0xf]
        %v381 = vld [vmem:[%s282 + $0x1c] sm:$0xf]
        %v382 = vld [vmem:[%s282 + $0x20] sm:$0xf]
        %v383 = vld [vmem:[%s282 + $0x24] sm:$0xf]
        %v384 = vld [vmem:[%s282 + $0x28] sm:$0xf]
        %v385 = vld [vmem:[%s282 + $0x2c] sm:$0xf]
        %v386 = vld [vmem:[%s282 + $0x30] sm:$0xf]
        %v387 = vld [vmem:[%s282 + $0x34] sm:$0xf]
        %v388 = vld [vmem:[%s282 + $0x38] sm:$0xf]
        %v389 = vld [vmem:[%s282 + $0x3c] sm:$0xf]
        %v390 = vld [vmem:[%s282 + $0x40] sm:$0xf]
        %v391 = vld [vmem:[%s282 + $0x44] sm:$0xf]
        %v392 = vld [vmem:[%s282 + $0x48] sm:$0xf]
        %v393 = vld [vmem:[%s282 + $0x4c] sm:$0xf]
        %v394 = vld [vmem:[%s282 + $0x50] sm:$0xf]
        %v395 = vld [vmem:[%s282 + $0x54] sm:$0xf]
        %v396 = vld [vmem:[%s282 + $0x58] sm:$0xf]
        %v397 = vld [vmem:[%s282 + $0x5c] sm:$0xf]
        %v398 = vld [vmem:[%s282 + $0x60] sm:$0xf]
        %v399 = vld [vmem:[%s282 + $0x64] sm:$0xf]
        %v400 = vld [vmem:[%s282 + $0x68] sm:$0xf]
        %v401 = vld [vmem:[%s282 + $0x6c] sm:$0xf]
        %v402 = vld [vmem:[%s282 + $0x70] sm:$0xf]
        %v403 = vld [vmem:[%s282 + $0x74] sm:$0xf]
        %v404 = vld [vmem:[%s282 + $0x78] sm:$0xf]
        %v405 = vld [vmem:[%s282 + $0x7c] sm:$0xf]
        %v406 = vld [vmem:[%s282 + $0x80] sm:$0xf]
        %v407 = vld [vmem:[%s282 + $0x84] sm:$0xf]
        %v408 = vld [vmem:[%s282 + $0x88] sm:$0xf]
        %v409 = vld [vmem:[%s282 + $0x8c] sm:$0xf]
        %v410 = vld [vmem:[%s282 + $0x90] sm:$0xf]
        %v411 = vld [vmem:[%s282 + $0x94] sm:$0xf]
        %v412 = vld [vmem:[%s282 + $0x98] sm:$0xf]
        %v413 = vld [vmem:[%s282 + $0x9c] sm:$0xf]
        %v414 = vld [vmem:[%s282 + $0xa0] sm:$0xf]
        %v415 = vld [vmem:[%s282 + $0xa4] sm:$0xf]
        %v416 = vld [vmem:[%s282 + $0xa8] sm:$0xf]
        %v417 = vld [vmem:[%s282 + $0xac] sm:$0xf]
        %v418 = vld [vmem:[%s282 + $0xb0] sm:$0xf]
        %v419 = vld [vmem:[%s282 + $0xb4] sm:$0xf]
        %v420 = vld [vmem:[%s282 + $0xb8] sm:$0xf]
        %v421 = vld [vmem:[%s282 + $0xbc] sm:$0xf]
        %v422 = vld [vmem:[%s282 + $0xc0] sm:$0xf]
        %v423 = vld [vmem:[%s282 + $0xc4] sm:$0xf]
        %v424 = vld [vmem:[%s282 + $0xc8] sm:$0xf]
        %v425 = vld [vmem:[%s282 + $0xcc] sm:$0xf]
        %v426 = vld [vmem:[%s282 + $0xd0] sm:$0xf]
        %v427 = vld [vmem:[%s282 + $0xd4] sm:$0xf]
        %v428 = vld [vmem:[%s282 + $0xd8] sm:$0xf]
        %v429 = vld [vmem:[%s282 + $0xdc] sm:$0xf]
        %v430 = vld [vmem:[%s282 + $0xe0] sm:$0xf]
        %v431 = vld [vmem:[%s282 + $0xe4] sm:$0xf]
        %v432 = vld [vmem:[%s282 + $0xe8] sm:$0xf]
        %v433 = vld [vmem:[%s282 + $0xec] sm:$0xf]
        %v434 = vld [vmem:[%s282 + $0xf0] sm:$0xf]
        %v435 = vld [vmem:[%s282 + $0xf4] sm:$0xf]
        %v436 = vld [vmem:[%s282 + $0xf8] sm:$0xf]
        %v437 = vld [vmem:[%s282 + $0xfc] sm:$0xf]
        %v438 = vmax.bf16 %v374, 0
        %v439 = vmax.bf16 %v375, 0
        %v440 = vmax.bf16 %v376, 0
        %v441 = vmax.bf16 %v377, 0
        %v442 = vmax.bf16 %v378, 0
        %v443 = vmax.bf16 %v379, 0
        %v444 = vmax.bf16 %v380, 0
        %v445 = vmax.bf16 %v381, 0
        %v446 = vmax.bf16 %v382, 0
        %v447 = vmax.bf16 %v383, 0
        %v448 = vmax.bf16 %v384, 0
        %v449 = vmax.bf16 %v385, 0
        %v450 = vmax.bf16 %v386, 0
        %v451 = vmax.bf16 %v387, 0
        %v452 = vmax.bf16 %v388, 0
        %v453 = vmax.bf16 %v389, 0
        %v454 = vmax.bf16 %v390, 0
        %v455 = vmax.bf16 %v391, 0
        %v456 = vmax.bf16 %v392, 0
        %v457 = vmax.bf16 %v393, 0
        %v458 = vmax.bf16 %v394, 0
        %v459 = vmax.bf16 %v395, 0
        %v460 = vmax.bf16 %v396, 0
        %v461 = vmax.bf16 %v397, 0
        %v462 = vmax.bf16 %v398, 0
        %v463 = vmax.bf16 %v399, 0
        %v464 = vmax.bf16 %v400, 0
        %v465 = vmax.bf16 %v401, 0
        %v466 = vmax.bf16 %v402, 0
        %v467 = vmax.bf16 %v403, 0
        %v468 = vmax.bf16 %v404, 0
        %v469 = vmax.bf16 %v405, 0
        %v470 = vmax.bf16 %v406, 0
        %v471 = vmax.bf16 %v407, 0
        %v472 = vmax.bf16 %v408, 0
        %v473 = vmax.bf16 %v409, 0
        %v474 = vmax.bf16 %v410, 0
        %v475 = vmax.bf16 %v411, 0
        %v476 = vmax.bf16 %v412, 0
        %v477 = vmax.bf16 %v413, 0
        %v478 = vmax.bf16 %v414, 0
        %v479 = vmax.bf16 %v415, 0
        %v480 = vmax.bf16 %v416, 0
        %v481 = vmax.bf16 %v417, 0
        %v482 = vmax.bf16 %v418, 0
        %v483 = vmax.bf16 %v419, 0
        %v484 = vmax.bf16 %v420, 0
        %v485 = vmax.bf16 %v421, 0
        %v486 = vmax.bf16 %v422, 0
        %v487 = vmax.bf16 %v423, 0
        %v488 = vmax.bf16 %v424, 0
        %v489 = vmax.bf16 %v425, 0
        %v490 = vmax.bf16 %v426, 0
        %v491 = vmax.bf16 %v427, 0
        %v492 = vmax.bf16 %v428, 0
        %v493 = vmax.bf16 %v429, 0
        %v494 = vmax.bf16 %v430, 0
        %v495 = vmax.bf16 %v431, 0
        %v496 = vmax.bf16 %v432, 0
        %v497 = vmax.bf16 %v433, 0
        %v498 = vmax.bf16 %v434, 0
        %v499 = vmax.bf16 %v435, 0
        %v500 = vmax.bf16 %v436, 0
        %v501 = vmax.bf16 %v437, 0
        %v502 = vld [vmem:[#allocation2] sm:$0xff]
        %v503 = vld [vmem:[#allocation2 + $0x8] sm:$0xff]
        %v504 = vld [vmem:[#allocation2 + $0x10] sm:$0xff]
        %v505 = vld [vmem:[#allocation2 + $0x18] sm:$0xff]
        %v506 = vld [vmem:[#allocation2 + $0x20] sm:$0xff]
        %v507 = vld [vmem:[#allocation2 + $0x28] sm:$0xff]
        %v508 = vld [vmem:[#allocation2 + $0x30] sm:$0xff]
        %v509 = vld [vmem:[#allocation2 + $0x38] sm:$0xff]
        %v510 = vld [vmem:[#allocation2 + $0x40] sm:$0xff]
        %v511 = vld [vmem:[#allocation2 + $0x48] sm:$0xff]
        %v512 = vld [vmem:[#allocation2 + $0x50] sm:$0xff]
        %v513 = vld [vmem:[#allocation2 + $0x58] sm:$0xff]
        %v514 = vld [vmem:[#allocation2 + $0x60] sm:$0xff]
        %v515 = vld [vmem:[#allocation2 + $0x68] sm:$0xff]
        %v516 = vld [vmem:[#allocation2 + $0x70] sm:$0xff]
        %v517 = vld [vmem:[#allocation2 + $0x78] sm:$0xff]
        %v518 = vld [vmem:[#allocation2 + $0x80] sm:$0xff]
        %v519 = vld [vmem:[#allocation2 + $0x88] sm:$0xff]
        %v520 = vld [vmem:[#allocation2 + $0x90] sm:$0xff]
        %v521 = vld [vmem:[#allocation2 + $0x98] sm:$0xff]
        %v522 = vld [vmem:[#allocation2 + $0xa0] sm:$0xff]
        %v523 = vld [vmem:[#allocation2 + $0xa8] sm:$0xff]
        %v524 = vld [vmem:[#allocation2 + $0xb0] sm:$0xff]
        %v525 = vld [vmem:[#allocation2 + $0xb8] sm:$0xff]
        %v526 = vld [vmem:[#allocation2 + $0xc0] sm:$0xff]
        %v527 = vld [vmem:[#allocation2 + $0xc8] sm:$0xff]
        %v528 = vld [vmem:[#allocation2 + $0xd0] sm:$0xff]
        %v529 = vld [vmem:[#allocation2 + $0xd8] sm:$0xff]
        %v530 = vld [vmem:[#allocation2 + $0xe0] sm:$0xff]
        %v531 = vld [vmem:[#allocation2 + $0xe8] sm:$0xff]
        %v532 = vld [vmem:[#allocation2 + $0xf0] sm:$0xff]
        %v533 = vld [vmem:[#allocation2 + $0xf8] sm:$0xff]
        %v534 = vld [vmem:[#allocation2 + $0x100] sm:$0xff]
        %v535 = vld [vmem:[#allocation2 + $0x108] sm:$0xff]
        %v536 = vld [vmem:[#allocation2 + $0x110] sm:$0xff]
        %v537 = vld [vmem:[#allocation2 + $0x118] sm:$0xff]
        %v538 = vld [vmem:[#allocation2 + $0x120] sm:$0xff]
        %v539 = vld [vmem:[#allocation2 + $0x128] sm:$0xff]
        %v540 = vld [vmem:[#allocation2 + $0x130] sm:$0xff]
        %v541 = vld [vmem:[#allocation2 + $0x138] sm:$0xff]
        %v542 = vld [vmem:[#allocation2 + $0x140] sm:$0xff]
        %v543 = vld [vmem:[#allocation2 + $0x148] sm:$0xff]
        %v544 = vld [vmem:[#allocation2 + $0x150] sm:$0xff]
        %v545 = vld [vmem:[#allocation2 + $0x158] sm:$0xff]
        %v546 = vld [vmem:[#allocation2 + $0x160] sm:$0xff]
        %v547 = vld [vmem:[#allocation2 + $0x168] sm:$0xff]
        %v548 = vld [vmem:[#allocation2 + $0x170] sm:$0xff]
        %v549 = vld [vmem:[#allocation2 + $0x178] sm:$0xff]
        %v550 = vld [vmem:[#allocation2 + $0x180] sm:$0xff]
        %v551 = vld [vmem:[#allocation2 + $0x188] sm:$0xff]
        %v552 = vld [vmem:[#allocation2 + $0x190] sm:$0xff]
        %v553 = vld [vmem:[#allocation2 + $0x198] sm:$0xff]
        %v554 = vld [vmem:[#allocation2 + $0x1a0] sm:$0xff]
        %v555 = vld [vmem:[#allocation2 + $0x1a8] sm:$0xff]
        %v556 = vld [vmem:[#allocation2 + $0x1b0] sm:$0xff]
        %v557 = vld [vmem:[#allocation2 + $0x1b8] sm:$0xff]
        %v558 = vld [vmem:[#allocation2 + $0x1c0] sm:$0xff]
        %v559 = vld [vmem:[#allocation2 + $0x1c8] sm:$0xff]
        %v560 = vld [vmem:[#allocation2 + $0x1d0] sm:$0xff]
        %v561 = vld [vmem:[#allocation2 + $0x1d8] sm:$0xff]
        %v562 = vld [vmem:[#allocation2 + $0x1e0] sm:$0xff]
        %v563 = vld [vmem:[#allocation2 + $0x1e8] sm:$0xff]
        %v564 = vld [vmem:[#allocation2 + $0x1f0] sm:$0xff]
        %v565 = vld [vmem:[#allocation2 + $0x1f8] sm:$0xff]
        %v566 = vld [vmem:[%s292] sm:$0xf]
        %v567 = vld [vmem:[%s292 + $0x4] sm:$0xf]
        %v568 = vld [vmem:[%s292 + $0x8] sm:$0xf]
        %v569 = vld [vmem:[%s292 + $0xc] sm:$0xf]
        %v570 = vld [vmem:[%s292 + $0x10] sm:$0xf]
        %v571 = vld [vmem:[%s292 + $0x14] sm:$0xf]
        %v572 = vld [vmem:[%s292 + $0x18] sm:$0xf]
        %v573 = vld [vmem:[%s292 + $0x1c] sm:$0xf]
        %v638 = vunpack.c.l.b16 %v438
        %v639 = vunpack.c.l.b16 %v439
        %v640 = vunpack.c.l.b16 %v440
        %v641 = vunpack.c.l.b16 %v441
        %v642 = vunpack.c.l.b16 %v442
        %v643 = vunpack.c.l.b16 %v443
        %v644 = vunpack.c.l.b16 %v444
        %v645 = vunpack.c.l.b16 %v445
        %v646 = vunpack.c.l.b16 %v446
        %v647 = vunpack.c.l.b16 %v447
        %v648 = vunpack.c.l.b16 %v448
        %v649 = vunpack.c.l.b16 %v449
        %v650 = vunpack.c.l.b16 %v450
        %v651 = vunpack.c.l.b16 %v451
        %v652 = vunpack.c.l.b16 %v452
        %v653 = vunpack.c.l.b16 %v453
        %v654 = vunpack.c.l.b16 %v454
        %v655 = vunpack.c.l.b16 %v455
        %v656 = vunpack.c.l.b16 %v456
        %v657 = vunpack.c.l.b16 %v457
        %v658 = vunpack.c.l.b16 %v458
        %v659 = vunpack.c.l.b16 %v459
        %v660 = vunpack.c.l.b16 %v460
        %v661 = vunpack.c.l.b16 %v461
        %v662 = vunpack.c.l.b16 %v462
        %v663 = vunpack.c.l.b16 %v463
        %v664 = vunpack.c.l.b16 %v464
        %v665 = vunpack.c.l.b16 %v465
        %v666 = vunpack.c.l.b16 %v466
        %v667 = vunpack.c.l.b16 %v467
        %v668 = vunpack.c.l.b16 %v468
        %v669 = vunpack.c.l.b16 %v469
        %v670 = vunpack.c.l.b16 %v470
        %v671 = vunpack.c.l.b16 %v471
        %v672 = vunpack.c.l.b16 %v472
        %v673 = vunpack.c.l.b16 %v473
        %v674 = vunpack.c.l.b16 %v474
        %v675 = vunpack.c.l.b16 %v475
        %v676 = vunpack.c.l.b16 %v476
        %v677 = vunpack.c.l.b16 %v477
        %v678 = vunpack.c.l.b16 %v478
        %v679 = vunpack.c.l.b16 %v479
        %v680 = vunpack.c.l.b16 %v480
        %v681 = vunpack.c.l.b16 %v481
        %v682 = vunpack.c.l.b16 %v482
        %v683 = vunpack.c.l.b16 %v483
        %v684 = vunpack.c.l.b16 %v484
        %v685 = vunpack.c.l.b16 %v485
        %v686 = vunpack.c.l.b16 %v486
        %v687 = vunpack.c.l.b16 %v487
        %v688 = vunpack.c.l.b16 %v488
        %v689 = vunpack.c.l.b16 %v489
        %v690 = vunpack.c.l.b16 %v490
        %v691 = vunpack.c.l.b16 %v491
        %v692 = vunpack.c.l.b16 %v492
        %v693 = vunpack.c.l.b16 %v493
        %v694 = vunpack.c.l.b16 %v494
        %v695 = vunpack.c.l.b16 %v495
        %v696 = vunpack.c.l.b16 %v496
        %v697 = vunpack.c.l.b16 %v497
        %v698 = vunpack.c.l.b16 %v498
        %v699 = vunpack.c.l.b16 %v499
        %v700 = vunpack.c.l.b16 %v500
        %v701 = vunpack.c.l.b16 %v501
        %v702 = vpack.c.b16 %v639, %v638
        %v703 = vpack.c.b16 %v641, %v640
        %v704 = vpack.c.b16 %v643, %v642
        %v705 = vpack.c.b16 %v645, %v644
        %v706 = vpack.c.b16 %v647, %v646
        %v707 = vpack.c.b16 %v649, %v648
        %v708 = vpack.c.b16 %v651, %v650
        %v709 = vpack.c.b16 %v653, %v652
        %v710 = vpack.c.b16 %v655, %v654
        %v711 = vpack.c.b16 %v657, %v656
        %v712 = vpack.c.b16 %v659, %v658
        %v713 = vpack.c.b16 %v661, %v660
        %v714 = vpack.c.b16 %v663, %v662
        %v715 = vpack.c.b16 %v665, %v664
        %v716 = vpack.c.b16 %v667, %v666
        %v717 = vpack.c.b16 %v669, %v668
        %v718 = vpack.c.b16 %v671, %v670
        %v719 = vpack.c.b16 %v673, %v672
        %v720 = vpack.c.b16 %v675, %v674
        %v721 = vpack.c.b16 %v677, %v676
        %v722 = vpack.c.b16 %v679, %v678
        %v723 = vpack.c.b16 %v681, %v680
        %v724 = vpack.c.b16 %v683, %v682
        %v725 = vpack.c.b16 %v685, %v684
        %v726 = vpack.c.b16 %v687, %v686
        %v727 = vpack.c.b16 %v689, %v688
        %v728 = vpack.c.b16 %v691, %v690
        %v729 = vpack.c.b16 %v693, %v692
        %v730 = vpack.c.b16 %v695, %v694
        %v731 = vpack.c.b16 %v697, %v696
        %v732 = vpack.c.b16 %v699, %v698
        %v733 = vpack.c.b16 %v701, %v700
        %v742 = vunpack.c.l.b16 %v566
        %v743 = vunpack.c.l.b16 %v567
        %v744 = vunpack.c.l.b16 %v568
        %v745 = vunpack.c.l.b16 %v569
        %v746 = vunpack.c.l.b16 %v570
        %v747 = vunpack.c.l.b16 %v571
        %v748 = vunpack.c.l.b16 %v572
        %v749 = vunpack.c.l.b16 %v573
        %v750 = vpack.c.b16 %v743, %v742
        %v751 = vpack.c.b16 %v745, %v744
        %v752 = vpack.c.b16 %v747, %v746
        %v753 = vpack.c.b16 %v749, %v748
        %vm758 = vcmask 523264
        %v760 = vsel %vm758, %v702, 0
        %v763 = vsel %vm758, %v703, 0
        %v766 = vsel %vm758, %v704, 0
        %v769 = vsel %vm758, %v705, 0
        %v772 = vsel %vm758, %v706, 0
        %v775 = vsel %vm758, %v707, 0
        %v778 = vsel %vm758, %v708, 0
        %v781 = vsel %vm758, %v709, 0
        %v784 = vsel %vm758, %v710, 0
        %v787 = vsel %vm758, %v711, 0
        %v790 = vsel %vm758, %v712, 0
        %v793 = vsel %vm758, %v713, 0
        %v796 = vsel %vm758, %v714, 0
        %v799 = vsel %vm758, %v715, 0
        %v802 = vsel %vm758, %v716, 0
        %v805 = vsel %vm758, %v717, 0
        %v808 = vsel %vm758, %v718, 0
        %v811 = vsel %vm758, %v719, 0
        %v814 = vsel %vm758, %v720, 0
        %v817 = vsel %vm758, %v721, 0
        %v820 = vsel %vm758, %v722, 0
        %v823 = vsel %vm758, %v723, 0
        %v826 = vsel %vm758, %v724, 0
        %v829 = vsel %vm758, %v725, 0
        %v832 = vsel %vm758, %v726, 0
        %v835 = vsel %vm758, %v727, 0
        %v838 = vsel %vm758, %v728, 0
        %v841 = vsel %vm758, %v729, 0
        %v844 = vsel %vm758, %v730, 0
        %v847 = vsel %vm758, %v731, 0
        %v850 = vsel %vm758, %v732, 0
        %v853 = vsel %vm758, %v733, 0
        %855 = vmatprep.subr.bf16.mxu0 0
        %856 = vmatpush1.bf16.msra.mxu0 0
        %857 = vmatprep.subr.bf16.mxu0 0
        %858 = vmatpush1.bf16.msra.mxu0 0
        %859 = vmatprep.subr.bf16.mxu0 0
        %860 = vmatpush1.bf16.msra.mxu0 0
        %861 = vmatprep.subr.bf16.mxu0 0
        %862 = vmatpush1.bf16.msra.mxu0 0
        %863 = vmatprep.subr.bf16.mxu0 0
        %864 = vmatpush1.bf16.msra.mxu0 %v753
        %865 = vmatprep.subr.bf16.mxu0 0
        %866 = vmatpush1.bf16.msra.mxu0 %v752
        %867 = vmatprep.subr.bf16.mxu0 0
        %868 = vmatpush1.bf16.msra.mxu0 %v751
        %869 = vmatprep.subr.bf16.mxu0 0
        %870 = vmatpush1.bf16.msra.mxu0 %v750
        %871 = vmatprep.subr.bf16.mxu0 0
        %872 = vmatpush2.bf16.msra.mxu0 0
        %873 = vmatprep.subr.bf16.mxu0 0
        %874 = vmatpush2.bf16.msra.mxu0 0
        %875 = vmatprep.subr.bf16.mxu0 0
        %876 = vmatpush2.bf16.msra.mxu0 0
        %877 = vmatprep.subr.bf16.mxu0 0
        %878 = vmatpush2.bf16.msra.mxu0 0
        %879 = vmatprep.subr.bf16.mxu0 0
        %880 = vmatpush2.bf16.msra.mxu0 0
        %881 = vmatprep.subr.bf16.mxu0 0
        %882 = vmatpush2.bf16.msra.mxu0 0
        %883 = vmatprep.subr.bf16.mxu0 0
        %884 = vmatpush2.bf16.msra.mxu0 0
        %885 = vmatprep.subr.bf16.mxu0 0
        %886 = vmatpush2.bf16.msra.mxu0 0
        %887 = vmatprep.mubr.bf16.mxu0 0
        %888 = vmatmul.mubr.bf16.gmra.mxu0 %v760
        %v889 = vpop.f32.mrf.mxu0
        %v890 = vadd.f32 0.0, %v889
        %v891 = vpop.f32.mrf.mxu0
        %v892 = vpop.f32.mrf.mxu0
        %v893 = vadd.f32 0.0, %v892
        %v894 = vpop.f32.mrf.mxu0
        %895 = vmatprep.mubr.bf16.mxu0 0
        %896 = vmatmul.mubr.bf16.gmra.mxu0 %v763
        %v897 = vpop.f32.mrf.mxu0
        %v898 = vadd.f32 0.0, %v897
        %v899 = vpop.f32.mrf.mxu0
        %v900 = vpop.f32.mrf.mxu0
        %v901 = vadd.f32 0.0, %v900
        %v902 = vpop.f32.mrf.mxu0
        %903 = vmatprep.mubr.bf16.mxu0 0
        %904 = vmatmul.mubr.bf16.gmra.mxu0 %v766
        %v905 = vpop.f32.mrf.mxu0
        %v906 = vadd.f32 0.0, %v905
        %v907 = vpop.f32.mrf.mxu0
        %v908 = vpop.f32.mrf.mxu0
        %v909 = vadd.f32 0.0, %v908
        %v910 = vpop.f32.mrf.mxu0
        %911 = vmatprep.mubr.bf16.mxu0 0
        %912 = vmatmul.mubr.bf16.gmra.mxu0 %v769
        %v913 = vpop.f32.mrf.mxu0
        %v914 = vadd.f32 0.0, %v913
        %v915 = vpop.f32.mrf.mxu0
        %v916 = vpop.f32.mrf.mxu0
        %v917 = vadd.f32 0.0, %v916
        %v918 = vpop.f32.mrf.mxu0
        %919 = vmatprep.mubr.bf16.mxu0 0
        %920 = vmatmul.mubr.bf16.gmra.mxu0 %v772
        %v921 = vpop.f32.mrf.mxu0
        %v922 = vadd.f32 0.0, %v921
        %v923 = vpop.f32.mrf.mxu0
        %v924 = vpop.f32.mrf.mxu0
        %v925 = vadd.f32 0.0, %v924
        %v926 = vpop.f32.mrf.mxu0
        %927 = vmatprep.mubr.bf16.mxu0 0
        %928 = vmatmul.mubr.bf16.gmra.mxu0 %v775
        %v929 = vpop.f32.mrf.mxu0
        %v930 = vadd.f32 0.0, %v929
        %v931 = vpop.f32.mrf.mxu0
        %v932 = vpop.f32.mrf.mxu0
        %v933 = vadd.f32 0.0, %v932
        %v934 = vpop.f32.mrf.mxu0
        %935 = vmatprep.mubr.bf16.mxu0 0
        %936 = vmatmul.mubr.bf16.gmra.mxu0 %v778
        %v937 = vpop.f32.mrf.mxu0
        %v938 = vadd.f32 0.0, %v937
        %v939 = vpop.f32.mrf.mxu0
        %v940 = vpop.f32.mrf.mxu0
        %v941 = vadd.f32 0.0, %v940
        %v942 = vpop.f32.mrf.mxu0
        %943 = vmatprep.mubr.bf16.mxu0 0
        %944 = vmatmul.mubr.bf16.gmra.mxu0 %v781
        %v945 = vpop.f32.mrf.mxu0
        %v946 = vadd.f32 0.0, %v945
        %v947 = vpop.f32.mrf.mxu0
        %v948 = vpop.f32.mrf.mxu0
        %v949 = vadd.f32 0.0, %v948
        %v950 = vpop.f32.mrf.mxu0
        %951 = vmatprep.mubr.bf16.mxu0 0
        %952 = vmatmul.mubr.bf16.gmra.mxu0 %v784
        %v953 = vpop.f32.mrf.mxu0
        %v954 = vadd.f32 0.0, %v953
        %v955 = vpop.f32.mrf.mxu0
        %v956 = vpop.f32.mrf.mxu0
        %v957 = vadd.f32 0.0, %v956
        %v958 = vpop.f32.mrf.mxu0
        %959 = vmatprep.mubr.bf16.mxu0 0
        %960 = vmatmul.mubr.bf16.gmra.mxu0 %v787
        %v961 = vpop.f32.mrf.mxu0
        %v962 = vadd.f32 0.0, %v961
        %v963 = vpop.f32.mrf.mxu0
        %v964 = vpop.f32.mrf.mxu0
        %v965 = vadd.f32 0.0, %v964
        %v966 = vpop.f32.mrf.mxu0
        %967 = vmatprep.mubr.bf16.mxu0 0
        %968 = vmatmul.mubr.bf16.gmra.mxu0 %v790
        %v969 = vpop.f32.mrf.mxu0
        %v970 = vadd.f32 0.0, %v969
        %v971 = vpop.f32.mrf.mxu0
        %v972 = vpop.f32.mrf.mxu0
        %v973 = vadd.f32 0.0, %v972
        %v974 = vpop.f32.mrf.mxu0
        %975 = vmatprep.mubr.bf16.mxu0 0
        %976 = vmatmul.mubr.bf16.gmra.mxu0 %v793
        %v977 = vpop.f32.mrf.mxu0
        %v978 = vadd.f32 0.0, %v977
        %v979 = vpop.f32.mrf.mxu0
        %v980 = vpop.f32.mrf.mxu0
        %v981 = vadd.f32 0.0, %v980
        %v982 = vpop.f32.mrf.mxu0
        %983 = vmatprep.mubr.bf16.mxu0 0
        %984 = vmatmul.mubr.bf16.gmra.mxu0 %v796
        %v985 = vpop.f32.mrf.mxu0
        %v986 = vadd.f32 0.0, %v985
        %v987 = vpop.f32.mrf.mxu0
        %v988 = vpop.f32.mrf.mxu0
        %v989 = vadd.f32 0.0, %v988
        %v990 = vpop.f32.mrf.mxu0
        %991 = vmatprep.mubr.bf16.mxu0 0
        %992 = vmatmul.mubr.bf16.gmra.mxu0 %v799
        %v993 = vpop.f32.mrf.mxu0
        %v994 = vadd.f32 0.0, %v993
        %v995 = vpop.f32.mrf.mxu0
        %v996 = vpop.f32.mrf.mxu0
        %v997 = vadd.f32 0.0, %v996
        %v998 = vpop.f32.mrf.mxu0
        %999 = vmatprep.mubr.bf16.mxu0 0
        %1000 = vmatmul.mubr.bf16.gmra.mxu0 %v802
        %v1001 = vpop.f32.mrf.mxu0
        %v1002 = vadd.f32 0.0, %v1001
        %v1003 = vpop.f32.mrf.mxu0
        %v1004 = vpop.f32.mrf.mxu0
        %v1005 = vadd.f32 0.0, %v1004
        %v1006 = vpop.f32.mrf.mxu0
        %1007 = vmatprep.mubr.bf16.mxu0 0
        %1008 = vmatmul.mubr.bf16.gmra.mxu0 %v805
        %v1009 = vpop.f32.mrf.mxu0
        %v1010 = vadd.f32 0.0, %v1009
        %v1011 = vpop.f32.mrf.mxu0
        %v1012 = vpop.f32.mrf.mxu0
        %v1013 = vadd.f32 0.0, %v1012
        %v1014 = vpop.f32.mrf.mxu0
        %1015 = vmatprep.mubr.bf16.mxu0 0
        %1016 = vmatmul.mubr.bf16.gmra.mxu0 %v808
        %v1017 = vpop.f32.mrf.mxu0
        %v1018 = vadd.f32 0.0, %v1017
        %v1019 = vpop.f32.mrf.mxu0
        %v1020 = vpop.f32.mrf.mxu0
        %v1021 = vadd.f32 0.0, %v1020
        %v1022 = vpop.f32.mrf.mxu0
        %1023 = vmatprep.mubr.bf16.mxu0 0
        %1024 = vmatmul.mubr.bf16.gmra.mxu0 %v811
        %v1025 = vpop.f32.mrf.mxu0
        %v1026 = vadd.f32 0.0, %v1025
        %v1027 = vpop.f32.mrf.mxu0
        %v1028 = vpop.f32.mrf.mxu0
        %v1029 = vadd.f32 0.0, %v1028
        %v1030 = vpop.f32.mrf.mxu0
        %1031 = vmatprep.mubr.bf16.mxu0 0
        %1032 = vmatmul.mubr.bf16.gmra.mxu0 %v814
        %v1033 = vpop.f32.mrf.mxu0
        %v1034 = vadd.f32 0.0, %v1033
        %v1035 = vpop.f32.mrf.mxu0
        %v1036 = vpop.f32.mrf.mxu0
        %v1037 = vadd.f32 0.0, %v1036
        %v1038 = vpop.f32.mrf.mxu0
        %1039 = vmatprep.mubr.bf16.mxu0 0
        %1040 = vmatmul.mubr.bf16.gmra.mxu0 %v817
        %v1041 = vpop.f32.mrf.mxu0
        %v1042 = vadd.f32 0.0, %v1041
        %v1043 = vpop.f32.mrf.mxu0
        %v1044 = vpop.f32.mrf.mxu0
        %v1045 = vadd.f32 0.0, %v1044
        %v1046 = vpop.f32.mrf.mxu0
        %1047 = vmatprep.mubr.bf16.mxu0 0
        %1048 = vmatmul.mubr.bf16.gmra.mxu0 %v820
        %v1049 = vpop.f32.mrf.mxu0
        %v1050 = vadd.f32 0.0, %v1049
        %v1051 = vpop.f32.mrf.mxu0
        %v1052 = vpop.f32.mrf.mxu0
        %v1053 = vadd.f32 0.0, %v1052
        %v1054 = vpop.f32.mrf.mxu0
        %1055 = vmatprep.mubr.bf16.mxu0 0
        %1056 = vmatmul.mubr.bf16.gmra.mxu0 %v823
        %v1057 = vpop.f32.mrf.mxu0
        %v1058 = vadd.f32 0.0, %v1057
        %v1059 = vpop.f32.mrf.mxu0
        %v1060 = vpop.f32.mrf.mxu0
        %v1061 = vadd.f32 0.0, %v1060
        %v1062 = vpop.f32.mrf.mxu0
        %1063 = vmatprep.mubr.bf16.mxu0 0
        %1064 = vmatmul.mubr.bf16.gmra.mxu0 %v826
        %v1065 = vpop.f32.mrf.mxu0
        %v1066 = vadd.f32 0.0, %v1065
        %v1067 = vpop.f32.mrf.mxu0
        %v1068 = vpop.f32.mrf.mxu0
        %v1069 = vadd.f32 0.0, %v1068
        %v1070 = vpop.f32.mrf.mxu0
        %1071 = vmatprep.mubr.bf16.mxu0 0
        %1072 = vmatmul.mubr.bf16.gmra.mxu0 %v829
        %v1073 = vpop.f32.mrf.mxu0
        %v1074 = vadd.f32 0.0, %v1073
        %v1075 = vpop.f32.mrf.mxu0
        %v1076 = vpop.f32.mrf.mxu0
        %v1077 = vadd.f32 0.0, %v1076
        %v1078 = vpop.f32.mrf.mxu0
        %1079 = vmatprep.mubr.bf16.mxu0 0
        %1080 = vmatmul.mubr.bf16.gmra.mxu0 %v832
        %v1081 = vpop.f32.mrf.mxu0
        %v1082 = vadd.f32 0.0, %v1081
        %v1083 = vpop.f32.mrf.mxu0
        %v1084 = vpop.f32.mrf.mxu0
        %v1085 = vadd.f32 0.0, %v1084
        %v1086 = vpop.f32.mrf.mxu0
        %1087 = vmatprep.mubr.bf16.mxu0 0
        %1088 = vmatmul.mubr.bf16.gmra.mxu0 %v835
        %v1089 = vpop.f32.mrf.mxu0
        %v1090 = vadd.f32 0.0, %v1089
        %v1091 = vpop.f32.mrf.mxu0
        %v1092 = vpop.f32.mrf.mxu0
        %v1093 = vadd.f32 0.0, %v1092
        %v1094 = vpop.f32.mrf.mxu0
        %1095 = vmatprep.mubr.bf16.mxu0 0
        %1096 = vmatmul.mubr.bf16.gmra.mxu0 %v838
        %v1097 = vpop.f32.mrf.mxu0
        %v1098 = vadd.f32 0.0, %v1097
        %v1099 = vpop.f32.mrf.mxu0
        %v1100 = vpop.f32.mrf.mxu0
        %v1101 = vadd.f32 0.0, %v1100
        %v1102 = vpop.f32.mrf.mxu0
        %1103 = vmatprep.mubr.bf16.mxu0 0
        %1104 = vmatmul.mubr.bf16.gmra.mxu0 %v841
        %v1105 = vpop.f32.mrf.mxu0
        %v1106 = vadd.f32 0.0, %v1105
        %v1107 = vpop.f32.mrf.mxu0
        %v1108 = vpop.f32.mrf.mxu0
        %v1109 = vadd.f32 0.0, %v1108
        %v1110 = vpop.f32.mrf.mxu0
        %1111 = vmatprep.mubr.bf16.mxu0 0
        %1112 = vmatmul.mubr.bf16.gmra.mxu0 %v844
        %v1113 = vpop.f32.mrf.mxu0
        %v1114 = vadd.f32 0.0, %v1113
        %v1115 = vpop.f32.mrf.mxu0
        %v1116 = vpop.f32.mrf.mxu0
        %v1117 = vadd.f32 0.0, %v1116
        %v1118 = vpop.f32.mrf.mxu0
        %1119 = vmatprep.mubr.bf16.mxu0 0
        %1120 = vmatmul.mubr.bf16.gmra.mxu0 %v847
        %v1121 = vpop.f32.mrf.mxu0
        %v1122 = vadd.f32 0.0, %v1121
        %v1123 = vpop.f32.mrf.mxu0
        %v1124 = vpop.f32.mrf.mxu0
        %v1125 = vadd.f32 0.0, %v1124
        %v1126 = vpop.f32.mrf.mxu0
        %1127 = vmatprep.mubr.bf16.mxu0 0
        %1128 = vmatmul.mubr.bf16.gmra.mxu0 %v850
        %v1129 = vpop.f32.mrf.mxu0
        %v1130 = vadd.f32 0.0, %v1129
        %v1131 = vpop.f32.mrf.mxu0
        %v1132 = vpop.f32.mrf.mxu0
        %v1133 = vadd.f32 0.0, %v1132
        %v1134 = vpop.f32.mrf.mxu0
        %1135 = vmatprep.mubr.bf16.mxu0 0
        %1136 = vmatmul.mubr.bf16.gmra.mxu0 %v853
        %v1137 = vpop.f32.mrf.mxu0
        %v1138 = vadd.f32 0.0, %v1137
        %v1139 = vpop.f32.mrf.mxu0
        %v1140 = vpop.f32.mrf.mxu0
        %v1141 = vadd.f32 0.0, %v1140
        %v1142 = vpop.f32.mrf.mxu0
        %1143 = vdwg.mxu0
        %v1144 = vadd.f32 %v502, %v890
        %v1145 = vadd.f32 %v503, %v893
        %v1146 = vadd.f32 %v504, %v898
        %v1147 = vadd.f32 %v505, %v901
        %v1148 = vadd.f32 %v506, %v906
        %v1149 = vadd.f32 %v507, %v909
        %v1150 = vadd.f32 %v508, %v914
        %v1151 = vadd.f32 %v509, %v917
        %v1152 = vadd.f32 %v510, %v922
        %v1153 = vadd.f32 %v511, %v925
        %v1154 = vadd.f32 %v512, %v930
        %v1155 = vadd.f32 %v513, %v933
        %v1156 = vadd.f32 %v514, %v938
        %v1157 = vadd.f32 %v515, %v941
        %v1158 = vadd.f32 %v516, %v946
        %v1159 = vadd.f32 %v517, %v949
        %v1160 = vadd.f32 %v518, %v954
        %v1161 = vadd.f32 %v519, %v957
        %v1162 = vadd.f32 %v520, %v962
        %v1163 = vadd.f32 %v521, %v965
        %v1164 = vadd.f32 %v522, %v970
        %v1165 = vadd.f32 %v523, %v973
        %v1166 = vadd.f32 %v524, %v978
        %v1167 = vadd.f32 %v525, %v981
        %v1168 = vadd.f32 %v526, %v986
        %v1169 = vadd.f32 %v527, %v989
        %v1170 = vadd.f32 %v528, %v994
        %v1171 = vadd.f32 %v529, %v997
        %v1172 = vadd.f32 %v530, %v1002
        %v1173 = vadd.f32 %v531, %v1005
        %v1174 = vadd.f32 %v532, %v1010
        %v1175 = vadd.f32 %v533, %v1013
        %v1176 = vadd.f32 %v534, %v1018
        %v1177 = vadd.f32 %v535, %v1021
        %v1178 = vadd.f32 %v536, %v1026
        %v1179 = vadd.f32 %v537, %v1029
        %v1180 = vadd.f32 %v538, %v1034
        %v1181 = vadd.f32 %v539, %v1037
        %v1182 = vadd.f32 %v540, %v1042
        %v1183 = vadd.f32 %v541, %v1045
        %v1184 = vadd.f32 %v542, %v1050
        %v1185 = vadd.f32 %v543, %v1053
        %v1186 = vadd.f32 %v544, %v1058
        %v1187 = vadd.f32 %v545, %v1061
        %v1188 = vadd.f32 %v546, %v1066
        %v1189 = vadd.f32 %v547, %v1069
        %v1190 = vadd.f32 %v548, %v1074
        %v1191 = vadd.f32 %v549, %v1077
        %v1192 = vadd.f32 %v550, %v1082
        %v1193 = vadd.f32 %v551, %v1085
        %v1194 = vadd.f32 %v552, %v1090
        %v1195 = vadd.f32 %v553, %v1093
        %v1196 = vadd.f32 %v554, %v1098
        %v1197 = vadd.f32 %v555, %v1101
        %v1198 = vadd.f32 %v556, %v1106
        %v1199 = vadd.f32 %v557, %v1109
        %v1200 = vadd.f32 %v558, %v1114
        %v1201 = vadd.f32 %v559, %v1117
        %v1202 = vadd.f32 %v560, %v1122
        %v1203 = vadd.f32 %v561, %v1125
        %v1204 = vadd.f32 %v562, %v1130
        %v1205 = vadd.f32 %v563, %v1133
        %v1206 = vadd.f32 %v564, %v1138
        %v1207 = vadd.f32 %v565, %v1141
        %vm1208 = vcmask 23552
        %1209 = vst.msk [vmem:[#allocation2] sm:$0xff] %vm1208, %v1144
        %1210 = vst.msk [vmem:[#allocation2 + $0x8] sm:$0xff] %vm1208, %v1145
        %1211 = vst.msk [vmem:[#allocation2 + $0x10] sm:$0xff] %vm1208, %v1146
        %1212 = vst.msk [vmem:[#allocation2 + $0x18] sm:$0xff] %vm1208, %v1147
        %1213 = vst.msk [vmem:[#allocation2 + $0x20] sm:$0xff] %vm1208, %v1148
        %1214 = vst.msk [vmem:[#allocation2 + $0x28] sm:$0xff] %vm1208, %v1149
        %1215 = vst.msk [vmem:[#allocation2 + $0x30] sm:$0xff] %vm1208, %v1150
        %1216 = vst.msk [vmem:[#allocation2 + $0x38] sm:$0xff] %vm1208, %v1151
        %1217 = vst.msk [vmem:[#allocation2 + $0x40] sm:$0xff] %vm1208, %v1152
        %1218 = vst.msk [vmem:[#allocation2 + $0x48] sm:$0xff] %vm1208, %v1153
        %1219 = vst.msk [vmem:[#allocation2 + $0x50] sm:$0xff] %vm1208, %v1154
        %1220 = vst.msk [vmem:[#allocation2 + $0x58] sm:$0xff] %vm1208, %v1155
        %1221 = vst.msk [vmem:[#allocation2 + $0x60] sm:$0xff] %vm1208, %v1156
        %1222 = vst.msk [vmem:[#allocation2 + $0x68] sm:$0xff] %vm1208, %v1157
        %1223 = vst.msk [vmem:[#allocation2 + $0x70] sm:$0xff] %vm1208, %v1158
        %1224 = vst.msk [vmem:[#allocation2 + $0x78] sm:$0xff] %vm1208, %v1159
        %1225 = vst.msk [vmem:[#allocation2 + $0x80] sm:$0xff] %vm1208, %v1160
        %1226 = vst.msk [vmem:[#allocation2 + $0x88] sm:$0xff] %vm1208, %v1161
        %1227 = vst.msk [vmem:[#allocation2 + $0x90] sm:$0xff] %vm1208, %v1162
        %1228 = vst.msk [vmem:[#allocation2 + $0x98] sm:$0xff] %vm1208, %v1163
        %1229 = vst.msk [vmem:[#allocation2 + $0xa0] sm:$0xff] %vm1208, %v1164
        %1230 = vst.msk [vmem:[#allocation2 + $0xa8] sm:$0xff] %vm1208, %v1165
        %1231 = vst.msk [vmem:[#allocation2 + $0xb0] sm:$0xff] %vm1208, %v1166
        %1232 = vst.msk [vmem:[#allocation2 + $0xb8] sm:$0xff] %vm1208, %v1167
        %1233 = vst.msk [vmem:[#allocation2 + $0xc0] sm:$0xff] %vm1208, %v1168
        %1234 = vst.msk [vmem:[#allocation2 + $0xc8] sm:$0xff] %vm1208, %v1169
        %1235 = vst.msk [vmem:[#allocation2 + $0xd0] sm:$0xff] %vm1208, %v1170
        %1236 = vst.msk [vmem:[#allocation2 + $0xd8] sm:$0xff] %vm1208, %v1171
        %1237 = vst.msk [vmem:[#allocation2 + $0xe0] sm:$0xff] %vm1208, %v1172
        %1238 = vst.msk [vmem:[#allocation2 + $0xe8] sm:$0xff] %vm1208, %v1173
        %1239 = vst.msk [vmem:[#allocation2 + $0xf0] sm:$0xff] %vm1208, %v1174
        %1240 = vst.msk [vmem:[#allocation2 + $0xf8] sm:$0xff] %vm1208, %v1175
        %1241 = vst.msk [vmem:[#allocation2 + $0x100] sm:$0xff] %vm1208, %v1176
        %1242 = vst.msk [vmem:[#allocation2 + $0x108] sm:$0xff] %vm1208, %v1177
        %1243 = vst.msk [vmem:[#allocation2 + $0x110] sm:$0xff] %vm1208, %v1178
        %1244 = vst.msk [vmem:[#allocation2 + $0x118] sm:$0xff] %vm1208, %v1179
        %1245 = vst.msk [vmem:[#allocation2 + $0x120] sm:$0xff] %vm1208, %v1180
        %1246 = vst.msk [vmem:[#allocation2 + $0x128] sm:$0xff] %vm1208, %v1181
        %1247 = vst.msk [vmem:[#allocation2 + $0x130] sm:$0xff] %vm1208, %v1182
        %1248 = vst.msk [vmem:[#allocation2 + $0x138] sm:$0xff] %vm1208, %v1183
        %1249 = vst.msk [vmem:[#allocation2 + $0x140] sm:$0xff] %vm1208, %v1184
        %1250 = vst.msk [vmem:[#allocation2 + $0x148] sm:$0xff] %vm1208, %v1185
        %1251 = vst.msk [vmem:[#allocation2 + $0x150] sm:$0xff] %vm1208, %v1186
        %1252 = vst.msk [vmem:[#allocation2 + $0x158] sm:$0xff] %vm1208, %v1187
        %1253 = vst.msk [vmem:[#allocation2 + $0x160] sm:$0xff] %vm1208, %v1188
        %1254 = vst.msk [vmem:[#allocation2 + $0x168] sm:$0xff] %vm1208, %v1189
        %1255 = vst.msk [vmem:[#allocation2 + $0x170] sm:$0xff] %vm1208, %v1190
        %1256 = vst.msk [vmem:[#allocation2 + $0x178] sm:$0xff] %vm1208, %v1191
        %1257 = vst.msk [vmem:[#allocation2 + $0x180] sm:$0xff] %vm1208, %v1192
        %1258 = vst.msk [vmem:[#allocation2 + $0x188] sm:$0xff] %vm1208, %v1193
        %1259 = vst.msk [vmem:[#allocation2 + $0x190] sm:$0xff] %vm1208, %v1194
        %1260 = vst.msk [vmem:[#allocation2 + $0x198] sm:$0xff] %vm1208, %v1195
        %1261 = vst.msk [vmem:[#allocation2 + $0x1a0] sm:$0xff] %vm1208, %v1196
        %1262 = vst.msk [vmem:[#allocation2 + $0x1a8] sm:$0xff] %vm1208, %v1197
        %1263 = vst.msk [vmem:[#allocation2 + $0x1b0] sm:$0xff] %vm1208, %v1198
        %1264 = vst.msk [vmem:[#allocation2 + $0x1b8] sm:$0xff] %vm1208, %v1199
        %1265 = vst.msk [vmem:[#allocation2 + $0x1c0] sm:$0xff] %vm1208, %v1200
        %1266 = vst.msk [vmem:[#allocation2 + $0x1c8] sm:$0xff] %vm1208, %v1201
        %1267 = vst.msk [vmem:[#allocation2 + $0x1d0] sm:$0xff] %vm1208, %v1202
        %1268 = vst.msk [vmem:[#allocation2 + $0x1d8] sm:$0xff] %vm1208, %v1203
        %1269 = vst.msk [vmem:[#allocation2 + $0x1e0] sm:$0xff] %vm1208, %v1204
        %1270 = vst.msk [vmem:[#allocation2 + $0x1e8] sm:$0xff] %vm1208, %v1205
        %1271 = vst.msk [vmem:[#allocation2 + $0x1f0] sm:$0xff] %vm1208, %v1206
        %1272 = vst.msk [vmem:[#allocation2 + $0x1f8] sm:$0xff] %vm1208, %v1207
        // Predicated region
        $region37: #{_lambda_.33} parent=31 // pred_check
          %p1273 = pneg %p305
        $region38: #{_lambda_.33} parent=31 // pred_check_branch
          %1275 = sbr.rel (%p1273) target = $region40
        $region39: #{_lambda_.33} parent=31 // pred_region
          %v1276 = vld [vmem:[#allocation2] sm:$0xff]
          %v1277 = vld [vmem:[#allocation2 + $0x8] sm:$0xff]
          %v1278 = vld [vmem:[#allocation2 + $0x10] sm:$0xff]
          %v1279 = vld [vmem:[#allocation2 + $0x18] sm:$0xff]
          %v1280 = vld [vmem:[#allocation2 + $0x20] sm:$0xff]
          %v1281 = vld [vmem:[#allocation2 + $0x28] sm:$0xff]
          %v1282 = vld [vmem:[#allocation2 + $0x30] sm:$0xff]
          %v1283 = vld [vmem:[#allocation2 + $0x38] sm:$0xff]
          %v1284 = vld [vmem:[#allocation2 + $0x40] sm:$0xff]
          %v1285 = vld [vmem:[#allocation2 + $0x48] sm:$0xff]
          %v1286 = vld [vmem:[#allocation2 + $0x50] sm:$0xff]
          %v1287 = vld [vmem:[#allocation2 + $0x58] sm:$0xff]
          %v1288 = vld [vmem:[#allocation2 + $0x60] sm:$0xff]
          %v1289 = vld [vmem:[#allocation2 + $0x68] sm:$0xff]
          %v1290 = vld [vmem:[#allocation2 + $0x70] sm:$0xff]
          %v1291 = vld [vmem:[#allocation2 + $0x78] sm:$0xff]
          %v1292 = vld [vmem:[#allocation2 + $0x80] sm:$0xff]
          %v1293 = vld [vmem:[#allocation2 + $0x88] sm:$0xff]
          %v1294 = vld [vmem:[#allocation2 + $0x90] sm:$0xff]
          %v1295 = vld [vmem:[#allocation2 + $0x98] sm:$0xff]
          %v1296 = vld [vmem:[#allocation2 + $0xa0] sm:$0xff]
          %v1297 = vld [vmem:[#allocation2 + $0xa8] sm:$0xff]
          %v1298 = vld [vmem:[#allocation2 + $0xb0] sm:$0xff]
          %v1299 = vld [vmem:[#allocation2 + $0xb8] sm:$0xff]
          %v1300 = vld [vmem:[#allocation2 + $0xc0] sm:$0xff]
          %v1301 = vld [vmem:[#allocation2 + $0xc8] sm:$0xff]
          %v1302 = vld [vmem:[#allocation2 + $0xd0] sm:$0xff]
          %v1303 = vld [vmem:[#allocation2 + $0xd8] sm:$0xff]
          %v1304 = vld [vmem:[#allocation2 + $0xe0] sm:$0xff]
          %v1305 = vld [vmem:[#allocation2 + $0xe8] sm:$0xff]
          %v1306 = vld [vmem:[#allocation2 + $0xf0] sm:$0xff]
          %v1307 = vld [vmem:[#allocation2 + $0xf8] sm:$0xff]
          %v1308 = vld [vmem:[#allocation2 + $0x100] sm:$0xff]
          %v1309 = vld [vmem:[#allocation2 + $0x108] sm:$0xff]
          %v1310 = vld [vmem:[#allocation2 + $0x110] sm:$0xff]
          %v1311 = vld [vmem:[#allocation2 + $0x118] sm:$0xff]
          %v1312 = vld [vmem:[#allocation2 + $0x120] sm:$0xff]
          %v1313 = vld [vmem:[#allocation2 + $0x128] sm:$0xff]
          %v1314 = vld [vmem:[#allocation2 + $0x130] sm:$0xff]
          %v1315 = vld [vmem:[#allocation2 + $0x138] sm:$0xff]
          %v1316 = vld [vmem:[#allocation2 + $0x140] sm:$0xff]
          %v1317 = vld [vmem:[#allocation2 + $0x148] sm:$0xff]
          %v1318 = vld [vmem:[#allocation2 + $0x150] sm:$0xff]
          %v1319 = vld [vmem:[#allocation2 + $0x158] sm:$0xff]
          %v1320 = vld [vmem:[#allocation2 + $0x160] sm:$0xff]
          %v1321 = vld [vmem:[#allocation2 + $0x168] sm:$0xff]
          %v1322 = vld [vmem:[#allocation2 + $0x170] sm:$0xff]
          %v1323 = vld [vmem:[#allocation2 + $0x178] sm:$0xff]
          %v1324 = vld [vmem:[#allocation2 + $0x180] sm:$0xff]
          %v1325 = vld [vmem:[#allocation2 + $0x188] sm:$0xff]
          %v1326 = vld [vmem:[#allocation2 + $0x190] sm:$0xff]
          %v1327 = vld [vmem:[#allocation2 + $0x198] sm:$0xff]
          %v1328 = vld [vmem:[#allocation2 + $0x1a0] sm:$0xff]
          %v1329 = vld [vmem:[#allocation2 + $0x1a8] sm:$0xff]
          %v1330 = vld [vmem:[#allocation2 + $0x1b0] sm:$0xff]
          %v1331 = vld [vmem:[#allocation2 + $0x1b8] sm:$0xff]
          %v1332 = vld [vmem:[#allocation2 + $0x1c0] sm:$0xff]
          %v1333 = vld [vmem:[#allocation2 + $0x1c8] sm:$0xff]
          %v1334 = vld [vmem:[#allocation2 + $0x1d0] sm:$0xff]
          %v1335 = vld [vmem:[#allocation2 + $0x1d8] sm:$0xff]
          %v1336 = vld [vmem:[#allocation2 + $0x1e0] sm:$0xff]
          %v1337 = vld [vmem:[#allocation2 + $0x1e8] sm:$0xff]
          %v1338 = vld [vmem:[#allocation2 + $0x1f0] sm:$0xff]
          %v1339 = vld [vmem:[#allocation2 + $0x1f8] sm:$0xff]
          %v1340 = vld [vmem:[%s2] sm:$0x1]
          %v1342 = vlaneseq
          %v1343 = vshrl.u32 %v1342, 7
          %v1344 = vsub.s32 0, %v1343
          %v1345 = vrot.slane %v1340, %v1344
          %v1347 = vadd.f32 %v1276, %v1345
          %v1348 = vadd.f32 %v1277, %v1345
          %v1349 = vadd.f32 %v1278, %v1345
          %v1350 = vadd.f32 %v1279, %v1345
          %v1351 = vadd.f32 %v1280, %v1345
          %v1352 = vadd.f32 %v1281, %v1345
          %v1353 = vadd.f32 %v1282, %v1345
          %v1354 = vadd.f32 %v1283, %v1345
          %v1355 = vadd.f32 %v1284, %v1345
          %v1356 = vadd.f32 %v1285, %v1345
          %v1357 = vadd.f32 %v1286, %v1345
          %v1358 = vadd.f32 %v1287, %v1345
          %v1359 = vadd.f32 %v1288, %v1345
          %v1360 = vadd.f32 %v1289, %v1345
          %v1361 = vadd.f32 %v1290, %v1345
          %v1362 = vadd.f32 %v1291, %v1345
          %v1363 = vadd.f32 %v1292, %v1345
          %v1364 = vadd.f32 %v1293, %v1345
          %v1365 = vadd.f32 %v1294, %v1345
          %v1366 = vadd.f32 %v1295, %v1345
          %v1367 = vadd.f32 %v1296, %v1345
          %v1368 = vadd.f32 %v1297, %v1345
          %v1369 = vadd.f32 %v1298, %v1345
          %v1370 = vadd.f32 %v1299, %v1345
          %v1371 = vadd.f32 %v1300, %v1345
          %v1372 = vadd.f32 %v1301, %v1345
          %v1373 = vadd.f32 %v1302, %v1345
          %v1374 = vadd.f32 %v1303, %v1345
          %v1375 = vadd.f32 %v1304, %v1345
          %v1376 = vadd.f32 %v1305, %v1345
          %v1377 = vadd.f32 %v1306, %v1345
          %v1378 = vadd.f32 %v1307, %v1345
          %v1379 = vadd.f32 %v1308, %v1345
          %v1380 = vadd.f32 %v1309, %v1345
          %v1381 = vadd.f32 %v1310, %v1345
          %v1382 = vadd.f32 %v1311, %v1345
          %v1383 = vadd.f32 %v1312, %v1345
          %v1384 = vadd.f32 %v1313, %v1345
          %v1385 = vadd.f32 %v1314, %v1345
          %v1386 = vadd.f32 %v1315, %v1345
          %v1387 = vadd.f32 %v1316, %v1345
          %v1388 = vadd.f32 %v1317, %v1345
          %v1389 = vadd.f32 %v1318, %v1345
          %v1390 = vadd.f32 %v1319, %v1345
          %v1391 = vadd.f32 %v1320, %v1345
          %v1392 = vadd.f32 %v1321, %v1345
          %v1393 = vadd.f32 %v1322, %v1345
          %v1394 = vadd.f32 %v1323, %v1345
          %v1395 = vadd.f32 %v1324, %v1345
          %v1396 = vadd.f32 %v1325, %v1345
          %v1397 = vadd.f32 %v1326, %v1345
          %v1398 = vadd.f32 %v1327, %v1345
          %v1399 = vadd.f32 %v1328, %v1345
          %v1400 = vadd.f32 %v1329, %v1345
          %v1401 = vadd.f32 %v1330, %v1345
          %v1402 = vadd.f32 %v1331, %v1345
          %v1403 = vadd.f32 %v1332, %v1345
          %v1404 = vadd.f32 %v1333, %v1345
          %v1405 = vadd.f32 %v1334, %v1345
          %v1406 = vadd.f32 %v1335, %v1345
          %v1407 = vadd.f32 %v1336, %v1345
          %v1408 = vadd.f32 %v1337, %v1345
          %v1409 = vadd.f32 %v1338, %v1345
          %v1410 = vadd.f32 %v1339, %v1345
          %v1411 = vsel %vm1208, %v1347, 0.0
          %v1412 = vsel %vm1208, %v1348, 0.0
          %v1413 = vadd.f32 %v1411, %v1412
          %v1414 = vsel %vm1208, %v1349, 0.0
          %v1415 = vadd.f32 %v1413, %v1414
          %v1416 = vsel %vm1208, %v1350, 0.0
          %v1417 = vadd.f32 %v1415, %v1416
          %v1418 = vsel %vm1208, %v1351, 0.0
          %v1419 = vadd.f32 %v1417, %v1418
          %v1420 = vsel %vm1208, %v1352, 0.0
          %v1421 = vadd.f32 %v1419, %v1420
          %v1422 = vsel %vm1208, %v1353, 0.0
          %v1423 = vadd.f32 %v1421, %v1422
          %v1424 = vsel %vm1208, %v1354, 0.0
          %v1425 = vadd.f32 %v1423, %v1424
          %v1426 = vsel %vm1208, %v1355, 0.0
          %v1427 = vadd.f32 %v1425, %v1426
          %v1428 = vsel %vm1208, %v1356, 0.0
          %v1429 = vadd.f32 %v1427, %v1428
          %v1430 = vsel %vm1208, %v1357, 0.0
          %v1431 = vadd.f32 %v1429, %v1430
          %v1432 = vsel %vm1208, %v1358, 0.0
          %v1433 = vadd.f32 %v1431, %v1432
          %v1434 = vsel %vm1208, %v1359, 0.0
          %v1435 = vadd.f32 %v1433, %v1434
          %v1436 = vsel %vm1208, %v1360, 0.0
          %v1437 = vadd.f32 %v1435, %v1436
          %v1438 = vsel %vm1208, %v1361, 0.0
          %v1439 = vadd.f32 %v1437, %v1438
          %v1440 = vsel %vm1208, %v1362, 0.0
          %v1441 = vadd.f32 %v1439, %v1440
          %v1442 = vsel %vm1208, %v1363, 0.0
          %v1443 = vadd.f32 %v1441, %v1442
          %v1444 = vsel %vm1208, %v1364, 0.0
          %v1445 = vadd.f32 %v1443, %v1444
          %v1446 = vsel %vm1208, %v1365, 0.0
          %v1447 = vadd.f32 %v1445, %v1446
          %v1448 = vsel %vm1208, %v1366, 0.0
          %v1449 = vadd.f32 %v1447, %v1448
          %v1450 = vsel %vm1208, %v1367, 0.0
          %v1451 = vadd.f32 %v1449, %v1450
          %v1452 = vsel %vm1208, %v1368, 0.0
          %v1453 = vadd.f32 %v1451, %v1452
          %v1454 = vsel %vm1208, %v1369, 0.0
          %v1455 = vadd.f32 %v1453, %v1454
          %v1456 = vsel %vm1208, %v1370, 0.0
          %v1457 = vadd.f32 %v1455, %v1456
          %v1458 = vsel %vm1208, %v1371, 0.0
          %v1459 = vadd.f32 %v1457, %v1458
          %v1460 = vsel %vm1208, %v1372, 0.0
          %v1461 = vadd.f32 %v1459, %v1460
          %v1462 = vsel %vm1208, %v1373, 0.0
          %v1463 = vadd.f32 %v1461, %v1462
          %v1464 = vsel %vm1208, %v1374, 0.0
          %v1465 = vadd.f32 %v1463, %v1464
          %v1466 = vsel %vm1208, %v1375, 0.0
          %v1467 = vadd.f32 %v1465, %v1466
          %v1468 = vsel %vm1208, %v1376, 0.0
          %v1469 = vadd.f32 %v1467, %v1468
          %v1470 = vsel %vm1208, %v1377, 0.0
          %v1471 = vadd.f32 %v1469, %v1470
          %v1472 = vsel %vm1208, %v1378, 0.0
          %v1473 = vadd.f32 %v1471, %v1472
          %v1474 = vsel %vm1208, %v1379, 0.0
          %v1475 = vadd.f32 %v1473, %v1474
          %v1476 = vsel %vm1208, %v1380, 0.0
          %v1477 = vadd.f32 %v1475, %v1476
          %v1478 = vsel %vm1208, %v1381, 0.0
          %v1479 = vadd.f32 %v1477, %v1478
          %v1480 = vsel %vm1208, %v1382, 0.0
          %v1481 = vadd.f32 %v1479, %v1480
          %v1482 = vsel %vm1208, %v1383, 0.0
          %v1483 = vadd.f32 %v1481, %v1482
          %v1484 = vsel %vm1208, %v1384, 0.0
          %v1485 = vadd.f32 %v1483, %v1484
          %v1486 = vsel %vm1208, %v1385, 0.0
          %v1487 = vadd.f32 %v1485, %v1486
          %v1488 = vsel %vm1208, %v1386, 0.0
          %v1489 = vadd.f32 %v1487, %v1488
          %v1490 = vsel %vm1208, %v1387, 0.0
          %v1491 = vadd.f32 %v1489, %v1490
          %v1492 = vsel %vm1208, %v1388, 0.0
          %v1493 = vadd.f32 %v1491, %v1492
          %v1494 = vsel %vm1208, %v1389, 0.0
          %v1495 = vadd.f32 %v1493, %v1494
          %v1496 = vsel %vm1208, %v1390, 0.0
          %v1497 = vadd.f32 %v1495, %v1496
          %v1498 = vsel %vm1208, %v1391, 0.0
          %v1499 = vadd.f32 %v1497, %v1498
          %v1500 = vsel %vm1208, %v1392, 0.0
          %v1501 = vadd.f32 %v1499, %v1500
          %v1502 = vsel %vm1208, %v1393, 0.0
          %v1503 = vadd.f32 %v1501, %v1502
          %v1504 = vsel %vm1208, %v1394, 0.0
          %v1505 = vadd.f32 %v1503, %v1504
          %v1506 = vsel %vm1208, %v1395, 0.0
          %v1507 = vadd.f32 %v1505, %v1506
          %v1508 = vsel %vm1208, %v1396, 0.0
          %v1509 = vadd.f32 %v1507, %v1508
          %v1510 = vsel %vm1208, %v1397, 0.0
          %v1511 = vadd.f32 %v1509, %v1510
          %v1512 = vsel %vm1208, %v1398, 0.0
          %v1513 = vadd.f32 %v1511, %v1512
          %v1514 = vsel %vm1208, %v1399, 0.0
          %v1515 = vadd.f32 %v1513, %v1514
          %v1516 = vsel %vm1208, %v1400, 0.0
          %v1517 = vadd.f32 %v1515, %v1516
          %v1518 = vsel %vm1208, %v1401, 0.0
          %v1519 = vadd.f32 %v1517, %v1518
          %v1520 = vsel %vm1208, %v1402, 0.0
          %v1521 = vadd.f32 %v1519, %v1520
          %v1522 = vsel %vm1208, %v1403, 0.0
          %v1523 = vadd.f32 %v1521, %v1522
          %v1524 = vsel %vm1208, %v1404, 0.0
          %v1525 = vadd.f32 %v1523, %v1524
          %v1526 = vsel %vm1208, %v1405, 0.0
          %v1527 = vadd.f32 %v1525, %v1526
          %v1528 = vsel %vm1208, %v1406, 0.0
          %v1529 = vadd.f32 %v1527, %v1528
          %v1530 = vsel %vm1208, %v1407, 0.0
          %v1531 = vadd.f32 %v1529, %v1530
          %v1532 = vsel %vm1208, %v1408, 0.0
          %v1533 = vadd.f32 %v1531, %v1532
          %v1534 = vsel %vm1208, %v1409, 0.0
          %v1535 = vadd.f32 %v1533, %v1534
          %v1536 = vsel %vm1208, %v1410, 0.0
          %v1537 = vadd.f32 %v1535, %v1536
          %v1538 = vrot.slane %v1537, 4
          %v1539 = vadd.f32 %v1537, %v1538
          %v1540 = vrot.slane %v1539, 2
          %v1541 = vadd.f32 %v1539, %v1540
          %v1542 = vrot.slane %v1541, 1
          %v1543 = vadd.f32 %v1541, %v1542
          %v1544 = vmul.f32 %v1347, %v1347
          %v1545 = vmul.f32 %v1348, %v1348
          %v1546 = vmul.f32 %v1349, %v1349
          %v1547 = vmul.f32 %v1350, %v1350
          %v1548 = vmul.f32 %v1351, %v1351
          %v1549 = vmul.f32 %v1352, %v1352
          %v1550 = vmul.f32 %v1353, %v1353
          %v1551 = vmul.f32 %v1354, %v1354
          %v1552 = vmul.f32 %v1355, %v1355
          %v1553 = vmul.f32 %v1356, %v1356
          %v1554 = vmul.f32 %v1357, %v1357
          %v1555 = vmul.f32 %v1358, %v1358
          %v1556 = vmul.f32 %v1359, %v1359
          %v1557 = vmul.f32 %v1360, %v1360
          %v1558 = vmul.f32 %v1361, %v1361
          %v1559 = vmul.f32 %v1362, %v1362
          %v1560 = vmul.f32 %v1363, %v1363
          %v1561 = vmul.f32 %v1364, %v1364
          %v1562 = vmul.f32 %v1365, %v1365
          %v1563 = vmul.f32 %v1366, %v1366
          %v1564 = vmul.f32 %v1367, %v1367
          %v1565 = vmul.f32 %v1368, %v1368
          %v1566 = vmul.f32 %v1369, %v1369
          %v1567 = vmul.f32 %v1370, %v1370
          %v1568 = vmul.f32 %v1371, %v1371
          %v1569 = vmul.f32 %v1372, %v1372
          %v1570 = vmul.f32 %v1373, %v1373
          %v1571 = vmul.f32 %v1374, %v1374
          %v1572 = vmul.f32 %v1375, %v1375
          %v1573 = vmul.f32 %v1376, %v1376
          %v1574 = vmul.f32 %v1377, %v1377
          %v1575 = vmul.f32 %v1378, %v1378
          %v1576 = vmul.f32 %v1379, %v1379
          %v1577 = vmul.f32 %v1380, %v1380
          %v1578 = vmul.f32 %v1381, %v1381
          %v1579 = vmul.f32 %v1382, %v1382
          %v1580 = vmul.f32 %v1383, %v1383
          %v1581 = vmul.f32 %v1384, %v1384
          %v1582 = vmul.f32 %v1385, %v1385
          %v1583 = vmul.f32 %v1386, %v1386
          %v1584 = vmul.f32 %v1387, %v1387
          %v1585 = vmul.f32 %v1388, %v1388
          %v1586 = vmul.f32 %v1389, %v1389
          %v1587 = vmul.f32 %v1390, %v1390
          %v1588 = vmul.f32 %v1391, %v1391
          %v1589 = vmul.f32 %v1392, %v1392
          %v1590 = vmul.f32 %v1393, %v1393
          %v1591 = vmul.f32 %v1394, %v1394
          %v1592 = vmul.f32 %v1395, %v1395
          %v1593 = vmul.f32 %v1396, %v1396
          %v1594 = vmul.f32 %v1397, %v1397
          %v1595 = vmul.f32 %v1398, %v1398
          %v1596 = vmul.f32 %v1399, %v1399
          %v1597 = vmul.f32 %v1400, %v1400
          %v1598 = vmul.f32 %v1401, %v1401
          %v1599 = vmul.f32 %v1402, %v1402
          %v1600 = vmul.f32 %v1403, %v1403
          %v1601 = vmul.f32 %v1404, %v1404
          %v1602 = vmul.f32 %v1405, %v1405
          %v1603 = vmul.f32 %v1406, %v1406
          %v1604 = vmul.f32 %v1407, %v1407
          %v1605 = vmul.f32 %v1408, %v1408
          %v1606 = vmul.f32 %v1409, %v1409
          %v1607 = vmul.f32 %v1410, %v1410
          %v1608 = vsel %vm1208, %v1544, 0.0
          %v1609 = vsel %vm1208, %v1545, 0.0
          %v1610 = vadd.f32 %v1608, %v1609
          %v1611 = vsel %vm1208, %v1546, 0.0
          %v1612 = vadd.f32 %v1610, %v1611
          %v1613 = vsel %vm1208, %v1547, 0.0
          %v1614 = vadd.f32 %v1612, %v1613
          %v1615 = vsel %vm1208, %v1548, 0.0
          %v1616 = vadd.f32 %v1614, %v1615
          %v1617 = vsel %vm1208, %v1549, 0.0
          %v1618 = vadd.f32 %v1616, %v1617
          %v1619 = vsel %vm1208, %v1550, 0.0
          %v1620 = vadd.f32 %v1618, %v1619
          %v1621 = vsel %vm1208, %v1551, 0.0
          %v1622 = vadd.f32 %v1620, %v1621
          %v1623 = vsel %vm1208, %v1552, 0.0
          %v1624 = vadd.f32 %v1622, %v1623
          %v1625 = vsel %vm1208, %v1553, 0.0
          %v1626 = vadd.f32 %v1624, %v1625
          %v1627 = vsel %vm1208, %v1554, 0.0
          %v1628 = vadd.f32 %v1626, %v1627
          %v1629 = vsel %vm1208, %v1555, 0.0
          %v1630 = vadd.f32 %v1628, %v1629
          %v1631 = vsel %vm1208, %v1556, 0.0
          %v1632 = vadd.f32 %v1630, %v1631
          %v1633 = vsel %vm1208, %v1557, 0.0
          %v1634 = vadd.f32 %v1632, %v1633
          %v1635 = vsel %vm1208, %v1558, 0.0
          %v1636 = vadd.f32 %v1634, %v1635
          %v1637 = vsel %vm1208, %v1559, 0.0
          %v1638 = vadd.f32 %v1636, %v1637
          %v1639 = vsel %vm1208, %v1560, 0.0
          %v1640 = vadd.f32 %v1638, %v1639
          %v1641 = vsel %vm1208, %v1561, 0.0
          %v1642 = vadd.f32 %v1640, %v1641
          %v1643 = vsel %vm1208, %v1562, 0.0
          %v1644 = vadd.f32 %v1642, %v1643
          %v1645 = vsel %vm1208, %v1563, 0.0
          %v1646 = vadd.f32 %v1644, %v1645
          %v1647 = vsel %vm1208, %v1564, 0.0
          %v1648 = vadd.f32 %v1646, %v1647
          %v1649 = vsel %vm1208, %v1565, 0.0
          %v1650 = vadd.f32 %v1648, %v1649
          %v1651 = vsel %vm1208, %v1566, 0.0
          %v1652 = vadd.f32 %v1650, %v1651
          %v1653 = vsel %vm1208, %v1567, 0.0
          %v1654 = vadd.f32 %v1652, %v1653
          %v1655 = vsel %vm1208, %v1568, 0.0
          %v1656 = vadd.f32 %v1654, %v1655
          %v1657 = vsel %vm1208, %v1569, 0.0
          %v1658 = vadd.f32 %v1656, %v1657
          %v1659 = vsel %vm1208, %v1570, 0.0
          %v1660 = vadd.f32 %v1658, %v1659
          %v1661 = vsel %vm1208, %v1571, 0.0
          %v1662 = vadd.f32 %v1660, %v1661
          %v1663 = vsel %vm1208, %v1572, 0.0
          %v1664 = vadd.f32 %v1662, %v1663
          %v1665 = vsel %vm1208, %v1573, 0.0
          %v1666 = vadd.f32 %v1664, %v1665
          %v1667 = vsel %vm1208, %v1574, 0.0
          %v1668 = vadd.f32 %v1666, %v1667
          %v1669 = vsel %vm1208, %v1575, 0.0
          %v1670 = vadd.f32 %v1668, %v1669
          %v1671 = vsel %vm1208, %v1576, 0.0
          %v1672 = vadd.f32 %v1670, %v1671
          %v1673 = vsel %vm1208, %v1577, 0.0
          %v1674 = vadd.f32 %v1672, %v1673
          %v1675 = vsel %vm1208, %v1578, 0.0
          %v1676 = vadd.f32 %v1674, %v1675
          %v1677 = vsel %vm1208, %v1579, 0.0
          %v1678 = vadd.f32 %v1676, %v1677
          %v1679 = vsel %vm1208, %v1580, 0.0
          %v1680 = vadd.f32 %v1678, %v1679
          %v1681 = vsel %vm1208, %v1581, 0.0
          %v1682 = vadd.f32 %v1680, %v1681
          %v1683 = vsel %vm1208, %v1582, 0.0
          %v1684 = vadd.f32 %v1682, %v1683
          %v1685 = vsel %vm1208, %v1583, 0.0
          %v1686 = vadd.f32 %v1684, %v1685
          %v1687 = vsel %vm1208, %v1584, 0.0
          %v1688 = vadd.f32 %v1686, %v1687
          %v1689 = vsel %vm1208, %v1585, 0.0
          %v1690 = vadd.f32 %v1688, %v1689
          %v1691 = vsel %vm1208, %v1586, 0.0
          %v1692 = vadd.f32 %v1690, %v1691
          %v1693 = vsel %vm1208, %v1587, 0.0
          %v1694 = vadd.f32 %v1692, %v1693
          %v1695 = vsel %vm1208, %v1588, 0.0
          %v1696 = vadd.f32 %v1694, %v1695
          %v1697 = vsel %vm1208, %v1589, 0.0
          %v1698 = vadd.f32 %v1696, %v1697
          %v1699 = vsel %vm1208, %v1590, 0.0
          %v1700 = vadd.f32 %v1698, %v1699
          %v1701 = vsel %vm1208, %v1591, 0.0
          %v1702 = vadd.f32 %v1700, %v1701
          %v1703 = vsel %vm1208, %v1592, 0.0
          %v1704 = vadd.f32 %v1702, %v1703
          %v1705 = vsel %vm1208, %v1593, 0.0
          %v1706 = vadd.f32 %v1704, %v1705
          %v1707 = vsel %vm1208, %v1594, 0.0
          %v1708 = vadd.f32 %v1706, %v1707
          %v1709 = vsel %vm1208, %v1595, 0.0
          %v1710 = vadd.f32 %v1708, %v1709
          %v1711 = vsel %vm1208, %v1596, 0.0
          %v1712 = vadd.f32 %v1710, %v1711
          %v1713 = vsel %vm1208, %v1597, 0.0
          %v1714 = vadd.f32 %v1712, %v1713
          %v1715 = vsel %vm1208, %v1598, 0.0
          %v1716 = vadd.f32 %v1714, %v1715
          %v1717 = vsel %vm1208, %v1599, 0.0
          %v1718 = vadd.f32 %v1716, %v1717
          %v1719 = vsel %vm1208, %v1600, 0.0
          %v1720 = vadd.f32 %v1718, %v1719
          %v1721 = vsel %vm1208, %v1601, 0.0
          %v1722 = vadd.f32 %v1720, %v1721
          %v1723 = vsel %vm1208, %v1602, 0.0
          %v1724 = vadd.f32 %v1722, %v1723
          %v1725 = vsel %vm1208, %v1603, 0.0
          %v1726 = vadd.f32 %v1724, %v1725
          %v1727 = vsel %vm1208, %v1604, 0.0
          %v1728 = vadd.f32 %v1726, %v1727
          %v1729 = vsel %vm1208, %v1605, 0.0
          %v1730 = vadd.f32 %v1728, %v1729
          %v1731 = vsel %vm1208, %v1606, 0.0
          %v1732 = vadd.f32 %v1730, %v1731
          %v1733 = vsel %vm1208, %v1607, 0.0
          %v1734 = vadd.f32 %v1732, %v1733
          %v1735 = vrot.slane %v1734, 4
          %v1736 = vadd.f32 %v1734, %v1735
          %v1737 = vrot.slane %v1736, 2
          %v1738 = vadd.f32 %v1736, %v1737
          %v1739 = vrot.slane %v1738, 1
          %v1740 = vadd.f32 %v1738, %v1739
          %vm1741 = vcmask 1040384
          %v1742 = vsel %vm1741, %v1543, %v1740
          %vm1743 = vcmask 1041408
          %v1744 = vsel %vm1743, %v1742, 0.0
          %1745 = vst.msk [vmem:[%s270] sm:$0xff] %vm1208, %v1744
          %v1746 = vtanh.pop %v1347
          %v1747 = vtanh.pop %v1348
          %v1748 = vtanh.pop %v1349
          %v1749 = vtanh.pop %v1350
          %v1750 = vtanh.pop %v1351
          %v1751 = vtanh.pop %v1352
          %v1752 = vtanh.pop %v1353
          %v1753 = vtanh.pop %v1354
          %v1754 = vtanh.pop %v1355
          %v1755 = vtanh.pop %v1356
          %v1756 = vtanh.pop %v1357
          %v1757 = vtanh.pop %v1358
          %v1758 = vtanh.pop %v1359
          %v1759 = vtanh.pop %v1360
          %v1760 = vtanh.pop %v1361
          %v1761 = vtanh.pop %v1362
          %v1762 = vtanh.pop %v1363
          %v1763 = vtanh.pop %v1364
          %v1764 = vtanh.pop %v1365
          %v1765 = vtanh.pop %v1366
          %v1766 = vtanh.pop %v1367
          %v1767 = vtanh.pop %v1368
          %v1768 = vtanh.pop %v1369
          %v1769 = vtanh.pop %v1370
          %v1770 = vtanh.pop %v1371
          %v1771 = vtanh.pop %v1372
          %v1772 = vtanh.pop %v1373
          %v1773 = vtanh.pop %v1374
          %v1774 = vtanh.pop %v1375
          %v1775 = vtanh.pop %v1376
          %v1776 = vtanh.pop %v1377
          %v1777 = vtanh.pop %v1378
          %v1778 = vtanh.pop %v1379
          %v1779 = vtanh.pop %v1380
          %v1780 = vtanh.pop %v1381
          %v1781 = vtanh.pop %v1382
          %v1782 = vtanh.pop %v1383
          %v1783 = vtanh.pop %v1384
          %v1784 = vtanh.pop %v1385
          %v1785 = vtanh.pop %v1386
          %v1786 = vtanh.pop %v1387
          %v1787 = vtanh.pop %v1388
          %v1788 = vtanh.pop %v1389
          %v1789 = vtanh.pop %v1390
          %v1790 = vtanh.pop %v1391
          %v1791 = vtanh.pop %v1392
          %v1792 = vtanh.pop %v1393
          %v1793 = vtanh.pop %v1394
          %v1794 = vtanh.pop %v1395
          %v1795 = vtanh.pop %v1396
          %v1796 = vtanh.pop %v1397
          %v1797 = vtanh.pop %v1398
          %v1798 = vtanh.pop %v1399
          %v1799 = vtanh.pop %v1400
          %v1800 = vtanh.pop %v1401
          %v1801 = vtanh.pop %v1402
          %v1802 = vtanh.pop %v1403
          %v1803 = vtanh.pop %v1404
          %v1804 = vtanh.pop %v1405
          %v1805 = vtanh.pop %v1406
          %v1806 = vtanh.pop %v1407
          %v1807 = vtanh.pop %v1408
          %v1808 = vtanh.pop %v1409
          %v1809 = vtanh.pop %v1410
          %1810 = vst.msk [vmem:[%s302] sm:$0xff] %vm1208, %v1746
          %1811 = vst.msk [vmem:[%s302 + $0x8] sm:$0xff] %vm1208, %v1747
          %1812 = vst.msk [vmem:[%s302 + $0x10] sm:$0xff] %vm1208, %v1748
          %1813 = vst.msk [vmem:[%s302 + $0x18] sm:$0xff] %vm1208, %v1749
          %1814 = vst.msk [vmem:[%s302 + $0x20] sm:$0xff] %vm1208, %v1750
          %1815 = vst.msk [vmem:[%s302 + $0x28] sm:$0xff] %vm1208, %v1751
          %1816 = vst.msk [vmem:[%s302 + $0x30] sm:$0xff] %vm1208, %v1752
          %1817 = vst.msk [vmem:[%s302 + $0x38] sm:$0xff] %vm1208, %v1753
          %1818 = vst.msk [vmem:[%s302 + $0x40] sm:$0xff] %vm1208, %v1754
          %1819 = vst.msk [vmem:[%s302 + $0x48] sm:$0xff] %vm1208, %v1755
          %1820 = vst.msk [vmem:[%s302 + $0x50] sm:$0xff] %vm1208, %v1756
          %1821 = vst.msk [vmem:[%s302 + $0x58] sm:$0xff] %vm1208, %v1757
          %1822 = vst.msk [vmem:[%s302 + $0x60] sm:$0xff] %vm1208, %v1758
          %1823 = vst.msk [vmem:[%s302 + $0x68] sm:$0xff] %vm1208, %v1759
          %1824 = vst.msk [vmem:[%s302 + $0x70] sm:$0xff] %vm1208, %v1760
          %1825 = vst.msk [vmem:[%s302 + $0x78] sm:$0xff] %vm1208, %v1761
          %1826 = vst.msk [vmem:[%s302 + $0x80] sm:$0xff] %vm1208, %v1762
          %1827 = vst.msk [vmem:[%s302 + $0x88] sm:$0xff] %vm1208, %v1763
          %1828 = vst.msk [vmem:[%s302 + $0x90] sm:$0xff] %vm1208, %v1764
          %1829 = vst.msk [vmem:[%s302 + $0x98] sm:$0xff] %vm1208, %v1765
          %1830 = vst.msk [vmem:[%s302 + $0xa0] sm:$0xff] %vm1208, %v1766
          %1831 = vst.msk [vmem:[%s302 + $0xa8] sm:$0xff] %vm1208, %v1767
          %1832 = vst.msk [vmem:[%s302 + $0xb0] sm:$0xff] %vm1208, %v1768
          %1833 = vst.msk [vmem:[%s302 + $0xb8] sm:$0xff] %vm1208, %v1769
          %1834 = vst.msk [vmem:[%s302 + $0xc0] sm:$0xff] %vm1208, %v1770
          %1835 = vst.msk [vmem:[%s302 + $0xc8] sm:$0xff] %vm1208, %v1771
          %1836 = vst.msk [vmem:[%s302 + $0xd0] sm:$0xff] %vm1208, %v1772
          %1837 = vst.msk [vmem:[%s302 + $0xd8] sm:$0xff] %vm1208, %v1773
          %1838 = vst.msk [vmem:[%s302 + $0xe0] sm:$0xff] %vm1208, %v1774
          %1839 = vst.msk [vmem:[%s302 + $0xe8] sm:$0xff] %vm1208, %v1775
          %1840 = vst.msk [vmem:[%s302 + $0xf0] sm:$0xff] %vm1208, %v1776
          %1841 = vst.msk [vmem:[%s302 + $0xf8] sm:$0xff] %vm1208, %v1777
          %1842 = vst.msk [vmem:[%s302 + $0x100] sm:$0xff] %vm1208, %v1778
          %1843 = vst.msk [vmem:[%s302 + $0x108] sm:$0xff] %vm1208, %v1779
          %1844 = vst.msk [vmem:[%s302 + $0x110] sm:$0xff] %vm1208, %v1780
          %1845 = vst.msk [vmem:[%s302 + $0x118] sm:$0xff] %vm1208, %v1781
          %1846 = vst.msk [vmem:[%s302 + $0x120] sm:$0xff] %vm1208, %v1782
          %1847 = vst.msk [vmem:[%s302 + $0x128] sm:$0xff] %vm1208, %v1783
          %1848 = vst.msk [vmem:[%s302 + $0x130] sm:$0xff] %vm1208, %v1784
          %1849 = vst.msk [vmem:[%s302 + $0x138] sm:$0xff] %vm1208, %v1785
          %1850 = vst.msk [vmem:[%s302 + $0x140] sm:$0xff] %vm1208, %v1786
          %1851 = vst.msk [vmem:[%s302 + $0x148] sm:$0xff] %vm1208, %v1787
          %1852 = vst.msk [vmem:[%s302 + $0x150] sm:$0xff] %vm1208, %v1788
          %1853 = vst.msk [vmem:[%s302 + $0x158] sm:$0xff] %vm1208, %v1789
          %1854 = vst.msk [vmem:[%s302 + $0x160] sm:$0xff] %vm1208, %v1790
          %1855 = vst.msk [vmem:[%s302 + $0x168] sm:$0xff] %vm1208, %v1791
          %1856 = vst.msk [vmem:[%s302 + $0x170] sm:$0xff] %vm1208, %v1792
          %1857 = vst.msk [vmem:[%s302 + $0x178] sm:$0xff] %vm1208, %v1793
          %1858 = vst.msk [vmem:[%s302 + $0x180] sm:$0xff] %vm1208, %v1794
          %1859 = vst.msk [vmem:[%s302 + $0x188] sm:$0xff] %vm1208, %v1795
          %1860 = vst.msk [vmem:[%s302 + $0x190] sm:$0xff] %vm1208, %v1796
          %1861 = vst.msk [vmem:[%s302 + $0x198] sm:$0xff] %vm1208, %v1797
          %1862 = vst.msk [vmem:[%s302 + $0x1a0] sm:$0xff] %vm1208, %v1798
          %1863 = vst.msk [vmem:[%s302 + $0x1a8] sm:$0xff] %vm1208, %v1799
          %1864 = vst.msk [vmem:[%s302 + $0x1b0] sm:$0xff] %vm1208, %v1800
          %1865 = vst.msk [vmem:[%s302 + $0x1b8] sm:$0xff] %vm1208, %v1801
          %1866 = vst.msk [vmem:[%s302 + $0x1c0] sm:$0xff] %vm1208, %v1802
          %1867 = vst.msk [vmem:[%s302 + $0x1c8] sm:$0xff] %vm1208, %v1803
          %1868 = vst.msk [vmem:[%s302 + $0x1d0] sm:$0xff] %vm1208, %v1804
          %1869 = vst.msk [vmem:[%s302 + $0x1d8] sm:$0xff] %vm1208, %v1805
          %1870 = vst.msk [vmem:[%s302 + $0x1e0] sm:$0xff] %vm1208, %v1806
          %1871 = vst.msk [vmem:[%s302 + $0x1e8] sm:$0xff] %vm1208, %v1807
          %1872 = vst.msk [vmem:[%s302 + $0x1f0] sm:$0xff] %vm1208, %v1808
          %1873 = vst.msk [vmem:[%s302 + $0x1f8] sm:$0xff] %vm1208, %v1809
        $region40: #{_lambda_.33} parent=31 // pred_fallthru
          _
        %s1874 = smul.u32 64, %s25
        %p1875 = scmp.lt.s32.totalorder %s24, 3
        %s1876 = scalar_select %p1875, %s24, 3
        %p1877 = scmp.lt.s32.totalorder %s1874, 63
        %s1878 = scalar_select %p1877, %s1874, 63
        %s1879 = smul.addr %s1876, 64
        %s1880 = sadd.s32 %s1878, %s1879
        %s1881 = smul.addr %s1880, 8
        %s1882 = scalar_lea.vmem %s3, %s1881
        %s1883 = sand.u32 %s155, 1
        %s1884 = scalar_lea.sflag [#allocation4], %s1883
        %s1885 = sand.u32 %s155, 1
        %s1886 = smul.addr %s1885, 8
        %s1887 = scalar_lea.vmem [#allocation3], %s1886
        // Predicated region
        $region41: #{_lambda_.33} parent=31 // pred_check
          %p1888 = pneg %p137
        $region42: #{_lambda_.33} parent=31 // pred_check_branch
          %1890 = sbr.rel (%p1888) target = $region44
        $region43: #{_lambda_.33} parent=31 // pred_region
          %s1891 = smul.u32 64, %s25
        $region44: #{_lambda_.33} parent=31 // pred_fallthru
          _
        // Predicated region
        $region45: #{_lambda_.33} parent=31 // pred_check
          %p1892 = pneg %p165
        $region46: #{_lambda_.33} parent=31 // pred_check_branch
          %1894 = sbr.rel (%p1892) target = $region48
        $region47: #{_lambda_.33} parent=31 // pred_region
          %s1896 = ssub.s32 128, 128
          %1897 = vsyncadd %s1884, %s1896
          %s1898 = sadd.s32 %s25, %s24
          %s1899 = smul.addr %s1898, 128
          %s1900 = scalar_lea.hbm %s4, %s1899
          %s1902 = sshll.u32 %s1887, 4
          %s1903 = int_to_ptr.vmem [resolvable:$true] %s1902
          %1905 = dma.vmem_to_hbm [thread:$0]  %s1903, 128, %s1900, %s1884
        $region48: #{_lambda_.33} parent=31 // pred_fallthru
          _
      $region32: #{_lambda_.33} parent=5 // pred_fallthru
        _
      %p1906 = scmp.le.s32.totalorder 2, %s14
      // Predicated region
      $region49: #{_lambda_.33} parent=5 // pred_check
        %p1907 = pneg %p1906
      $region50: #{_lambda_.33} parent=5 // pred_check_branch
        %1909 = sbr.rel (%p1907) target = $region52
      $region51: #{_lambda_.33} parent=5 // pred_region
        %s1910 = ssub.s32 %s14, 2
        // Predicated region
        $region53: #{_lambda_.33} parent=51 // pred_check
          %p1911 = pneg %p143
        $region54: #{_lambda_.33} parent=51 // pred_check_branch
          %1913 = sbr.rel (%p1911) target = $region56
        $region55: #{_lambda_.33} parent=51 // pred_region
          %s1914 = smul.u32 64, %s28
          %p1915 = scmp.lt.s32.totalorder %s27, 3
          %s1916 = scalar_select %p1915, %s27, 3
          %p1917 = scmp.lt.s32.totalorder %s1914, 63
          %s1918 = scalar_select %p1917, %s1914, 63
          %s1919 = smul.addr %s1916, 64
          %s1920 = sadd.s32 %s1918, %s1919
          %s1921 = smul.addr %s1920, 8
          %s1922 = scalar_lea.vmem %s3, %s1921
        $region56: #{_lambda_.33} parent=51 // pred_fallthru
          _
        // Predicated region
        $region57: #{_lambda_.33} parent=51 // pred_check
          %p1923 = pneg %p171
        $region58: #{_lambda_.33} parent=51 // pred_check_branch
          %1925 = sbr.rel (%p1923) target = $region60
        $region59: #{_lambda_.33} parent=51 // pred_region
          %s1926 = sand.u32 %s156, 1
          %s1927 = scalar_lea.sflag [#allocation4], %s1926
          %s1928 = sand.u32 %s156, 1
          %s1929 = smul.addr %s1928, 8
          %s1930 = scalar_lea.vmem [#allocation3], %s1929
          %1931 = dma.done %s1927, 128
        $region60: #{_lambda_.33} parent=51 // pred_fallthru
          _
      $region52: #{_lambda_.33} parent=5 // pred_fallthru
        _
    $region6: #{_lambda_.33} parent=1 // loop_footer
      %s18 = sadd.s32 1, %s14
    $region7: #{_lambda_.33} parent=1 // loop_footer_branch
      %13 = sbr.rel target = $region3
    $region8: #{_lambda_.33} parent=1 // loop_exit
      _
    %1932 = vsyncpa [#allocation4], 1
    %s1933 = scalar_lea.sflag [#allocation4], 1
    %1934 = vsyncpa %s1933, 1

</llo_original>
